<compile_context>
chip_gen: v7x
topology: tpu7x:2x2x1
jax: 0.10.0
libtpu: 0.0.40
codegen_flags: <defaults>
</compile_context>

<pallas_src>
import math

import jax
import jax.numpy as jnp
from jax.experimental import pallas as pl
from jax.experimental.pallas import tpu as pltpu


# ----------------------------------------------------------------------------
# Kernel factory
# ----------------------------------------------------------------------------
def _make_attention_kernel(batch_block, seq_q, seq_k, hidden, num_heads, *,
                           with_attn, attn_flat, head_split, mxu_dtype, eps=1e-5):
    Bt, Sq, Sk, H, nh = batch_block, seq_q, seq_k, hidden, num_heads
    d = H // nh
    scale = 1.0 / math.sqrt(d)

    def to_heads(x2, S):
        # (Bt*S, H) -> head-major (nh*Bt, S, d)  (torch's permute(2,0,1,3) layout).
        if head_split == "reshape":
            x4 = x2.reshape(Bt, S, nh, d)            # split the hidden (lane) dim once
            x4 = jnp.transpose(x4, (2, 0, 1, 3))     # head to front, minor dim untouched
            return x4.reshape(nh * Bt, S, d)         # leading merge (free)
        # Fallback for Mosaic versions without general minor-dim reshapes.
        x3 = x2.reshape(Bt, S, H)
        parts = [x3[:, :, i * d:(i + 1) * d] for i in range(nh)]
        return jnp.stack(parts, axis=0).reshape(nh * Bt, S, d)

    def merge_heads(ctx):
        # (nh*Bt, Sq, d) -> (Bt*Sq, H) with head-adjacent hidden ordering (torch cat order).
        c4 = ctx.reshape(nh, Bt, Sq, d)              # leading split (free)
        if head_split == "reshape":
            return jnp.transpose(c4, (1, 2, 0, 3)).reshape(Bt * Sq, H)
        merged = jnp.concatenate([c4[i] for i in range(nh)], axis=-1)   # (Bt, Sq, H)
        return merged.reshape(Bt * Sq, H)

    def body(k_ref, v_ref, q_ref, wk_ref, wv_ref, wq_ref, wf_ref, bf_ref,
             gamma_ref, beta_ref, out_ref, attn_ref):
        mx = lambda x: x.astype(mxu_dtype)           # MXU operand dtype (f32 accumulate)

        # Flatten (Bt, S, H) blocks to 2-D row slabs: each projection is ONE MXU matmul
        # over Bt*S rows (amortizes per-step overhead), leading-dims-only reshape.
        k2 = k_ref[...].reshape(Bt * Sk, H)
        v2 = v_ref[...].reshape(Bt * Sk, H)
        q2 = q_ref[...].reshape(Bt * Sq, H)
        residual = q2.astype(jnp.float32)

        # Bias-free Q/K/V projections (weights stored [in, out], already in mxu_dtype).
        kp = jnp.dot(mx(k2), wk_ref[...], preferred_element_type=jnp.float32)
        vp = jnp.dot(mx(v2), wv_ref[...], preferred_element_type=jnp.float32)
        # Fold the 1/sqrt(d) score scale into q once (cheaper than scaling every score).
        qp = jnp.dot(mx(q2), wq_ref[...], preferred_element_type=jnp.float32) * scale

        qh = to_heads(qp, Sq)
        kh = to_heads(kp, Sk)
        vh = to_heads(vp, Sk)

        # Scores: contract the last dims directly (lhs orientation is MXU-native; the rhs
        # orientation is handled inside dot_general -- an explicit pre-transpose of K
        # would do the same vxpose work, just as a separate op).
        s = jnp.einsum('gqd,gkd->gqk', mx(qh), mx(kh),
                       preferred_element_type=jnp.float32)
        s = s - jnp.max(s, axis=-1, keepdims=True)
        e = jnp.exp(s)
        denom = jnp.sum(e, axis=-1, keepdims=True)
        if with_attn:
            p = e / denom                               # exact: returned rows sum to 1
        else:
            p = e * pl.reciprocal(denom, approx=True)   # EUP slot; no attn output path
        # TODO(synk): attn_dropout / residual_dropout are identity in eval mode.

        if with_attn:
            if attn_flat:
                # Lane-flattened contiguous slab (avoids sub-128-lane masked stores).
                attn_ref[...] = p.reshape(nh, Bt, Sq * Sk).astype(attn_ref.dtype)
            else:
                # Head-major (nh, Bt, Sq, Sk) = torch's bmm batch layout.
                attn_ref[...] = p.reshape(nh, Bt, Sq, Sk).astype(attn_ref.dtype)

        ctx = jnp.einsum('gqk,gkd->gqd', mx(p), mx(vh),
                         preferred_element_type=jnp.float32)

        merged = merge_heads(ctx)                       # (Bt*Sq, H), f32

        # final_linear(cat([residual, heads], -1)) without the 2H concatenate:
        #   out = residual @ Wf[:H] + merged @ Wf[H:]   (two K=H MXU matmuls)
        res_part = jnp.dot(mx(residual), wf_ref[:H, :],
                           preferred_element_type=jnp.float32)
        head_part = jnp.dot(mx(merged), wf_ref[H:, :],
                            preferred_element_type=jnp.float32)
        final = res_part + head_part + bf_ref[...].astype(jnp.float32) + residual

        # LayerNorm over hidden (biased variance, eps=1e-5); f32 elementwise math.
        mean = jnp.mean(final, axis=-1, keepdims=True)
        var = jnp.mean((final - mean) ** 2, axis=-1, keepdims=True)
        normed = (final - mean) * jax.lax.rsqrt(var + eps)
        y = normed * gamma_ref[...] + beta_ref[...]
        out_ref[...] = y.reshape(Bt, Sq, H).astype(out_ref.dtype)

    if with_attn:
        return body

    def body_no_attn(*refs):
        body(*refs, None)

    return body_no_attn


# ----------------------------------------------------------------------------
# Wrapper
# ----------------------------------------------------------------------------
def attention_forward(key, value, query, params, *, batch_block=None,
                      return_attn=True, mxu_dtype=jnp.bfloat16,
                      attn_dtype=jnp.float32):
    B, Sk, H = key.shape
    Sq = query.shape[1]
    nh = params["num_heads"]
    assert H % nh == 0

    act_itemsize = jnp.dtype(query.dtype).itemsize
    mxu_itemsize = jnp.dtype(mxu_dtype).itemsize
    attn_itemsize = jnp.dtype(attn_dtype).itemsize

    # Batch-block heuristic: prefer >= 4 grid steps (>= 2 per TensorCore on v7x so the
    # input DMA pipeline stays overlapped), with a generous ~12 MiB per-step activation
    # budget (v5e/v6e keep climbing the HBM roofline with larger blocks).
    if batch_block is None:
        target_steps = 4 if B >= 4 else min(B, 2)
        cands = [dd for dd in range(1, B + 1) if B % dd == 0 and B // dd >= target_steps]
        batch_block = max(cands) if cands else B
    per_elem = (2 * Sk + 2 * Sq) * H * act_itemsize
    if return_attn:                       # attn bytes only count when they are written
        per_elem += nh * Sq * Sk * attn_itemsize
    cap = max(1, (12 * 1024 * 1024) // max(per_elem, 1))
    batch_block = max(1, min(batch_block, cap, B))
    while B % batch_block:                # TODO(synk): prime B degrades to 1 (correct, slow)
        batch_block -= 1
    grid = (B // batch_block,)

    # Weights cast once to the MXU operand dtype (halves resident weight VMEM for bf16).
    wk = params["wk"].astype(mxu_dtype)
    wv = params["wv"].astype(mxu_dtype)
    wq = params["wq"].astype(mxu_dtype)
    wf = params["wf"].astype(mxu_dtype)
    bf, gamma, beta = params["bf"], params["gamma"], params["beta"]

    # Per-generation VMEM budget: physical capacity minus headroom for Mosaic internal
    # scratch / semaphores (<= ~52 MiB on v7x's 64 MiB, up to ~116 MiB on v5e/v6e).
    try:
        phys_vmem = int(pltpu.get_tpu_info().vmem_capacity_bytes)
    except Exception:
        phys_vmem = 64 * 1024 * 1024      # conservative (v7x per-core) fallback

    def run(head_split, single_buffer):
        attn_flat = (return_attn and head_split == "reshape" and Sk < 128
                     and (batch_block % 8 == 0 or batch_block == B))

        kernel = _make_attention_kernel(
            batch_block, Sq, Sk, H, nh,
            with_attn=return_attn, attn_flat=attn_flat,
            head_split=head_split, mxu_dtype=mxu_dtype)

        def wspec(shape):
            # Grid-invariant blocks: single-buffer them (no useless double-buffer copy).
            zero_map = lambda b, _n=len(shape): (0,) * _n
            if single_buffer and hasattr(pl, "Buffered"):
                return pl.BlockSpec(shape, zero_map, pipeline_mode=pl.Buffered(1))
            return pl.BlockSpec(shape, zero_map)

        in_specs = [
            pl.BlockSpec((batch_block, Sk, H), lambda b: (b, 0, 0)),   # key
            pl.BlockSpec((batch_block, Sk, H), lambda b: (b, 0, 0)),   # value
            pl.BlockSpec((batch_block, Sq, H), lambda b: (b, 0, 0)),   # query
            wspec((H, H)),                                             # W_k
            wspec((H, H)),                                             # W_v
            wspec((H, H)),                                             # W_q
            wspec((2 * H, H)),                                         # W_final
            wspec((1, H)),                                             # b_final
            wspec((1, H)),                                             # ln gamma
            wspec((1, H)),                                             # ln beta
        ]
        out_spec_y = pl.BlockSpec((batch_block, Sq, H), lambda b: (b, 0, 0))

        if return_attn:
            if attn_flat:
                attn_shape = (nh, B, Sq * Sk)
                attn_spec = pl.BlockSpec((nh, batch_block, Sq * Sk), lambda b: (0, b, 0))
            else:
                attn_shape = (nh, B, Sq, Sk)
                attn_spec = pl.BlockSpec((nh, batch_block, Sq, Sk),
                                         lambda b: (0, b, 0, 0))
            out_shape = (jax.ShapeDtypeStruct((B, Sq, H), query.dtype),
                         jax.ShapeDtypeStruct(attn_shape, attn_dtype))
            out_specs = [out_spec_y, attn_spec]
        else:
            out_shape = jax.ShapeDtypeStruct((B, Sq, H), query.dtype)
            out_specs = out_spec_y

        weight_bytes = 5 * H * H * mxu_itemsize + 3 * H * 4
        act_block = (2 * Sk + 2 * Sq) * H * batch_block * act_itemsize
        attn_block = nh * batch_block * Sq * Sk * attn_itemsize if return_attn else 0
        want = (weight_bytes * (1 if single_buffer else 2)
                + 2 * (act_block + attn_block) + (8 << 20))
        vmem_limit = int(max(16 << 20,
                             min(phys_vmem - (12 << 20), max(32 << 20, want))))

        outs = pl.pallas_call(
            kernel,
            out_shape=out_shape,
            grid_spec=pltpu.PrefetchScalarGridSpec(
                num_scalar_prefetch=0,
                grid=grid,
                in_specs=in_specs,
                out_specs=out_specs,
            ),
            compiler_params=pltpu.CompilerParams(
                dimension_semantics=("parallel",),
                vmem_limit_bytes=vmem_limit,
            ),
        )(key, value, query, wk, wv, wq, wf, bf, gamma, beta)
        return outs, attn_flat

    # Attempt the fully optimized variant first; degrade gracefully if a given Mosaic
    # version rejects minor-dim reshapes or single-buffered (Buffered(1)) BlockSpecs.
    last_err = None
    for head_split, single_buffer in (("reshape", True), ("slice", True),
                                      ("reshape", False), ("slice", False)):
        try:
            outs, attn_flat = run(head_split, single_buffer)
            break
        except Exception as err:          # lowering/compile failure -> try next variant
            last_err = err
    else:
        raise last_err

    if return_attn:
        out, attn = outs
        if attn_flat:
            attn = attn.reshape(nh, B, Sq, Sk)
        # (nh, B, Sq, Sk) -> (nh*B, Sq, Sk): torch bmm batch layout (free reshape).
        return out, attn.reshape(nh * B, Sq, Sk)
    return outs, None


# ----------------------------------------------------------------------------
# Deterministic parameter init (xavier_uniform, gain=1 for 'linear')
# ----------------------------------------------------------------------------
def _xavier_uniform(key, fan_in, fan_out):
    bound = math.sqrt(6.0 / (fan_in + fan_out))
    # Stored as [in, out] so the kernel does x @ W.
    return jax.random.uniform(key, (fan_in, fan_out), jnp.float32, -bound, bound)


def init_params(rng, hidden_dim, num_heads):
    k = jax.random.split(rng, 5)
    bound_b = 1.0 / math.sqrt(2 * hidden_dim)
    return {
        "num_heads": num_heads,
        "wk": _xavier_uniform(k[0], hidden_dim, hidden_dim),
        "wv": _xavier_uniform(k[1], hidden_dim, hidden_dim),
        "wq": _xavier_uniform(k[2], hidden_dim, hidden_dim),
        "wf": _xavier_uniform(k[3], 2 * hidden_dim, hidden_dim),
        "bf": jax.random.uniform(k[4], (1, hidden_dim), jnp.float32, -bound_b, bound_b),
        "gamma": jnp.ones((1, hidden_dim), jnp.float32),
        "beta": jnp.zeros((1, hidden_dim), jnp.float32),
    }


# ----------------------------------------------------------------------------
# Pure-JAX reference (mirrors the PyTorch forward, eval mode)
# ----------------------------------------------------------------------------
def reference_forward(key, value, query, params):
    B, Sk, H = key.shape
    Sq = query.shape[1]
    h = params["num_heads"]
    d = H // h
    residual = query
    kp = key @ params["wk"]
    vp = value @ params["wv"]
    qp = query @ params["wq"]

    def split(x, S):
        return x.reshape(B, S, h, d).transpose(2, 0, 1, 3).reshape(h * B, S, d)

    kp, vp, qp = split(kp, Sk), split(vp, Sk), split(qp, Sq)
    scores = jnp.einsum("bqd,bkd->bqk", qp, kp) / math.sqrt(d)
    attn = jax.nn.softmax(scores, axis=-1)
    res = jnp.einsum("bqk,bkd->bqd", attn, vp)
    res = res.reshape(h, B, Sq, d).transpose(1, 2, 0, 3).reshape(B, Sq, H)
    res = jnp.concatenate([residual, res], axis=-1)
    res = res @ params["wf"] + params["bf"][0]
    res = res + residual
    mean = jnp.mean(res, axis=-1, keepdims=True)
    var = jnp.mean((res - mean) ** 2, axis=-1, keepdims=True)
    res = (res - mean) / jnp.sqrt(var + 1e-5)
    res = res * params["gamma"][0] + params["beta"][0]
    return res, attn


if __name__ == "__main__":
    B, S, H, NUM_HEADS = 2, 8, 32, 4

    rng = jax.random.PRNGKey(0)
    r_k, r_v, r_q, r_p = jax.random.split(rng, 4)
    key_in = jax.random.normal(r_k, (B, S, H), jnp.float32)
    value_in = jax.random.normal(r_v, (B, S, H), jnp.float32)
    query_in = jax.random.normal(r_q, (B, S, H), jnp.float32)
    params = init_params(r_p, H, NUM_HEADS)

    ref_out, ref_attn = reference_forward(key_in, value_in, query_in, params)

    # 1) exact-dtype path (f32 MXU operands, exact softmax): matches the torch forward.
    out_f32, attn_f32 = attention_forward(key_in, value_in, query_in, params,
                                          mxu_dtype=jnp.float32)
    out_f32 = jax.block_until_ready(out_f32)
    assert out_f32.shape == (B, S, H) and attn_f32.shape == (NUM_HEADS * B, S, S)
    assert jnp.allclose(out_f32, ref_out, atol=1e-4), "f32 output mismatch vs reference"
    assert jnp.allclose(attn_f32, ref_attn, atol=1e-4), "f32 attn mismatch vs reference"

    # 2) default perf path (bf16 MXU operands, f32 accumulation).
    out_bf, attn_bf = attention_forward(key_in, value_in, query_in, params)
    out_bf = jax.block_until_ready(out_bf)
    assert jnp.allclose(out_bf, ref_out, atol=1.5e-1), "bf16 output mismatch vs reference"
    assert jnp.allclose(attn_bf, ref_attn, atol=5e-2), "bf16 attn mismatch vs reference"

    # 3) attn-free path (skips the attn HBM write, approx EUP softmax reciprocal).
    out_na, _ = attention_forward(key_in, value_in, query_in, params, return_attn=False)
    out_na = jax.block_until_ready(out_na)
    assert jnp.allclose(out_na, out_bf, atol=5e-3), "attn-skipping variant mismatch"

    # 4) larger batch: exercises grid batching and the lane-flattened attn store path.
    B2 = 8
    k2_in = jax.random.normal(jax.random.PRNGKey(1), (B2, S, H), jnp.float32)
    v2_in = jax.random.normal(jax.random.PRNGKey(2), (B2, S, H), jnp.float32)
    q2_in = jax.random.normal(jax.random.PRNGKey(3), (B2, S, H), jnp.float32)
    ref2_out, ref2_attn = reference_forward(k2_in, v2_in, q2_in, params)
    out2, attn2 = attention_forward(k2_in, v2_in, q2_in, params, batch_block=8)
    out2 = jax.block_until_ready(out2)
    assert out2.shape == (B2, S, H) and attn2.shape == (NUM_HEADS * B2, S, S)
    assert jnp.allclose(out2, ref2_out, atol=1.5e-1), "batched output mismatch"
    assert jnp.allclose(attn2, ref2_attn, atol=5e-2), "batched attn mismatch"

    print("KERNEL_OK")
</pallas_src>

<mosaic_0001>
module attributes {stable_mosaic.version = 11 : i64} {
  func.func @body(%arg0: i32, %arg1: memref<1x8x32xf32, #tpu.memory_space<vmem>>, %arg2: memref<1x8x32xf32, #tpu.memory_space<vmem>>, %arg3: memref<1x8x32xf32, #tpu.memory_space<vmem>>, %arg4: memref<32x32xf32, #tpu.memory_space<vmem>>, %arg5: memref<32x32xf32, #tpu.memory_space<vmem>>, %arg6: memref<32x32xf32, #tpu.memory_space<vmem>>, %arg7: memref<64x32xf32, #tpu.memory_space<vmem>>, %arg8: memref<1x32xf32, #tpu.memory_space<vmem>>, %arg9: memref<1x32xf32, #tpu.memory_space<vmem>>, %arg10: memref<1x32xf32, #tpu.memory_space<vmem>>, %arg11: memref<1x8x32xf32, #tpu.memory_space<vmem>>, %arg12: memref<4x1x8x8xf32, #tpu.memory_space<vmem>>) attributes {dimension_semantics = [#tpu.dimension_semantics<parallel>], iteration_bounds = array<i64: 2>, scalar_prefetch = 0 : i64, scratch_operands = 0 : i64, tpu.core_type = #tpu.core_type<tc>, window_params = [{transform_indices = @transform_0, window_bounds = array<i64: 1, 8, 32>}, {transform_indices = @transform_1, window_bounds = array<i64: 1, 8, 32>}, {transform_indices = @transform_2, window_bounds = array<i64: 1, 8, 32>}, {pipeline_mode = #tpu.pipeline_mode<synchronous>, transform_indices = @transform_3, window_bounds = array<i64: 32, 32>}, {pipeline_mode = #tpu.pipeline_mode<synchronous>, transform_indices = @transform_4, window_bounds = array<i64: 32, 32>}, {pipeline_mode = #tpu.pipeline_mode<synchronous>, transform_indices = @transform_5, window_bounds = array<i64: 32, 32>}, {pipeline_mode = #tpu.pipeline_mode<synchronous>, transform_indices = @transform_6, window_bounds = array<i64: 64, 32>}, {pipeline_mode = #tpu.pipeline_mode<synchronous>, transform_indices = @transform_7, window_bounds = array<i64: 1, 32>}, {pipeline_mode = #tpu.pipeline_mode<synchronous>, transform_indices = @transform_8, window_bounds = array<i64: 1, 32>}, {pipeline_mode = #tpu.pipeline_mode<synchronous>, transform_indices = @transform_9, window_bounds = array<i64: 1, 32>}, {transform_indices = @transform_10, window_bounds = array<i64: 1, 8, 32>}, {transform_indices = @transform_11, window_bounds = array<i64: 4, 1, 8, 8>}]} {
    %c0 = arith.constant 0 : index
    %c0_0 = arith.constant 0 : index
    %c0_1 = arith.constant 0 : index
    %0 = vector.load %arg1[%c0, %c0_0, %c0_1] : memref<1x8x32xf32, #tpu.memory_space<vmem>>, vector<1x8x32xf32>
    %1 = vector.shape_cast %0 : vector<1x8x32xf32> to vector<8x32xf32>
    %c0_2 = arith.constant 0 : index
    %c0_3 = arith.constant 0 : index
    %c0_4 = arith.constant 0 : index
    %2 = vector.load %arg2[%c0_2, %c0_3, %c0_4] : memref<1x8x32xf32, #tpu.memory_space<vmem>>, vector<1x8x32xf32>
    %3 = vector.shape_cast %2 : vector<1x8x32xf32> to vector<8x32xf32>
    %c0_5 = arith.constant 0 : index
    %c0_6 = arith.constant 0 : index
    %c0_7 = arith.constant 0 : index
    %4 = vector.load %arg3[%c0_5, %c0_6, %c0_7] : memref<1x8x32xf32, #tpu.memory_space<vmem>>, vector<1x8x32xf32>
    %5 = vector.shape_cast %4 : vector<1x8x32xf32> to vector<8x32xf32>
    %c0_8 = arith.constant 0 : index
    %c0_9 = arith.constant 0 : index
    %6 = vector.load %arg4[%c0_8, %c0_9] : memref<32x32xf32, #tpu.memory_space<vmem>>, vector<32x32xf32>
    %cst = arith.constant dense<0.000000e+00> : vector<8x32xf32>
    %7 = tpu.matmul %1, %6, %cst {dimension_numbers = #tpu.dot_dimension_numbers<[1], [0], [0], [1], [0, 0, 1, 1], [], []>} : vector<8x32xf32>, vector<32x32xf32>, vector<8x32xf32> -> vector<8x32xf32>
    %c0_10 = arith.constant 0 : index
    %c0_11 = arith.constant 0 : index
    %8 = vector.load %arg5[%c0_10, %c0_11] : memref<32x32xf32, #tpu.memory_space<vmem>>, vector<32x32xf32>
    %cst_12 = arith.constant dense<0.000000e+00> : vector<8x32xf32>
    %9 = tpu.matmul %3, %8, %cst_12 {dimension_numbers = #tpu.dot_dimension_numbers<[1], [0], [0], [1], [0, 0, 1, 1], [], []>} : vector<8x32xf32>, vector<32x32xf32>, vector<8x32xf32> -> vector<8x32xf32>
    %c0_13 = arith.constant 0 : index
    %c0_14 = arith.constant 0 : index
    %10 = vector.load %arg6[%c0_13, %c0_14] : memref<32x32xf32, #tpu.memory_space<vmem>>, vector<32x32xf32>
    %cst_15 = arith.constant dense<0.000000e+00> : vector<8x32xf32>
    %11 = tpu.matmul %5, %10, %cst_15 {dimension_numbers = #tpu.dot_dimension_numbers<[1], [0], [0], [1], [0, 0, 1, 1], [], []>} : vector<8x32xf32>, vector<32x32xf32>, vector<8x32xf32> -> vector<8x32xf32>
    %cst_16 = arith.constant 0.353553385 : f32
    %12 = vector.broadcast %cst_16 : f32 to vector<8x32xf32>
    %13 = arith.mulf %11, %12 : vector<8x32xf32>
    %14 = vector.shape_cast %13 : vector<8x32xf32> to vector<1x8x4x8xf32>
    %15 = tpu.transpose %14, [2, 0, 1, 3] : vector<1x8x4x8xf32> -> vector<4x1x8x8xf32>
    %16 = vector.shape_cast %15 : vector<4x1x8x8xf32> to vector<4x8x8xf32>
    %17 = vector.shape_cast %7 : vector<8x32xf32> to vector<1x8x4x8xf32>
    %18 = tpu.transpose %17, [2, 0, 1, 3] : vector<1x8x4x8xf32> -> vector<4x1x8x8xf32>
    %19 = vector.shape_cast %18 : vector<4x1x8x8xf32> to vector<4x8x8xf32>
    %20 = vector.shape_cast %9 : vector<8x32xf32> to vector<1x8x4x8xf32>
    %21 = tpu.transpose %20, [2, 0, 1, 3] : vector<1x8x4x8xf32> -> vector<4x1x8x8xf32>
    %22 = vector.shape_cast %21 : vector<4x1x8x8xf32> to vector<4x8x8xf32>
    "tpu.trace_start"() <{level = 10 : i32, message = "gqd,gkd->gqk"}> : () -> ()
    %cst_17 = arith.constant dense<0.000000e+00> : vector<4x8x8xf32>
    %23 = tpu.matmul %16, %19, %cst_17 {dimension_numbers = #tpu.dot_dimension_numbers<[2], [2], [1], [1], [0, 0, 0, 1, 1, 1], [0], [0]>} : vector<4x8x8xf32>, vector<4x8x8xf32>, vector<4x8x8xf32> -> vector<4x8x8xf32>
    "tpu.trace_stop"() : () -> ()
    %cst_18 = arith.constant dense<0xFF800000> : vector<4x8xf32>
    %24 = vector.multi_reduction <maximumf>, %23, %cst_18 [2] : vector<4x8x8xf32> to vector<4x8xf32>
    %25 = vector.shape_cast %24 : vector<4x8xf32> to vector<4x8x1xf32>
    %26 = vector.broadcast %25 : vector<4x8x1xf32> to vector<4x8x8xf32>
    %27 = arith.subf %23, %26 : vector<4x8x8xf32>
    %28 = math.exp %27 : vector<4x8x8xf32>
    %cst_19 = arith.constant dense<0.000000e+00> : vector<4x8xf32>
    %29 = vector.multi_reduction <add>, %28, %cst_19 [2] : vector<4x8x8xf32> to vector<4x8xf32>
    %30 = vector.shape_cast %29 : vector<4x8xf32> to vector<4x8x1xf32>
    %31 = vector.broadcast %30 : vector<4x8x1xf32> to vector<4x8x8xf32>
    %32 = arith.divf %28, %31 : vector<4x8x8xf32>
    %33 = vector.shape_cast %32 : vector<4x8x8xf32> to vector<4x1x8x8xf32>
    %c0_20 = arith.constant 0 : index
    %c0_21 = arith.constant 0 : index
    %c0_22 = arith.constant 0 : index
    %c0_23 = arith.constant 0 : index
    %34 = vector.load %arg12[%c0_20, %c0_21, %c0_22, %c0_23] : memref<4x1x8x8xf32, #tpu.memory_space<vmem>>, vector<4x1x8x8xf32>
    tpu.vector_store %arg12[%c0_20, %c0_21, %c0_22, %c0_23], %33 {strides = array<i32>} : memref<4x1x8x8xf32, #tpu.memory_space<vmem>>, vector<4x1x8x8xf32>,
    "tpu.trace_start"() <{level = 10 : i32, message = "gqk,gkd->gqd"}> : () -> ()
    %cst_24 = arith.constant dense<0.000000e+00> : vector<4x8x8xf32>
    %35 = tpu.matmul %32, %22, %cst_24 {dimension_numbers = #tpu.dot_dimension_numbers<[2], [1], [1], [2], [0, 0, 0, 1, 1, 2], [0], [0]>} : vector<4x8x8xf32>, vector<4x8x8xf32>, vector<4x8x8xf32> -> vector<4x8x8xf32>
    "tpu.trace_stop"() : () -> ()
    %36 = vector.shape_cast %35 : vector<4x8x8xf32> to vector<4x1x8x8xf32>
    %37 = tpu.transpose %36, [1, 2, 0, 3] : vector<4x1x8x8xf32> -> vector<1x8x4x8xf32>
    %38 = vector.shape_cast %37 : vector<1x8x4x8xf32> to vector<8x32xf32>
    %c0_25 = arith.constant 0 : index
    %c0_26 = arith.constant 0 : index
    %39 = vector.load %arg7[%c0_25, %c0_26] : memref<64x32xf32, #tpu.memory_space<vmem>>, vector<32x32xf32>
    %cst_27 = arith.constant dense<0.000000e+00> : vector<8x32xf32>
    %40 = tpu.matmul %5, %39, %cst_27 {dimension_numbers = #tpu.dot_dimension_numbers<[1], [0], [0], [1], [0, 0, 1, 1], [], []>} : vector<8x32xf32>, vector<32x32xf32>, vector<8x32xf32> -> vector<8x32xf32>
    %c32 = arith.constant 32 : index
    %c0_28 = arith.constant 0 : index
    %41 = vector.load %arg7[%c32, %c0_28] : memref<64x32xf32, #tpu.memory_space<vmem>>, vector<32x32xf32>
    %cst_29 = arith.constant dense<0.000000e+00> : vector<8x32xf32>
    %42 = tpu.matmul %38, %41, %cst_29 {dimension_numbers = #tpu.dot_dimension_numbers<[1], [0], [0], [1], [0, 0, 1, 1], [], []>} : vector<8x32xf32>, vector<32x32xf32>, vector<8x32xf32> -> vector<8x32xf32>
    %43 = arith.addf %40, %42 : vector<8x32xf32>
    %c0_30 = arith.constant 0 : index
    %c0_31 = arith.constant 0 : index
    %44 = vector.load %arg8[%c0_30, %c0_31] : memref<1x32xf32, #tpu.memory_space<vmem>>, vector<1x32xf32>
    %45 = vector.broadcast %44 : vector<1x32xf32> to vector<8x32xf32>
    %46 = arith.addf %43, %45 : vector<8x32xf32>
    %47 = arith.addf %46, %5 : vector<8x32xf32>
    %cst_32 = arith.constant dense<0.000000e+00> : vector<8xf32>
    %48 = vector.multi_reduction <add>, %47, %cst_32 [1] : vector<8x32xf32> to vector<8xf32>
    %49 = vector.shape_cast %48 : vector<8xf32> to vector<8x1xf32>
    %cst_33 = arith.constant 3.200000e+01 : f32
    %50 = vector.broadcast %cst_33 : f32 to vector<8x1xf32>
    %51 = arith.divf %49, %50 : vector<8x1xf32>
    %52 = vector.broadcast %51 : vector<8x1xf32> to vector<8x32xf32>
    %53 = arith.subf %47, %52 : vector<8x32xf32>
    %54 = arith.mulf %53, %53 : vector<8x32xf32>
    %cst_34 = arith.constant dense<0.000000e+00> : vector<8xf32>
    %55 = vector.multi_reduction <add>, %54, %cst_34 [1] : vector<8x32xf32> to vector<8xf32>
    %56 = vector.shape_cast %55 : vector<8xf32> to vector<8x1xf32>
    %cst_35 = arith.constant 3.200000e+01 : f32
    %57 = vector.broadcast %cst_35 : f32 to vector<8x1xf32>
    %58 = arith.divf %56, %57 : vector<8x1xf32>
    %59 = vector.broadcast %51 : vector<8x1xf32> to vector<8x32xf32>
    %60 = arith.subf %47, %59 : vector<8x32xf32>
    %cst_36 = arith.constant 9.99999974E-6 : f32
    %61 = vector.broadcast %cst_36 : f32 to vector<8x1xf32>
    %62 = arith.addf %58, %61 : vector<8x1xf32>
    %63 = math.rsqrt %62 : vector<8x1xf32>
    %64 = vector.broadcast %63 : vector<8x1xf32> to vector<8x32xf32>
    %65 = arith.mulf %60, %64 : vector<8x32xf32>
    %c0_37 = arith.constant 0 : index
    %c0_38 = arith.constant 0 : index
    %66 = vector.load %arg9[%c0_37, %c0_38] : memref<1x32xf32, #tpu.memory_space<vmem>>, vector<1x32xf32>
    %67 = vector.broadcast %66 : vector<1x32xf32> to vector<8x32xf32>
    %68 = arith.mulf %65, %67 : vector<8x32xf32>
    %c0_39 = arith.constant 0 : index
    %c0_40 = arith.constant 0 : index
    %69 = vector.load %arg10[%c0_39, %c0_40] : memref<1x32xf32, #tpu.memory_space<vmem>>, vector<1x32xf32>
    %70 = vector.broadcast %69 : vector<1x32xf32> to vector<8x32xf32>
    %71 = arith.addf %68, %70 : vector<8x32xf32>
    %72 = vector.shape_cast %71 : vector<8x32xf32> to vector<1x8x32xf32>
    %c0_41 = arith.constant 0 : index
    %c0_42 = arith.constant 0 : index
    %c0_43 = arith.constant 0 : index
    %73 = vector.load %arg11[%c0_41, %c0_42, %c0_43] : memref<1x8x32xf32, #tpu.memory_space<vmem>>, vector<1x8x32xf32>
    tpu.vector_store %arg11[%c0_41, %c0_42, %c0_43], %72 {strides = array<i32>} : memref<1x8x32xf32, #tpu.memory_space<vmem>>, vector<1x8x32xf32>,
    return
  }
  func.func @transform_0(%arg0: i32) -> (i32, i32, i32) {
    %c0_i32 = arith.constant 0 : i32
    %c0_i32_0 = arith.constant 0 : i32
    %c0_i32_1 = arith.constant 0 : i32
    return %arg0, %c0_i32, %c0_i32_0 : i32, i32, i32
  }
  func.func @transform_1(%arg0: i32) -> (i32, i32, i32) {
    %c0_i32 = arith.constant 0 : i32
    %c0_i32_0 = arith.constant 0 : i32
    %c0_i32_1 = arith.constant 0 : i32
    return %arg0, %c0_i32, %c0_i32_0 : i32, i32, i32
  }
  func.func @transform_2(%arg0: i32) -> (i32, i32, i32) {
    %c0_i32 = arith.constant 0 : i32
    %c0_i32_0 = arith.constant 0 : i32
    %c0_i32_1 = arith.constant 0 : i32
    return %arg0, %c0_i32, %c0_i32_0 : i32, i32, i32
  }
  func.func @transform_3(%arg0: i32) -> (i32, i32) {
    %c0_i32 = arith.constant 0 : i32
    %c0_i32_0 = arith.constant 0 : i32
    %c0_i32_1 = arith.constant 0 : i32
    return %c0_i32, %c0_i32_0 : i32, i32
  }
  func.func @transform_4(%arg0: i32) -> (i32, i32) {
    %c0_i32 = arith.constant 0 : i32
    %c0_i32_0 = arith.constant 0 : i32
    %c0_i32_1 = arith.constant 0 : i32
    return %c0_i32, %c0_i32_0 : i32, i32
  }
  func.func @transform_5(%arg0: i32) -> (i32, i32) {
    %c0_i32 = arith.constant 0 : i32
    %c0_i32_0 = arith.constant 0 : i32
    %c0_i32_1 = arith.constant 0 : i32
    return %c0_i32, %c0_i32_0 : i32, i32
  }
  func.func @transform_6(%arg0: i32) -> (i32, i32) {
    %c0_i32 = arith.constant 0 : i32
    %c0_i32_0 = arith.constant 0 : i32
    %c0_i32_1 = arith.constant 0 : i32
    return %c0_i32, %c0_i32_0 : i32, i32
  }
  func.func @transform_7(%arg0: i32) -> (i32, i32) {
    %c0_i32 = arith.constant 0 : i32
    %c0_i32_0 = arith.constant 0 : i32
    %c0_i32_1 = arith.constant 0 : i32
    return %c0_i32, %c0_i32_0 : i32, i32
  }
  func.func @transform_8(%arg0: i32) -> (i32, i32) {
    %c0_i32 = arith.constant 0 : i32
    %c0_i32_0 = arith.constant 0 : i32
    %c0_i32_1 = arith.constant 0 : i32
    return %c0_i32, %c0_i32_0 : i32, i32
  }
  func.func @transform_9(%arg0: i32) -> (i32, i32) {
    %c0_i32 = arith.constant 0 : i32
    %c0_i32_0 = arith.constant 0 : i32
    %c0_i32_1 = arith.constant 0 : i32
    return %c0_i32, %c0_i32_0 : i32, i32
  }
  func.func @transform_10(%arg0: i32) -> (i32, i32, i32) {
    %c0_i32 = arith.constant 0 : i32
    %c0_i32_0 = arith.constant 0 : i32
    %c0_i32_1 = arith.constant 0 : i32
    return %arg0, %c0_i32, %c0_i32_0 : i32, i32, i32
  }
  func.func @transform_11(%arg0: i32) -> (i32, i32, i32, i32) {
    %c0_i32 = arith.constant 0 : i32
    %c0_i32_0 = arith.constant 0 : i32
    %c0_i32_1 = arith.constant 0 : i32
    %c0_i32_2 = arith.constant 0 : i32
    return %c0_i32, %arg0, %c0_i32_0, %c0_i32_1 : i32, i32, i32, i32
  }
}

module attributes {stable_mosaic.version = 11 : i64} {
  func.func @body(%arg0: i32, %arg1: memref<1x8x32xf32, #tpu.memory_space<vmem>>, %arg2: memref<1x8x32xf32, #tpu.memory_space<vmem>>, %arg3: memref<1x8x32xf32, #tpu.memory_space<vmem>>, %arg4: memref<32x32xf32, #tpu.memory_space<vmem>>, %arg5: memref<32x32xf32, #tpu.memory_space<vmem>>, %arg6: memref<32x32xf32, #tpu.memory_space<vmem>>, %arg7: memref<64x32xf32, #tpu.memory_space<vmem>>, %arg8: memref<1x32xf32, #tpu.memory_space<vmem>>, %arg9: memref<1x32xf32, #tpu.memory_space<vmem>>, %arg10: memref<1x32xf32, #tpu.memory_space<vmem>>, %arg11: memref<1x8x32xf32, #tpu.memory_space<vmem>>, %arg12: memref<4x1x8x8xf32, #tpu.memory_space<vmem>>) attributes {dimension_semantics = [#tpu.dimension_semantics<parallel>], iteration_bounds = array<i64: 2>, scalar_prefetch = 0 : i64, scratch_operands = 0 : i64, tpu.core_type = #tpu.core_type<tc>, window_params = [{transform_indices = @transform_0, window_bounds = array<i64: 1, 8, 32>}, {transform_indices = @transform_1, window_bounds = array<i64: 1, 8, 32>}, {transform_indices = @transform_2, window_bounds = array<i64: 1, 8, 32>}, {pipeline_mode = #tpu.pipeline_mode<synchronous>, transform_indices = @transform_3, window_bounds = array<i64: 32, 32>}, {pipeline_mode = #tpu.pipeline_mode<synchronous>, transform_indices = @transform_4, window_bounds = array<i64: 32, 32>}, {pipeline_mode = #tpu.pipeline_mode<synchronous>, transform_indices = @transform_5, window_bounds = array<i64: 32, 32>}, {pipeline_mode = #tpu.pipeline_mode<synchronous>, transform_indices = @transform_6, window_bounds = array<i64: 64, 32>}, {pipeline_mode = #tpu.pipeline_mode<synchronous>, transform_indices = @transform_7, window_bounds = array<i64: 1, 32>}, {pipeline_mode = #tpu.pipeline_mode<synchronous>, transform_indices = @transform_8, window_bounds = array<i64: 1, 32>}, {pipeline_mode = #tpu.pipeline_mode<synchronous>, transform_indices = @transform_9, window_bounds = array<i64: 1, 32>}, {transform_indices = @transform_10, window_bounds = array<i64: 1, 8, 32>}, {transform_indices = @transform_11, window_bounds = array<i64: 4, 1, 8, 8>}]} {
    %c0 = arith.constant 0 : index
    %c0_0 = arith.constant 0 : index
    %c0_1 = arith.constant 0 : index
    %0 = vector.load %arg1[%c0, %c0_0, %c0_1] : memref<1x8x32xf32, #tpu.memory_space<vmem>>, vector<1x8x32xf32>
    %1 = vector.shape_cast %0 : vector<1x8x32xf32> to vector<8x32xf32>
    %c0_2 = arith.constant 0 : index
    %c0_3 = arith.constant 0 : index
    %c0_4 = arith.constant 0 : index
    %2 = vector.load %arg2[%c0_2, %c0_3, %c0_4] : memref<1x8x32xf32, #tpu.memory_space<vmem>>, vector<1x8x32xf32>
    %3 = vector.shape_cast %2 : vector<1x8x32xf32> to vector<8x32xf32>
    %c0_5 = arith.constant 0 : index
    %c0_6 = arith.constant 0 : index
    %c0_7 = arith.constant 0 : index
    %4 = vector.load %arg3[%c0_5, %c0_6, %c0_7] : memref<1x8x32xf32, #tpu.memory_space<vmem>>, vector<1x8x32xf32>
    %5 = vector.shape_cast %4 : vector<1x8x32xf32> to vector<8x32xf32>
    %c0_8 = arith.constant 0 : index
    %c0_9 = arith.constant 0 : index
    %6 = vector.load %arg4[%c0_8, %c0_9] : memref<32x32xf32, #tpu.memory_space<vmem>>, vector<32x32xf32>
    %cst = arith.constant dense<0.000000e+00> : vector<8x32xf32>
    %7 = tpu.matmul %1, %6, %cst {dimension_numbers = #tpu.dot_dimension_numbers<[1], [0], [0], [1], [0, 0, 1, 1], [], []>} : vector<8x32xf32>, vector<32x32xf32>, vector<8x32xf32> -> vector<8x32xf32>
    %c0_10 = arith.constant 0 : index
    %c0_11 = arith.constant 0 : index
    %8 = vector.load %arg5[%c0_10, %c0_11] : memref<32x32xf32, #tpu.memory_space<vmem>>, vector<32x32xf32>
    %cst_12 = arith.constant dense<0.000000e+00> : vector<8x32xf32>
    %9 = tpu.matmul %3, %8, %cst_12 {dimension_numbers = #tpu.dot_dimension_numbers<[1], [0], [0], [1], [0, 0, 1, 1], [], []>} : vector<8x32xf32>, vector<32x32xf32>, vector<8x32xf32> -> vector<8x32xf32>
    %c0_13 = arith.constant 0 : index
    %c0_14 = arith.constant 0 : index
    %10 = vector.load %arg6[%c0_13, %c0_14] : memref<32x32xf32, #tpu.memory_space<vmem>>, vector<32x32xf32>
    %cst_15 = arith.constant dense<0.000000e+00> : vector<8x32xf32>
    %11 = tpu.matmul %5, %10, %cst_15 {dimension_numbers = #tpu.dot_dimension_numbers<[1], [0], [0], [1], [0, 0, 1, 1], [], []>} : vector<8x32xf32>, vector<32x32xf32>, vector<8x32xf32> -> vector<8x32xf32>
    %cst_16 = arith.constant 0.353553385 : f32
    %12 = vector.broadcast %cst_16 : f32 to vector<8x32xf32>
    %13 = arith.mulf %11, %12 : vector<8x32xf32>
    %14 = vector.shape_cast %13 : vector<8x32xf32> to vector<1x8x32xf32>
    %15 = vector.extract_strided_slice %14 {offsets = [0, 0, 0], sizes = [1, 8, 8], strides = [1, 1, 1]} : vector<1x8x32xf32> to vector<1x8x8xf32>
    %16 = vector.extract_strided_slice %14 {offsets = [0, 0, 8], sizes = [1, 8, 8], strides = [1, 1, 1]} : vector<1x8x32xf32> to vector<1x8x8xf32>
    %17 = vector.extract_strided_slice %14 {offsets = [0, 0, 16], sizes = [1, 8, 8], strides = [1, 1, 1]} : vector<1x8x32xf32> to vector<1x8x8xf32>
    %18 = vector.extract_strided_slice %14 {offsets = [0, 0, 24], sizes = [1, 8, 8], strides = [1, 1, 1]} : vector<1x8x32xf32> to vector<1x8x8xf32>
    %19 = vector.shape_cast %15 : vector<1x8x8xf32> to vector<1x1x8x8xf32>
    %20 = vector.shape_cast %16 : vector<1x8x8xf32> to vector<1x1x8x8xf32>
    %21 = vector.shape_cast %17 : vector<1x8x8xf32> to vector<1x1x8x8xf32>
    %22 = vector.shape_cast %18 : vector<1x8x8xf32> to vector<1x1x8x8xf32>
    %23 = tpu.concatenate %19, %20, %21, %22 in 0 : vector<1x1x8x8xf32>, vector<1x1x8x8xf32>, vector<1x1x8x8xf32>, vector<1x1x8x8xf32> -> vector<4x1x8x8xf32>
    %24 = vector.shape_cast %23 : vector<4x1x8x8xf32> to vector<4x8x8xf32>
    %25 = vector.shape_cast %7 : vector<8x32xf32> to vector<1x8x32xf32>
    %26 = vector.extract_strided_slice %25 {offsets = [0, 0, 0], sizes = [1, 8, 8], strides = [1, 1, 1]} : vector<1x8x32xf32> to vector<1x8x8xf32>
    %27 = vector.extract_strided_slice %25 {offsets = [0, 0, 8], sizes = [1, 8, 8], strides = [1, 1, 1]} : vector<1x8x32xf32> to vector<1x8x8xf32>
    %28 = vector.extract_strided_slice %25 {offsets = [0, 0, 16], sizes = [1, 8, 8], strides = [1, 1, 1]} : vector<1x8x32xf32> to vector<1x8x8xf32>
    %29 = vector.extract_strided_slice %25 {offsets = [0, 0, 24], sizes = [1, 8, 8], strides = [1, 1, 1]} : vector<1x8x32xf32> to vector<1x8x8xf32>
    %30 = vector.shape_cast %26 : vector<1x8x8xf32> to vector<1x1x8x8xf32>
    %31 = vector.shape_cast %27 : vector<1x8x8xf32> to vector<1x1x8x8xf32>
    %32 = vector.shape_cast %28 : vector<1x8x8xf32> to vector<1x1x8x8xf32>
    %33 = vector.shape_cast %29 : vector<1x8x8xf32> to vector<1x1x8x8xf32>
    %34 = tpu.concatenate %30, %31, %32, %33 in 0 : vector<1x1x8x8xf32>, vector<1x1x8x8xf32>, vector<1x1x8x8xf32>, vector<1x1x8x8xf32> -> vector<4x1x8x8xf32>
    %35 = vector.shape_cast %34 : vector<4x1x8x8xf32> to vector<4x8x8xf32>
    %36 = vector.shape_cast %9 : vector<8x32xf32> to vector<1x8x32xf32>
    %37 = vector.extract_strided_slice %36 {offsets = [0, 0, 0], sizes = [1, 8, 8], strides = [1, 1, 1]} : vector<1x8x32xf32> to vector<1x8x8xf32>
    %38 = vector.extract_strided_slice %36 {offsets = [0, 0, 8], sizes = [1, 8, 8], strides = [1, 1, 1]} : vector<1x8x32xf32> to vector<1x8x8xf32>
    %39 = vector.extract_strided_slice %36 {offsets = [0, 0, 16], sizes = [1, 8, 8], strides = [1, 1, 1]} : vector<1x8x32xf32> to vector<1x8x8xf32>
    %40 = vector.extract_strided_slice %36 {offsets = [0, 0, 24], sizes = [1, 8, 8], strides = [1, 1, 1]} : vector<1x8x32xf32> to vector<1x8x8xf32>
    %41 = vector.shape_cast %37 : vector<1x8x8xf32> to vector<1x1x8x8xf32>
    %42 = vector.shape_cast %38 : vector<1x8x8xf32> to vector<1x1x8x8xf32>
    %43 = vector.shape_cast %39 : vector<1x8x8xf32> to vector<1x1x8x8xf32>
    %44 = vector.shape_cast %40 : vector<1x8x8xf32> to vector<1x1x8x8xf32>
    %45 = tpu.concatenate %41, %42, %43, %44 in 0 : vector<1x1x8x8xf32>, vector<1x1x8x8xf32>, vector<1x1x8x8xf32>, vector<1x1x8x8xf32> -> vector<4x1x8x8xf32>
    %46 = vector.shape_cast %45 : vector<4x1x8x8xf32> to vector<4x8x8xf32>
    "tpu.trace_start"() <{level = 10 : i32, message = "gqd,gkd->gqk"}> : () -> ()
    %cst_17 = arith.constant dense<0.000000e+00> : vector<4x8x8xf32>
    %47 = tpu.matmul %24, %35, %cst_17 {dimension_numbers = #tpu.dot_dimension_numbers<[2], [2], [1], [1], [0, 0, 0, 1, 1, 1], [0], [0]>} : vector<4x8x8xf32>, vector<4x8x8xf32>, vector<4x8x8xf32> -> vector<4x8x8xf32>
    "tpu.trace_stop"() : () -> ()
    %cst_18 = arith.constant dense<0xFF800000> : vector<4x8xf32>
    %48 = vector.multi_reduction <maximumf>, %47, %cst_18 [2] : vector<4x8x8xf32> to vector<4x8xf32>
    %49 = vector.shape_cast %48 : vector<4x8xf32> to vector<4x8x1xf32>
    %50 = vector.broadcast %49 : vector<4x8x1xf32> to vector<4x8x8xf32>
    %51 = arith.subf %47, %50 : vector<4x8x8xf32>
    %52 = math.exp %51 : vector<4x8x8xf32>
    %cst_19 = arith.constant dense<0.000000e+00> : vector<4x8xf32>
    %53 = vector.multi_reduction <add>, %52, %cst_19 [2] : vector<4x8x8xf32> to vector<4x8xf32>
    %54 = vector.shape_cast %53 : vector<4x8xf32> to vector<4x8x1xf32>
    %55 = vector.broadcast %54 : vector<4x8x1xf32> to vector<4x8x8xf32>
    %56 = arith.divf %52, %55 : vector<4x8x8xf32>
    %57 = vector.shape_cast %56 : vector<4x8x8xf32> to vector<4x1x8x8xf32>
    %c0_20 = arith.constant 0 : index
    %c0_21 = arith.constant 0 : index
    %c0_22 = arith.constant 0 : index
    %c0_23 = arith.constant 0 : index
    %58 = vector.load %arg12[%c0_20, %c0_21, %c0_22, %c0_23] : memref<4x1x8x8xf32, #tpu.memory_space<vmem>>, vector<4x1x8x8xf32>
    tpu.vector_store %arg12[%c0_20, %c0_21, %c0_22, %c0_23], %57 {strides = array<i32>} : memref<4x1x8x8xf32, #tpu.memory_space<vmem>>, vector<4x1x8x8xf32>,
    "tpu.trace_start"() <{level = 10 : i32, message = "gqk,gkd->gqd"}> : () -> ()
    %cst_24 = arith.constant dense<0.000000e+00> : vector<4x8x8xf32>
    %59 = tpu.matmul %56, %46, %cst_24 {dimension_numbers = #tpu.dot_dimension_numbers<[2], [1], [1], [2], [0, 0, 0, 1, 1, 2], [0], [0]>} : vector<4x8x8xf32>, vector<4x8x8xf32>, vector<4x8x8xf32> -> vector<4x8x8xf32>
    "tpu.trace_stop"() : () -> ()
    %60 = vector.shape_cast %59 : vector<4x8x8xf32> to vector<4x1x8x8xf32>
    %61 = vector.extract_strided_slice %60 {offsets = [0, 0, 0, 0], sizes = [1, 1, 8, 8], strides = [1, 1, 1, 1]} : vector<4x1x8x8xf32> to vector<1x1x8x8xf32>
    %62 = vector.shape_cast %61 : vector<1x1x8x8xf32> to vector<1x8x8xf32>
    %63 = vector.extract_strided_slice %60 {offsets = [1, 0, 0, 0], sizes = [1, 1, 8, 8], strides = [1, 1, 1, 1]} : vector<4x1x8x8xf32> to vector<1x1x8x8xf32>
    %64 = vector.shape_cast %63 : vector<1x1x8x8xf32> to vector<1x8x8xf32>
    %65 = vector.extract_strided_slice %60 {offsets = [2, 0, 0, 0], sizes = [1, 1, 8, 8], strides = [1, 1, 1, 1]} : vector<4x1x8x8xf32> to vector<1x1x8x8xf32>
    %66 = vector.shape_cast %65 : vector<1x1x8x8xf32> to vector<1x8x8xf32>
    %67 = vector.extract_strided_slice %60 {offsets = [3, 0, 0, 0], sizes = [1, 1, 8, 8], strides = [1, 1, 1, 1]} : vector<4x1x8x8xf32> to vector<1x1x8x8xf32>
    %68 = vector.shape_cast %67 : vector<1x1x8x8xf32> to vector<1x8x8xf32>
    %69 = tpu.concatenate %62, %64, %66, %68 in 2 : vector<1x8x8xf32>, vector<1x8x8xf32>, vector<1x8x8xf32>, vector<1x8x8xf32> -> vector<1x8x32xf32>
    %70 = vector.shape_cast %69 : vector<1x8x32xf32> to vector<8x32xf32>
    %c0_25 = arith.constant 0 : index
    %c0_26 = arith.constant 0 : index
    %71 = vector.load %arg7[%c0_25, %c0_26] : memref<64x32xf32, #tpu.memory_space<vmem>>, vector<32x32xf32>
    %cst_27 = arith.constant dense<0.000000e+00> : vector<8x32xf32>
    %72 = tpu.matmul %5, %71, %cst_27 {dimension_numbers = #tpu.dot_dimension_numbers<[1], [0], [0], [1], [0, 0, 1, 1], [], []>} : vector<8x32xf32>, vector<32x32xf32>, vector<8x32xf32> -> vector<8x32xf32>
    %c32 = arith.constant 32 : index
    %c0_28 = arith.constant 0 : index
    %73 = vector.load %arg7[%c32, %c0_28] : memref<64x32xf32, #tpu.memory_space<vmem>>, vector<32x32xf32>
    %cst_29 = arith.constant dense<0.000000e+00> : vector<8x32xf32>
    %74 = tpu.matmul %70, %73, %cst_29 {dimension_numbers = #tpu.dot_dimension_numbers<[1], [0], [0], [1], [0, 0, 1, 1], [], []>} : vector<8x32xf32>, vector<32x32xf32>, vector<8x32xf32> -> vector<8x32xf32>
    %75 = arith.addf %72, %74 : vector<8x32xf32>
    %c0_30 = arith.constant 0 : index
    %c0_31 = arith.constant 0 : index
    %76 = vector.load %arg8[%c0_30, %c0_31] : memref<1x32xf32, #tpu.memory_space<vmem>>, vector<1x32xf32>
    %77 = vector.broadcast %76 : vector<1x32xf32> to vector<8x32xf32>
    %78 = arith.addf %75, %77 : vector<8x32xf32>
    %79 = arith.addf %78, %5 : vector<8x32xf32>
    %cst_32 = arith.constant dense<0.000000e+00> : vector<8xf32>
    %80 = vector.multi_reduction <add>, %79, %cst_32 [1] : vector<8x32xf32> to vector<8xf32>
    %81 = vector.shape_cast %80 : vector<8xf32> to vector<8x1xf32>
    %cst_33 = arith.constant 3.200000e+01 : f32
    %82 = vector.broadcast %cst_33 : f32 to vector<8x1xf32>
    %83 = arith.divf %81, %82 : vector<8x1xf32>
    %84 = vector.broadcast %83 : vector<8x1xf32> to vector<8x32xf32>
    %85 = arith.subf %79, %84 : vector<8x32xf32>
    %86 = arith.mulf %85, %85 : vector<8x32xf32>
    %cst_34 = arith.constant dense<0.000000e+00> : vector<8xf32>
    %87 = vector.multi_reduction <add>, %86, %cst_34 [1] : vector<8x32xf32> to vector<8xf32>
    %88 = vector.shape_cast %87 : vector<8xf32> to vector<8x1xf32>
    %cst_35 = arith.constant 3.200000e+01 : f32
    %89 = vector.broadcast %cst_35 : f32 to vector<8x1xf32>
    %90 = arith.divf %88, %89 : vector<8x1xf32>
    %91 = vector.broadcast %83 : vector<8x1xf32> to vector<8x32xf32>
    %92 = arith.subf %79, %91 : vector<8x32xf32>
    %cst_36 = arith.constant 9.99999974E-6 : f32
    %93 = vector.broadcast %cst_36 : f32 to vector<8x1xf32>
    %94 = arith.addf %90, %93 : vector<8x1xf32>
    %95 = math.rsqrt %94 : vector<8x1xf32>
    %96 = vector.broadcast %95 : vector<8x1xf32> to vector<8x32xf32>
    %97 = arith.mulf %92, %96 : vector<8x32xf32>
    %c0_37 = arith.constant 0 : index
    %c0_38 = arith.constant 0 : index
    %98 = vector.load %arg9[%c0_37, %c0_38] : memref<1x32xf32, #tpu.memory_space<vmem>>, vector<1x32xf32>
    %99 = vector.broadcast %98 : vector<1x32xf32> to vector<8x32xf32>
    %100 = arith.mulf %97, %99 : vector<8x32xf32>
    %c0_39 = arith.constant 0 : index
    %c0_40 = arith.constant 0 : index
    %101 = vector.load %arg10[%c0_39, %c0_40] : memref<1x32xf32, #tpu.memory_space<vmem>>, vector<1x32xf32>
    %102 = vector.broadcast %101 : vector<1x32xf32> to vector<8x32xf32>
    %103 = arith.addf %100, %102 : vector<8x32xf32>
    %104 = vector.shape_cast %103 : vector<8x32xf32> to vector<1x8x32xf32>
    %c0_41 = arith.constant 0 : index
    %c0_42 = arith.constant 0 : index
    %c0_43 = arith.constant 0 : index
    %105 = vector.load %arg11[%c0_41, %c0_42, %c0_43] : memref<1x8x32xf32, #tpu.memory_space<vmem>>, vector<1x8x32xf32>
    tpu.vector_store %arg11[%c0_41, %c0_42, %c0_43], %104 {strides = array<i32>} : memref<1x8x32xf32, #tpu.memory_space<vmem>>, vector<1x8x32xf32>,
    return
  }
  func.func @transform_0(%arg0: i32) -> (i32, i32, i32) {
    %c0_i32 = arith.constant 0 : i32
    %c0_i32_0 = arith.constant 0 : i32
    %c0_i32_1 = arith.constant 0 : i32
    return %arg0, %c0_i32, %c0_i32_0 : i32, i32, i32
  }
  func.func @transform_1(%arg0: i32) -> (i32, i32, i32) {
    %c0_i32 = arith.constant 0 : i32
    %c0_i32_0 = arith.constant 0 : i32
    %c0_i32_1 = arith.constant 0 : i32
    return %arg0, %c0_i32, %c0_i32_0 : i32, i32, i32
  }
  func.func @transform_2(%arg0: i32) -> (i32, i32, i32) {
    %c0_i32 = arith.constant 0 : i32
    %c0_i32_0 = arith.constant 0 : i32
    %c0_i32_1 = arith.constant 0 : i32
    return %arg0, %c0_i32, %c0_i32_0 : i32, i32, i32
  }
  func.func @transform_3(%arg0: i32) -> (i32, i32) {
    %c0_i32 = arith.constant 0 : i32
    %c0_i32_0 = arith.constant 0 : i32
    %c0_i32_1 = arith.constant 0 : i32
    return %c0_i32, %c0_i32_0 : i32, i32
  }
  func.func @transform_4(%arg0: i32) -> (i32, i32) {
    %c0_i32 = arith.constant 0 : i32
    %c0_i32_0 = arith.constant 0 : i32
    %c0_i32_1 = arith.constant 0 : i32
    return %c0_i32, %c0_i32_0 : i32, i32
  }
  func.func @transform_5(%arg0: i32) -> (i32, i32) {
    %c0_i32 = arith.constant 0 : i32
    %c0_i32_0 = arith.constant 0 : i32
    %c0_i32_1 = arith.constant 0 : i32
    return %c0_i32, %c0_i32_0 : i32, i32
  }
  func.func @transform_6(%arg0: i32) -> (i32, i32) {
    %c0_i32 = arith.constant 0 : i32
    %c0_i32_0 = arith.constant 0 : i32
    %c0_i32_1 = arith.constant 0 : i32
    return %c0_i32, %c0_i32_0 : i32, i32
  }
  func.func @transform_7(%arg0: i32) -> (i32, i32) {
    %c0_i32 = arith.constant 0 : i32
    %c0_i32_0 = arith.constant 0 : i32
    %c0_i32_1 = arith.constant 0 : i32
    return %c0_i32, %c0_i32_0 : i32, i32
  }
  func.func @transform_8(%arg0: i32) -> (i32, i32) {
    %c0_i32 = arith.constant 0 : i32
    %c0_i32_0 = arith.constant 0 : i32
    %c0_i32_1 = arith.constant 0 : i32
    return %c0_i32, %c0_i32_0 : i32, i32
  }
  func.func @transform_9(%arg0: i32) -> (i32, i32) {
    %c0_i32 = arith.constant 0 : i32
    %c0_i32_0 = arith.constant 0 : i32
    %c0_i32_1 = arith.constant 0 : i32
    return %c0_i32, %c0_i32_0 : i32, i32
  }
  func.func @transform_10(%arg0: i32) -> (i32, i32, i32) {
    %c0_i32 = arith.constant 0 : i32
    %c0_i32_0 = arith.constant 0 : i32
    %c0_i32_1 = arith.constant 0 : i32
    return %arg0, %c0_i32, %c0_i32_0 : i32, i32, i32
  }
  func.func @transform_11(%arg0: i32) -> (i32, i32, i32, i32) {
    %c0_i32 = arith.constant 0 : i32
    %c0_i32_0 = arith.constant 0 : i32
    %c0_i32_1 = arith.constant 0 : i32
    %c0_i32_2 = arith.constant 0 : i32
    return %c0_i32, %arg0, %c0_i32_0, %c0_i32_1 : i32, i32, i32, i32
  }
}

module attributes {stable_mosaic.version = 11 : i64} {
  func.func @body(%arg0: i32, %arg1: memref<1x8x32xf32, #tpu.memory_space<vmem>>, %arg2: memref<1x8x32xf32, #tpu.memory_space<vmem>>, %arg3: memref<1x8x32xf32, #tpu.memory_space<vmem>>, %arg4: memref<32x32xf32, #tpu.memory_space<vmem>>, %arg5: memref<32x32xf32, #tpu.memory_space<vmem>>, %arg6: memref<32x32xf32, #tpu.memory_space<vmem>>, %arg7: memref<64x32xf32, #tpu.memory_space<vmem>>, %arg8: memref<1x32xf32, #tpu.memory_space<vmem>>, %arg9: memref<1x32xf32, #tpu.memory_space<vmem>>, %arg10: memref<1x32xf32, #tpu.memory_space<vmem>>, %arg11: memref<1x8x32xf32, #tpu.memory_space<vmem>>, %arg12: memref<4x1x8x8xf32, #tpu.memory_space<vmem>>) attributes {dimension_semantics = [#tpu.dimension_semantics<parallel>], iteration_bounds = array<i64: 2>, scalar_prefetch = 0 : i64, scratch_operands = 0 : i64, tpu.core_type = #tpu.core_type<tc>, window_params = [{transform_indices = @transform_0, window_bounds = array<i64: 1, 8, 32>}, {transform_indices = @transform_1, window_bounds = array<i64: 1, 8, 32>}, {transform_indices = @transform_2, window_bounds = array<i64: 1, 8, 32>}, {pipeline_mode = #tpu.pipeline_mode<synchronous>, transform_indices = @transform_3, window_bounds = array<i64: 32, 32>}, {pipeline_mode = #tpu.pipeline_mode<synchronous>, transform_indices = @transform_4, window_bounds = array<i64: 32, 32>}, {pipeline_mode = #tpu.pipeline_mode<synchronous>, transform_indices = @transform_5, window_bounds = array<i64: 32, 32>}, {pipeline_mode = #tpu.pipeline_mode<synchronous>, transform_indices = @transform_6, window_bounds = array<i64: 64, 32>}, {pipeline_mode = #tpu.pipeline_mode<synchronous>, transform_indices = @transform_7, window_bounds = array<i64: 1, 32>}, {pipeline_mode = #tpu.pipeline_mode<synchronous>, transform_indices = @transform_8, window_bounds = array<i64: 1, 32>}, {pipeline_mode = #tpu.pipeline_mode<synchronous>, transform_indices = @transform_9, window_bounds = array<i64: 1, 32>}, {transform_indices = @transform_10, window_bounds = array<i64: 1, 8, 32>}, {transform_indices = @transform_11, window_bounds = array<i64: 4, 1, 8, 8>}]} {
    %c0 = arith.constant 0 : index
    %c0_0 = arith.constant 0 : index
    %c0_1 = arith.constant 0 : index
    %0 = vector.load %arg1[%c0, %c0_0, %c0_1] : memref<1x8x32xf32, #tpu.memory_space<vmem>>, vector<1x8x32xf32>
    %1 = vector.shape_cast %0 : vector<1x8x32xf32> to vector<8x32xf32>
    %c0_2 = arith.constant 0 : index
    %c0_3 = arith.constant 0 : index
    %c0_4 = arith.constant 0 : index
    %2 = vector.load %arg2[%c0_2, %c0_3, %c0_4] : memref<1x8x32xf32, #tpu.memory_space<vmem>>, vector<1x8x32xf32>
    %3 = vector.shape_cast %2 : vector<1x8x32xf32> to vector<8x32xf32>
    %c0_5 = arith.constant 0 : index
    %c0_6 = arith.constant 0 : index
    %c0_7 = arith.constant 0 : index
    %4 = vector.load %arg3[%c0_5, %c0_6, %c0_7] : memref<1x8x32xf32, #tpu.memory_space<vmem>>, vector<1x8x32xf32>
    %5 = vector.shape_cast %4 : vector<1x8x32xf32> to vector<8x32xf32>
    %c0_8 = arith.constant 0 : index
    %c0_9 = arith.constant 0 : index
    %6 = vector.load %arg4[%c0_8, %c0_9] : memref<32x32xf32, #tpu.memory_space<vmem>>, vector<32x32xf32>
    %cst = arith.constant dense<0.000000e+00> : vector<8x32xf32>
    %7 = tpu.matmul %1, %6, %cst {dimension_numbers = #tpu.dot_dimension_numbers<[1], [0], [0], [1], [0, 0, 1, 1], [], []>} : vector<8x32xf32>, vector<32x32xf32>, vector<8x32xf32> -> vector<8x32xf32>
    %c0_10 = arith.constant 0 : index
    %c0_11 = arith.constant 0 : index
    %8 = vector.load %arg5[%c0_10, %c0_11] : memref<32x32xf32, #tpu.memory_space<vmem>>, vector<32x32xf32>
    %cst_12 = arith.constant dense<0.000000e+00> : vector<8x32xf32>
    %9 = tpu.matmul %3, %8, %cst_12 {dimension_numbers = #tpu.dot_dimension_numbers<[1], [0], [0], [1], [0, 0, 1, 1], [], []>} : vector<8x32xf32>, vector<32x32xf32>, vector<8x32xf32> -> vector<8x32xf32>
    %c0_13 = arith.constant 0 : index
    %c0_14 = arith.constant 0 : index
    %10 = vector.load %arg6[%c0_13, %c0_14] : memref<32x32xf32, #tpu.memory_space<vmem>>, vector<32x32xf32>
    %cst_15 = arith.constant dense<0.000000e+00> : vector<8x32xf32>
    %11 = tpu.matmul %5, %10, %cst_15 {dimension_numbers = #tpu.dot_dimension_numbers<[1], [0], [0], [1], [0, 0, 1, 1], [], []>} : vector<8x32xf32>, vector<32x32xf32>, vector<8x32xf32> -> vector<8x32xf32>
    %cst_16 = arith.constant 0.353553385 : f32
    %12 = vector.broadcast %cst_16 : f32 to vector<8x32xf32>
    %13 = arith.mulf %11, %12 : vector<8x32xf32>
    %14 = vector.shape_cast %13 : vector<8x32xf32> to vector<1x8x4x8xf32>
    %15 = tpu.transpose %14, [2, 0, 1, 3] : vector<1x8x4x8xf32> -> vector<4x1x8x8xf32>
    %16 = vector.shape_cast %15 : vector<4x1x8x8xf32> to vector<4x8x8xf32>
    %17 = vector.shape_cast %7 : vector<8x32xf32> to vector<1x8x4x8xf32>
    %18 = tpu.transpose %17, [2, 0, 1, 3] : vector<1x8x4x8xf32> -> vector<4x1x8x8xf32>
    %19 = vector.shape_cast %18 : vector<4x1x8x8xf32> to vector<4x8x8xf32>
    %20 = vector.shape_cast %9 : vector<8x32xf32> to vector<1x8x4x8xf32>
    %21 = tpu.transpose %20, [2, 0, 1, 3] : vector<1x8x4x8xf32> -> vector<4x1x8x8xf32>
    %22 = vector.shape_cast %21 : vector<4x1x8x8xf32> to vector<4x8x8xf32>
    "tpu.trace_start"() <{level = 10 : i32, message = "gqd,gkd->gqk"}> : () -> ()
    %cst_17 = arith.constant dense<0.000000e+00> : vector<4x8x8xf32>
    %23 = tpu.matmul %16, %19, %cst_17 {dimension_numbers = #tpu.dot_dimension_numbers<[2], [2], [1], [1], [0, 0, 0, 1, 1, 1], [0], [0]>} : vector<4x8x8xf32>, vector<4x8x8xf32>, vector<4x8x8xf32> -> vector<4x8x8xf32>
    "tpu.trace_stop"() : () -> ()
    %cst_18 = arith.constant dense<0xFF800000> : vector<4x8xf32>
    %24 = vector.multi_reduction <maximumf>, %23, %cst_18 [2] : vector<4x8x8xf32> to vector<4x8xf32>
    %25 = vector.shape_cast %24 : vector<4x8xf32> to vector<4x8x1xf32>
    %26 = vector.broadcast %25 : vector<4x8x1xf32> to vector<4x8x8xf32>
    %27 = arith.subf %23, %26 : vector<4x8x8xf32>
    %28 = math.exp %27 : vector<4x8x8xf32>
    %cst_19 = arith.constant dense<0.000000e+00> : vector<4x8xf32>
    %29 = vector.multi_reduction <add>, %28, %cst_19 [2] : vector<4x8x8xf32> to vector<4x8xf32>
    %30 = vector.shape_cast %29 : vector<4x8xf32> to vector<4x8x1xf32>
    %31 = vector.broadcast %30 : vector<4x8x1xf32> to vector<4x8x8xf32>
    %32 = arith.divf %28, %31 : vector<4x8x8xf32>
    %33 = vector.shape_cast %32 : vector<4x8x8xf32> to vector<4x1x8x8xf32>
    %c0_20 = arith.constant 0 : index
    %c0_21 = arith.constant 0 : index
    %c0_22 = arith.constant 0 : index
    %c0_23 = arith.constant 0 : index
    %34 = vector.load %arg12[%c0_20, %c0_21, %c0_22, %c0_23] : memref<4x1x8x8xf32, #tpu.memory_space<vmem>>, vector<4x1x8x8xf32>
    tpu.vector_store %arg12[%c0_20, %c0_21, %c0_22, %c0_23], %33 {strides = array<i32>} : memref<4x1x8x8xf32, #tpu.memory_space<vmem>>, vector<4x1x8x8xf32>,
    "tpu.trace_start"() <{level = 10 : i32, message = "gqk,gkd->gqd"}> : () -> ()
    %cst_24 = arith.constant dense<0.000000e+00> : vector<4x8x8xf32>
    %35 = tpu.matmul %32, %22, %cst_24 {dimension_numbers = #tpu.dot_dimension_numbers<[2], [1], [1], [2], [0, 0, 0, 1, 1, 2], [0], [0]>} : vector<4x8x8xf32>, vector<4x8x8xf32>, vector<4x8x8xf32> -> vector<4x8x8xf32>
    "tpu.trace_stop"() : () -> ()
    %36 = vector.shape_cast %35 : vector<4x8x8xf32> to vector<4x1x8x8xf32>
    %37 = tpu.transpose %36, [1, 2, 0, 3] : vector<4x1x8x8xf32> -> vector<1x8x4x8xf32>
    %38 = vector.shape_cast %37 : vector<1x8x4x8xf32> to vector<8x32xf32>
    %c0_25 = arith.constant 0 : index
    %c0_26 = arith.constant 0 : index
    %39 = vector.load %arg7[%c0_25, %c0_26] : memref<64x32xf32, #tpu.memory_space<vmem>>, vector<32x32xf32>
    %cst_27 = arith.constant dense<0.000000e+00> : vector<8x32xf32>
    %40 = tpu.matmul %5, %39, %cst_27 {dimension_numbers = #tpu.dot_dimension_numbers<[1], [0], [0], [1], [0, 0, 1, 1], [], []>} : vector<8x32xf32>, vector<32x32xf32>, vector<8x32xf32> -> vector<8x32xf32>
    %c32 = arith.constant 32 : index
    %c0_28 = arith.constant 0 : index
    %41 = vector.load %arg7[%c32, %c0_28] : memref<64x32xf32, #tpu.memory_space<vmem>>, vector<32x32xf32>
    %cst_29 = arith.constant dense<0.000000e+00> : vector<8x32xf32>
    %42 = tpu.matmul %38, %41, %cst_29 {dimension_numbers = #tpu.dot_dimension_numbers<[1], [0], [0], [1], [0, 0, 1, 1], [], []>} : vector<8x32xf32>, vector<32x32xf32>, vector<8x32xf32> -> vector<8x32xf32>
    %43 = arith.addf %40, %42 : vector<8x32xf32>
    %c0_30 = arith.constant 0 : index
    %c0_31 = arith.constant 0 : index
    %44 = vector.load %arg8[%c0_30, %c0_31] : memref<1x32xf32, #tpu.memory_space<vmem>>, vector<1x32xf32>
    %45 = vector.broadcast %44 : vector<1x32xf32> to vector<8x32xf32>
    %46 = arith.addf %43, %45 : vector<8x32xf32>
    %47 = arith.addf %46, %5 : vector<8x32xf32>
    %cst_32 = arith.constant dense<0.000000e+00> : vector<8xf32>
    %48 = vector.multi_reduction <add>, %47, %cst_32 [1] : vector<8x32xf32> to vector<8xf32>
    %49 = vector.shape_cast %48 : vector<8xf32> to vector<8x1xf32>
    %cst_33 = arith.constant 3.200000e+01 : f32
    %50 = vector.broadcast %cst_33 : f32 to vector<8x1xf32>
    %51 = arith.divf %49, %50 : vector<8x1xf32>
    %52 = vector.broadcast %51 : vector<8x1xf32> to vector<8x32xf32>
    %53 = arith.subf %47, %52 : vector<8x32xf32>
    %54 = arith.mulf %53, %53 : vector<8x32xf32>
    %cst_34 = arith.constant dense<0.000000e+00> : vector<8xf32>
    %55 = vector.multi_reduction <add>, %54, %cst_34 [1] : vector<8x32xf32> to vector<8xf32>
    %56 = vector.shape_cast %55 : vector<8xf32> to vector<8x1xf32>
    %cst_35 = arith.constant 3.200000e+01 : f32
    %57 = vector.broadcast %cst_35 : f32 to vector<8x1xf32>
    %58 = arith.divf %56, %57 : vector<8x1xf32>
    %59 = vector.broadcast %51 : vector<8x1xf32> to vector<8x32xf32>
    %60 = arith.subf %47, %59 : vector<8x32xf32>
    %cst_36 = arith.constant 9.99999974E-6 : f32
    %61 = vector.broadcast %cst_36 : f32 to vector<8x1xf32>
    %62 = arith.addf %58, %61 : vector<8x1xf32>
    %63 = math.rsqrt %62 : vector<8x1xf32>
    %64 = vector.broadcast %63 : vector<8x1xf32> to vector<8x32xf32>
    %65 = arith.mulf %60, %64 : vector<8x32xf32>
    %c0_37 = arith.constant 0 : index
    %c0_38 = arith.constant 0 : index
    %66 = vector.load %arg9[%c0_37, %c0_38] : memref<1x32xf32, #tpu.memory_space<vmem>>, vector<1x32xf32>
    %67 = vector.broadcast %66 : vector<1x32xf32> to vector<8x32xf32>
    %68 = arith.mulf %65, %67 : vector<8x32xf32>
    %c0_39 = arith.constant 0 : index
    %c0_40 = arith.constant 0 : index
    %69 = vector.load %arg10[%c0_39, %c0_40] : memref<1x32xf32, #tpu.memory_space<vmem>>, vector<1x32xf32>
    %70 = vector.broadcast %69 : vector<1x32xf32> to vector<8x32xf32>
    %71 = arith.addf %68, %70 : vector<8x32xf32>
    %72 = vector.shape_cast %71 : vector<8x32xf32> to vector<1x8x32xf32>
    %c0_41 = arith.constant 0 : index
    %c0_42 = arith.constant 0 : index
    %c0_43 = arith.constant 0 : index
    %73 = vector.load %arg11[%c0_41, %c0_42, %c0_43] : memref<1x8x32xf32, #tpu.memory_space<vmem>>, vector<1x8x32xf32>
    tpu.vector_store %arg11[%c0_41, %c0_42, %c0_43], %72 {strides = array<i32>} : memref<1x8x32xf32, #tpu.memory_space<vmem>>, vector<1x8x32xf32>,
    return
  }
  func.func @transform_0(%arg0: i32) -> (i32, i32, i32) {
    %c0_i32 = arith.constant 0 : i32
    %c0_i32_0 = arith.constant 0 : i32
    %c0_i32_1 = arith.constant 0 : i32
    return %arg0, %c0_i32, %c0_i32_0 : i32, i32, i32
  }
  func.func @transform_1(%arg0: i32) -> (i32, i32, i32) {
    %c0_i32 = arith.constant 0 : i32
    %c0_i32_0 = arith.constant 0 : i32
    %c0_i32_1 = arith.constant 0 : i32
    return %arg0, %c0_i32, %c0_i32_0 : i32, i32, i32
  }
  func.func @transform_2(%arg0: i32) -> (i32, i32, i32) {
    %c0_i32 = arith.constant 0 : i32
    %c0_i32_0 = arith.constant 0 : i32
    %c0_i32_1 = arith.constant 0 : i32
    return %arg0, %c0_i32, %c0_i32_0 : i32, i32, i32
  }
  func.func @transform_3(%arg0: i32) -> (i32, i32) {
    %c0_i32 = arith.constant 0 : i32
    %c0_i32_0 = arith.constant 0 : i32
    %c0_i32_1 = arith.constant 0 : i32
    return %c0_i32, %c0_i32_0 : i32, i32
  }
  func.func @transform_4(%arg0: i32) -> (i32, i32) {
    %c0_i32 = arith.constant 0 : i32
    %c0_i32_0 = arith.constant 0 : i32
    %c0_i32_1 = arith.constant 0 : i32
    return %c0_i32, %c0_i32_0 : i32, i32
  }
  func.func @transform_5(%arg0: i32) -> (i32, i32) {
    %c0_i32 = arith.constant 0 : i32
    %c0_i32_0 = arith.constant 0 : i32
    %c0_i32_1 = arith.constant 0 : i32
    return %c0_i32, %c0_i32_0 : i32, i32
  }
  func.func @transform_6(%arg0: i32) -> (i32, i32) {
    %c0_i32 = arith.constant 0 : i32
    %c0_i32_0 = arith.constant 0 : i32
    %c0_i32_1 = arith.constant 0 : i32
    return %c0_i32, %c0_i32_0 : i32, i32
  }
  func.func @transform_7(%arg0: i32) -> (i32, i32) {
    %c0_i32 = arith.constant 0 : i32
    %c0_i32_0 = arith.constant 0 : i32
    %c0_i32_1 = arith.constant 0 : i32
    return %c0_i32, %c0_i32_0 : i32, i32
  }
  func.func @transform_8(%arg0: i32) -> (i32, i32) {
    %c0_i32 = arith.constant 0 : i32
    %c0_i32_0 = arith.constant 0 : i32
    %c0_i32_1 = arith.constant 0 : i32
    return %c0_i32, %c0_i32_0 : i32, i32
  }
  func.func @transform_9(%arg0: i32) -> (i32, i32) {
    %c0_i32 = arith.constant 0 : i32
    %c0_i32_0 = arith.constant 0 : i32
    %c0_i32_1 = arith.constant 0 : i32
    return %c0_i32, %c0_i32_0 : i32, i32
  }
  func.func @transform_10(%arg0: i32) -> (i32, i32, i32) {
    %c0_i32 = arith.constant 0 : i32
    %c0_i32_0 = arith.constant 0 : i32
    %c0_i32_1 = arith.constant 0 : i32
    return %arg0, %c0_i32, %c0_i32_0 : i32, i32, i32
  }
  func.func @transform_11(%arg0: i32) -> (i32, i32, i32, i32) {
    %c0_i32 = arith.constant 0 : i32
    %c0_i32_0 = arith.constant 0 : i32
    %c0_i32_1 = arith.constant 0 : i32
    %c0_i32_2 = arith.constant 0 : i32
    return %c0_i32, %arg0, %c0_i32_0, %c0_i32_1 : i32, i32, i32, i32
  }
}

module attributes {stable_mosaic.version = 11 : i64} {
  func.func @body(%arg0: i32, %arg1: memref<1x8x32xf32, #tpu.memory_space<vmem>>, %arg2: memref<1x8x32xf32, #tpu.memory_space<vmem>>, %arg3: memref<1x8x32xf32, #tpu.memory_space<vmem>>, %arg4: memref<32x32xf32, #tpu.memory_space<vmem>>, %arg5: memref<32x32xf32, #tpu.memory_space<vmem>>, %arg6: memref<32x32xf32, #tpu.memory_space<vmem>>, %arg7: memref<64x32xf32, #tpu.memory_space<vmem>>, %arg8: memref<1x32xf32, #tpu.memory_space<vmem>>, %arg9: memref<1x32xf32, #tpu.memory_space<vmem>>, %arg10: memref<1x32xf32, #tpu.memory_space<vmem>>, %arg11: memref<1x8x32xf32, #tpu.memory_space<vmem>>, %arg12: memref<4x1x8x8xf32, #tpu.memory_space<vmem>>) attributes {dimension_semantics = [#tpu.dimension_semantics<parallel>], iteration_bounds = array<i64: 2>, scalar_prefetch = 0 : i64, scratch_operands = 0 : i64, tpu.core_type = #tpu.core_type<tc>, window_params = [{transform_indices = @transform_0, window_bounds = array<i64: 1, 8, 32>}, {transform_indices = @transform_1, window_bounds = array<i64: 1, 8, 32>}, {transform_indices = @transform_2, window_bounds = array<i64: 1, 8, 32>}, {pipeline_mode = #tpu.pipeline_mode<synchronous>, transform_indices = @transform_3, window_bounds = array<i64: 32, 32>}, {pipeline_mode = #tpu.pipeline_mode<synchronous>, transform_indices = @transform_4, window_bounds = array<i64: 32, 32>}, {pipeline_mode = #tpu.pipeline_mode<synchronous>, transform_indices = @transform_5, window_bounds = array<i64: 32, 32>}, {pipeline_mode = #tpu.pipeline_mode<synchronous>, transform_indices = @transform_6, window_bounds = array<i64: 64, 32>}, {pipeline_mode = #tpu.pipeline_mode<synchronous>, transform_indices = @transform_7, window_bounds = array<i64: 1, 32>}, {pipeline_mode = #tpu.pipeline_mode<synchronous>, transform_indices = @transform_8, window_bounds = array<i64: 1, 32>}, {pipeline_mode = #tpu.pipeline_mode<synchronous>, transform_indices = @transform_9, window_bounds = array<i64: 1, 32>}, {transform_indices = @transform_10, window_bounds = array<i64: 1, 8, 32>}, {transform_indices = @transform_11, window_bounds = array<i64: 4, 1, 8, 8>}]} {
    %c0 = arith.constant 0 : index
    %c0_0 = arith.constant 0 : index
    %c0_1 = arith.constant 0 : index
    %0 = vector.load %arg1[%c0, %c0_0, %c0_1] : memref<1x8x32xf32, #tpu.memory_space<vmem>>, vector<1x8x32xf32>
    %1 = vector.shape_cast %0 : vector<1x8x32xf32> to vector<8x32xf32>
    %c0_2 = arith.constant 0 : index
    %c0_3 = arith.constant 0 : index
    %c0_4 = arith.constant 0 : index
    %2 = vector.load %arg2[%c0_2, %c0_3, %c0_4] : memref<1x8x32xf32, #tpu.memory_space<vmem>>, vector<1x8x32xf32>
    %3 = vector.shape_cast %2 : vector<1x8x32xf32> to vector<8x32xf32>
    %c0_5 = arith.constant 0 : index
    %c0_6 = arith.constant 0 : index
    %c0_7 = arith.constant 0 : index
    %4 = vector.load %arg3[%c0_5, %c0_6, %c0_7] : memref<1x8x32xf32, #tpu.memory_space<vmem>>, vector<1x8x32xf32>
    %5 = vector.shape_cast %4 : vector<1x8x32xf32> to vector<8x32xf32>
    %c0_8 = arith.constant 0 : index
    %c0_9 = arith.constant 0 : index
    %6 = vector.load %arg4[%c0_8, %c0_9] : memref<32x32xf32, #tpu.memory_space<vmem>>, vector<32x32xf32>
    %cst = arith.constant dense<0.000000e+00> : vector<8x32xf32>
    %7 = tpu.matmul %1, %6, %cst {dimension_numbers = #tpu.dot_dimension_numbers<[1], [0], [0], [1], [0, 0, 1, 1], [], []>} : vector<8x32xf32>, vector<32x32xf32>, vector<8x32xf32> -> vector<8x32xf32>
    %c0_10 = arith.constant 0 : index
    %c0_11 = arith.constant 0 : index
    %8 = vector.load %arg5[%c0_10, %c0_11] : memref<32x32xf32, #tpu.memory_space<vmem>>, vector<32x32xf32>
    %cst_12 = arith.constant dense<0.000000e+00> : vector<8x32xf32>
    %9 = tpu.matmul %3, %8, %cst_12 {dimension_numbers = #tpu.dot_dimension_numbers<[1], [0], [0], [1], [0, 0, 1, 1], [], []>} : vector<8x32xf32>, vector<32x32xf32>, vector<8x32xf32> -> vector<8x32xf32>
    %c0_13 = arith.constant 0 : index
    %c0_14 = arith.constant 0 : index
    %10 = vector.load %arg6[%c0_13, %c0_14] : memref<32x32xf32, #tpu.memory_space<vmem>>, vector<32x32xf32>
    %cst_15 = arith.constant dense<0.000000e+00> : vector<8x32xf32>
    %11 = tpu.matmul %5, %10, %cst_15 {dimension_numbers = #tpu.dot_dimension_numbers<[1], [0], [0], [1], [0, 0, 1, 1], [], []>} : vector<8x32xf32>, vector<32x32xf32>, vector<8x32xf32> -> vector<8x32xf32>
    %cst_16 = arith.constant 0.353553385 : f32
    %12 = vector.broadcast %cst_16 : f32 to vector<8x32xf32>
    %13 = arith.mulf %11, %12 : vector<8x32xf32>
    %14 = vector.shape_cast %13 : vector<8x32xf32> to vector<1x8x32xf32>
    %15 = vector.extract_strided_slice %14 {offsets = [0, 0, 0], sizes = [1, 8, 8], strides = [1, 1, 1]} : vector<1x8x32xf32> to vector<1x8x8xf32>
    %16 = vector.extract_strided_slice %14 {offsets = [0, 0, 8], sizes = [1, 8, 8], strides = [1, 1, 1]} : vector<1x8x32xf32> to vector<1x8x8xf32>
    %17 = vector.extract_strided_slice %14 {offsets = [0, 0, 16], sizes = [1, 8, 8], strides = [1, 1, 1]} : vector<1x8x32xf32> to vector<1x8x8xf32>
    %18 = vector.extract_strided_slice %14 {offsets = [0, 0, 24], sizes = [1, 8, 8], strides = [1, 1, 1]} : vector<1x8x32xf32> to vector<1x8x8xf32>
    %19 = vector.shape_cast %15 : vector<1x8x8xf32> to vector<1x1x8x8xf32>
    %20 = vector.shape_cast %16 : vector<1x8x8xf32> to vector<1x1x8x8xf32>
    %21 = vector.shape_cast %17 : vector<1x8x8xf32> to vector<1x1x8x8xf32>
    %22 = vector.shape_cast %18 : vector<1x8x8xf32> to vector<1x1x8x8xf32>
    %23 = tpu.concatenate %19, %20, %21, %22 in 0 : vector<1x1x8x8xf32>, vector<1x1x8x8xf32>, vector<1x1x8x8xf32>, vector<1x1x8x8xf32> -> vector<4x1x8x8xf32>
    %24 = vector.shape_cast %23 : vector<4x1x8x8xf32> to vector<4x8x8xf32>
    %25 = vector.shape_cast %7 : vector<8x32xf32> to vector<1x8x32xf32>
    %26 = vector.extract_strided_slice %25 {offsets = [0, 0, 0], sizes = [1, 8, 8], strides = [1, 1, 1]} : vector<1x8x32xf32> to vector<1x8x8xf32>
    %27 = vector.extract_strided_slice %25 {offsets = [0, 0, 8], sizes = [1, 8, 8], strides = [1, 1, 1]} : vector<1x8x32xf32> to vector<1x8x8xf32>
    %28 = vector.extract_strided_slice %25 {offsets = [0, 0, 16], sizes = [1, 8, 8], strides = [1, 1, 1]} : vector<1x8x32xf32> to vector<1x8x8xf32>
    %29 = vector.extract_strided_slice %25 {offsets = [0, 0, 24], sizes = [1, 8, 8], strides = [1, 1, 1]} : vector<1x8x32xf32> to vector<1x8x8xf32>
    %30 = vector.shape_cast %26 : vector<1x8x8xf32> to vector<1x1x8x8xf32>
    %31 = vector.shape_cast %27 : vector<1x8x8xf32> to vector<1x1x8x8xf32>
    %32 = vector.shape_cast %28 : vector<1x8x8xf32> to vector<1x1x8x8xf32>
    %33 = vector.shape_cast %29 : vector<1x8x8xf32> to vector<1x1x8x8xf32>
    %34 = tpu.concatenate %30, %31, %32, %33 in 0 : vector<1x1x8x8xf32>, vector<1x1x8x8xf32>, vector<1x1x8x8xf32>, vector<1x1x8x8xf32> -> vector<4x1x8x8xf32>
    %35 = vector.shape_cast %34 : vector<4x1x8x8xf32> to vector<4x8x8xf32>
    %36 = vector.shape_cast %9 : vector<8x32xf32> to vector<1x8x32xf32>
    %37 = vector.extract_strided_slice %36 {offsets = [0, 0, 0], sizes = [1, 8, 8], strides = [1, 1, 1]} : vector<1x8x32xf32> to vector<1x8x8xf32>
    %38 = vector.extract_strided_slice %36 {offsets = [0, 0, 8], sizes = [1, 8, 8], strides = [1, 1, 1]} : vector<1x8x32xf32> to vector<1x8x8xf32>
    %39 = vector.extract_strided_slice %36 {offsets = [0, 0, 16], sizes = [1, 8, 8], strides = [1, 1, 1]} : vector<1x8x32xf32> to vector<1x8x8xf32>
    %40 = vector.extract_strided_slice %36 {offsets = [0, 0, 24], sizes = [1, 8, 8], strides = [1, 1, 1]} : vector<1x8x32xf32> to vector<1x8x8xf32>
    %41 = vector.shape_cast %37 : vector<1x8x8xf32> to vector<1x1x8x8xf32>
    %42 = vector.shape_cast %38 : vector<1x8x8xf32> to vector<1x1x8x8xf32>
    %43 = vector.shape_cast %39 : vector<1x8x8xf32> to vector<1x1x8x8xf32>
    %44 = vector.shape_cast %40 : vector<1x8x8xf32> to vector<1x1x8x8xf32>
    %45 = tpu.concatenate %41, %42, %43, %44 in 0 : vector<1x1x8x8xf32>, vector<1x1x8x8xf32>, vector<1x1x8x8xf32>, vector<1x1x8x8xf32> -> vector<4x1x8x8xf32>
    %46 = vector.shape_cast %45 : vector<4x1x8x8xf32> to vector<4x8x8xf32>
    "tpu.trace_start"() <{level = 10 : i32, message = "gqd,gkd->gqk"}> : () -> ()
    %cst_17 = arith.constant dense<0.000000e+00> : vector<4x8x8xf32>
    %47 = tpu.matmul %24, %35, %cst_17 {dimension_numbers = #tpu.dot_dimension_numbers<[2], [2], [1], [1], [0, 0, 0, 1, 1, 1], [0], [0]>} : vector<4x8x8xf32>, vector<4x8x8xf32>, vector<4x8x8xf32> -> vector<4x8x8xf32>
    "tpu.trace_stop"() : () -> ()
    %cst_18 = arith.constant dense<0xFF800000> : vector<4x8xf32>
    %48 = vector.multi_reduction <maximumf>, %47, %cst_18 [2] : vector<4x8x8xf32> to vector<4x8xf32>
    %49 = vector.shape_cast %48 : vector<4x8xf32> to vector<4x8x1xf32>
    %50 = vector.broadcast %49 : vector<4x8x1xf32> to vector<4x8x8xf32>
    %51 = arith.subf %47, %50 : vector<4x8x8xf32>
    %52 = math.exp %51 : vector<4x8x8xf32>
    %cst_19 = arith.constant dense<0.000000e+00> : vector<4x8xf32>
    %53 = vector.multi_reduction <add>, %52, %cst_19 [2] : vector<4x8x8xf32> to vector<4x8xf32>
    %54 = vector.shape_cast %53 : vector<4x8xf32> to vector<4x8x1xf32>
    %55 = vector.broadcast %54 : vector<4x8x1xf32> to vector<4x8x8xf32>
    %56 = arith.divf %52, %55 : vector<4x8x8xf32>
    %57 = vector.shape_cast %56 : vector<4x8x8xf32> to vector<4x1x8x8xf32>
    %c0_20 = arith.constant 0 : index
    %c0_21 = arith.constant 0 : index
    %c0_22 = arith.constant 0 : index
    %c0_23 = arith.constant 0 : index
    %58 = vector.load %arg12[%c0_20, %c0_21, %c0_22, %c0_23] : memref<4x1x8x8xf32, #tpu.memory_space<vmem>>, vector<4x1x8x8xf32>
    tpu.vector_store %arg12[%c0_20, %c0_21, %c0_22, %c0_23], %57 {strides = array<i32>} : memref<4x1x8x8xf32, #tpu.memory_space<vmem>>, vector<4x1x8x8xf32>,
    "tpu.trace_start"() <{level = 10 : i32, message = "gqk,gkd->gqd"}> : () -> ()
    %cst_24 = arith.constant dense<0.000000e+00> : vector<4x8x8xf32>
    %59 = tpu.matmul %56, %46, %cst_24 {dimension_numbers = #tpu.dot_dimension_numbers<[2], [1], [1], [2], [0, 0, 0, 1, 1, 2], [0], [0]>} : vector<4x8x8xf32>, vector<4x8x8xf32>, vector<4x8x8xf32> -> vector<4x8x8xf32>
    "tpu.trace_stop"() : () -> ()
    %60 = vector.shape_cast %59 : vector<4x8x8xf32> to vector<4x1x8x8xf32>
    %61 = vector.extract_strided_slice %60 {offsets = [0, 0, 0, 0], sizes = [1, 1, 8, 8], strides = [1, 1, 1, 1]} : vector<4x1x8x8xf32> to vector<1x1x8x8xf32>
    %62 = vector.shape_cast %61 : vector<1x1x8x8xf32> to vector<1x8x8xf32>
    %63 = vector.extract_strided_slice %60 {offsets = [1, 0, 0, 0], sizes = [1, 1, 8, 8], strides = [1, 1, 1, 1]} : vector<4x1x8x8xf32> to vector<1x1x8x8xf32>
    %64 = vector.shape_cast %63 : vector<1x1x8x8xf32> to vector<1x8x8xf32>
    %65 = vector.extract_strided_slice %60 {offsets = [2, 0, 0, 0], sizes = [1, 1, 8, 8], strides = [1, 1, 1, 1]} : vector<4x1x8x8xf32> to vector<1x1x8x8xf32>
    %66 = vector.shape_cast %65 : vector<1x1x8x8xf32> to vector<1x8x8xf32>
    %67 = vector.extract_strided_slice %60 {offsets = [3, 0, 0, 0], sizes = [1, 1, 8, 8], strides = [1, 1, 1, 1]} : vector<4x1x8x8xf32> to vector<1x1x8x8xf32>
    %68 = vector.shape_cast %67 : vector<1x1x8x8xf32> to vector<1x8x8xf32>
    %69 = tpu.concatenate %62, %64, %66, %68 in 2 : vector<1x8x8xf32>, vector<1x8x8xf32>, vector<1x8x8xf32>, vector<1x8x8xf32> -> vector<1x8x32xf32>
    %70 = vector.shape_cast %69 : vector<1x8x32xf32> to vector<8x32xf32>
    %c0_25 = arith.constant 0 : index
    %c0_26 = arith.constant 0 : index
    %71 = vector.load %arg7[%c0_25, %c0_26] : memref<64x32xf32, #tpu.memory_space<vmem>>, vector<32x32xf32>
    %cst_27 = arith.constant dense<0.000000e+00> : vector<8x32xf32>
    %72 = tpu.matmul %5, %71, %cst_27 {dimension_numbers = #tpu.dot_dimension_numbers<[1], [0], [0], [1], [0, 0, 1, 1], [], []>} : vector<8x32xf32>, vector<32x32xf32>, vector<8x32xf32> -> vector<8x32xf32>
    %c32 = arith.constant 32 : index
    %c0_28 = arith.constant 0 : index
    %73 = vector.load %arg7[%c32, %c0_28] : memref<64x32xf32, #tpu.memory_space<vmem>>, vector<32x32xf32>
    %cst_29 = arith.constant dense<0.000000e+00> : vector<8x32xf32>
    %74 = tpu.matmul %70, %73, %cst_29 {dimension_numbers = #tpu.dot_dimension_numbers<[1], [0], [0], [1], [0, 0, 1, 1], [], []>} : vector<8x32xf32>, vector<32x32xf32>, vector<8x32xf32> -> vector<8x32xf32>
    %75 = arith.addf %72, %74 : vector<8x32xf32>
    %c0_30 = arith.constant 0 : index
    %c0_31 = arith.constant 0 : index
    %76 = vector.load %arg8[%c0_30, %c0_31] : memref<1x32xf32, #tpu.memory_space<vmem>>, vector<1x32xf32>
    %77 = vector.broadcast %76 : vector<1x32xf32> to vector<8x32xf32>
    %78 = arith.addf %75, %77 : vector<8x32xf32>
    %79 = arith.addf %78, %5 : vector<8x32xf32>
    %cst_32 = arith.constant dense<0.000000e+00> : vector<8xf32>
    %80 = vector.multi_reduction <add>, %79, %cst_32 [1] : vector<8x32xf32> to vector<8xf32>
    %81 = vector.shape_cast %80 : vector<8xf32> to vector<8x1xf32>
    %cst_33 = arith.constant 3.200000e+01 : f32
    %82 = vector.broadcast %cst_33 : f32 to vector<8x1xf32>
    %83 = arith.divf %81, %82 : vector<8x1xf32>
    %84 = vector.broadcast %83 : vector<8x1xf32> to vector<8x32xf32>
    %85 = arith.subf %79, %84 : vector<8x32xf32>
    %86 = arith.mulf %85, %85 : vector<8x32xf32>
    %cst_34 = arith.constant dense<0.000000e+00> : vector<8xf32>
    %87 = vector.multi_reduction <add>, %86, %cst_34 [1] : vector<8x32xf32> to vector<8xf32>
    %88 = vector.shape_cast %87 : vector<8xf32> to vector<8x1xf32>
    %cst_35 = arith.constant 3.200000e+01 : f32
    %89 = vector.broadcast %cst_35 : f32 to vector<8x1xf32>
    %90 = arith.divf %88, %89 : vector<8x1xf32>
    %91 = vector.broadcast %83 : vector<8x1xf32> to vector<8x32xf32>
    %92 = arith.subf %79, %91 : vector<8x32xf32>
    %cst_36 = arith.constant 9.99999974E-6 : f32
    %93 = vector.broadcast %cst_36 : f32 to vector<8x1xf32>
    %94 = arith.addf %90, %93 : vector<8x1xf32>
    %95 = math.rsqrt %94 : vector<8x1xf32>
    %96 = vector.broadcast %95 : vector<8x1xf32> to vector<8x32xf32>
    %97 = arith.mulf %92, %96 : vector<8x32xf32>
    %c0_37 = arith.constant 0 : index
    %c0_38 = arith.constant 0 : index
    %98 = vector.load %arg9[%c0_37, %c0_38] : memref<1x32xf32, #tpu.memory_space<vmem>>, vector<1x32xf32>
    %99 = vector.broadcast %98 : vector<1x32xf32> to vector<8x32xf32>
    %100 = arith.mulf %97, %99 : vector<8x32xf32>
    %c0_39 = arith.constant 0 : index
    %c0_40 = arith.constant 0 : index
    %101 = vector.load %arg10[%c0_39, %c0_40] : memref<1x32xf32, #tpu.memory_space<vmem>>, vector<1x32xf32>
    %102 = vector.broadcast %101 : vector<1x32xf32> to vector<8x32xf32>
    %103 = arith.addf %100, %102 : vector<8x32xf32>
    %104 = vector.shape_cast %103 : vector<8x32xf32> to vector<1x8x32xf32>
    %c0_41 = arith.constant 0 : index
    %c0_42 = arith.constant 0 : index
    %c0_43 = arith.constant 0 : index
    %105 = vector.load %arg11[%c0_41, %c0_42, %c0_43] : memref<1x8x32xf32, #tpu.memory_space<vmem>>, vector<1x8x32xf32>
    tpu.vector_store %arg11[%c0_41, %c0_42, %c0_43], %104 {strides = array<i32>} : memref<1x8x32xf32, #tpu.memory_space<vmem>>, vector<1x8x32xf32>,
    return
  }
  func.func @transform_0(%arg0: i32) -> (i32, i32, i32) {
    %c0_i32 = arith.constant 0 : i32
    %c0_i32_0 = arith.constant 0 : i32
    %c0_i32_1 = arith.constant 0 : i32
    return %arg0, %c0_i32, %c0_i32_0 : i32, i32, i32
  }
  func.func @transform_1(%arg0: i32) -> (i32, i32, i32) {
    %c0_i32 = arith.constant 0 : i32
    %c0_i32_0 = arith.constant 0 : i32
    %c0_i32_1 = arith.constant 0 : i32
    return %arg0, %c0_i32, %c0_i32_0 : i32, i32, i32
  }
  func.func @transform_2(%arg0: i32) -> (i32, i32, i32) {
    %c0_i32 = arith.constant 0 : i32
    %c0_i32_0 = arith.constant 0 : i32
    %c0_i32_1 = arith.constant 0 : i32
    return %arg0, %c0_i32, %c0_i32_0 : i32, i32, i32
  }
  func.func @transform_3(%arg0: i32) -> (i32, i32) {
    %c0_i32 = arith.constant 0 : i32
    %c0_i32_0 = arith.constant 0 : i32
    %c0_i32_1 = arith.constant 0 : i32
    return %c0_i32, %c0_i32_0 : i32, i32
  }
  func.func @transform_4(%arg0: i32) -> (i32, i32) {
    %c0_i32 = arith.constant 0 : i32
    %c0_i32_0 = arith.constant 0 : i32
    %c0_i32_1 = arith.constant 0 : i32
    return %c0_i32, %c0_i32_0 : i32, i32
  }
  func.func @transform_5(%arg0: i32) -> (i32, i32) {
    %c0_i32 = arith.constant 0 : i32
    %c0_i32_0 = arith.constant 0 : i32
    %c0_i32_1 = arith.constant 0 : i32
    return %c0_i32, %c0_i32_0 : i32, i32
  }
  func.func @transform_6(%arg0: i32) -> (i32, i32) {
    %c0_i32 = arith.constant 0 : i32
    %c0_i32_0 = arith.constant 0 : i32
    %c0_i32_1 = arith.constant 0 : i32
    return %c0_i32, %c0_i32_0 : i32, i32
  }
  func.func @transform_7(%arg0: i32) -> (i32, i32) {
    %c0_i32 = arith.constant 0 : i32
    %c0_i32_0 = arith.constant 0 : i32
    %c0_i32_1 = arith.constant 0 : i32
    return %c0_i32, %c0_i32_0 : i32, i32
  }
  func.func @transform_8(%arg0: i32) -> (i32, i32) {
    %c0_i32 = arith.constant 0 : i32
    %c0_i32_0 = arith.constant 0 : i32
    %c0_i32_1 = arith.constant 0 : i32
    return %c0_i32, %c0_i32_0 : i32, i32
  }
  func.func @transform_9(%arg0: i32) -> (i32, i32) {
    %c0_i32 = arith.constant 0 : i32
    %c0_i32_0 = arith.constant 0 : i32
    %c0_i32_1 = arith.constant 0 : i32
    return %c0_i32, %c0_i32_0 : i32, i32
  }
  func.func @transform_10(%arg0: i32) -> (i32, i32, i32) {
    %c0_i32 = arith.constant 0 : i32
    %c0_i32_0 = arith.constant 0 : i32
    %c0_i32_1 = arith.constant 0 : i32
    return %arg0, %c0_i32, %c0_i32_0 : i32, i32, i32
  }
  func.func @transform_11(%arg0: i32) -> (i32, i32, i32, i32) {
    %c0_i32 = arith.constant 0 : i32
    %c0_i32_0 = arith.constant 0 : i32
    %c0_i32_1 = arith.constant 0 : i32
    %c0_i32_2 = arith.constant 0 : i32
    return %c0_i32, %arg0, %c0_i32_0, %c0_i32_1 : i32, i32, i32, i32
  }
}

</mosaic_0001>

<llo_original>
// kernel: tpu_custom_call.1
$region0: #{tpu_custom_call.1}
  #allocation0 [shape = 'u32[]', space=smem, size = 0x4, offset = 0x4, fixed_abs, tag = 'smem constant byte address 0x4 - core index']
  #allocation1 [shape = 'u32[144,128]{1,0:T(1,128)}', space=vmem, size = 0x12000, scoped, tag = 'internal scratch']
  %s0 = inlined_call_operand.hbm [shape: f32[2,8,32], index: 0, kind: input, shape index: {}]
  %s1 = inlined_call_operand.hbm [shape: f32[2,8,32], index: 1, kind: input, shape index: {}]
  %s2 = inlined_call_operand.hbm [shape: f32[2,8,32], index: 2, kind: input, shape index: {}]
  %s3 = inlined_call_operand.vmem [shape: f32[32,32], index: 3, kind: input, shape index: {}]
  %s4 = inlined_call_operand.vmem [shape: f32[32,32], index: 4, kind: input, shape index: {}]
  %s5 = inlined_call_operand.vmem [shape: f32[32,32], index: 5, kind: input, shape index: {}]
  %s6 = inlined_call_operand.vmem [shape: f32[64,32], index: 6, kind: input, shape index: {}]
  %s7 = inlined_call_operand.vmem [shape: f32[1,32], index: 7, kind: input, shape index: {}]
  %s8 = inlined_call_operand.vmem [shape: f32[1,32], index: 8, kind: input, shape index: {}]
  %s9 = inlined_call_operand.vmem [shape: f32[1,32], index: 9, kind: input, shape index: {}]
  %s10 = inlined_call_operand.hbm [shape: f32[2,8,32], index: 10, kind: output, shape index: {0}]
  %s11 = inlined_call_operand.hbm [shape: f32[4,2,8,8], index: 11, kind: output, shape index: {1}]
  %12 = xla_tuple %s10, %s11
  %s13 = sld [smem:[#allocation0]]
  $region93: #{tpu_custom_call.1} parent=0
    _
  %s15 = ssub.s32 1, %s13
  %s16 = scalar_select 0, %s15, %s13
  $region1: #{tpu_custom_call.1} parent=0
    #allocation2 [shape = 'u8[8192]{0}', space=vmem, size = 0x2000, scoped, tag = 'input window, operand 0']
    #allocation3 [shape = 's32[2]{0}', space=sflag, size = 0x8, scoped, tag = 'scoped memory for tpu_custom_call.1']
    #allocation4 [shape = 's32[2]{0}', space=sflag, size = 0x8, scoped, tag = 'scoped memory for tpu_custom_call.1']
    #allocation5 [shape = 'u8[8192]{0}', space=vmem, size = 0x2000, scoped, tag = 'input window, operand 1']
    #allocation6 [shape = 's32[2]{0}', space=sflag, size = 0x8, scoped, tag = 'scoped memory for tpu_custom_call.1']
    #allocation7 [shape = 'u8[8192]{0}', space=vmem, size = 0x2000, scoped, tag = 'input window, operand 2']
    #allocation8 [shape = 'u8[8192]{0}', space=vmem, size = 0x2000, scoped, tag = 'output window, operand 0']
    #allocation9 [shape = 'u8[32768]{0}', space=vmem, size = 0x8000, scoped, tag = 'output window, operand 1']
    #allocation10 [shape = 's32[2]{0}', space=sflag, size = 0x8, scoped, tag = 'scoped memory for tpu_custom_call.1']
    %17 = vsyncpa [#allocation3], 0
    %s18 = scalar_lea.sflag [#allocation3], 1
    %19 = vsyncpa %s18, 0
    %20 = vsyncpa [#allocation6], 0
    %s21 = scalar_lea.sflag [#allocation6], 1
    %22 = vsyncpa %s21, 0
    %23 = vsyncpa [#allocation4], 0
    %s24 = scalar_lea.sflag [#allocation4], 1
    %25 = vsyncpa %s24, 0
    %26 = vsyncpa [#allocation10], 0
    %s27 = scalar_lea.sflag [#allocation10], 1
    %28 = vsyncpa %s27, 0
    loop: start=0, step=1, limit=4
    $region2: #{tpu_custom_call.1} parent=1 // loop_pre_header
      _
    $region3: #{tpu_custom_call.1} parent=1 // loop_header
      %s30 = sphi 0, %s34
      %p31 = scmp.ge.s32.totalorder %s30, 4
      %s40 = sphi 0, %s42
      %s43 = sphi 0, %s40
      %s44 = sphi 0, %s43
      %s60 = sphi 0, %s44
      %s66 = sphi 0, %s68
      %s69 = sphi 0, %s66
      %s70 = sphi 0, %s69
      %s86 = sphi 0, %s70
      %s92 = sphi 0, %s94
      %s95 = sphi 0, %s92
      %s96 = sphi 0, %s95
      %s112 = sphi 0, %s96
      %s116 = sphi 0, %s116
      %s118 = sphi 0, %s116
      %s119 = sphi 0, %s118
      %s133 = sphi 0, %s119
      %s137 = sphi 0, %s137
      %s139 = sphi 0, %s137
      %s140 = sphi 0, %s139
      %s154 = sphi 0, %s140
      %s158 = sphi 0, %s158
      %s160 = sphi 0, %s158
      %s161 = sphi 0, %s160
      %s175 = sphi 0, %s161
      %s179 = sphi 0, %s179
      %s181 = sphi 0, %s179
      %s182 = sphi 0, %s181
      %s196 = sphi 0, %s182
      %s200 = sphi 0, %s200
      %s202 = sphi 0, %s200
      %s203 = sphi 0, %s202
      %s217 = sphi 0, %s203
      %s221 = sphi 0, %s221
      %s223 = sphi 0, %s221
      %s224 = sphi 0, %s223
      %s238 = sphi 0, %s224
      %s242 = sphi 0, %s242
      %s244 = sphi 0, %s242
      %s245 = sphi 0, %s244
      %s259 = sphi 0, %s245
      %s265 = sphi 0, %s267
      %s268 = sphi 0, %s265
      %s269 = sphi 0, %s268
      %s285 = sphi 0, %s269
      %s291 = sphi 0, %s293
      %s294 = sphi 0, %s291
      %s295 = sphi 0, %s294
      %s311 = sphi 0, %s295
    $region4: #{tpu_custom_call.1} parent=1 // loop_header_branch
      %33 = sbr.rel (%p31) target = $region8
    $region5: #{tpu_custom_call.1} parent=1 // loop_body
      %s35 = ssub.s32 %s30, 1
      %s36 = ssub.s32 %s30, 2
      %s37 = sadd.s32 %s30, 1
      %s38 = ssub.s32 %s30, %s37
      %p39 = scmp.eq.s32.totalorder %s38, 0
      %s41 = sadd.s32 %s40, 1
      %s42 = scalar_select %p39, %s40, %s41
      %p45 = pneg %p39
      %p46 = scmp.eq.s32.totalorder %s30, 1
      %p47 = por %p45, %p46
      %p48 = scmp.ne.s32.totalorder %s40, %s43
      %p49 = scmp.eq.s32.totalorder %s30, 0
      %p50 = por %p48, %p49
      %p51 = scmp.ne.s32.totalorder %s40, %s43
      %p52 = scmp.eq.s32.totalorder %s35, 1
      %p53 = por %p51, %p52
      %p54 = scmp.ne.s32.totalorder %s43, %s44
      %p55 = scmp.eq.s32.totalorder %s35, 0
      %p56 = por %p54, %p55
      %p57 = scmp.ne.s32.totalorder %s43, %s44
      %p58 = scmp.eq.s32.totalorder %s36, 1
      %p59 = por %p57, %p58
      %p61 = scmp.ne.s32.totalorder %s44, %s60
      %p62 = scmp.eq.s32.totalorder %s36, 0
      %p63 = por %p61, %p62
      %s64 = ssub.s32 %s30, %s37
      %p65 = scmp.eq.s32.totalorder %s64, 0
      %s67 = sadd.s32 %s66, 1
      %s68 = scalar_select %p65, %s66, %s67
      %p71 = pneg %p65
      %p72 = scmp.eq.s32.totalorder %s30, 1
      %p73 = por %p71, %p72
      %p74 = scmp.ne.s32.totalorder %s66, %s69
      %p75 = scmp.eq.s32.totalorder %s30, 0
      %p76 = por %p74, %p75
      %p77 = scmp.ne.s32.totalorder %s66, %s69
      %p78 = scmp.eq.s32.totalorder %s35, 1
      %p79 = por %p77, %p78
      %p80 = scmp.ne.s32.totalorder %s69, %s70
      %p81 = scmp.eq.s32.totalorder %s35, 0
      %p82 = por %p80, %p81
      %p83 = scmp.ne.s32.totalorder %s69, %s70
      %p84 = scmp.eq.s32.totalorder %s36, 1
      %p85 = por %p83, %p84
      %p87 = scmp.ne.s32.totalorder %s70, %s86
      %p88 = scmp.eq.s32.totalorder %s36, 0
      %p89 = por %p87, %p88
      %s90 = ssub.s32 %s30, %s37
      %p91 = scmp.eq.s32.totalorder %s90, 0
      %s93 = sadd.s32 %s92, 1
      %s94 = scalar_select %p91, %s92, %s93
      %p97 = pneg %p91
      %p98 = scmp.eq.s32.totalorder %s30, 1
      %p99 = por %p97, %p98
      %p100 = scmp.ne.s32.totalorder %s92, %s95
      %p101 = scmp.eq.s32.totalorder %s30, 0
      %p102 = por %p100, %p101
      %p103 = scmp.ne.s32.totalorder %s92, %s95
      %p104 = scmp.eq.s32.totalorder %s35, 1
      %p105 = por %p103, %p104
      %p106 = scmp.ne.s32.totalorder %s95, %s96
      %p107 = scmp.eq.s32.totalorder %s35, 0
      %p108 = por %p106, %p107
      %p109 = scmp.ne.s32.totalorder %s95, %s96
      %p110 = scmp.eq.s32.totalorder %s36, 1
      %p111 = por %p109, %p110
      %p113 = scmp.ne.s32.totalorder %s96, %s112
      %p114 = scmp.eq.s32.totalorder %s36, 0
      %p115 = por %p113, %p114
      %s117 = sadd.s32 %s116, 1
      %p120 = scmp.eq.s32.totalorder %s30, 1
      %p121 = scmp.ne.s32.totalorder %s116, %s118
      %p122 = scmp.eq.s32.totalorder %s30, 0
      %p123 = por %p121, %p122
      %p124 = scmp.ne.s32.totalorder %s116, %s118
      %p125 = scmp.eq.s32.totalorder %s35, 1
      %p126 = por %p124, %p125
      %p127 = scmp.ne.s32.totalorder %s118, %s119
      %p128 = scmp.eq.s32.totalorder %s35, 0
      %p129 = por %p127, %p128
      %p130 = scmp.ne.s32.totalorder %s118, %s119
      %p131 = scmp.eq.s32.totalorder %s36, 1
      %p132 = por %p130, %p131
      %p134 = scmp.ne.s32.totalorder %s119, %s133
      %p135 = scmp.eq.s32.totalorder %s36, 0
      %p136 = por %p134, %p135
      %s138 = sadd.s32 %s137, 1
      %p141 = scmp.eq.s32.totalorder %s30, 1
      %p142 = scmp.ne.s32.totalorder %s137, %s139
      %p143 = scmp.eq.s32.totalorder %s30, 0
      %p144 = por %p142, %p143
      %p145 = scmp.ne.s32.totalorder %s137, %s139
      %p146 = scmp.eq.s32.totalorder %s35, 1
      %p147 = por %p145, %p146
      %p148 = scmp.ne.s32.totalorder %s139, %s140
      %p149 = scmp.eq.s32.totalorder %s35, 0
      %p150 = por %p148, %p149
      %p151 = scmp.ne.s32.totalorder %s139, %s140
      %p152 = scmp.eq.s32.totalorder %s36, 1
      %p153 = por %p151, %p152
      %p155 = scmp.ne.s32.totalorder %s140, %s154
      %p156 = scmp.eq.s32.totalorder %s36, 0
      %p157 = por %p155, %p156
      %s159 = sadd.s32 %s158, 1
      %p162 = scmp.eq.s32.totalorder %s30, 1
      %p163 = scmp.ne.s32.totalorder %s158, %s160
      %p164 = scmp.eq.s32.totalorder %s30, 0
      %p165 = por %p163, %p164
      %p166 = scmp.ne.s32.totalorder %s158, %s160
      %p167 = scmp.eq.s32.totalorder %s35, 1
      %p168 = por %p166, %p167
      %p169 = scmp.ne.s32.totalorder %s160, %s161
      %p170 = scmp.eq.s32.totalorder %s35, 0
      %p171 = por %p169, %p170
      %p172 = scmp.ne.s32.totalorder %s160, %s161
      %p173 = scmp.eq.s32.totalorder %s36, 1
      %p174 = por %p172, %p173
      %p176 = scmp.ne.s32.totalorder %s161, %s175
      %p177 = scmp.eq.s32.totalorder %s36, 0
      %p178 = por %p176, %p177
      %s180 = sadd.s32 %s179, 1
      %p183 = scmp.eq.s32.totalorder %s30, 1
      %p184 = scmp.ne.s32.totalorder %s179, %s181
      %p185 = scmp.eq.s32.totalorder %s30, 0
      %p186 = por %p184, %p185
      %p187 = scmp.ne.s32.totalorder %s179, %s181
      %p188 = scmp.eq.s32.totalorder %s35, 1
      %p189 = por %p187, %p188
      %p190 = scmp.ne.s32.totalorder %s181, %s182
      %p191 = scmp.eq.s32.totalorder %s35, 0
      %p192 = por %p190, %p191
      %p193 = scmp.ne.s32.totalorder %s181, %s182
      %p194 = scmp.eq.s32.totalorder %s36, 1
      %p195 = por %p193, %p194
      %p197 = scmp.ne.s32.totalorder %s182, %s196
      %p198 = scmp.eq.s32.totalorder %s36, 0
      %p199 = por %p197, %p198
      %s201 = sadd.s32 %s200, 1
      %p204 = scmp.eq.s32.totalorder %s30, 1
      %p205 = scmp.ne.s32.totalorder %s200, %s202
      %p206 = scmp.eq.s32.totalorder %s30, 0
      %p207 = por %p205, %p206
      %p208 = scmp.ne.s32.totalorder %s200, %s202
      %p209 = scmp.eq.s32.totalorder %s35, 1
      %p210 = por %p208, %p209
      %p211 = scmp.ne.s32.totalorder %s202, %s203
      %p212 = scmp.eq.s32.totalorder %s35, 0
      %p213 = por %p211, %p212
      %p214 = scmp.ne.s32.totalorder %s202, %s203
      %p215 = scmp.eq.s32.totalorder %s36, 1
      %p216 = por %p214, %p215
      %p218 = scmp.ne.s32.totalorder %s203, %s217
      %p219 = scmp.eq.s32.totalorder %s36, 0
      %p220 = por %p218, %p219
      %s222 = sadd.s32 %s221, 1
      %p225 = scmp.eq.s32.totalorder %s30, 1
      %p226 = scmp.ne.s32.totalorder %s221, %s223
      %p227 = scmp.eq.s32.totalorder %s30, 0
      %p228 = por %p226, %p227
      %p229 = scmp.ne.s32.totalorder %s221, %s223
      %p230 = scmp.eq.s32.totalorder %s35, 1
      %p231 = por %p229, %p230
      %p232 = scmp.ne.s32.totalorder %s223, %s224
      %p233 = scmp.eq.s32.totalorder %s35, 0
      %p234 = por %p232, %p233
      %p235 = scmp.ne.s32.totalorder %s223, %s224
      %p236 = scmp.eq.s32.totalorder %s36, 1
      %p237 = por %p235, %p236
      %p239 = scmp.ne.s32.totalorder %s224, %s238
      %p240 = scmp.eq.s32.totalorder %s36, 0
      %p241 = por %p239, %p240
      %s243 = sadd.s32 %s242, 1
      %p246 = scmp.eq.s32.totalorder %s30, 1
      %p247 = scmp.ne.s32.totalorder %s242, %s244
      %p248 = scmp.eq.s32.totalorder %s30, 0
      %p249 = por %p247, %p248
      %p250 = scmp.ne.s32.totalorder %s242, %s244
      %p251 = scmp.eq.s32.totalorder %s35, 1
      %p252 = por %p250, %p251
      %p253 = scmp.ne.s32.totalorder %s244, %s245
      %p254 = scmp.eq.s32.totalorder %s35, 0
      %p255 = por %p253, %p254
      %p256 = scmp.ne.s32.totalorder %s244, %s245
      %p257 = scmp.eq.s32.totalorder %s36, 1
      %p258 = por %p256, %p257
      %p260 = scmp.ne.s32.totalorder %s245, %s259
      %p261 = scmp.eq.s32.totalorder %s36, 0
      %p262 = por %p260, %p261
      %s263 = ssub.s32 %s30, %s37
      %p264 = scmp.eq.s32.totalorder %s263, 0
      %s266 = sadd.s32 %s265, 1
      %s267 = scalar_select %p264, %s265, %s266
      %p270 = pneg %p264
      %p271 = scmp.eq.s32.totalorder %s30, 1
      %p272 = por %p270, %p271
      %p273 = scmp.ne.s32.totalorder %s265, %s268
      %p274 = scmp.eq.s32.totalorder %s30, 0
      %p275 = por %p273, %p274
      %p276 = scmp.ne.s32.totalorder %s265, %s268
      %p277 = scmp.eq.s32.totalorder %s35, 1
      %p278 = por %p276, %p277
      %p279 = scmp.ne.s32.totalorder %s268, %s269
      %p280 = scmp.eq.s32.totalorder %s35, 0
      %p281 = por %p279, %p280
      %p282 = scmp.ne.s32.totalorder %s268, %s269
      %p283 = scmp.eq.s32.totalorder %s36, 1
      %p284 = por %p282, %p283
      %p286 = scmp.ne.s32.totalorder %s269, %s285
      %p287 = scmp.eq.s32.totalorder %s36, 0
      %p288 = por %p286, %p287
      %s289 = ssub.s32 %s30, %s37
      %p290 = scmp.eq.s32.totalorder %s289, 0
      %s292 = sadd.s32 %s291, 1
      %s293 = scalar_select %p290, %s291, %s292
      %p296 = pneg %p290
      %p297 = scmp.eq.s32.totalorder %s30, 1
      %p298 = por %p296, %p297
      %p299 = scmp.ne.s32.totalorder %s291, %s294
      %p300 = scmp.eq.s32.totalorder %s30, 0
      %p301 = por %p299, %p300
      %p302 = scmp.ne.s32.totalorder %s291, %s294
      %p303 = scmp.eq.s32.totalorder %s35, 1
      %p304 = por %p302, %p303
      %p305 = scmp.ne.s32.totalorder %s294, %s295
      %p306 = scmp.eq.s32.totalorder %s35, 0
      %p307 = por %p305, %p306
      %p308 = scmp.ne.s32.totalorder %s294, %s295
      %p309 = scmp.eq.s32.totalorder %s36, 1
      %p310 = por %p308, %p309
      %p312 = scmp.ne.s32.totalorder %s295, %s311
      %p313 = scmp.eq.s32.totalorder %s36, 0
      %p314 = por %p312, %p313
      %p315 = scmp.le.s32.totalorder 1, %s30
      %p316 = scmp.lt.s32.totalorder %s30, 3
      %p317 = pnand %p315, %p316
      %p318 = pneg %p317
      // Predicated region
      $region9: #{tpu_custom_call.1} parent=5 // pred_check
        _
      $region10: #{tpu_custom_call.1} parent=5 // pred_check_branch
        %320 = sbr.rel (%p317) target = $region12
      $region11: #{tpu_custom_call.1} parent=5 // pred_region
        %s321 = ssub.s32 %s30, 1
        // Predicated region
        $region13: #{tpu_custom_call.1} parent=11 // pred_check
          %p322 = pneg %p129
        $region14: #{tpu_custom_call.1} parent=11 // pred_check_branch
          %324 = sbr.rel (%p322) target = $region16
        $region15: #{tpu_custom_call.1} parent=11 // pred_region
          _
        $region16: #{tpu_custom_call.1} parent=11 // pred_fallthru
          _
        // Predicated region
        $region17: #{tpu_custom_call.1} parent=11 // pred_check
          %p325 = pneg %p150
        $region18: #{tpu_custom_call.1} parent=11 // pred_check_branch
          %327 = sbr.rel (%p325) target = $region20
        $region19: #{tpu_custom_call.1} parent=11 // pred_region
          _
        $region20: #{tpu_custom_call.1} parent=11 // pred_fallthru
          _
        // Predicated region
        $region21: #{tpu_custom_call.1} parent=11 // pred_check
          %p328 = pneg %p171
        $region22: #{tpu_custom_call.1} parent=11 // pred_check_branch
          %330 = sbr.rel (%p328) target = $region24
        $region23: #{tpu_custom_call.1} parent=11 // pred_region
          _
        $region24: #{tpu_custom_call.1} parent=11 // pred_fallthru
          _
        // Predicated region
        $region25: #{tpu_custom_call.1} parent=11 // pred_check
          %p331 = pneg %p192
        $region26: #{tpu_custom_call.1} parent=11 // pred_check_branch
          %333 = sbr.rel (%p331) target = $region28
        $region27: #{tpu_custom_call.1} parent=11 // pred_region
          _
        $region28: #{tpu_custom_call.1} parent=11 // pred_fallthru
          _
        // Predicated region
        $region29: #{tpu_custom_call.1} parent=11 // pred_check
          %p334 = pneg %p213
        $region30: #{tpu_custom_call.1} parent=11 // pred_check_branch
          %336 = sbr.rel (%p334) target = $region32
        $region31: #{tpu_custom_call.1} parent=11 // pred_region
          _
        $region32: #{tpu_custom_call.1} parent=11 // pred_fallthru
          _
        // Predicated region
        $region33: #{tpu_custom_call.1} parent=11 // pred_check
          %p337 = pneg %p234
        $region34: #{tpu_custom_call.1} parent=11 // pred_check_branch
          %339 = sbr.rel (%p337) target = $region36
        $region35: #{tpu_custom_call.1} parent=11 // pred_region
          _
        $region36: #{tpu_custom_call.1} parent=11 // pred_fallthru
          _
        // Predicated region
        $region37: #{tpu_custom_call.1} parent=11 // pred_check
          %p340 = pneg %p255
        $region38: #{tpu_custom_call.1} parent=11 // pred_check_branch
          %342 = sbr.rel (%p340) target = $region40
        $region39: #{tpu_custom_call.1} parent=11 // pred_region
          _
        $region40: #{tpu_custom_call.1} parent=11 // pred_fallthru
          _
      $region12: #{tpu_custom_call.1} parent=5 // pred_fallthru
        _
      %p343 = scmp.lt.s32.totalorder %s30, 2
      // Predicated region
      $region41: #{tpu_custom_call.1} parent=5 // pred_check
        %p344 = pneg %p343
      $region42: #{tpu_custom_call.1} parent=5 // pred_check_branch
        %346 = sbr.rel (%p344) target = $region44
      $region43: #{tpu_custom_call.1} parent=5 // pred_region
        // Predicated region
        $region45: #{tpu_custom_call.1} parent=43 // pred_check
          %p347 = pneg %p50
        $region46: #{tpu_custom_call.1} parent=43 // pred_check_branch
          %349 = sbr.rel (%p347) target = $region48
        $region47: #{tpu_custom_call.1} parent=43 // pred_region
          %s350 = sand.u32 %s40, 1
          %s351 = scalar_lea.sflag [#allocation3], %s350
          %s352 = sand.u32 %s40, 1
          %s353 = smul.addr %s352, 8
          %s354 = scalar_lea.vmem [#allocation2], %s353
          %s356 = ssub.s32 128, 128
          %357 = vsyncadd %s351, %s356
          %s358 = smul.addr %s30, 128
          %s359 = scalar_lea.hbm %s0, %s358
          %s361 = sshll.u32 %s354, 4
          %s362 = int_to_ptr.vmem [resolvable:$true] %s361
          %364 = dma.hbm_to_vmem [thread:$0]  %s359, 128, %s362, %s351
        $region48: #{tpu_custom_call.1} parent=43 // pred_fallthru
          _
        // Predicated region
        $region49: #{tpu_custom_call.1} parent=43 // pred_check
          %p365 = pneg %p76
        $region50: #{tpu_custom_call.1} parent=43 // pred_check_branch
          %367 = sbr.rel (%p365) target = $region52
        $region51: #{tpu_custom_call.1} parent=43 // pred_region
          %s368 = sand.u32 %s30, 1
          %s369 = scalar_lea.sflag [#allocation6], %s368
          %s370 = sand.u32 %s66, 1
          %s371 = smul.addr %s370, 8
          %s372 = scalar_lea.vmem [#allocation5], %s371
          %s374 = ssub.s32 128, 128
          %375 = vsyncadd %s369, %s374
          %s376 = smul.addr %s30, 128
          %s377 = scalar_lea.hbm %s1, %s376
          %s379 = sshll.u32 %s372, 4
          %s380 = int_to_ptr.vmem [resolvable:$true] %s379
          %382 = dma.hbm_to_vmem [thread:$0]  %s377, 128, %s380, %s369
        $region52: #{tpu_custom_call.1} parent=43 // pred_fallthru
          _
        // Predicated region
        $region53: #{tpu_custom_call.1} parent=43 // pred_check
          %p383 = pneg %p102
        $region54: #{tpu_custom_call.1} parent=43 // pred_check_branch
          %385 = sbr.rel (%p383) target = $region56
        $region55: #{tpu_custom_call.1} parent=43 // pred_region
          %s386 = sand.u32 %s30, 1
          %s387 = scalar_lea.sflag [#allocation6], %s386
          %s388 = sand.u32 %s92, 1
          %s389 = smul.addr %s388, 8
          %s390 = scalar_lea.vmem [#allocation7], %s389
          %s392 = ssub.s32 128, 128
          %393 = vsyncadd %s387, %s392
          %s394 = smul.addr %s30, 128
          %s395 = scalar_lea.hbm %s2, %s394
          %s397 = sshll.u32 %s390, 4
          %s398 = int_to_ptr.vmem [resolvable:$true] %s397
          %400 = dma.hbm_to_vmem [thread:$0]  %s395, 128, %s398, %s387
        $region56: #{tpu_custom_call.1} parent=43 // pred_fallthru
          _
      $region44: #{tpu_custom_call.1} parent=5 // pred_fallthru
        _
      %p401 = scmp.le.s32.totalorder 1, %s30
      %p402 = scmp.lt.s32.totalorder %s30, 3
      %p403 = pnand %p401, %p402
      %p404 = pneg %p403
      // Predicated region
      $region57: #{tpu_custom_call.1} parent=5 // pred_check
        _
      $region58: #{tpu_custom_call.1} parent=5 // pred_check_branch
        %406 = sbr.rel (%p403) target = $region60
      $region59: #{tpu_custom_call.1} parent=5 // pred_region
        %s407 = ssub.s32 %s30, 1
        %s408 = sand.u32 %s43, 1
        %s409 = scalar_lea.sflag [#allocation3], %s408
        %s410 = sand.u32 %s43, 1
        %s411 = smul.addr %s410, 8
        %s412 = scalar_lea.vmem [#allocation2], %s411
        // Predicated region
        $region61: #{tpu_custom_call.1} parent=59 // pred_check
          %p413 = pneg %p56
        $region62: #{tpu_custom_call.1} parent=59 // pred_check_branch
          %415 = sbr.rel (%p413) target = $region64
        $region63: #{tpu_custom_call.1} parent=59 // pred_region
          %416 = dma.done %s409, 128
        $region64: #{tpu_custom_call.1} parent=59 // pred_fallthru
          _
        %s417 = sand.u32 %s35, 1
        %s418 = scalar_lea.sflag [#allocation6], %s417
        %s419 = sand.u32 %s69, 1
        %s420 = smul.addr %s419, 8
        %s421 = scalar_lea.vmem [#allocation5], %s420
        // Predicated region
        $region65: #{tpu_custom_call.1} parent=59 // pred_check
          %p422 = pneg %p82
        $region66: #{tpu_custom_call.1} parent=59 // pred_check_branch
          %424 = sbr.rel (%p422) target = $region68
        $region67: #{tpu_custom_call.1} parent=59 // pred_region
          %425 = dma.done %s418, 128
        $region68: #{tpu_custom_call.1} parent=59 // pred_fallthru
          _
        %s426 = sand.u32 %s35, 1
        %s427 = scalar_lea.sflag [#allocation6], %s426
        %s428 = sand.u32 %s95, 1
        %s429 = smul.addr %s428, 8
        %s430 = scalar_lea.vmem [#allocation7], %s429
        // Predicated region
        $region69: #{tpu_custom_call.1} parent=59 // pred_check
          %p431 = pneg %p108
        $region70: #{tpu_custom_call.1} parent=59 // pred_check_branch
          %433 = sbr.rel (%p431) target = $region72
        $region71: #{tpu_custom_call.1} parent=59 // pred_region
          %434 = dma.done %s427, 128
        $region72: #{tpu_custom_call.1} parent=59 // pred_fallthru
          _
        %s435 = sand.u32 %s43, 1
        %s436 = scalar_lea.sflag [#allocation3], %s435
        %s437 = sand.u32 %s43, 1
        %s438 = smul.addr %s437, 8
        %s439 = scalar_lea.vmem [#allocation2], %s438
        %p440 = pneg %p56
        %p441 = pneg %p53
        %s442 = sand.u32 %s35, 1
        %s443 = scalar_lea.sflag [#allocation6], %s442
        %s444 = sand.u32 %s69, 1
        %s445 = smul.addr %s444, 8
        %s446 = scalar_lea.vmem [#allocation5], %s445
        %p447 = pneg %p82
        %p448 = pneg %p79
        %s449 = sand.u32 %s35, 1
        %s450 = scalar_lea.sflag [#allocation6], %s449
        %s451 = sand.u32 %s95, 1
        %s452 = smul.addr %s451, 8
        %s453 = scalar_lea.vmem [#allocation7], %s452
        %p454 = pneg %p108
        %p455 = pneg %p105
        %p456 = pneg %p129
        %p457 = pneg %p126
        %p458 = pneg %p150
        %p459 = pneg %p147
        %p460 = pneg %p171
        %p461 = pneg %p168
        %p462 = pneg %p192
        %p463 = pneg %p189
        %p464 = pneg %p213
        %p465 = pneg %p210
        %p466 = pneg %p234
        %p467 = pneg %p231
        %p468 = pneg %p255
        %p469 = pneg %p252
        %p470 = pneg %p281
        %p471 = pneg %p278
        %s472 = sand.u32 %s268, 1
        %s473 = scalar_lea.sflag [#allocation4], %s472
        %s474 = sand.u32 %s268, 1
        %s475 = smul.addr %s474, 8
        %s476 = scalar_lea.vmem [#allocation8], %s475
        %p477 = pneg %p307
        %p478 = pneg %p304
        %s479 = sand.u32 %s294, 1
        %s480 = scalar_lea.sflag [#allocation10], %s479
        %s481 = sand.u32 %s294, 1
        %s482 = smul.addr %s481, 32
        %s483 = scalar_lea.vmem [#allocation9], %s482
        %v484 = vld [vmem:[%s412] sm:$0xff]
        %v485 = vld [vmem:[%s421] sm:$0xff]
        %v486 = vld [vmem:[%s430] sm:$0xff]
        %v487 = vld [vmem:[%s3] sm:$0xff]
        %v488 = vld [vmem:[%s3 + $0x8] sm:$0xff]
        %v489 = vld [vmem:[%s3 + $0x10] sm:$0xff]
        %v490 = vld [vmem:[%s3 + $0x18] sm:$0xff]
        %vm491 = vcmask 261120
        %v493 = vsel %vm491, %v484, 0
        %495 = vmatprep.subr.mxu0 0.0
        %496 = vmatpush1.msra.mxu0 %v487
        %497 = vmatprep.subr.mxu0 0.0
        %498 = vmatpush1.msra.mxu0 %v488
        %499 = vmatprep.subr.mxu0 0.0
        %500 = vmatpush1.msra.mxu0 %v489
        %501 = vmatprep.subr.mxu0 0.0
        %502 = vmatpush1.msra.mxu0 %v490
        %503 = vmatprep.subr.mxu0 0.0
        %504 = vmatpush1.msra.mxu0 0.0
        %505 = vmatprep.subr.mxu0 0.0
        %506 = vmatpush1.msra.mxu0 0.0
        %507 = vmatprep.subr.mxu0 0.0
        %508 = vmatpush1.msra.mxu0 0.0
        %509 = vmatprep.subr.mxu0 0.0
        %510 = vmatpush1.msra.mxu0 0.0
        %511 = vmatprep.subr.mxu0 0.0
        %512 = vmatpush1.msra.mxu0 0.0
        %513 = vmatprep.subr.mxu0 0.0
        %514 = vmatpush1.msra.mxu0 0.0
        %515 = vmatprep.subr.mxu0 0.0
        %516 = vmatpush1.msra.mxu0 0.0
        %517 = vmatprep.subr.mxu0 0.0
        %518 = vmatpush1.msra.mxu0 0.0
        %519 = vmatprep.subr.mxu0 0.0
        %520 = vmatpush1.msra.mxu0 0.0
        %521 = vmatprep.subr.mxu0 0.0
        %522 = vmatpush1.msra.mxu0 0.0
        %523 = vmatprep.subr.mxu0 0.0
        %524 = vmatpush1.msra.mxu0 0.0
        %525 = vmatprep.subr.mxu0 0.0
        %526 = vmatpush1.msra.mxu0 0.0
        %527 = vmatprep.subr.mxu0 0.0
        %528 = vmatpush1.msra.mxu0 0.0
        %529 = vmatprep.subr.mxu0 0.0
        %530 = vmatpush1.msra.mxu0 0.0
        %531 = vmatprep.subr.mxu0 0.0
        %532 = vmatpush1.msra.mxu0 0.0
        %533 = vmatprep.subr.mxu0 0.0
        %534 = vmatpush1.msra.mxu0 0.0
        %535 = vmatprep.subr.mxu0 0.0
        %536 = vmatpush1.msra.mxu0 0.0
        %537 = vmatprep.subr.mxu0 0.0
        %538 = vmatpush1.msra.mxu0 0.0
        %539 = vmatprep.subr.mxu0 0.0
        %540 = vmatpush1.msra.mxu0 0.0
        %541 = vmatprep.subr.mxu0 0.0
        %542 = vmatpush1.msra.mxu0 0.0
        %543 = vmatprep.subr.mxu0 0.0
        %544 = vmatpush1.msra.mxu0 0.0
        %545 = vmatprep.subr.mxu0 0.0
        %546 = vmatpush1.msra.mxu0 0.0
        %547 = vmatprep.subr.mxu0 0.0
        %548 = vmatpush1.msra.mxu0 0.0
        %549 = vmatprep.subr.mxu0 0.0
        %550 = vmatpush1.msra.mxu0 0.0
        %551 = vmatprep.subr.mxu0 0.0
        %552 = vmatpush1.msra.mxu0 0.0
        %553 = vmatprep.subr.mxu0 0.0
        %554 = vmatpush1.msra.mxu0 0.0
        %555 = vmatprep.subr.mxu0 0.0
        %556 = vmatpush1.msra.mxu0 0.0
        %557 = vmatprep.subr.mxu0 0.0
        %558 = vmatpush1.msra.mxu0 0.0
        %559 = vmatprep.mubr.f32.mxu0 0.0
        %560 = vmatmul.mubr.f32.gmra.mrb[0].mxu0 %v493
        %v561 = vpop.f32.mrb[0].mxu0
        %v562 = vadd.f32 0.0, %v561
        %v563 = vpop.f32.mrb[0].mxu0
        %564 = vdwg.mxu0
        %v565 = vld [vmem:[%s4] sm:$0xff]
        %v566 = vld [vmem:[%s4 + $0x8] sm:$0xff]
        %v567 = vld [vmem:[%s4 + $0x10] sm:$0xff]
        %v568 = vld [vmem:[%s4 + $0x18] sm:$0xff]
        %v570 = vsel %vm491, %v485, 0
        %572 = vmatprep.subr.mxu0 0.0
        %573 = vmatpush1.msra.mxu0 %v565
        %574 = vmatprep.subr.mxu0 0.0
        %575 = vmatpush1.msra.mxu0 %v566
        %576 = vmatprep.subr.mxu0 0.0
        %577 = vmatpush1.msra.mxu0 %v567
        %578 = vmatprep.subr.mxu0 0.0
        %579 = vmatpush1.msra.mxu0 %v568
        %580 = vmatprep.subr.mxu0 0.0
        %581 = vmatpush1.msra.mxu0 0.0
        %582 = vmatprep.subr.mxu0 0.0
        %583 = vmatpush1.msra.mxu0 0.0
        %584 = vmatprep.subr.mxu0 0.0
        %585 = vmatpush1.msra.mxu0 0.0
        %586 = vmatprep.subr.mxu0 0.0
        %587 = vmatpush1.msra.mxu0 0.0
        %588 = vmatprep.subr.mxu0 0.0
        %589 = vmatpush1.msra.mxu0 0.0
        %590 = vmatprep.subr.mxu0 0.0
        %591 = vmatpush1.msra.mxu0 0.0
        %592 = vmatprep.subr.mxu0 0.0
        %593 = vmatpush1.msra.mxu0 0.0
        %594 = vmatprep.subr.mxu0 0.0
        %595 = vmatpush1.msra.mxu0 0.0
        %596 = vmatprep.subr.mxu0 0.0
        %597 = vmatpush1.msra.mxu0 0.0
        %598 = vmatprep.subr.mxu0 0.0
        %599 = vmatpush1.msra.mxu0 0.0
        %600 = vmatprep.subr.mxu0 0.0
        %601 = vmatpush1.msra.mxu0 0.0
        %602 = vmatprep.subr.mxu0 0.0
        %603 = vmatpush1.msra.mxu0 0.0
        %604 = vmatprep.subr.mxu0 0.0
        %605 = vmatpush1.msra.mxu0 0.0
        %606 = vmatprep.subr.mxu0 0.0
        %607 = vmatpush1.msra.mxu0 0.0
        %608 = vmatprep.subr.mxu0 0.0
        %609 = vmatpush1.msra.mxu0 0.0
        %610 = vmatprep.subr.mxu0 0.0
        %611 = vmatpush1.msra.mxu0 0.0
        %612 = vmatprep.subr.mxu0 0.0
        %613 = vmatpush1.msra.mxu0 0.0
        %614 = vmatprep.subr.mxu0 0.0
        %615 = vmatpush1.msra.mxu0 0.0
        %616 = vmatprep.subr.mxu0 0.0
        %617 = vmatpush1.msra.mxu0 0.0
        %618 = vmatprep.subr.mxu0 0.0
        %619 = vmatpush1.msra.mxu0 0.0
        %620 = vmatprep.subr.mxu0 0.0
        %621 = vmatpush1.msra.mxu0 0.0
        %622 = vmatprep.subr.mxu0 0.0
        %623 = vmatpush1.msra.mxu0 0.0
        %624 = vmatprep.subr.mxu0 0.0
        %625 = vmatpush1.msra.mxu0 0.0
        %626 = vmatprep.subr.mxu0 0.0
        %627 = vmatpush1.msra.mxu0 0.0
        %628 = vmatprep.subr.mxu0 0.0
        %629 = vmatpush1.msra.mxu0 0.0
        %630 = vmatprep.subr.mxu0 0.0
        %631 = vmatpush1.msra.mxu0 0.0
        %632 = vmatprep.subr.mxu0 0.0
        %633 = vmatpush1.msra.mxu0 0.0
        %634 = vmatprep.subr.mxu0 0.0
        %635 = vmatpush1.msra.mxu0 0.0
        %636 = vmatprep.mubr.f32.mxu0 0.0
        %637 = vmatmul.mubr.f32.gmra.mrb[0].mxu0 %v570
        %v638 = vpop.f32.mrb[0].mxu0
        %v639 = vadd.f32 0.0, %v638
        %v640 = vpop.f32.mrb[0].mxu0
        %641 = vdwg.mxu0
        %v642 = vld [vmem:[%s5] sm:$0xff]
        %v643 = vld [vmem:[%s5 + $0x8] sm:$0xff]
        %v644 = vld [vmem:[%s5 + $0x10] sm:$0xff]
        %v645 = vld [vmem:[%s5 + $0x18] sm:$0xff]
        %v647 = vsel %vm491, %v486, 0
        %649 = vmatprep.subr.mxu0 0.0
        %650 = vmatpush1.msra.mxu0 %v642
        %651 = vmatprep.subr.mxu0 0.0
        %652 = vmatpush1.msra.mxu0 %v643
        %653 = vmatprep.subr.mxu0 0.0
        %654 = vmatpush1.msra.mxu0 %v644
        %655 = vmatprep.subr.mxu0 0.0
        %656 = vmatpush1.msra.mxu0 %v645
        %657 = vmatprep.subr.mxu0 0.0
        %658 = vmatpush1.msra.mxu0 0.0
        %659 = vmatprep.subr.mxu0 0.0
        %660 = vmatpush1.msra.mxu0 0.0
        %661 = vmatprep.subr.mxu0 0.0
        %662 = vmatpush1.msra.mxu0 0.0
        %663 = vmatprep.subr.mxu0 0.0
        %664 = vmatpush1.msra.mxu0 0.0
        %665 = vmatprep.subr.mxu0 0.0
        %666 = vmatpush1.msra.mxu0 0.0
        %667 = vmatprep.subr.mxu0 0.0
        %668 = vmatpush1.msra.mxu0 0.0
        %669 = vmatprep.subr.mxu0 0.0
        %670 = vmatpush1.msra.mxu0 0.0
        %671 = vmatprep.subr.mxu0 0.0
        %672 = vmatpush1.msra.mxu0 0.0
        %673 = vmatprep.subr.mxu0 0.0
        %674 = vmatpush1.msra.mxu0 0.0
        %675 = vmatprep.subr.mxu0 0.0
        %676 = vmatpush1.msra.mxu0 0.0
        %677 = vmatprep.subr.mxu0 0.0
        %678 = vmatpush1.msra.mxu0 0.0
        %679 = vmatprep.subr.mxu0 0.0
        %680 = vmatpush1.msra.mxu0 0.0
        %681 = vmatprep.subr.mxu0 0.0
        %682 = vmatpush1.msra.mxu0 0.0
        %683 = vmatprep.subr.mxu0 0.0
        %684 = vmatpush1.msra.mxu0 0.0
        %685 = vmatprep.subr.mxu0 0.0
        %686 = vmatpush1.msra.mxu0 0.0
        %687 = vmatprep.subr.mxu0 0.0
        %688 = vmatpush1.msra.mxu0 0.0
        %689 = vmatprep.subr.mxu0 0.0
        %690 = vmatpush1.msra.mxu0 0.0
        %691 = vmatprep.subr.mxu0 0.0
        %692 = vmatpush1.msra.mxu0 0.0
        %693 = vmatprep.subr.mxu0 0.0
        %694 = vmatpush1.msra.mxu0 0.0
        %695 = vmatprep.subr.mxu0 0.0
        %696 = vmatpush1.msra.mxu0 0.0
        %697 = vmatprep.subr.mxu0 0.0
        %698 = vmatpush1.msra.mxu0 0.0
        %699 = vmatprep.subr.mxu0 0.0
        %700 = vmatpush1.msra.mxu0 0.0
        %701 = vmatprep.subr.mxu0 0.0
        %702 = vmatpush1.msra.mxu0 0.0
        %703 = vmatprep.subr.mxu0 0.0
        %704 = vmatpush1.msra.mxu0 0.0
        %705 = vmatprep.subr.mxu0 0.0
        %706 = vmatpush1.msra.mxu0 0.0
        %707 = vmatprep.subr.mxu0 0.0
        %708 = vmatpush1.msra.mxu0 0.0
        %709 = vmatprep.subr.mxu0 0.0
        %710 = vmatpush1.msra.mxu0 0.0
        %711 = vmatprep.subr.mxu0 0.0
        %712 = vmatpush1.msra.mxu0 0.0
        %713 = vmatprep.mubr.f32.mxu0 0.0
        %714 = vmatmul.mubr.f32.gmra.mrb[0].mxu0 %v647
        %v715 = vpop.f32.mrb[0].mxu0
        %v716 = vadd.f32 0.0, %v715
        %v717 = vpop.f32.mrb[0].mxu0
        %718 = vdwg.mxu0
        %v719 = vmul.f32 %v716, 0.35355338
        %721 = vrot.lane.b32.xlu0 %v719, 120
        %v722 = vpop.permute.xlu0 %721
        %724 = vrot.lane.b32.xlu0 %v719, 112
        %v725 = vpop.permute.xlu0 %724
        %727 = vrot.lane.b32.xlu0 %v719, 104
        %v728 = vpop.permute.xlu0 %727
        %v730 = vcombine.low %v719, %v725
        %v731 = vcombine.high %v719, %v725
        %v733 = vunpack.c.l.s4 1983009808
        %v734 = vunpack.c.0.s8 %v733
        %v735 = vlaneseq
        %v736 = vshrl.u32 %v735, 7
        %v737 = vsub.s32 %v734, %v736
        %v738 = vrot.slane %v730, %v737
        %v740 = vunpack.c.l.s4 1983009808
        %v741 = vunpack.c.0.s8 %v740
        %v742 = vlaneseq
        %v743 = vshrl.u32 %v742, 7
        %v744 = vsub.s32 %v741, %v743
        %v745 = vrot.slane %v731, %v744
        %v746 = vcombine.low %v722, %v728
        %v747 = vcombine.high %v722, %v728
        %v749 = vunpack.c.l.s4 1983009808
        %v750 = vunpack.c.0.s8 %v749
        %v751 = vlaneseq
        %v752 = vshrl.u32 %v751, 7
        %v753 = vsub.s32 %v750, %v752
        %v754 = vrot.slane %v746, %v753
        %v756 = vunpack.c.l.s4 1983009808
        %v757 = vunpack.c.0.s8 %v756
        %v758 = vlaneseq
        %v759 = vshrl.u32 %v758, 7
        %v760 = vsub.s32 %v757, %v759
        %v761 = vrot.slane %v747, %v760
        %v762 = vcombine.low %v738, %v754
        %v763 = vcombine.high %v738, %v754
        %v765 = vunpack.c.l.s4 1934713408
        %v766 = vunpack.c.0.s8 %v765
        %v767 = vlaneseq
        %v768 = vshrl.u32 %v767, 7
        %v769 = vsub.s32 %v766, %v768
        %v770 = vrot.slane %v762, %v769
        %v772 = vunpack.c.l.s4 1934713408
        %v773 = vunpack.c.0.s8 %v772
        %v774 = vlaneseq
        %v775 = vshrl.u32 %v774, 7
        %v776 = vsub.s32 %v773, %v775
        %v777 = vrot.slane %v763, %v776
        %v778 = vcombine.low %v745, %v761
        %v779 = vcombine.high %v745, %v761
        %v781 = vunpack.c.l.s4 1934713408
        %v782 = vunpack.c.0.s8 %v781
        %v783 = vlaneseq
        %v784 = vshrl.u32 %v783, 7
        %v785 = vsub.s32 %v782, %v784
        %v786 = vrot.slane %v778, %v785
        %v788 = vunpack.c.l.s4 1934713408
        %v789 = vunpack.c.0.s8 %v788
        %v790 = vlaneseq
        %v791 = vshrl.u32 %v790, 7
        %v792 = vsub.s32 %v789, %v791
        %v793 = vrot.slane %v779, %v792
        %v794 = vcombine.high %v770, 0.0
        %v795 = vcombine.high %v777, 0.0
        %v796 = vcombine.high %v786, 0.0
        %v797 = vcombine.high %v793, 0.0
        %v798 = vcombine.low %v770, %v777
        %v800 = vunpack.c.l.s4 1983009808
        %v801 = vunpack.c.0.s8 %v800
        %v802 = vlaneseq
        %v803 = vshrl.u32 %v802, 7
        %v804 = vsub.s32 %v801, %v803
        %v805 = vrot.slane %v798, %v804
        %v806 = vcombine.low %v794, %v795
        %v808 = vunpack.c.l.s4 1983009808
        %v809 = vunpack.c.0.s8 %v808
        %v810 = vlaneseq
        %v811 = vshrl.u32 %v810, 7
        %v812 = vsub.s32 %v809, %v811
        %v813 = vrot.slane %v806, %v812
        %v814 = vcombine.low %v786, %v793
        %v816 = vunpack.c.l.s4 1983009808
        %v817 = vunpack.c.0.s8 %v816
        %v818 = vlaneseq
        %v819 = vshrl.u32 %v818, 7
        %v820 = vsub.s32 %v817, %v819
        %v821 = vrot.slane %v814, %v820
        %v822 = vcombine.low %v796, %v797
        %v824 = vunpack.c.l.s4 1983009808
        %v825 = vunpack.c.0.s8 %v824
        %v826 = vlaneseq
        %v827 = vshrl.u32 %v826, 7
        %v828 = vsub.s32 %v825, %v827
        %v829 = vrot.slane %v822, %v828
        %v830 = vcombine.low %v805, %v813
        %v831 = vcombine.high %v805, %v813
        %v833 = vunpack.c.l.s4 1934713408
        %v834 = vunpack.c.0.s8 %v833
        %v835 = vlaneseq
        %v836 = vshrl.u32 %v835, 7
        %v837 = vsub.s32 %v834, %v836
        %v838 = vrot.slane %v830, %v837
        %v840 = vunpack.c.l.s4 1934713408
        %v841 = vunpack.c.0.s8 %v840
        %v842 = vlaneseq
        %v843 = vshrl.u32 %v842, 7
        %v844 = vsub.s32 %v841, %v843
        %v845 = vrot.slane %v831, %v844
        %v846 = vcombine.low %v821, %v829
        %v847 = vcombine.high %v821, %v829
        %v849 = vunpack.c.l.s4 1934713408
        %v850 = vunpack.c.0.s8 %v849
        %v851 = vlaneseq
        %v852 = vshrl.u32 %v851, 7
        %v853 = vsub.s32 %v850, %v852
        %v854 = vrot.slane %v846, %v853
        %v856 = vunpack.c.l.s4 1934713408
        %v857 = vunpack.c.0.s8 %v856
        %v858 = vlaneseq
        %v859 = vshrl.u32 %v858, 7
        %v860 = vsub.s32 %v857, %v859
        %v861 = vrot.slane %v847, %v860
        %v862 = vcombine.low %v838, %v854
        %v863 = vcombine.high %v838, %v854
        %v864 = vcombine.low %v845, %v861
        %v865 = vcombine.high %v845, %v861
        %867 = vrot.lane.b32.xlu0 %v562, 120
        %v868 = vpop.permute.xlu0 %867
        %870 = vrot.lane.b32.xlu0 %v562, 112
        %v871 = vpop.permute.xlu0 %870
        %873 = vrot.lane.b32.xlu0 %v562, 104
        %v874 = vpop.permute.xlu0 %873
        %v876 = vcombine.low %v562, %v871
        %v877 = vcombine.high %v562, %v871
        %v879 = vunpack.c.l.s4 1983009808
        %v880 = vunpack.c.0.s8 %v879
        %v881 = vlaneseq
        %v882 = vshrl.u32 %v881, 7
        %v883 = vsub.s32 %v880, %v882
        %v884 = vrot.slane %v876, %v883
        %v886 = vunpack.c.l.s4 1983009808
        %v887 = vunpack.c.0.s8 %v886
        %v888 = vlaneseq
        %v889 = vshrl.u32 %v888, 7
        %v890 = vsub.s32 %v887, %v889
        %v891 = vrot.slane %v877, %v890
        %v892 = vcombine.low %v868, %v874
        %v893 = vcombine.high %v868, %v874
        %v895 = vunpack.c.l.s4 1983009808
        %v896 = vunpack.c.0.s8 %v895
        %v897 = vlaneseq
        %v898 = vshrl.u32 %v897, 7
        %v899 = vsub.s32 %v896, %v898
        %v900 = vrot.slane %v892, %v899
        %v902 = vunpack.c.l.s4 1983009808
        %v903 = vunpack.c.0.s8 %v902
        %v904 = vlaneseq
        %v905 = vshrl.u32 %v904, 7
        %v906 = vsub.s32 %v903, %v905
        %v907 = vrot.slane %v893, %v906
        %v908 = vcombine.low %v884, %v900
        %v909 = vcombine.high %v884, %v900
        %v911 = vunpack.c.l.s4 1934713408
        %v912 = vunpack.c.0.s8 %v911
        %v913 = vlaneseq
        %v914 = vshrl.u32 %v913, 7
        %v915 = vsub.s32 %v912, %v914
        %v916 = vrot.slane %v908, %v915
        %v918 = vunpack.c.l.s4 1934713408
        %v919 = vunpack.c.0.s8 %v918
        %v920 = vlaneseq
        %v921 = vshrl.u32 %v920, 7
        %v922 = vsub.s32 %v919, %v921
        %v923 = vrot.slane %v909, %v922
        %v924 = vcombine.low %v891, %v907
        %v925 = vcombine.high %v891, %v907
        %v927 = vunpack.c.l.s4 1934713408
        %v928 = vunpack.c.0.s8 %v927
        %v929 = vlaneseq
        %v930 = vshrl.u32 %v929, 7
        %v931 = vsub.s32 %v928, %v930
        %v932 = vrot.slane %v924, %v931
        %v934 = vunpack.c.l.s4 1934713408
        %v935 = vunpack.c.0.s8 %v934
        %v936 = vlaneseq
        %v937 = vshrl.u32 %v936, 7
        %v938 = vsub.s32 %v935, %v937
        %v939 = vrot.slane %v925, %v938
        %v940 = vcombine.high %v916, 0.0
        %v941 = vcombine.high %v923, 0.0
        %v942 = vcombine.high %v932, 0.0
        %v943 = vcombine.high %v939, 0.0
        %v944 = vcombine.low %v916, %v923
        %v946 = vunpack.c.l.s4 1983009808
        %v947 = vunpack.c.0.s8 %v946
        %v948 = vlaneseq
        %v949 = vshrl.u32 %v948, 7
        %v950 = vsub.s32 %v947, %v949
        %v951 = vrot.slane %v944, %v950
        %v952 = vcombine.low %v940, %v941
        %v954 = vunpack.c.l.s4 1983009808
        %v955 = vunpack.c.0.s8 %v954
        %v956 = vlaneseq
        %v957 = vshrl.u32 %v956, 7
        %v958 = vsub.s32 %v955, %v957
        %v959 = vrot.slane %v952, %v958
        %v960 = vcombine.low %v932, %v939
        %v962 = vunpack.c.l.s4 1983009808
        %v963 = vunpack.c.0.s8 %v962
        %v964 = vlaneseq
        %v965 = vshrl.u32 %v964, 7
        %v966 = vsub.s32 %v963, %v965
        %v967 = vrot.slane %v960, %v966
        %v968 = vcombine.low %v942, %v943
        %v970 = vunpack.c.l.s4 1983009808
        %v971 = vunpack.c.0.s8 %v970
        %v972 = vlaneseq
        %v973 = vshrl.u32 %v972, 7
        %v974 = vsub.s32 %v971, %v973
        %v975 = vrot.slane %v968, %v974
        %v976 = vcombine.low %v951, %v959
        %v977 = vcombine.high %v951, %v959
        %v979 = vunpack.c.l.s4 1934713408
        %v980 = vunpack.c.0.s8 %v979
        %v981 = vlaneseq
        %v982 = vshrl.u32 %v981, 7
        %v983 = vsub.s32 %v980, %v982
        %v984 = vrot.slane %v976, %v983
        %v986 = vunpack.c.l.s4 1934713408
        %v987 = vunpack.c.0.s8 %v986
        %v988 = vlaneseq
        %v989 = vshrl.u32 %v988, 7
        %v990 = vsub.s32 %v987, %v989
        %v991 = vrot.slane %v977, %v990
        %v992 = vcombine.low %v967, %v975
        %v993 = vcombine.high %v967, %v975
        %v995 = vunpack.c.l.s4 1934713408
        %v996 = vunpack.c.0.s8 %v995
        %v997 = vlaneseq
        %v998 = vshrl.u32 %v997, 7
        %v999 = vsub.s32 %v996, %v998
        %v1000 = vrot.slane %v992, %v999
        %v1002 = vunpack.c.l.s4 1934713408
        %v1003 = vunpack.c.0.s8 %v1002
        %v1004 = vlaneseq
        %v1005 = vshrl.u32 %v1004, 7
        %v1006 = vsub.s32 %v1003, %v1005
        %v1007 = vrot.slane %v993, %v1006
        %v1008 = vcombine.low %v984, %v1000
        %v1009 = vcombine.high %v984, %v1000
        %v1010 = vcombine.low %v991, %v1007
        %v1011 = vcombine.high %v991, %v1007
        %1013 = vrot.lane.b32.xlu0 %v639, 120
        %v1014 = vpop.permute.xlu0 %1013
        %1016 = vrot.lane.b32.xlu0 %v639, 112
        %v1017 = vpop.permute.xlu0 %1016
        %1019 = vrot.lane.b32.xlu0 %v639, 104
        %v1020 = vpop.permute.xlu0 %1019
        %v1022 = vcombine.low %v639, %v1017
        %v1023 = vcombine.high %v639, %v1017
        %v1025 = vunpack.c.l.s4 1983009808
        %v1026 = vunpack.c.0.s8 %v1025
        %v1027 = vlaneseq
        %v1028 = vshrl.u32 %v1027, 7
        %v1029 = vsub.s32 %v1026, %v1028
        %v1030 = vrot.slane %v1022, %v1029
        %v1032 = vunpack.c.l.s4 1983009808
        %v1033 = vunpack.c.0.s8 %v1032
        %v1034 = vlaneseq
        %v1035 = vshrl.u32 %v1034, 7
        %v1036 = vsub.s32 %v1033, %v1035
        %v1037 = vrot.slane %v1023, %v1036
        %v1038 = vcombine.low %v1014, %v1020
        %v1039 = vcombine.high %v1014, %v1020
        %v1041 = vunpack.c.l.s4 1983009808
        %v1042 = vunpack.c.0.s8 %v1041
        %v1043 = vlaneseq
        %v1044 = vshrl.u32 %v1043, 7
        %v1045 = vsub.s32 %v1042, %v1044
        %v1046 = vrot.slane %v1038, %v1045
        %v1048 = vunpack.c.l.s4 1983009808
        %v1049 = vunpack.c.0.s8 %v1048
        %v1050 = vlaneseq
        %v1051 = vshrl.u32 %v1050, 7
        %v1052 = vsub.s32 %v1049, %v1051
        %v1053 = vrot.slane %v1039, %v1052
        %v1054 = vcombine.low %v1030, %v1046
        %v1055 = vcombine.high %v1030, %v1046
        %v1057 = vunpack.c.l.s4 1934713408
        %v1058 = vunpack.c.0.s8 %v1057
        %v1059 = vlaneseq
        %v1060 = vshrl.u32 %v1059, 7
        %v1061 = vsub.s32 %v1058, %v1060
        %v1062 = vrot.slane %v1054, %v1061
        %v1064 = vunpack.c.l.s4 1934713408
        %v1065 = vunpack.c.0.s8 %v1064
        %v1066 = vlaneseq
        %v1067 = vshrl.u32 %v1066, 7
        %v1068 = vsub.s32 %v1065, %v1067
        %v1069 = vrot.slane %v1055, %v1068
        %v1070 = vcombine.low %v1037, %v1053
        %v1071 = vcombine.high %v1037, %v1053
        %v1073 = vunpack.c.l.s4 1934713408
        %v1074 = vunpack.c.0.s8 %v1073
        %v1075 = vlaneseq
        %v1076 = vshrl.u32 %v1075, 7
        %v1077 = vsub.s32 %v1074, %v1076
        %v1078 = vrot.slane %v1070, %v1077
        %v1080 = vunpack.c.l.s4 1934713408
        %v1081 = vunpack.c.0.s8 %v1080
        %v1082 = vlaneseq
        %v1083 = vshrl.u32 %v1082, 7
        %v1084 = vsub.s32 %v1081, %v1083
        %v1085 = vrot.slane %v1071, %v1084
        %v1086 = vcombine.high %v1062, 0.0
        %v1087 = vcombine.high %v1069, 0.0
        %v1088 = vcombine.high %v1078, 0.0
        %v1089 = vcombine.high %v1085, 0.0
        %v1090 = vcombine.low %v1062, %v1069
        %v1092 = vunpack.c.l.s4 1983009808
        %v1093 = vunpack.c.0.s8 %v1092
        %v1094 = vlaneseq
        %v1095 = vshrl.u32 %v1094, 7
        %v1096 = vsub.s32 %v1093, %v1095
        %v1097 = vrot.slane %v1090, %v1096
        %v1098 = vcombine.low %v1086, %v1087
        %v1100 = vunpack.c.l.s4 1983009808
        %v1101 = vunpack.c.0.s8 %v1100
        %v1102 = vlaneseq
        %v1103 = vshrl.u32 %v1102, 7
        %v1104 = vsub.s32 %v1101, %v1103
        %v1105 = vrot.slane %v1098, %v1104
        %v1106 = vcombine.low %v1078, %v1085
        %v1108 = vunpack.c.l.s4 1983009808
        %v1109 = vunpack.c.0.s8 %v1108
        %v1110 = vlaneseq
        %v1111 = vshrl.u32 %v1110, 7
        %v1112 = vsub.s32 %v1109, %v1111
        %v1113 = vrot.slane %v1106, %v1112
        %v1114 = vcombine.low %v1088, %v1089
        %v1116 = vunpack.c.l.s4 1983009808
        %v1117 = vunpack.c.0.s8 %v1116
        %v1118 = vlaneseq
        %v1119 = vshrl.u32 %v1118, 7
        %v1120 = vsub.s32 %v1117, %v1119
        %v1121 = vrot.slane %v1114, %v1120
        %v1122 = vcombine.low %v1097, %v1105
        %v1123 = vcombine.high %v1097, %v1105
        %v1125 = vunpack.c.l.s4 1934713408
        %v1126 = vunpack.c.0.s8 %v1125
        %v1127 = vlaneseq
        %v1128 = vshrl.u32 %v1127, 7
        %v1129 = vsub.s32 %v1126, %v1128
        %v1130 = vrot.slane %v1122, %v1129
        %v1132 = vunpack.c.l.s4 1934713408
        %v1133 = vunpack.c.0.s8 %v1132
        %v1134 = vlaneseq
        %v1135 = vshrl.u32 %v1134, 7
        %v1136 = vsub.s32 %v1133, %v1135
        %v1137 = vrot.slane %v1123, %v1136
        %v1138 = vcombine.low %v1113, %v1121
        %v1139 = vcombine.high %v1113, %v1121
        %v1141 = vunpack.c.l.s4 1934713408
        %v1142 = vunpack.c.0.s8 %v1141
        %v1143 = vlaneseq
        %v1144 = vshrl.u32 %v1143, 7
        %v1145 = vsub.s32 %v1142, %v1144
        %v1146 = vrot.slane %v1138, %v1145
        %v1148 = vunpack.c.l.s4 1934713408
        %v1149 = vunpack.c.0.s8 %v1148
        %v1150 = vlaneseq
        %v1151 = vshrl.u32 %v1150, 7
        %v1152 = vsub.s32 %v1149, %v1151
        %v1153 = vrot.slane %v1139, %v1152
        %v1154 = vcombine.low %v1130, %v1146
        %v1155 = vcombine.high %v1130, %v1146
        %v1156 = vcombine.low %v1137, %v1153
        %v1157 = vcombine.high %v1137, %v1153
        %vm1158 = vcmask 64512
        %v1160 = vsel %vm1158, %v862, 0
        %v1163 = vsel %vm1158, %v1008, 0
        %1165 = vmatprep.subr.mxu0 0.0
        %1166 = vmatpush1.xpose.msra.mxu0 %v1163
        %1167 = vmatprep.subr.mxu0 0.0
        %1168 = vmatpush1.xpose.msra.mxu0 0.0
        %1169 = vmatprep.subr.mxu0 0.0
        %1170 = vmatpush1.xpose.msra.mxu0 0.0
        %1171 = vmatprep.subr.mxu0 0.0
        %1172 = vmatpush1.xpose.msra.mxu0 0.0
        %1173 = vmatprep.subr.mxu0 0.0
        %1174 = vmatpush1.xpose.msra.mxu0 0.0
        %1175 = vmatprep.subr.mxu0 0.0
        %1176 = vmatpush1.xpose.msra.mxu0 0.0
        %1177 = vmatprep.subr.mxu0 0.0
        %1178 = vmatpush1.xpose.msra.mxu0 0.0
        %1179 = vmatprep.subr.mxu0 0.0
        %1180 = vmatpush1.xpose.msra.mxu0 0.0
        %1181 = vmatprep.subr.mxu0 0.0
        %1182 = vmatpush1.xpose.msra.mxu0 0.0
        %1183 = vmatprep.subr.mxu0 0.0
        %1184 = vmatpush1.xpose.msra.mxu0 0.0
        %1185 = vmatprep.subr.mxu0 0.0
        %1186 = vmatpush1.xpose.msra.mxu0 0.0
        %1187 = vmatprep.subr.mxu0 0.0
        %1188 = vmatpush1.xpose.msra.mxu0 0.0
        %1189 = vmatprep.subr.mxu0 0.0
        %1190 = vmatpush1.xpose.msra.mxu0 0.0
        %1191 = vmatprep.subr.mxu0 0.0
        %1192 = vmatpush1.xpose.msra.mxu0 0.0
        %1193 = vmatprep.subr.mxu0 0.0
        %1194 = vmatpush1.xpose.msra.mxu0 0.0
        %1195 = vmatprep.subr.mxu0 0.0
        %1196 = vmatpush1.xpose.msra.mxu0 0.0
        %1197 = vmatprep.subr.mxu0 0.0
        %1198 = vmatpush1.xpose.msra.mxu0 0.0
        %1199 = vmatprep.subr.mxu0 0.0
        %1200 = vmatpush1.xpose.msra.mxu0 0.0
        %1201 = vmatprep.subr.mxu0 0.0
        %1202 = vmatpush1.xpose.msra.mxu0 0.0
        %1203 = vmatprep.subr.mxu0 0.0
        %1204 = vmatpush1.xpose.msra.mxu0 0.0
        %1205 = vmatprep.subr.mxu0 0.0
        %1206 = vmatpush1.xpose.msra.mxu0 0.0
        %1207 = vmatprep.subr.mxu0 0.0
        %1208 = vmatpush1.xpose.msra.mxu0 0.0
        %1209 = vmatprep.subr.mxu0 0.0
        %1210 = vmatpush1.xpose.msra.mxu0 0.0
        %1211 = vmatprep.subr.mxu0 0.0
        %1212 = vmatpush1.xpose.msra.mxu0 0.0
        %1213 = vmatprep.subr.mxu0 0.0
        %1214 = vmatpush1.xpose.msra.mxu0 0.0
        %1215 = vmatprep.subr.mxu0 0.0
        %1216 = vmatpush1.xpose.msra.mxu0 0.0
        %1217 = vmatprep.subr.mxu0 0.0
        %1218 = vmatpush1.xpose.msra.mxu0 0.0
        %1219 = vmatprep.subr.mxu0 0.0
        %1220 = vmatpush1.xpose.msra.mxu0 0.0
        %1221 = vmatprep.subr.mxu0 0.0
        %1222 = vmatpush1.xpose.msra.mxu0 0.0
        %1223 = vmatprep.subr.mxu0 0.0
        %1224 = vmatpush1.xpose.msra.mxu0 0.0
        %1225 = vmatprep.subr.mxu0 0.0
        %1226 = vmatpush1.xpose.msra.mxu0 0.0
        %1227 = vmatprep.subr.mxu0 0.0
        %1228 = vmatpush1.xpose.msra.mxu0 0.0
        %1229 = vmatprep.mubr.f32.mxu0 0.0
        %1230 = vmatmul.mubr.f32.gmra.mrb[0].mxu0 %v1160
        %v1231 = vpop.f32.mrb[0].mxu0
        %v1232 = vadd.f32 0.0, %v1231
        %v1233 = vpop.f32.mrb[0].mxu0
        %1234 = vdwg.mxu0
        %v1236 = vsel %vm1158, %v863, 0
        %v1239 = vsel %vm1158, %v1009, 0
        %1241 = vmatprep.subr.mxu0 0.0
        %1242 = vmatpush1.xpose.msra.mxu0 %v1239
        %1243 = vmatprep.subr.mxu0 0.0
        %1244 = vmatpush1.xpose.msra.mxu0 0.0
        %1245 = vmatprep.subr.mxu0 0.0
        %1246 = vmatpush1.xpose.msra.mxu0 0.0
        %1247 = vmatprep.subr.mxu0 0.0
        %1248 = vmatpush1.xpose.msra.mxu0 0.0
        %1249 = vmatprep.subr.mxu0 0.0
        %1250 = vmatpush1.xpose.msra.mxu0 0.0
        %1251 = vmatprep.subr.mxu0 0.0
        %1252 = vmatpush1.xpose.msra.mxu0 0.0
        %1253 = vmatprep.subr.mxu0 0.0
        %1254 = vmatpush1.xpose.msra.mxu0 0.0
        %1255 = vmatprep.subr.mxu0 0.0
        %1256 = vmatpush1.xpose.msra.mxu0 0.0
        %1257 = vmatprep.subr.mxu0 0.0
        %1258 = vmatpush1.xpose.msra.mxu0 0.0
        %1259 = vmatprep.subr.mxu0 0.0
        %1260 = vmatpush1.xpose.msra.mxu0 0.0
        %1261 = vmatprep.subr.mxu0 0.0
        %1262 = vmatpush1.xpose.msra.mxu0 0.0
        %1263 = vmatprep.subr.mxu0 0.0
        %1264 = vmatpush1.xpose.msra.mxu0 0.0
        %1265 = vmatprep.subr.mxu0 0.0
        %1266 = vmatpush1.xpose.msra.mxu0 0.0
        %1267 = vmatprep.subr.mxu0 0.0
        %1268 = vmatpush1.xpose.msra.mxu0 0.0
        %1269 = vmatprep.subr.mxu0 0.0
        %1270 = vmatpush1.xpose.msra.mxu0 0.0
        %1271 = vmatprep.subr.mxu0 0.0
        %1272 = vmatpush1.xpose.msra.mxu0 0.0
        %1273 = vmatprep.subr.mxu0 0.0
        %1274 = vmatpush1.xpose.msra.mxu0 0.0
        %1275 = vmatprep.subr.mxu0 0.0
        %1276 = vmatpush1.xpose.msra.mxu0 0.0
        %1277 = vmatprep.subr.mxu0 0.0
        %1278 = vmatpush1.xpose.msra.mxu0 0.0
        %1279 = vmatprep.subr.mxu0 0.0
        %1280 = vmatpush1.xpose.msra.mxu0 0.0
        %1281 = vmatprep.subr.mxu0 0.0
        %1282 = vmatpush1.xpose.msra.mxu0 0.0
        %1283 = vmatprep.subr.mxu0 0.0
        %1284 = vmatpush1.xpose.msra.mxu0 0.0
        %1285 = vmatprep.subr.mxu0 0.0
        %1286 = vmatpush1.xpose.msra.mxu0 0.0
        %1287 = vmatprep.subr.mxu0 0.0
        %1288 = vmatpush1.xpose.msra.mxu0 0.0
        %1289 = vmatprep.subr.mxu0 0.0
        %1290 = vmatpush1.xpose.msra.mxu0 0.0
        %1291 = vmatprep.subr.mxu0 0.0
        %1292 = vmatpush1.xpose.msra.mxu0 0.0
        %1293 = vmatprep.subr.mxu0 0.0
        %1294 = vmatpush1.xpose.msra.mxu0 0.0
        %1295 = vmatprep.subr.mxu0 0.0
        %1296 = vmatpush1.xpose.msra.mxu0 0.0
        %1297 = vmatprep.subr.mxu0 0.0
        %1298 = vmatpush1.xpose.msra.mxu0 0.0
        %1299 = vmatprep.subr.mxu0 0.0
        %1300 = vmatpush1.xpose.msra.mxu0 0.0
        %1301 = vmatprep.subr.mxu0 0.0
        %1302 = vmatpush1.xpose.msra.mxu0 0.0
        %1303 = vmatprep.subr.mxu0 0.0
        %1304 = vmatpush1.xpose.msra.mxu0 0.0
        %1305 = vmatprep.mubr.f32.mxu0 0.0
        %1306 = vmatmul.mubr.f32.gmra.mrb[0].mxu0 %v1236
        %v1307 = vpop.f32.mrb[0].mxu0
        %v1308 = vadd.f32 0.0, %v1307
        %v1309 = vpop.f32.mrb[0].mxu0
        %1310 = vdwg.mxu0
        %v1312 = vsel %vm1158, %v864, 0
        %v1315 = vsel %vm1158, %v1010, 0
        %1317 = vmatprep.subr.mxu0 0.0
        %1318 = vmatpush1.xpose.msra.mxu0 %v1315
        %1319 = vmatprep.subr.mxu0 0.0
        %1320 = vmatpush1.xpose.msra.mxu0 0.0
        %1321 = vmatprep.subr.mxu0 0.0
        %1322 = vmatpush1.xpose.msra.mxu0 0.0
        %1323 = vmatprep.subr.mxu0 0.0
        %1324 = vmatpush1.xpose.msra.mxu0 0.0
        %1325 = vmatprep.subr.mxu0 0.0
        %1326 = vmatpush1.xpose.msra.mxu0 0.0
        %1327 = vmatprep.subr.mxu0 0.0
        %1328 = vmatpush1.xpose.msra.mxu0 0.0
        %1329 = vmatprep.subr.mxu0 0.0
        %1330 = vmatpush1.xpose.msra.mxu0 0.0
        %1331 = vmatprep.subr.mxu0 0.0
        %1332 = vmatpush1.xpose.msra.mxu0 0.0
        %1333 = vmatprep.subr.mxu0 0.0
        %1334 = vmatpush1.xpose.msra.mxu0 0.0
        %1335 = vmatprep.subr.mxu0 0.0
        %1336 = vmatpush1.xpose.msra.mxu0 0.0
        %1337 = vmatprep.subr.mxu0 0.0
        %1338 = vmatpush1.xpose.msra.mxu0 0.0
        %1339 = vmatprep.subr.mxu0 0.0
        %1340 = vmatpush1.xpose.msra.mxu0 0.0
        %1341 = vmatprep.subr.mxu0 0.0
        %1342 = vmatpush1.xpose.msra.mxu0 0.0
        %1343 = vmatprep.subr.mxu0 0.0
        %1344 = vmatpush1.xpose.msra.mxu0 0.0
        %1345 = vmatprep.subr.mxu0 0.0
        %1346 = vmatpush1.xpose.msra.mxu0 0.0
        %1347 = vmatprep.subr.mxu0 0.0
        %1348 = vmatpush1.xpose.msra.mxu0 0.0
        %1349 = vmatprep.subr.mxu0 0.0
        %1350 = vmatpush1.xpose.msra.mxu0 0.0
        %1351 = vmatprep.subr.mxu0 0.0
        %1352 = vmatpush1.xpose.msra.mxu0 0.0
        %1353 = vmatprep.subr.mxu0 0.0
        %1354 = vmatpush1.xpose.msra.mxu0 0.0
        %1355 = vmatprep.subr.mxu0 0.0
        %1356 = vmatpush1.xpose.msra.mxu0 0.0
        %1357 = vmatprep.subr.mxu0 0.0
        %1358 = vmatpush1.xpose.msra.mxu0 0.0
        %1359 = vmatprep.subr.mxu0 0.0
        %1360 = vmatpush1.xpose.msra.mxu0 0.0
        %1361 = vmatprep.subr.mxu0 0.0
        %1362 = vmatpush1.xpose.msra.mxu0 0.0
        %1363 = vmatprep.subr.mxu0 0.0
        %1364 = vmatpush1.xpose.msra.mxu0 0.0
        %1365 = vmatprep.subr.mxu0 0.0
        %1366 = vmatpush1.xpose.msra.mxu0 0.0
        %1367 = vmatprep.subr.mxu0 0.0
        %1368 = vmatpush1.xpose.msra.mxu0 0.0
        %1369 = vmatprep.subr.mxu0 0.0
        %1370 = vmatpush1.xpose.msra.mxu0 0.0
        %1371 = vmatprep.subr.mxu0 0.0
        %1372 = vmatpush1.xpose.msra.mxu0 0.0
        %1373 = vmatprep.subr.mxu0 0.0
        %1374 = vmatpush1.xpose.msra.mxu0 0.0
        %1375 = vmatprep.subr.mxu0 0.0
        %1376 = vmatpush1.xpose.msra.mxu0 0.0
        %1377 = vmatprep.subr.mxu0 0.0
        %1378 = vmatpush1.xpose.msra.mxu0 0.0
        %1379 = vmatprep.subr.mxu0 0.0
        %1380 = vmatpush1.xpose.msra.mxu0 0.0
        %1381 = vmatprep.mubr.f32.mxu0 0.0
        %1382 = vmatmul.mubr.f32.gmra.mrb[0].mxu0 %v1312
        %v1383 = vpop.f32.mrb[0].mxu0
        %v1384 = vadd.f32 0.0, %v1383
        %v1385 = vpop.f32.mrb[0].mxu0
        %1386 = vdwg.mxu0
        %v1388 = vsel %vm1158, %v865, 0
        %v1391 = vsel %vm1158, %v1011, 0
        %1393 = vmatprep.subr.mxu0 0.0
        %1394 = vmatpush1.xpose.msra.mxu0 %v1391
        %1395 = vmatprep.subr.mxu0 0.0
        %1396 = vmatpush1.xpose.msra.mxu0 0.0
        %1397 = vmatprep.subr.mxu0 0.0
        %1398 = vmatpush1.xpose.msra.mxu0 0.0
        %1399 = vmatprep.subr.mxu0 0.0
        %1400 = vmatpush1.xpose.msra.mxu0 0.0
        %1401 = vmatprep.subr.mxu0 0.0
        %1402 = vmatpush1.xpose.msra.mxu0 0.0
        %1403 = vmatprep.subr.mxu0 0.0
        %1404 = vmatpush1.xpose.msra.mxu0 0.0
        %1405 = vmatprep.subr.mxu0 0.0
        %1406 = vmatpush1.xpose.msra.mxu0 0.0
        %1407 = vmatprep.subr.mxu0 0.0
        %1408 = vmatpush1.xpose.msra.mxu0 0.0
        %1409 = vmatprep.subr.mxu0 0.0
        %1410 = vmatpush1.xpose.msra.mxu0 0.0
        %1411 = vmatprep.subr.mxu0 0.0
        %1412 = vmatpush1.xpose.msra.mxu0 0.0
        %1413 = vmatprep.subr.mxu0 0.0
        %1414 = vmatpush1.xpose.msra.mxu0 0.0
        %1415 = vmatprep.subr.mxu0 0.0
        %1416 = vmatpush1.xpose.msra.mxu0 0.0
        %1417 = vmatprep.subr.mxu0 0.0
        %1418 = vmatpush1.xpose.msra.mxu0 0.0
        %1419 = vmatprep.subr.mxu0 0.0
        %1420 = vmatpush1.xpose.msra.mxu0 0.0
        %1421 = vmatprep.subr.mxu0 0.0
        %1422 = vmatpush1.xpose.msra.mxu0 0.0
        %1423 = vmatprep.subr.mxu0 0.0
        %1424 = vmatpush1.xpose.msra.mxu0 0.0
        %1425 = vmatprep.subr.mxu0 0.0
        %1426 = vmatpush1.xpose.msra.mxu0 0.0
        %1427 = vmatprep.subr.mxu0 0.0
        %1428 = vmatpush1.xpose.msra.mxu0 0.0
        %1429 = vmatprep.subr.mxu0 0.0
        %1430 = vmatpush1.xpose.msra.mxu0 0.0
        %1431 = vmatprep.subr.mxu0 0.0
        %1432 = vmatpush1.xpose.msra.mxu0 0.0
        %1433 = vmatprep.subr.mxu0 0.0
        %1434 = vmatpush1.xpose.msra.mxu0 0.0
        %1435 = vmatprep.subr.mxu0 0.0
        %1436 = vmatpush1.xpose.msra.mxu0 0.0
        %1437 = vmatprep.subr.mxu0 0.0
        %1438 = vmatpush1.xpose.msra.mxu0 0.0
        %1439 = vmatprep.subr.mxu0 0.0
        %1440 = vmatpush1.xpose.msra.mxu0 0.0
        %1441 = vmatprep.subr.mxu0 0.0
        %1442 = vmatpush1.xpose.msra.mxu0 0.0
        %1443 = vmatprep.subr.mxu0 0.0
        %1444 = vmatpush1.xpose.msra.mxu0 0.0
        %1445 = vmatprep.subr.mxu0 0.0
        %1446 = vmatpush1.xpose.msra.mxu0 0.0
        %1447 = vmatprep.subr.mxu0 0.0
        %1448 = vmatpush1.xpose.msra.mxu0 0.0
        %1449 = vmatprep.subr.mxu0 0.0
        %1450 = vmatpush1.xpose.msra.mxu0 0.0
        %1451 = vmatprep.subr.mxu0 0.0
        %1452 = vmatpush1.xpose.msra.mxu0 0.0
        %1453 = vmatprep.subr.mxu0 0.0
        %1454 = vmatpush1.xpose.msra.mxu0 0.0
        %1455 = vmatprep.subr.mxu0 0.0
        %1456 = vmatpush1.xpose.msra.mxu0 0.0
        %1457 = vmatprep.mubr.f32.mxu0 0.0
        %1458 = vmatmul.mubr.f32.gmra.mrb[0].mxu0 %v1388
        %v1459 = vpop.f32.mrb[0].mxu0
        %v1460 = vadd.f32 0.0, %v1459
        %v1461 = vpop.f32.mrb[0].mxu0
        %1462 = vdwg.mxu0
        %v1463 = vsel %vm1158, %v1232, -inf
        %1464 = vmax.xlane.f32.xlu0 %v1463
        %v1465 = vpop.xlane.xlu0 %1464
        %v1466 = vsel %vm1158, %v1308, -inf
        %1467 = vmax.xlane.f32.xlu0 %v1466
        %v1468 = vpop.xlane.xlu0 %1467
        %v1469 = vsel %vm1158, %v1384, -inf
        %1470 = vmax.xlane.f32.xlu0 %v1469
        %v1471 = vpop.xlane.xlu0 %1470
        %v1472 = vsel %vm1158, %v1460, -inf
        %1473 = vmax.xlane.f32.xlu0 %v1472
        %v1474 = vpop.xlane.xlu0 %1473
        %v1475 = vsub.f32 %v1232, %v1465
        %v1476 = vsub.f32 %v1308, %v1468
        %v1477 = vsub.f32 %v1384, %v1471
        %v1478 = vsub.f32 %v1460, %v1474
        %v1479 = vmul.f32 %v1475, 1.442695
        %v1480 = vpow.pop %v1479
        %v1481 = vmul.f32 %v1476, 1.442695
        %v1482 = vpow.pop %v1481
        %v1483 = vmul.f32 %v1477, 1.442695
        %v1484 = vpow.pop %v1483
        %v1485 = vmul.f32 %v1478, 1.442695
        %v1486 = vpow.pop %v1485
        %v1487 = vsel %vm1158, %v1480, 0.0
        %1488 = vadd.xlane.f32.xlu0 %v1487
        %v1489 = vpop.xlane.xlu0 %1488
        %v1490 = vsel %vm1158, %v1482, 0.0
        %1491 = vadd.xlane.f32.xlu0 %v1490
        %v1492 = vpop.xlane.xlu0 %1491
        %v1493 = vsel %vm1158, %v1484, 0.0
        %1494 = vadd.xlane.f32.xlu0 %v1493
        %v1495 = vpop.xlane.xlu0 %1494
        %v1496 = vsel %vm1158, %v1486, 0.0
        %1497 = vadd.xlane.f32.xlu0 %v1496
        %v1498 = vpop.xlane.xlu0 %1497
        %v1499 = vrcp.pop %v1489
        %v1500 = vmul.f32 %v1480, %v1499
        %v1501 = vrcp.pop %v1492
        %v1502 = vmul.f32 %v1482, %v1501
        %v1503 = vrcp.pop %v1495
        %v1504 = vmul.f32 %v1484, %v1503
        %v1505 = vrcp.pop %v1498
        %v1506 = vmul.f32 %v1486, %v1505
        %1507 = vst.msk [vmem:[%s483] sm:$0xff] %vm1158, %v1500
        %1508 = vst.msk [vmem:[%s483 + $0x8] sm:$0xff] %vm1158, %v1502
        %1509 = vst.msk [vmem:[%s483 + $0x10] sm:$0xff] %vm1158, %v1504
        %1510 = vst.msk [vmem:[%s483 + $0x18] sm:$0xff] %vm1158, %v1506
        %v1512 = vsel %vm1158, %v1500, 0
        %1514 = vmatprep.subr.mxu0 0.0
        %1515 = vmatpush1.msra.mxu0 %v1154
        %1516 = vmatprep.subr.mxu0 0.0
        %1517 = vmatpush1.msra.mxu0 0.0
        %1518 = vmatprep.subr.mxu0 0.0
        %1519 = vmatpush1.msra.mxu0 0.0
        %1520 = vmatprep.subr.mxu0 0.0
        %1521 = vmatpush1.msra.mxu0 0.0
        %1522 = vmatprep.subr.mxu0 0.0
        %1523 = vmatpush1.msra.mxu0 0.0
        %1524 = vmatprep.subr.mxu0 0.0
        %1525 = vmatpush1.msra.mxu0 0.0
        %1526 = vmatprep.subr.mxu0 0.0
        %1527 = vmatpush1.msra.mxu0 0.0
        %1528 = vmatprep.subr.mxu0 0.0
        %1529 = vmatpush1.msra.mxu0 0.0
        %1530 = vmatprep.subr.mxu0 0.0
        %1531 = vmatpush1.msra.mxu0 0.0
        %1532 = vmatprep.subr.mxu0 0.0
        %1533 = vmatpush1.msra.mxu0 0.0
        %1534 = vmatprep.subr.mxu0 0.0
        %1535 = vmatpush1.msra.mxu0 0.0
        %1536 = vmatprep.subr.mxu0 0.0
        %1537 = vmatpush1.msra.mxu0 0.0
        %1538 = vmatprep.subr.mxu0 0.0
        %1539 = vmatpush1.msra.mxu0 0.0
        %1540 = vmatprep.subr.mxu0 0.0
        %1541 = vmatpush1.msra.mxu0 0.0
        %1542 = vmatprep.subr.mxu0 0.0
        %1543 = vmatpush1.msra.mxu0 0.0
        %1544 = vmatprep.subr.mxu0 0.0
        %1545 = vmatpush1.msra.mxu0 0.0
        %1546 = vmatprep.subr.mxu0 0.0
        %1547 = vmatpush1.msra.mxu0 0.0
        %1548 = vmatprep.subr.mxu0 0.0
        %1549 = vmatpush1.msra.mxu0 0.0
        %1550 = vmatprep.subr.mxu0 0.0
        %1551 = vmatpush1.msra.mxu0 0.0
        %1552 = vmatprep.subr.mxu0 0.0
        %1553 = vmatpush1.msra.mxu0 0.0
        %1554 = vmatprep.subr.mxu0 0.0
        %1555 = vmatpush1.msra.mxu0 0.0
        %1556 = vmatprep.subr.mxu0 0.0
        %1557 = vmatpush1.msra.mxu0 0.0
        %1558 = vmatprep.subr.mxu0 0.0
        %1559 = vmatpush1.msra.mxu0 0.0
        %1560 = vmatprep.subr.mxu0 0.0
        %1561 = vmatpush1.msra.mxu0 0.0
        %1562 = vmatprep.subr.mxu0 0.0
        %1563 = vmatpush1.msra.mxu0 0.0
        %1564 = vmatprep.subr.mxu0 0.0
        %1565 = vmatpush1.msra.mxu0 0.0
        %1566 = vmatprep.subr.mxu0 0.0
        %1567 = vmatpush1.msra.mxu0 0.0
        %1568 = vmatprep.subr.mxu0 0.0
        %1569 = vmatpush1.msra.mxu0 0.0
        %1570 = vmatprep.subr.mxu0 0.0
        %1571 = vmatpush1.msra.mxu0 0.0
        %1572 = vmatprep.subr.mxu0 0.0
        %1573 = vmatpush1.msra.mxu0 0.0
        %1574 = vmatprep.subr.mxu0 0.0
        %1575 = vmatpush1.msra.mxu0 0.0
        %1576 = vmatprep.subr.mxu0 0.0
        %1577 = vmatpush1.msra.mxu0 0.0
        %1578 = vmatprep.mubr.f32.mxu0 0.0
        %1579 = vmatmul.mubr.f32.gmra.mrb[0].mxu0 %v1512
        %v1580 = vpop.f32.mrb[0].mxu0
        %v1581 = vadd.f32 0.0, %v1580
        %v1582 = vpop.f32.mrb[0].mxu0
        %1583 = vdwg.mxu0
        %v1585 = vsel %vm1158, %v1502, 0
        %1587 = vmatprep.subr.mxu0 0.0
        %1588 = vmatpush1.msra.mxu0 %v1155
        %1589 = vmatprep.subr.mxu0 0.0
        %1590 = vmatpush1.msra.mxu0 0.0
        %1591 = vmatprep.subr.mxu0 0.0
        %1592 = vmatpush1.msra.mxu0 0.0
        %1593 = vmatprep.subr.mxu0 0.0
        %1594 = vmatpush1.msra.mxu0 0.0
        %1595 = vmatprep.subr.mxu0 0.0
        %1596 = vmatpush1.msra.mxu0 0.0
        %1597 = vmatprep.subr.mxu0 0.0
        %1598 = vmatpush1.msra.mxu0 0.0
        %1599 = vmatprep.subr.mxu0 0.0
        %1600 = vmatpush1.msra.mxu0 0.0
        %1601 = vmatprep.subr.mxu0 0.0
        %1602 = vmatpush1.msra.mxu0 0.0
        %1603 = vmatprep.subr.mxu0 0.0
        %1604 = vmatpush1.msra.mxu0 0.0
        %1605 = vmatprep.subr.mxu0 0.0
        %1606 = vmatpush1.msra.mxu0 0.0
        %1607 = vmatprep.subr.mxu0 0.0
        %1608 = vmatpush1.msra.mxu0 0.0
        %1609 = vmatprep.subr.mxu0 0.0
        %1610 = vmatpush1.msra.mxu0 0.0
        %1611 = vmatprep.subr.mxu0 0.0
        %1612 = vmatpush1.msra.mxu0 0.0
        %1613 = vmatprep.subr.mxu0 0.0
        %1614 = vmatpush1.msra.mxu0 0.0
        %1615 = vmatprep.subr.mxu0 0.0
        %1616 = vmatpush1.msra.mxu0 0.0
        %1617 = vmatprep.subr.mxu0 0.0
        %1618 = vmatpush1.msra.mxu0 0.0
        %1619 = vmatprep.subr.mxu0 0.0
        %1620 = vmatpush1.msra.mxu0 0.0
        %1621 = vmatprep.subr.mxu0 0.0
        %1622 = vmatpush1.msra.mxu0 0.0
        %1623 = vmatprep.subr.mxu0 0.0
        %1624 = vmatpush1.msra.mxu0 0.0
        %1625 = vmatprep.subr.mxu0 0.0
        %1626 = vmatpush1.msra.mxu0 0.0
        %1627 = vmatprep.subr.mxu0 0.0
        %1628 = vmatpush1.msra.mxu0 0.0
        %1629 = vmatprep.subr.mxu0 0.0
        %1630 = vmatpush1.msra.mxu0 0.0
        %1631 = vmatprep.subr.mxu0 0.0
        %1632 = vmatpush1.msra.mxu0 0.0
        %1633 = vmatprep.subr.mxu0 0.0
        %1634 = vmatpush1.msra.mxu0 0.0
        %1635 = vmatprep.subr.mxu0 0.0
        %1636 = vmatpush1.msra.mxu0 0.0
        %1637 = vmatprep.subr.mxu0 0.0
        %1638 = vmatpush1.msra.mxu0 0.0
        %1639 = vmatprep.subr.mxu0 0.0
        %1640 = vmatpush1.msra.mxu0 0.0
        %1641 = vmatprep.subr.mxu0 0.0
        %1642 = vmatpush1.msra.mxu0 0.0
        %1643 = vmatprep.subr.mxu0 0.0
        %1644 = vmatpush1.msra.mxu0 0.0
        %1645 = vmatprep.subr.mxu0 0.0
        %1646 = vmatpush1.msra.mxu0 0.0
        %1647 = vmatprep.subr.mxu0 0.0
        %1648 = vmatpush1.msra.mxu0 0.0
        %1649 = vmatprep.subr.mxu0 0.0
        %1650 = vmatpush1.msra.mxu0 0.0
        %1651 = vmatprep.mubr.f32.mxu0 0.0
        %1652 = vmatmul.mubr.f32.gmra.mrb[0].mxu0 %v1585
        %v1653 = vpop.f32.mrb[0].mxu0
        %v1654 = vadd.f32 0.0, %v1653
        %v1655 = vpop.f32.mrb[0].mxu0
        %1656 = vdwg.mxu0
        %v1658 = vsel %vm1158, %v1504, 0
        %1660 = vmatprep.subr.mxu0 0.0
        %1661 = vmatpush1.msra.mxu0 %v1156
        %1662 = vmatprep.subr.mxu0 0.0
        %1663 = vmatpush1.msra.mxu0 0.0
        %1664 = vmatprep.subr.mxu0 0.0
        %1665 = vmatpush1.msra.mxu0 0.0
        %1666 = vmatprep.subr.mxu0 0.0
        %1667 = vmatpush1.msra.mxu0 0.0
        %1668 = vmatprep.subr.mxu0 0.0
        %1669 = vmatpush1.msra.mxu0 0.0
        %1670 = vmatprep.subr.mxu0 0.0
        %1671 = vmatpush1.msra.mxu0 0.0
        %1672 = vmatprep.subr.mxu0 0.0
        %1673 = vmatpush1.msra.mxu0 0.0
        %1674 = vmatprep.subr.mxu0 0.0
        %1675 = vmatpush1.msra.mxu0 0.0
        %1676 = vmatprep.subr.mxu0 0.0
        %1677 = vmatpush1.msra.mxu0 0.0
        %1678 = vmatprep.subr.mxu0 0.0
        %1679 = vmatpush1.msra.mxu0 0.0
        %1680 = vmatprep.subr.mxu0 0.0
        %1681 = vmatpush1.msra.mxu0 0.0
        %1682 = vmatprep.subr.mxu0 0.0
        %1683 = vmatpush1.msra.mxu0 0.0
        %1684 = vmatprep.subr.mxu0 0.0
        %1685 = vmatpush1.msra.mxu0 0.0
        %1686 = vmatprep.subr.mxu0 0.0
        %1687 = vmatpush1.msra.mxu0 0.0
        %1688 = vmatprep.subr.mxu0 0.0
        %1689 = vmatpush1.msra.mxu0 0.0
        %1690 = vmatprep.subr.mxu0 0.0
        %1691 = vmatpush1.msra.mxu0 0.0
        %1692 = vmatprep.subr.mxu0 0.0
        %1693 = vmatpush1.msra.mxu0 0.0
        %1694 = vmatprep.subr.mxu0 0.0
        %1695 = vmatpush1.msra.mxu0 0.0
        %1696 = vmatprep.subr.mxu0 0.0
        %1697 = vmatpush1.msra.mxu0 0.0
        %1698 = vmatprep.subr.mxu0 0.0
        %1699 = vmatpush1.msra.mxu0 0.0
        %1700 = vmatprep.subr.mxu0 0.0
        %1701 = vmatpush1.msra.mxu0 0.0
        %1702 = vmatprep.subr.mxu0 0.0
        %1703 = vmatpush1.msra.mxu0 0.0
        %1704 = vmatprep.subr.mxu0 0.0
        %1705 = vmatpush1.msra.mxu0 0.0
        %1706 = vmatprep.subr.mxu0 0.0
        %1707 = vmatpush1.msra.mxu0 0.0
        %1708 = vmatprep.subr.mxu0 0.0
        %1709 = vmatpush1.msra.mxu0 0.0
        %1710 = vmatprep.subr.mxu0 0.0
        %1711 = vmatpush1.msra.mxu0 0.0
        %1712 = vmatprep.subr.mxu0 0.0
        %1713 = vmatpush1.msra.mxu0 0.0
        %1714 = vmatprep.subr.mxu0 0.0
        %1715 = vmatpush1.msra.mxu0 0.0
        %1716 = vmatprep.subr.mxu0 0.0
        %1717 = vmatpush1.msra.mxu0 0.0
        %1718 = vmatprep.subr.mxu0 0.0
        %1719 = vmatpush1.msra.mxu0 0.0
        %1720 = vmatprep.subr.mxu0 0.0
        %1721 = vmatpush1.msra.mxu0 0.0
        %1722 = vmatprep.subr.mxu0 0.0
        %1723 = vmatpush1.msra.mxu0 0.0
        %1724 = vmatprep.mubr.f32.mxu0 0.0
        %1725 = vmatmul.mubr.f32.gmra.mrb[0].mxu0 %v1658
        %v1726 = vpop.f32.mrb[0].mxu0
        %v1727 = vadd.f32 0.0, %v1726
        %v1728 = vpop.f32.mrb[0].mxu0
        %1729 = vdwg.mxu0
        %v1731 = vsel %vm1158, %v1506, 0
        %1733 = vmatprep.subr.mxu0 0.0
        %1734 = vmatpush1.msra.mxu0 %v1157
        %1735 = vmatprep.subr.mxu0 0.0
        %1736 = vmatpush1.msra.mxu0 0.0
        %1737 = vmatprep.subr.mxu0 0.0
        %1738 = vmatpush1.msra.mxu0 0.0
        %1739 = vmatprep.subr.mxu0 0.0
        %1740 = vmatpush1.msra.mxu0 0.0
        %1741 = vmatprep.subr.mxu0 0.0
        %1742 = vmatpush1.msra.mxu0 0.0
        %1743 = vmatprep.subr.mxu0 0.0
        %1744 = vmatpush1.msra.mxu0 0.0
        %1745 = vmatprep.subr.mxu0 0.0
        %1746 = vmatpush1.msra.mxu0 0.0
        %1747 = vmatprep.subr.mxu0 0.0
        %1748 = vmatpush1.msra.mxu0 0.0
        %1749 = vmatprep.subr.mxu0 0.0
        %1750 = vmatpush1.msra.mxu0 0.0
        %1751 = vmatprep.subr.mxu0 0.0
        %1752 = vmatpush1.msra.mxu0 0.0
        %1753 = vmatprep.subr.mxu0 0.0
        %1754 = vmatpush1.msra.mxu0 0.0
        %1755 = vmatprep.subr.mxu0 0.0
        %1756 = vmatpush1.msra.mxu0 0.0
        %1757 = vmatprep.subr.mxu0 0.0
        %1758 = vmatpush1.msra.mxu0 0.0
        %1759 = vmatprep.subr.mxu0 0.0
        %1760 = vmatpush1.msra.mxu0 0.0
        %1761 = vmatprep.subr.mxu0 0.0
        %1762 = vmatpush1.msra.mxu0 0.0
        %1763 = vmatprep.subr.mxu0 0.0
        %1764 = vmatpush1.msra.mxu0 0.0
        %1765 = vmatprep.subr.mxu0 0.0
        %1766 = vmatpush1.msra.mxu0 0.0
        %1767 = vmatprep.subr.mxu0 0.0
        %1768 = vmatpush1.msra.mxu0 0.0
        %1769 = vmatprep.subr.mxu0 0.0
        %1770 = vmatpush1.msra.mxu0 0.0
        %1771 = vmatprep.subr.mxu0 0.0
        %1772 = vmatpush1.msra.mxu0 0.0
        %1773 = vmatprep.subr.mxu0 0.0
        %1774 = vmatpush1.msra.mxu0 0.0
        %1775 = vmatprep.subr.mxu0 0.0
        %1776 = vmatpush1.msra.mxu0 0.0
        %1777 = vmatprep.subr.mxu0 0.0
        %1778 = vmatpush1.msra.mxu0 0.0
        %1779 = vmatprep.subr.mxu0 0.0
        %1780 = vmatpush1.msra.mxu0 0.0
        %1781 = vmatprep.subr.mxu0 0.0
        %1782 = vmatpush1.msra.mxu0 0.0
        %1783 = vmatprep.subr.mxu0 0.0
        %1784 = vmatpush1.msra.mxu0 0.0
        %1785 = vmatprep.subr.mxu0 0.0
        %1786 = vmatpush1.msra.mxu0 0.0
        %1787 = vmatprep.subr.mxu0 0.0
        %1788 = vmatpush1.msra.mxu0 0.0
        %1789 = vmatprep.subr.mxu0 0.0
        %1790 = vmatpush1.msra.mxu0 0.0
        %1791 = vmatprep.subr.mxu0 0.0
        %1792 = vmatpush1.msra.mxu0 0.0
        %1793 = vmatprep.subr.mxu0 0.0
        %1794 = vmatpush1.msra.mxu0 0.0
        %1795 = vmatprep.subr.mxu0 0.0
        %1796 = vmatpush1.msra.mxu0 0.0
        %1797 = vmatprep.mubr.f32.mxu0 0.0
        %1798 = vmatmul.mubr.f32.gmra.mrb[0].mxu0 %v1731
        %v1799 = vpop.f32.mrb[0].mxu0
        %v1800 = vadd.f32 0.0, %v1799
        %v1801 = vpop.f32.mrb[0].mxu0
        %1802 = vdwg.mxu0
        %v1803 = vcombine.low %v1581, %v1727
        %v1804 = vcombine.high %v1581, %v1727
        %v1806 = vunpack.c.l.s4 1983009808
        %v1807 = vunpack.c.0.s8 %v1806
        %v1808 = vlaneseq
        %v1809 = vshrl.u32 %v1808, 7
        %v1810 = vsub.s32 %v1807, %v1809
        %v1811 = vrot.slane %v1803, %v1810
        %v1813 = vunpack.c.l.s4 1983009808
        %v1814 = vunpack.c.0.s8 %v1813
        %v1815 = vlaneseq
        %v1816 = vshrl.u32 %v1815, 7
        %v1817 = vsub.s32 %v1814, %v1816
        %v1818 = vrot.slane %v1804, %v1817
        %v1819 = vcombine.low %v1654, %v1800
        %v1820 = vcombine.high %v1654, %v1800
        %v1822 = vunpack.c.l.s4 1983009808
        %v1823 = vunpack.c.0.s8 %v1822
        %v1824 = vlaneseq
        %v1825 = vshrl.u32 %v1824, 7
        %v1826 = vsub.s32 %v1823, %v1825
        %v1827 = vrot.slane %v1819, %v1826
        %v1829 = vunpack.c.l.s4 1983009808
        %v1830 = vunpack.c.0.s8 %v1829
        %v1831 = vlaneseq
        %v1832 = vshrl.u32 %v1831, 7
        %v1833 = vsub.s32 %v1830, %v1832
        %v1834 = vrot.slane %v1820, %v1833
        %v1835 = vcombine.low %v1811, %v1827
        %v1836 = vcombine.high %v1811, %v1827
        %v1838 = vunpack.c.l.s4 1934713408
        %v1839 = vunpack.c.0.s8 %v1838
        %v1840 = vlaneseq
        %v1841 = vshrl.u32 %v1840, 7
        %v1842 = vsub.s32 %v1839, %v1841
        %v1843 = vrot.slane %v1835, %v1842
        %v1845 = vunpack.c.l.s4 1934713408
        %v1846 = vunpack.c.0.s8 %v1845
        %v1847 = vlaneseq
        %v1848 = vshrl.u32 %v1847, 7
        %v1849 = vsub.s32 %v1846, %v1848
        %v1850 = vrot.slane %v1836, %v1849
        %v1851 = vcombine.low %v1818, %v1834
        %v1852 = vcombine.high %v1818, %v1834
        %v1854 = vunpack.c.l.s4 1934713408
        %v1855 = vunpack.c.0.s8 %v1854
        %v1856 = vlaneseq
        %v1857 = vshrl.u32 %v1856, 7
        %v1858 = vsub.s32 %v1855, %v1857
        %v1859 = vrot.slane %v1851, %v1858
        %v1861 = vunpack.c.l.s4 1934713408
        %v1862 = vunpack.c.0.s8 %v1861
        %v1863 = vlaneseq
        %v1864 = vshrl.u32 %v1863, 7
        %v1865 = vsub.s32 %v1862, %v1864
        %v1866 = vrot.slane %v1852, %v1865
        %v1867 = vcombine.high %v1843, 0.0
        %v1868 = vcombine.high %v1850, 0.0
        %v1869 = vcombine.high %v1859, 0.0
        %v1870 = vcombine.high %v1866, 0.0
        %v1871 = vcombine.low %v1843, %v1850
        %v1873 = vunpack.c.l.s4 1983009808
        %v1874 = vunpack.c.0.s8 %v1873
        %v1875 = vlaneseq
        %v1876 = vshrl.u32 %v1875, 7
        %v1877 = vsub.s32 %v1874, %v1876
        %v1878 = vrot.slane %v1871, %v1877
        %v1879 = vcombine.low %v1867, %v1868
        %v1881 = vunpack.c.l.s4 1983009808
        %v1882 = vunpack.c.0.s8 %v1881
        %v1883 = vlaneseq
        %v1884 = vshrl.u32 %v1883, 7
        %v1885 = vsub.s32 %v1882, %v1884
        %v1886 = vrot.slane %v1879, %v1885
        %v1887 = vcombine.low %v1859, %v1866
        %v1889 = vunpack.c.l.s4 1983009808
        %v1890 = vunpack.c.0.s8 %v1889
        %v1891 = vlaneseq
        %v1892 = vshrl.u32 %v1891, 7
        %v1893 = vsub.s32 %v1890, %v1892
        %v1894 = vrot.slane %v1887, %v1893
        %v1895 = vcombine.low %v1869, %v1870
        %v1897 = vunpack.c.l.s4 1983009808
        %v1898 = vunpack.c.0.s8 %v1897
        %v1899 = vlaneseq
        %v1900 = vshrl.u32 %v1899, 7
        %v1901 = vsub.s32 %v1898, %v1900
        %v1902 = vrot.slane %v1895, %v1901
        %v1903 = vcombine.low %v1878, %v1886
        %v1904 = vcombine.high %v1878, %v1886
        %v1906 = vunpack.c.l.s4 1934713408
        %v1907 = vunpack.c.0.s8 %v1906
        %v1908 = vlaneseq
        %v1909 = vshrl.u32 %v1908, 7
        %v1910 = vsub.s32 %v1907, %v1909
        %v1911 = vrot.slane %v1903, %v1910
        %v1913 = vunpack.c.l.s4 1934713408
        %v1914 = vunpack.c.0.s8 %v1913
        %v1915 = vlaneseq
        %v1916 = vshrl.u32 %v1915, 7
        %v1917 = vsub.s32 %v1914, %v1916
        %v1918 = vrot.slane %v1904, %v1917
        %v1919 = vcombine.low %v1894, %v1902
        %v1920 = vcombine.high %v1894, %v1902
        %v1922 = vunpack.c.l.s4 1934713408
        %v1923 = vunpack.c.0.s8 %v1922
        %v1924 = vlaneseq
        %v1925 = vshrl.u32 %v1924, 7
        %v1926 = vsub.s32 %v1923, %v1925
        %v1927 = vrot.slane %v1919, %v1926
        %v1929 = vunpack.c.l.s4 1934713408
        %v1930 = vunpack.c.0.s8 %v1929
        %v1931 = vlaneseq
        %v1932 = vshrl.u32 %v1931, 7
        %v1933 = vsub.s32 %v1930, %v1932
        %v1934 = vrot.slane %v1920, %v1933
        %v1935 = vcombine.low %v1911, %v1927
        %v1936 = vcombine.high %v1911, %v1927
        %v1937 = vcombine.low %v1918, %v1934
        %v1938 = vcombine.high %v1918, %v1934
        %1940 = vrot.lane.b32.xlu0 %v1936, 8
        %v1941 = vpop.permute.xlu0 %1940
        %1944 = vrot.lane.b32.xlu0 %v1937, 16
        %v1945 = vpop.permute.xlu0 %1944
        %1948 = vrot.lane.b32.xlu0 %v1938, 24
        %v1949 = vpop.permute.xlu0 %1948
        %v1951 = vsel %vm1158, %v1935, %v1941
        %vm1952 = vcmask 130048
        %v1953 = vsel %vm1952, %v1951, %v1945
        %vm1954 = vcmask 195584
        %v1955 = vsel %vm1954, %v1953, %v1949
        %v1956 = vld [vmem:[%s6] sm:$0xff]
        %v1957 = vld [vmem:[%s6 + $0x8] sm:$0xff]
        %v1958 = vld [vmem:[%s6 + $0x10] sm:$0xff]
        %v1959 = vld [vmem:[%s6 + $0x18] sm:$0xff]
        %v1960 = vld [vmem:[%s6 + $0x20] sm:$0xff]
        %v1961 = vld [vmem:[%s6 + $0x28] sm:$0xff]
        %v1962 = vld [vmem:[%s6 + $0x30] sm:$0xff]
        %v1963 = vld [vmem:[%s6 + $0x38] sm:$0xff]
        %v1965 = vsel %vm491, %v1955, 0
        %1967 = vmatprep.subr.mxu0 0.0
        %1968 = vmatpush1.msra.mxu0 %v1960
        %1969 = vmatprep.subr.mxu0 0.0
        %1970 = vmatpush1.msra.mxu0 %v1961
        %1971 = vmatprep.subr.mxu0 0.0
        %1972 = vmatpush1.msra.mxu0 %v1962
        %1973 = vmatprep.subr.mxu0 0.0
        %1974 = vmatpush1.msra.mxu0 %v1963
        %1975 = vmatprep.subr.mxu0 0.0
        %1976 = vmatpush1.msra.mxu0 0.0
        %1977 = vmatprep.subr.mxu0 0.0
        %1978 = vmatpush1.msra.mxu0 0.0
        %1979 = vmatprep.subr.mxu0 0.0
        %1980 = vmatpush1.msra.mxu0 0.0
        %1981 = vmatprep.subr.mxu0 0.0
        %1982 = vmatpush1.msra.mxu0 0.0
        %1983 = vmatprep.subr.mxu0 0.0
        %1984 = vmatpush1.msra.mxu0 0.0
        %1985 = vmatprep.subr.mxu0 0.0
        %1986 = vmatpush1.msra.mxu0 0.0
        %1987 = vmatprep.subr.mxu0 0.0
        %1988 = vmatpush1.msra.mxu0 0.0
        %1989 = vmatprep.subr.mxu0 0.0
        %1990 = vmatpush1.msra.mxu0 0.0
        %1991 = vmatprep.subr.mxu0 0.0
        %1992 = vmatpush1.msra.mxu0 0.0
        %1993 = vmatprep.subr.mxu0 0.0
        %1994 = vmatpush1.msra.mxu0 0.0
        %1995 = vmatprep.subr.mxu0 0.0
        %1996 = vmatpush1.msra.mxu0 0.0
        %1997 = vmatprep.subr.mxu0 0.0
        %1998 = vmatpush1.msra.mxu0 0.0
        %1999 = vmatprep.subr.mxu0 0.0
        %2000 = vmatpush1.msra.mxu0 0.0
        %2001 = vmatprep.subr.mxu0 0.0
        %2002 = vmatpush1.msra.mxu0 0.0
        %2003 = vmatprep.subr.mxu0 0.0
        %2004 = vmatpush1.msra.mxu0 0.0
        %2005 = vmatprep.subr.mxu0 0.0
        %2006 = vmatpush1.msra.mxu0 0.0
        %2007 = vmatprep.subr.mxu0 0.0
        %2008 = vmatpush1.msra.mxu0 0.0
        %2009 = vmatprep.subr.mxu0 0.0
        %2010 = vmatpush1.msra.mxu0 0.0
        %2011 = vmatprep.subr.mxu0 0.0
        %2012 = vmatpush1.msra.mxu0 0.0
        %2013 = vmatprep.subr.mxu0 0.0
        %2014 = vmatpush1.msra.mxu0 0.0
        %2015 = vmatprep.subr.mxu0 0.0
        %2016 = vmatpush1.msra.mxu0 0.0
        %2017 = vmatprep.subr.mxu0 0.0
        %2018 = vmatpush1.msra.mxu0 0.0
        %2019 = vmatprep.subr.mxu0 0.0
        %2020 = vmatpush1.msra.mxu0 0.0
        %2021 = vmatprep.subr.mxu0 0.0
        %2022 = vmatpush1.msra.mxu0 0.0
        %2023 = vmatprep.subr.mxu0 0.0
        %2024 = vmatpush1.msra.mxu0 0.0
        %2025 = vmatprep.subr.mxu0 0.0
        %2026 = vmatpush1.msra.mxu0 0.0
        %2027 = vmatprep.subr.mxu0 0.0
        %2028 = vmatpush1.msra.mxu0 0.0
        %2029 = vmatprep.subr.mxu0 0.0
        %2030 = vmatpush1.msra.mxu0 0.0
        %2031 = vmatprep.mubr.f32.mxu0 0.0
        %2032 = vmatmul.mubr.f32.gmra.mrb[0].mxu0 %v1965
        %v2033 = vpop.f32.mrb[0].mxu0
        %v2034 = vadd.f32 0.0, %v2033
        %v2035 = vpop.f32.mrb[0].mxu0
        %2036 = vdwg.mxu0
        %2037 = vmatprep.subr.mxu0 0.0
        %2038 = vmatpush1.msra.mxu0 %v1956
        %2039 = vmatprep.subr.mxu0 0.0
        %2040 = vmatpush1.msra.mxu0 %v1957
        %2041 = vmatprep.subr.mxu0 0.0
        %2042 = vmatpush1.msra.mxu0 %v1958
        %2043 = vmatprep.subr.mxu0 0.0
        %2044 = vmatpush1.msra.mxu0 %v1959
        %2045 = vmatprep.subr.mxu0 0.0
        %2046 = vmatpush1.msra.mxu0 0.0
        %2047 = vmatprep.subr.mxu0 0.0
        %2048 = vmatpush1.msra.mxu0 0.0
        %2049 = vmatprep.subr.mxu0 0.0
        %2050 = vmatpush1.msra.mxu0 0.0
        %2051 = vmatprep.subr.mxu0 0.0
        %2052 = vmatpush1.msra.mxu0 0.0
        %2053 = vmatprep.subr.mxu0 0.0
        %2054 = vmatpush1.msra.mxu0 0.0
        %2055 = vmatprep.subr.mxu0 0.0
        %2056 = vmatpush1.msra.mxu0 0.0
        %2057 = vmatprep.subr.mxu0 0.0
        %2058 = vmatpush1.msra.mxu0 0.0
        %2059 = vmatprep.subr.mxu0 0.0
        %2060 = vmatpush1.msra.mxu0 0.0
        %2061 = vmatprep.subr.mxu0 0.0
        %2062 = vmatpush1.msra.mxu0 0.0
        %2063 = vmatprep.subr.mxu0 0.0
        %2064 = vmatpush1.msra.mxu0 0.0
        %2065 = vmatprep.subr.mxu0 0.0
        %2066 = vmatpush1.msra.mxu0 0.0
        %2067 = vmatprep.subr.mxu0 0.0
        %2068 = vmatpush1.msra.mxu0 0.0
        %2069 = vmatprep.subr.mxu0 0.0
        %2070 = vmatpush1.msra.mxu0 0.0
        %2071 = vmatprep.subr.mxu0 0.0
        %2072 = vmatpush1.msra.mxu0 0.0
        %2073 = vmatprep.subr.mxu0 0.0
        %2074 = vmatpush1.msra.mxu0 0.0
        %2075 = vmatprep.subr.mxu0 0.0
        %2076 = vmatpush1.msra.mxu0 0.0
        %2077 = vmatprep.subr.mxu0 0.0
        %2078 = vmatpush1.msra.mxu0 0.0
        %2079 = vmatprep.subr.mxu0 0.0
        %2080 = vmatpush1.msra.mxu0 0.0
        %2081 = vmatprep.subr.mxu0 0.0
        %2082 = vmatpush1.msra.mxu0 0.0
        %2083 = vmatprep.subr.mxu0 0.0
        %2084 = vmatpush1.msra.mxu0 0.0
        %2085 = vmatprep.subr.mxu0 0.0
        %2086 = vmatpush1.msra.mxu0 0.0
        %2087 = vmatprep.subr.mxu0 0.0
        %2088 = vmatpush1.msra.mxu0 0.0
        %2089 = vmatprep.subr.mxu0 0.0
        %2090 = vmatpush1.msra.mxu0 0.0
        %2091 = vmatprep.subr.mxu0 0.0
        %2092 = vmatpush1.msra.mxu0 0.0
        %2093 = vmatprep.subr.mxu0 0.0
        %2094 = vmatpush1.msra.mxu0 0.0
        %2095 = vmatprep.subr.mxu0 0.0
        %2096 = vmatpush1.msra.mxu0 0.0
        %2097 = vmatprep.subr.mxu0 0.0
        %2098 = vmatpush1.msra.mxu0 0.0
        %2099 = vmatprep.subr.mxu0 0.0
        %2100 = vmatpush1.msra.mxu0 0.0
        %2101 = vmatprep.mubr.f32.mxu0 0.0
        %2102 = vmatmul.mubr.f32.gmra.mrb[0].mxu0 %v647
        %v2103 = vpop.f32.mrb[0].mxu0
        %v2104 = vadd.f32 %v2034, %v2103
        %v2105 = vpop.f32.mrb[0].mxu0
        %2106 = vdwg.mxu0
        %v2107 = vld [vmem:[%s7] sm:$0x1]
        %v2109 = vlaneseq
        %v2110 = vshrl.u32 %v2109, 7
        %v2111 = vsub.s32 0, %v2110
        %v2112 = vrot.slane %v2107, %v2111
        %v2114 = vadd.f32 %v2104, %v2112
        %v2115 = vadd.f32 %v2114, %v486
        %v2116 = vsel %vm491, %v2115, 0.0
        %2117 = vadd.xlane.f32.xlu0 %v2116
        %v2118 = vpop.xlane.xlu0 %2117
        %v2119 = vrcp.pop 32.0
        %v2120 = vmul.f32 %v2118, %v2119
        %v2121 = vsub.f32 %v2115, %v2120
        %v2122 = vmul.f32 %v2121, %v2121
        %v2123 = vsel %vm491, %v2122, 0.0
        %2124 = vadd.xlane.f32.xlu0 %v2123
        %v2125 = vpop.xlane.xlu0 %2124
        %v2126 = vmul.f32 %v2125, %v2119
        %v2127 = vadd.f32 %v2126, 1e-05
        %v2128 = vrsqrt.pop %v2127
        %v2129 = vmul.f32 %v2121, %v2128
        %v2130 = vld [vmem:[%s8] sm:$0x1]
        %v2132 = vlaneseq
        %v2133 = vshrl.u32 %v2132, 7
        %v2134 = vsub.s32 0, %v2133
        %v2135 = vrot.slane %v2130, %v2134
        %v2137 = vmul.f32 %v2129, %v2135
        %v2138 = vld [vmem:[%s9] sm:$0x1]
        %v2140 = vlaneseq
        %v2141 = vshrl.u32 %v2140, 7
        %v2142 = vsub.s32 0, %v2141
        %v2143 = vrot.slane %v2138, %v2142
        %v2145 = vadd.f32 %v2137, %v2143
        %2146 = vst.msk [vmem:[%s476] sm:$0xff] %vm491, %v2145
        %s2147 = sand.u32 %s268, 1
        %s2148 = scalar_lea.sflag [#allocation4], %s2147
        %s2149 = sand.u32 %s268, 1
        %s2150 = smul.addr %s2149, 8
        %s2151 = scalar_lea.vmem [#allocation8], %s2150
        %s2152 = sand.u32 %s294, 1
        %s2153 = scalar_lea.sflag [#allocation10], %s2152
        %s2154 = sand.u32 %s294, 1
        %s2155 = smul.addr %s2154, 32
        %s2156 = scalar_lea.vmem [#allocation9], %s2155
        // Predicated region
        $region73: #{tpu_custom_call.1} parent=59 // pred_check
          %p2157 = pneg %p278
        $region74: #{tpu_custom_call.1} parent=59 // pred_check_branch
          %2159 = sbr.rel (%p2157) target = $region76
        $region75: #{tpu_custom_call.1} parent=59 // pred_region
          %s2161 = ssub.s32 128, 128
          %2162 = vsyncadd %s2148, %s2161
          %s2163 = smul.addr %s35, 128
          %s2164 = scalar_lea.hbm %s10, %s2163
          %s2166 = sshll.u32 %s2151, 4
          %s2167 = int_to_ptr.vmem [resolvable:$true] %s2166
          %2169 = dma.vmem_to_hbm [thread:$0]  %s2167, 128, %s2164, %s2148
        $region76: #{tpu_custom_call.1} parent=59 // pred_fallthru
          _
        // Predicated region
        $region77: #{tpu_custom_call.1} parent=59 // pred_check
          %p2170 = pneg %p304
        $region78: #{tpu_custom_call.1} parent=59 // pred_check_branch
          %2172 = sbr.rel (%p2170) target = $region80
        $region79: #{tpu_custom_call.1} parent=59 // pred_region
          %s2174 = ssub.s32 512, 512
          %2175 = vsyncadd %s2153, %s2174
          %s2176 = smul.addr %s35, 128
          %s2177 = scalar_lea.hbm %s11, %s2176
          %s2178 = sshll.u32 %s2156, 4
          %s2179 = int_to_ptr.vmem [resolvable:$true] %s2178
          %2184 = dma.vmem_to_hbm [thread:$0]  %s2179, 512, %s2177, %s2153, 128, 256, 8
        $region80: #{tpu_custom_call.1} parent=59 // pred_fallthru
          _
      $region60: #{tpu_custom_call.1} parent=5 // pred_fallthru
        _
      %p2185 = scmp.le.s32.totalorder 2, %s30
      // Predicated region
      $region81: #{tpu_custom_call.1} parent=5 // pred_check
        %p2186 = pneg %p2185
      $region82: #{tpu_custom_call.1} parent=5 // pred_check_branch
        %2188 = sbr.rel (%p2186) target = $region84
      $region83: #{tpu_custom_call.1} parent=5 // pred_region
        %s2189 = ssub.s32 %s30, 2
        // Predicated region
        $region85: #{tpu_custom_call.1} parent=83 // pred_check
          %p2190 = pneg %p284
        $region86: #{tpu_custom_call.1} parent=83 // pred_check_branch
          %2192 = sbr.rel (%p2190) target = $region88
        $region87: #{tpu_custom_call.1} parent=83 // pred_region
          %s2193 = sand.u32 %s269, 1
          %s2194 = scalar_lea.sflag [#allocation4], %s2193
          %s2195 = sand.u32 %s269, 1
          %s2196 = smul.addr %s2195, 8
          %s2197 = scalar_lea.vmem [#allocation8], %s2196
          %2198 = dma.done %s2194, 128
        $region88: #{tpu_custom_call.1} parent=83 // pred_fallthru
          _
        // Predicated region
        $region89: #{tpu_custom_call.1} parent=83 // pred_check
          %p2199 = pneg %p310
        $region90: #{tpu_custom_call.1} parent=83 // pred_check_branch
          %2201 = sbr.rel (%p2199) target = $region92
        $region91: #{tpu_custom_call.1} parent=83 // pred_region
          %s2202 = sand.u32 %s295, 1
          %s2203 = scalar_lea.sflag [#allocation10], %s2202
          %s2204 = sand.u32 %s295, 1
          %s2205 = smul.addr %s2204, 32
          %s2206 = scalar_lea.vmem [#allocation9], %s2205
          %2207 = dma.done %s2203, 512
        $region92: #{tpu_custom_call.1} parent=83 // pred_fallthru
          _
      $region84: #{tpu_custom_call.1} parent=5 // pred_fallthru
        _
    $region6: #{tpu_custom_call.1} parent=1 // loop_footer
      %s34 = sadd.s32 1, %s30
    $region7: #{tpu_custom_call.1} parent=1 // loop_footer_branch
      %29 = sbr.rel target = $region3
    $region8: #{tpu_custom_call.1} parent=1 // loop_exit
      _
    %2208 = vsyncpa [#allocation3], 1
    %s2209 = scalar_lea.sflag [#allocation3], 1
    %2210 = vsyncpa %s2209, 1
    %2211 = vsyncpa [#allocation6], 1
    %s2212 = scalar_lea.sflag [#allocation6], 1
    %2213 = vsyncpa %s2212, 1
    %2214 = vsyncpa [#allocation4], 1
    %s2215 = scalar_lea.sflag [#allocation4], 1
    %2216 = vsyncpa %s2215, 1
    %2217 = vsyncpa [#allocation10], 1
    %s2218 = scalar_lea.sflag [#allocation10], 1
    %2219 = vsyncpa %s2218, 1

// kernel: tpu_custom_call.1
$region0: #{tpu_custom_call.1}
  #allocation0 [shape = 'u32[]', space=smem, size = 0x4, offset = 0x4, fixed_abs, tag = 'smem constant byte address 0x4 - core index']
  #allocation1 [shape = 'u32[144,128]{1,0:T(1,128)}', space=vmem, size = 0x12000, scoped, tag = 'internal scratch']
  %s0 = inlined_call_operand.hbm [shape: f32[2,8,32], index: 0, kind: input, shape index: {}]
  %s1 = inlined_call_operand.hbm [shape: f32[2,8,32], index: 1, kind: input, shape index: {}]
  %s2 = inlined_call_operand.hbm [shape: f32[2,8,32], index: 2, kind: input, shape index: {}]
  %s3 = inlined_call_operand.vmem [shape: f32[32,32], index: 3, kind: input, shape index: {}]
  %s4 = inlined_call_operand.vmem [shape: f32[32,32], index: 4, kind: input, shape index: {}]
  %s5 = inlined_call_operand.vmem [shape: f32[32,32], index: 5, kind: input, shape index: {}]
  %s6 = inlined_call_operand.vmem [shape: f32[64,32], index: 6, kind: input, shape index: {}]
  %s7 = inlined_call_operand.vmem [shape: f32[1,32], index: 7, kind: input, shape index: {}]
  %s8 = inlined_call_operand.vmem [shape: f32[1,32], index: 8, kind: input, shape index: {}]
  %s9 = inlined_call_operand.vmem [shape: f32[1,32], index: 9, kind: input, shape index: {}]
  %s10 = inlined_call_operand.hbm [shape: f32[2,8,32], index: 10, kind: output, shape index: {0}]
  %s11 = inlined_call_operand.hbm [shape: f32[4,2,8,8], index: 11, kind: output, shape index: {1}]
  %12 = xla_tuple %s10, %s11
  %s13 = sld [smem:[#allocation0]]
  $region93: #{tpu_custom_call.1} parent=0
    _
  %s15 = ssub.s32 1, %s13
  %s16 = scalar_select 0, %s15, %s13
  $region1: #{tpu_custom_call.1} parent=0
    #allocation2 [shape = 'u8[8192]{0}', space=vmem, size = 0x2000, scoped, tag = 'input window, operand 0']
    #allocation3 [shape = 's32[2]{0}', space=sflag, size = 0x8, scoped, tag = 'scoped memory for tpu_custom_call.1']
    #allocation4 [shape = 's32[2]{0}', space=sflag, size = 0x8, scoped, tag = 'scoped memory for tpu_custom_call.1']
    #allocation5 [shape = 'u8[8192]{0}', space=vmem, size = 0x2000, scoped, tag = 'input window, operand 1']
    #allocation6 [shape = 's32[2]{0}', space=sflag, size = 0x8, scoped, tag = 'scoped memory for tpu_custom_call.1']
    #allocation7 [shape = 'u8[8192]{0}', space=vmem, size = 0x2000, scoped, tag = 'input window, operand 2']
    #allocation8 [shape = 'u8[8192]{0}', space=vmem, size = 0x2000, scoped, tag = 'output window, operand 0']
    #allocation9 [shape = 'u8[32768]{0}', space=vmem, size = 0x8000, scoped, tag = 'output window, operand 1']
    #allocation10 [shape = 's32[2]{0}', space=sflag, size = 0x8, scoped, tag = 'scoped memory for tpu_custom_call.1']
    %17 = vsyncpa [#allocation3], 0
    %s18 = scalar_lea.sflag [#allocation3], 1
    %19 = vsyncpa %s18, 0
    %20 = vsyncpa [#allocation6], 0
    %s21 = scalar_lea.sflag [#allocation6], 1
    %22 = vsyncpa %s21, 0
    %23 = vsyncpa [#allocation4], 0
    %s24 = scalar_lea.sflag [#allocation4], 1
    %25 = vsyncpa %s24, 0
    %26 = vsyncpa [#allocation10], 0
    %s27 = scalar_lea.sflag [#allocation10], 1
    %28 = vsyncpa %s27, 0
    loop: start=0, step=1, limit=4
    $region2: #{tpu_custom_call.1} parent=1 // loop_pre_header
      _
    $region3: #{tpu_custom_call.1} parent=1 // loop_header
      %s30 = sphi 0, %s34
      %p31 = scmp.ge.s32.totalorder %s30, 4
      %s40 = sphi 0, %s42
      %s43 = sphi 0, %s40
      %s44 = sphi 0, %s43
      %s60 = sphi 0, %s44
      %s66 = sphi 0, %s68
      %s69 = sphi 0, %s66
      %s70 = sphi 0, %s69
      %s86 = sphi 0, %s70
      %s92 = sphi 0, %s94
      %s95 = sphi 0, %s92
      %s96 = sphi 0, %s95
      %s112 = sphi 0, %s96
      %s116 = sphi 0, %s116
      %s118 = sphi 0, %s116
      %s119 = sphi 0, %s118
      %s133 = sphi 0, %s119
      %s137 = sphi 0, %s137
      %s139 = sphi 0, %s137
      %s140 = sphi 0, %s139
      %s154 = sphi 0, %s140
      %s158 = sphi 0, %s158
      %s160 = sphi 0, %s158
      %s161 = sphi 0, %s160
      %s175 = sphi 0, %s161
      %s179 = sphi 0, %s179
      %s181 = sphi 0, %s179
      %s182 = sphi 0, %s181
      %s196 = sphi 0, %s182
      %s200 = sphi 0, %s200
      %s202 = sphi 0, %s200
      %s203 = sphi 0, %s202
      %s217 = sphi 0, %s203
      %s221 = sphi 0, %s221
      %s223 = sphi 0, %s221
      %s224 = sphi 0, %s223
      %s238 = sphi 0, %s224
      %s242 = sphi 0, %s242
      %s244 = sphi 0, %s242
      %s245 = sphi 0, %s244
      %s259 = sphi 0, %s245
      %s265 = sphi 0, %s267
      %s268 = sphi 0, %s265
      %s269 = sphi 0, %s268
      %s285 = sphi 0, %s269
      %s291 = sphi 0, %s293
      %s294 = sphi 0, %s291
      %s295 = sphi 0, %s294
      %s311 = sphi 0, %s295
    $region4: #{tpu_custom_call.1} parent=1 // loop_header_branch
      %33 = sbr.rel (%p31) target = $region8
    $region5: #{tpu_custom_call.1} parent=1 // loop_body
      %s35 = ssub.s32 %s30, 1
      %s36 = ssub.s32 %s30, 2
      %s37 = sadd.s32 %s30, 1
      %s38 = ssub.s32 %s30, %s37
      %p39 = scmp.eq.s32.totalorder %s38, 0
      %s41 = sadd.s32 %s40, 1
      %s42 = scalar_select %p39, %s40, %s41
      %p45 = pneg %p39
      %p46 = scmp.eq.s32.totalorder %s30, 1
      %p47 = por %p45, %p46
      %p48 = scmp.ne.s32.totalorder %s40, %s43
      %p49 = scmp.eq.s32.totalorder %s30, 0
      %p50 = por %p48, %p49
      %p51 = scmp.ne.s32.totalorder %s40, %s43
      %p52 = scmp.eq.s32.totalorder %s35, 1
      %p53 = por %p51, %p52
      %p54 = scmp.ne.s32.totalorder %s43, %s44
      %p55 = scmp.eq.s32.totalorder %s35, 0
      %p56 = por %p54, %p55
      %p57 = scmp.ne.s32.totalorder %s43, %s44
      %p58 = scmp.eq.s32.totalorder %s36, 1
      %p59 = por %p57, %p58
      %p61 = scmp.ne.s32.totalorder %s44, %s60
      %p62 = scmp.eq.s32.totalorder %s36, 0
      %p63 = por %p61, %p62
      %s64 = ssub.s32 %s30, %s37
      %p65 = scmp.eq.s32.totalorder %s64, 0
      %s67 = sadd.s32 %s66, 1
      %s68 = scalar_select %p65, %s66, %s67
      %p71 = pneg %p65
      %p72 = scmp.eq.s32.totalorder %s30, 1
      %p73 = por %p71, %p72
      %p74 = scmp.ne.s32.totalorder %s66, %s69
      %p75 = scmp.eq.s32.totalorder %s30, 0
      %p76 = por %p74, %p75
      %p77 = scmp.ne.s32.totalorder %s66, %s69
      %p78 = scmp.eq.s32.totalorder %s35, 1
      %p79 = por %p77, %p78
      %p80 = scmp.ne.s32.totalorder %s69, %s70
      %p81 = scmp.eq.s32.totalorder %s35, 0
      %p82 = por %p80, %p81
      %p83 = scmp.ne.s32.totalorder %s69, %s70
      %p84 = scmp.eq.s32.totalorder %s36, 1
      %p85 = por %p83, %p84
      %p87 = scmp.ne.s32.totalorder %s70, %s86
      %p88 = scmp.eq.s32.totalorder %s36, 0
      %p89 = por %p87, %p88
      %s90 = ssub.s32 %s30, %s37
      %p91 = scmp.eq.s32.totalorder %s90, 0
      %s93 = sadd.s32 %s92, 1
      %s94 = scalar_select %p91, %s92, %s93
      %p97 = pneg %p91
      %p98 = scmp.eq.s32.totalorder %s30, 1
      %p99 = por %p97, %p98
      %p100 = scmp.ne.s32.totalorder %s92, %s95
      %p101 = scmp.eq.s32.totalorder %s30, 0
      %p102 = por %p100, %p101
      %p103 = scmp.ne.s32.totalorder %s92, %s95
      %p104 = scmp.eq.s32.totalorder %s35, 1
      %p105 = por %p103, %p104
      %p106 = scmp.ne.s32.totalorder %s95, %s96
      %p107 = scmp.eq.s32.totalorder %s35, 0
      %p108 = por %p106, %p107
      %p109 = scmp.ne.s32.totalorder %s95, %s96
      %p110 = scmp.eq.s32.totalorder %s36, 1
      %p111 = por %p109, %p110
      %p113 = scmp.ne.s32.totalorder %s96, %s112
      %p114 = scmp.eq.s32.totalorder %s36, 0
      %p115 = por %p113, %p114
      %s117 = sadd.s32 %s116, 1
      %p120 = scmp.eq.s32.totalorder %s30, 1
      %p121 = scmp.ne.s32.totalorder %s116, %s118
      %p122 = scmp.eq.s32.totalorder %s30, 0
      %p123 = por %p121, %p122
      %p124 = scmp.ne.s32.totalorder %s116, %s118
      %p125 = scmp.eq.s32.totalorder %s35, 1
      %p126 = por %p124, %p125
      %p127 = scmp.ne.s32.totalorder %s118, %s119
      %p128 = scmp.eq.s32.totalorder %s35, 0
      %p129 = por %p127, %p128
      %p130 = scmp.ne.s32.totalorder %s118, %s119
      %p131 = scmp.eq.s32.totalorder %s36, 1
      %p132 = por %p130, %p131
      %p134 = scmp.ne.s32.totalorder %s119, %s133
      %p135 = scmp.eq.s32.totalorder %s36, 0
      %p136 = por %p134, %p135
      %s138 = sadd.s32 %s137, 1
      %p141 = scmp.eq.s32.totalorder %s30, 1
      %p142 = scmp.ne.s32.totalorder %s137, %s139
      %p143 = scmp.eq.s32.totalorder %s30, 0
      %p144 = por %p142, %p143
      %p145 = scmp.ne.s32.totalorder %s137, %s139
      %p146 = scmp.eq.s32.totalorder %s35, 1
      %p147 = por %p145, %p146
      %p148 = scmp.ne.s32.totalorder %s139, %s140
      %p149 = scmp.eq.s32.totalorder %s35, 0
      %p150 = por %p148, %p149
      %p151 = scmp.ne.s32.totalorder %s139, %s140
      %p152 = scmp.eq.s32.totalorder %s36, 1
      %p153 = por %p151, %p152
      %p155 = scmp.ne.s32.totalorder %s140, %s154
      %p156 = scmp.eq.s32.totalorder %s36, 0
      %p157 = por %p155, %p156
      %s159 = sadd.s32 %s158, 1
      %p162 = scmp.eq.s32.totalorder %s30, 1
      %p163 = scmp.ne.s32.totalorder %s158, %s160
      %p164 = scmp.eq.s32.totalorder %s30, 0
      %p165 = por %p163, %p164
      %p166 = scmp.ne.s32.totalorder %s158, %s160
      %p167 = scmp.eq.s32.totalorder %s35, 1
      %p168 = por %p166, %p167
      %p169 = scmp.ne.s32.totalorder %s160, %s161
      %p170 = scmp.eq.s32.totalorder %s35, 0
      %p171 = por %p169, %p170
      %p172 = scmp.ne.s32.totalorder %s160, %s161
      %p173 = scmp.eq.s32.totalorder %s36, 1
      %p174 = por %p172, %p173
      %p176 = scmp.ne.s32.totalorder %s161, %s175
      %p177 = scmp.eq.s32.totalorder %s36, 0
      %p178 = por %p176, %p177
      %s180 = sadd.s32 %s179, 1
      %p183 = scmp.eq.s32.totalorder %s30, 1
      %p184 = scmp.ne.s32.totalorder %s179, %s181
      %p185 = scmp.eq.s32.totalorder %s30, 0
      %p186 = por %p184, %p185
      %p187 = scmp.ne.s32.totalorder %s179, %s181
      %p188 = scmp.eq.s32.totalorder %s35, 1
      %p189 = por %p187, %p188
      %p190 = scmp.ne.s32.totalorder %s181, %s182
      %p191 = scmp.eq.s32.totalorder %s35, 0
      %p192 = por %p190, %p191
      %p193 = scmp.ne.s32.totalorder %s181, %s182
      %p194 = scmp.eq.s32.totalorder %s36, 1
      %p195 = por %p193, %p194
      %p197 = scmp.ne.s32.totalorder %s182, %s196
      %p198 = scmp.eq.s32.totalorder %s36, 0
      %p199 = por %p197, %p198
      %s201 = sadd.s32 %s200, 1
      %p204 = scmp.eq.s32.totalorder %s30, 1
      %p205 = scmp.ne.s32.totalorder %s200, %s202
      %p206 = scmp.eq.s32.totalorder %s30, 0
      %p207 = por %p205, %p206
      %p208 = scmp.ne.s32.totalorder %s200, %s202
      %p209 = scmp.eq.s32.totalorder %s35, 1
      %p210 = por %p208, %p209
      %p211 = scmp.ne.s32.totalorder %s202, %s203
      %p212 = scmp.eq.s32.totalorder %s35, 0
      %p213 = por %p211, %p212
      %p214 = scmp.ne.s32.totalorder %s202, %s203
      %p215 = scmp.eq.s32.totalorder %s36, 1
      %p216 = por %p214, %p215
      %p218 = scmp.ne.s32.totalorder %s203, %s217
      %p219 = scmp.eq.s32.totalorder %s36, 0
      %p220 = por %p218, %p219
      %s222 = sadd.s32 %s221, 1
      %p225 = scmp.eq.s32.totalorder %s30, 1
      %p226 = scmp.ne.s32.totalorder %s221, %s223
      %p227 = scmp.eq.s32.totalorder %s30, 0
      %p228 = por %p226, %p227
      %p229 = scmp.ne.s32.totalorder %s221, %s223
      %p230 = scmp.eq.s32.totalorder %s35, 1
      %p231 = por %p229, %p230
      %p232 = scmp.ne.s32.totalorder %s223, %s224
      %p233 = scmp.eq.s32.totalorder %s35, 0
      %p234 = por %p232, %p233
      %p235 = scmp.ne.s32.totalorder %s223, %s224
      %p236 = scmp.eq.s32.totalorder %s36, 1
      %p237 = por %p235, %p236
      %p239 = scmp.ne.s32.totalorder %s224, %s238
      %p240 = scmp.eq.s32.totalorder %s36, 0
      %p241 = por %p239, %p240
      %s243 = sadd.s32 %s242, 1
      %p246 = scmp.eq.s32.totalorder %s30, 1
      %p247 = scmp.ne.s32.totalorder %s242, %s244
      %p248 = scmp.eq.s32.totalorder %s30, 0
      %p249 = por %p247, %p248
      %p250 = scmp.ne.s32.totalorder %s242, %s244
      %p251 = scmp.eq.s32.totalorder %s35, 1
      %p252 = por %p250, %p251
      %p253 = scmp.ne.s32.totalorder %s244, %s245
      %p254 = scmp.eq.s32.totalorder %s35, 0
      %p255 = por %p253, %p254
      %p256 = scmp.ne.s32.totalorder %s244, %s245
      %p257 = scmp.eq.s32.totalorder %s36, 1
      %p258 = por %p256, %p257
      %p260 = scmp.ne.s32.totalorder %s245, %s259
      %p261 = scmp.eq.s32.totalorder %s36, 0
      %p262 = por %p260, %p261
      %s263 = ssub.s32 %s30, %s37
      %p264 = scmp.eq.s32.totalorder %s263, 0
      %s266 = sadd.s32 %s265, 1
      %s267 = scalar_select %p264, %s265, %s266
      %p270 = pneg %p264
      %p271 = scmp.eq.s32.totalorder %s30, 1
      %p272 = por %p270, %p271
      %p273 = scmp.ne.s32.totalorder %s265, %s268
      %p274 = scmp.eq.s32.totalorder %s30, 0
      %p275 = por %p273, %p274
      %p276 = scmp.ne.s32.totalorder %s265, %s268
      %p277 = scmp.eq.s32.totalorder %s35, 1
      %p278 = por %p276, %p277
      %p279 = scmp.ne.s32.totalorder %s268, %s269
      %p280 = scmp.eq.s32.totalorder %s35, 0
      %p281 = por %p279, %p280
      %p282 = scmp.ne.s32.totalorder %s268, %s269
      %p283 = scmp.eq.s32.totalorder %s36, 1
      %p284 = por %p282, %p283
      %p286 = scmp.ne.s32.totalorder %s269, %s285
      %p287 = scmp.eq.s32.totalorder %s36, 0
      %p288 = por %p286, %p287
      %s289 = ssub.s32 %s30, %s37
      %p290 = scmp.eq.s32.totalorder %s289, 0
      %s292 = sadd.s32 %s291, 1
      %s293 = scalar_select %p290, %s291, %s292
      %p296 = pneg %p290
      %p297 = scmp.eq.s32.totalorder %s30, 1
      %p298 = por %p296, %p297
      %p299 = scmp.ne.s32.totalorder %s291, %s294
      %p300 = scmp.eq.s32.totalorder %s30, 0
      %p301 = por %p299, %p300
      %p302 = scmp.ne.s32.totalorder %s291, %s294
      %p303 = scmp.eq.s32.totalorder %s35, 1
      %p304 = por %p302, %p303
      %p305 = scmp.ne.s32.totalorder %s294, %s295
      %p306 = scmp.eq.s32.totalorder %s35, 0
      %p307 = por %p305, %p306
      %p308 = scmp.ne.s32.totalorder %s294, %s295
      %p309 = scmp.eq.s32.totalorder %s36, 1
      %p310 = por %p308, %p309
      %p312 = scmp.ne.s32.totalorder %s295, %s311
      %p313 = scmp.eq.s32.totalorder %s36, 0
      %p314 = por %p312, %p313
      %p315 = scmp.le.s32.totalorder 1, %s30
      %p316 = scmp.lt.s32.totalorder %s30, 3
      %p317 = pnand %p315, %p316
      %p318 = pneg %p317
      // Predicated region
      $region9: #{tpu_custom_call.1} parent=5 // pred_check
        _
      $region10: #{tpu_custom_call.1} parent=5 // pred_check_branch
        %320 = sbr.rel (%p317) target = $region12
      $region11: #{tpu_custom_call.1} parent=5 // pred_region
        %s321 = ssub.s32 %s30, 1
        // Predicated region
        $region13: #{tpu_custom_call.1} parent=11 // pred_check
          %p322 = pneg %p129
        $region14: #{tpu_custom_call.1} parent=11 // pred_check_branch
          %324 = sbr.rel (%p322) target = $region16
        $region15: #{tpu_custom_call.1} parent=11 // pred_region
          _
        $region16: #{tpu_custom_call.1} parent=11 // pred_fallthru
          _
        // Predicated region
        $region17: #{tpu_custom_call.1} parent=11 // pred_check
          %p325 = pneg %p150
        $region18: #{tpu_custom_call.1} parent=11 // pred_check_branch
          %327 = sbr.rel (%p325) target = $region20
        $region19: #{tpu_custom_call.1} parent=11 // pred_region
          _
        $region20: #{tpu_custom_call.1} parent=11 // pred_fallthru
          _
        // Predicated region
        $region21: #{tpu_custom_call.1} parent=11 // pred_check
          %p328 = pneg %p171
        $region22: #{tpu_custom_call.1} parent=11 // pred_check_branch
          %330 = sbr.rel (%p328) target = $region24
        $region23: #{tpu_custom_call.1} parent=11 // pred_region
          _
        $region24: #{tpu_custom_call.1} parent=11 // pred_fallthru
          _
        // Predicated region
        $region25: #{tpu_custom_call.1} parent=11 // pred_check
          %p331 = pneg %p192
        $region26: #{tpu_custom_call.1} parent=11 // pred_check_branch
          %333 = sbr.rel (%p331) target = $region28
        $region27: #{tpu_custom_call.1} parent=11 // pred_region
          _
        $region28: #{tpu_custom_call.1} parent=11 // pred_fallthru
          _
        // Predicated region
        $region29: #{tpu_custom_call.1} parent=11 // pred_check
          %p334 = pneg %p213
        $region30: #{tpu_custom_call.1} parent=11 // pred_check_branch
          %336 = sbr.rel (%p334) target = $region32
        $region31: #{tpu_custom_call.1} parent=11 // pred_region
          _
        $region32: #{tpu_custom_call.1} parent=11 // pred_fallthru
          _
        // Predicated region
        $region33: #{tpu_custom_call.1} parent=11 // pred_check
          %p337 = pneg %p234
        $region34: #{tpu_custom_call.1} parent=11 // pred_check_branch
          %339 = sbr.rel (%p337) target = $region36
        $region35: #{tpu_custom_call.1} parent=11 // pred_region
          _
        $region36: #{tpu_custom_call.1} parent=11 // pred_fallthru
          _
        // Predicated region
        $region37: #{tpu_custom_call.1} parent=11 // pred_check
          %p340 = pneg %p255
        $region38: #{tpu_custom_call.1} parent=11 // pred_check_branch
          %342 = sbr.rel (%p340) target = $region40
        $region39: #{tpu_custom_call.1} parent=11 // pred_region
          _
        $region40: #{tpu_custom_call.1} parent=11 // pred_fallthru
          _
      $region12: #{tpu_custom_call.1} parent=5 // pred_fallthru
        _
      %p343 = scmp.lt.s32.totalorder %s30, 2
      // Predicated region
      $region41: #{tpu_custom_call.1} parent=5 // pred_check
        %p344 = pneg %p343
      $region42: #{tpu_custom_call.1} parent=5 // pred_check_branch
        %346 = sbr.rel (%p344) target = $region44
      $region43: #{tpu_custom_call.1} parent=5 // pred_region
        // Predicated region
        $region45: #{tpu_custom_call.1} parent=43 // pred_check
          %p347 = pneg %p50
        $region46: #{tpu_custom_call.1} parent=43 // pred_check_branch
          %349 = sbr.rel (%p347) target = $region48
        $region47: #{tpu_custom_call.1} parent=43 // pred_region
          %s350 = sand.u32 %s40, 1
          %s351 = scalar_lea.sflag [#allocation3], %s350
          %s352 = sand.u32 %s40, 1
          %s353 = smul.addr %s352, 8
          %s354 = scalar_lea.vmem [#allocation2], %s353
          %s356 = ssub.s32 128, 128
          %357 = vsyncadd %s351, %s356
          %s358 = smul.addr %s30, 128
          %s359 = scalar_lea.hbm %s0, %s358
          %s361 = sshll.u32 %s354, 4
          %s362 = int_to_ptr.vmem [resolvable:$true] %s361
          %364 = dma.hbm_to_vmem [thread:$0]  %s359, 128, %s362, %s351
        $region48: #{tpu_custom_call.1} parent=43 // pred_fallthru
          _
        // Predicated region
        $region49: #{tpu_custom_call.1} parent=43 // pred_check
          %p365 = pneg %p76
        $region50: #{tpu_custom_call.1} parent=43 // pred_check_branch
          %367 = sbr.rel (%p365) target = $region52
        $region51: #{tpu_custom_call.1} parent=43 // pred_region
          %s368 = sand.u32 %s30, 1
          %s369 = scalar_lea.sflag [#allocation6], %s368
          %s370 = sand.u32 %s66, 1
          %s371 = smul.addr %s370, 8
          %s372 = scalar_lea.vmem [#allocation5], %s371
          %s374 = ssub.s32 128, 128
          %375 = vsyncadd %s369, %s374
          %s376 = smul.addr %s30, 128
          %s377 = scalar_lea.hbm %s1, %s376
          %s379 = sshll.u32 %s372, 4
          %s380 = int_to_ptr.vmem [resolvable:$true] %s379
          %382 = dma.hbm_to_vmem [thread:$0]  %s377, 128, %s380, %s369
        $region52: #{tpu_custom_call.1} parent=43 // pred_fallthru
          _
        // Predicated region
        $region53: #{tpu_custom_call.1} parent=43 // pred_check
          %p383 = pneg %p102
        $region54: #{tpu_custom_call.1} parent=43 // pred_check_branch
          %385 = sbr.rel (%p383) target = $region56
        $region55: #{tpu_custom_call.1} parent=43 // pred_region
          %s386 = sand.u32 %s30, 1
          %s387 = scalar_lea.sflag [#allocation6], %s386
          %s388 = sand.u32 %s92, 1
          %s389 = smul.addr %s388, 8
          %s390 = scalar_lea.vmem [#allocation7], %s389
          %s392 = ssub.s32 128, 128
          %393 = vsyncadd %s387, %s392
          %s394 = smul.addr %s30, 128
          %s395 = scalar_lea.hbm %s2, %s394
          %s397 = sshll.u32 %s390, 4
          %s398 = int_to_ptr.vmem [resolvable:$true] %s397
          %400 = dma.hbm_to_vmem [thread:$0]  %s395, 128, %s398, %s387
        $region56: #{tpu_custom_call.1} parent=43 // pred_fallthru
          _
      $region44: #{tpu_custom_call.1} parent=5 // pred_fallthru
        _
      %p401 = scmp.le.s32.totalorder 1, %s30
      %p402 = scmp.lt.s32.totalorder %s30, 3
      %p403 = pnand %p401, %p402
      %p404 = pneg %p403
      // Predicated region
      $region57: #{tpu_custom_call.1} parent=5 // pred_check
        _
      $region58: #{tpu_custom_call.1} parent=5 // pred_check_branch
        %406 = sbr.rel (%p403) target = $region60
      $region59: #{tpu_custom_call.1} parent=5 // pred_region
        %s407 = ssub.s32 %s30, 1
        %s408 = sand.u32 %s43, 1
        %s409 = scalar_lea.sflag [#allocation3], %s408
        %s410 = sand.u32 %s43, 1
        %s411 = smul.addr %s410, 8
        %s412 = scalar_lea.vmem [#allocation2], %s411
        // Predicated region
        $region61: #{tpu_custom_call.1} parent=59 // pred_check
          %p413 = pneg %p56
        $region62: #{tpu_custom_call.1} parent=59 // pred_check_branch
          %415 = sbr.rel (%p413) target = $region64
        $region63: #{tpu_custom_call.1} parent=59 // pred_region
          %416 = dma.done %s409, 128
        $region64: #{tpu_custom_call.1} parent=59 // pred_fallthru
          _
        %s417 = sand.u32 %s35, 1
        %s418 = scalar_lea.sflag [#allocation6], %s417
        %s419 = sand.u32 %s69, 1
        %s420 = smul.addr %s419, 8
        %s421 = scalar_lea.vmem [#allocation5], %s420
        // Predicated region
        $region65: #{tpu_custom_call.1} parent=59 // pred_check
          %p422 = pneg %p82
        $region66: #{tpu_custom_call.1} parent=59 // pred_check_branch
          %424 = sbr.rel (%p422) target = $region68
        $region67: #{tpu_custom_call.1} parent=59 // pred_region
          %425 = dma.done %s418, 128
        $region68: #{tpu_custom_call.1} parent=59 // pred_fallthru
          _
        %s426 = sand.u32 %s35, 1
        %s427 = scalar_lea.sflag [#allocation6], %s426
        %s428 = sand.u32 %s95, 1
        %s429 = smul.addr %s428, 8
        %s430 = scalar_lea.vmem [#allocation7], %s429
        // Predicated region
        $region69: #{tpu_custom_call.1} parent=59 // pred_check
          %p431 = pneg %p108
        $region70: #{tpu_custom_call.1} parent=59 // pred_check_branch
          %433 = sbr.rel (%p431) target = $region72
        $region71: #{tpu_custom_call.1} parent=59 // pred_region
          %434 = dma.done %s427, 128
        $region72: #{tpu_custom_call.1} parent=59 // pred_fallthru
          _
        %s435 = sand.u32 %s43, 1
        %s436 = scalar_lea.sflag [#allocation3], %s435
        %s437 = sand.u32 %s43, 1
        %s438 = smul.addr %s437, 8
        %s439 = scalar_lea.vmem [#allocation2], %s438
        %p440 = pneg %p56
        %p441 = pneg %p53
        %s442 = sand.u32 %s35, 1
        %s443 = scalar_lea.sflag [#allocation6], %s442
        %s444 = sand.u32 %s69, 1
        %s445 = smul.addr %s444, 8
        %s446 = scalar_lea.vmem [#allocation5], %s445
        %p447 = pneg %p82
        %p448 = pneg %p79
        %s449 = sand.u32 %s35, 1
        %s450 = scalar_lea.sflag [#allocation6], %s449
        %s451 = sand.u32 %s95, 1
        %s452 = smul.addr %s451, 8
        %s453 = scalar_lea.vmem [#allocation7], %s452
        %p454 = pneg %p108
        %p455 = pneg %p105
        %p456 = pneg %p129
        %p457 = pneg %p126
        %p458 = pneg %p150
        %p459 = pneg %p147
        %p460 = pneg %p171
        %p461 = pneg %p168
        %p462 = pneg %p192
        %p463 = pneg %p189
        %p464 = pneg %p213
        %p465 = pneg %p210
        %p466 = pneg %p234
        %p467 = pneg %p231
        %p468 = pneg %p255
        %p469 = pneg %p252
        %p470 = pneg %p281
        %p471 = pneg %p278
        %s472 = sand.u32 %s268, 1
        %s473 = scalar_lea.sflag [#allocation4], %s472
        %s474 = sand.u32 %s268, 1
        %s475 = smul.addr %s474, 8
        %s476 = scalar_lea.vmem [#allocation8], %s475
        %p477 = pneg %p307
        %p478 = pneg %p304
        %s479 = sand.u32 %s294, 1
        %s480 = scalar_lea.sflag [#allocation10], %s479
        %s481 = sand.u32 %s294, 1
        %s482 = smul.addr %s481, 32
        %s483 = scalar_lea.vmem [#allocation9], %s482
        %v484 = vld [vmem:[%s412] sm:$0xff]
        %v485 = vld [vmem:[%s421] sm:$0xff]
        %v486 = vld [vmem:[%s430] sm:$0xff]
        %v487 = vld [vmem:[%s3] sm:$0xff]
        %v488 = vld [vmem:[%s3 + $0x8] sm:$0xff]
        %v489 = vld [vmem:[%s3 + $0x10] sm:$0xff]
        %v490 = vld [vmem:[%s3 + $0x18] sm:$0xff]
        %vm491 = vcmask 261120
        %v493 = vsel %vm491, %v484, 0
        %495 = vmatprep.subr.mxu0 0.0
        %496 = vmatpush1.msra.mxu0 %v487
        %497 = vmatprep.subr.mxu0 0.0
        %498 = vmatpush1.msra.mxu0 %v488
        %499 = vmatprep.subr.mxu0 0.0
        %500 = vmatpush1.msra.mxu0 %v489
        %501 = vmatprep.subr.mxu0 0.0
        %502 = vmatpush1.msra.mxu0 %v490
        %503 = vmatprep.subr.mxu0 0.0
        %504 = vmatpush1.msra.mxu0 0.0
        %505 = vmatprep.subr.mxu0 0.0
        %506 = vmatpush1.msra.mxu0 0.0
        %507 = vmatprep.subr.mxu0 0.0
        %508 = vmatpush1.msra.mxu0 0.0
        %509 = vmatprep.subr.mxu0 0.0
        %510 = vmatpush1.msra.mxu0 0.0
        %511 = vmatprep.subr.mxu0 0.0
        %512 = vmatpush1.msra.mxu0 0.0
        %513 = vmatprep.subr.mxu0 0.0
        %514 = vmatpush1.msra.mxu0 0.0
        %515 = vmatprep.subr.mxu0 0.0
        %516 = vmatpush1.msra.mxu0 0.0
        %517 = vmatprep.subr.mxu0 0.0
        %518 = vmatpush1.msra.mxu0 0.0
        %519 = vmatprep.subr.mxu0 0.0
        %520 = vmatpush1.msra.mxu0 0.0
        %521 = vmatprep.subr.mxu0 0.0
        %522 = vmatpush1.msra.mxu0 0.0
        %523 = vmatprep.subr.mxu0 0.0
        %524 = vmatpush1.msra.mxu0 0.0
        %525 = vmatprep.subr.mxu0 0.0
        %526 = vmatpush1.msra.mxu0 0.0
        %527 = vmatprep.subr.mxu0 0.0
        %528 = vmatpush1.msra.mxu0 0.0
        %529 = vmatprep.subr.mxu0 0.0
        %530 = vmatpush1.msra.mxu0 0.0
        %531 = vmatprep.subr.mxu0 0.0
        %532 = vmatpush1.msra.mxu0 0.0
        %533 = vmatprep.subr.mxu0 0.0
        %534 = vmatpush1.msra.mxu0 0.0
        %535 = vmatprep.subr.mxu0 0.0
        %536 = vmatpush1.msra.mxu0 0.0
        %537 = vmatprep.subr.mxu0 0.0
        %538 = vmatpush1.msra.mxu0 0.0
        %539 = vmatprep.subr.mxu0 0.0
        %540 = vmatpush1.msra.mxu0 0.0
        %541 = vmatprep.subr.mxu0 0.0
        %542 = vmatpush1.msra.mxu0 0.0
        %543 = vmatprep.subr.mxu0 0.0
        %544 = vmatpush1.msra.mxu0 0.0
        %545 = vmatprep.subr.mxu0 0.0
        %546 = vmatpush1.msra.mxu0 0.0
        %547 = vmatprep.subr.mxu0 0.0
        %548 = vmatpush1.msra.mxu0 0.0
        %549 = vmatprep.subr.mxu0 0.0
        %550 = vmatpush1.msra.mxu0 0.0
        %551 = vmatprep.subr.mxu0 0.0
        %552 = vmatpush1.msra.mxu0 0.0
        %553 = vmatprep.subr.mxu0 0.0
        %554 = vmatpush1.msra.mxu0 0.0
        %555 = vmatprep.subr.mxu0 0.0
        %556 = vmatpush1.msra.mxu0 0.0
        %557 = vmatprep.subr.mxu0 0.0
        %558 = vmatpush1.msra.mxu0 0.0
        %559 = vmatprep.mubr.f32.mxu0 0.0
        %560 = vmatmul.mubr.f32.gmra.mrb[0].mxu0 %v493
        %v561 = vpop.f32.mrb[0].mxu0
        %v562 = vadd.f32 0.0, %v561
        %v563 = vpop.f32.mrb[0].mxu0
        %564 = vdwg.mxu0
        %v565 = vld [vmem:[%s4] sm:$0xff]
        %v566 = vld [vmem:[%s4 + $0x8] sm:$0xff]
        %v567 = vld [vmem:[%s4 + $0x10] sm:$0xff]
        %v568 = vld [vmem:[%s4 + $0x18] sm:$0xff]
        %v570 = vsel %vm491, %v485, 0
        %572 = vmatprep.subr.mxu0 0.0
        %573 = vmatpush1.msra.mxu0 %v565
        %574 = vmatprep.subr.mxu0 0.0
        %575 = vmatpush1.msra.mxu0 %v566
        %576 = vmatprep.subr.mxu0 0.0
        %577 = vmatpush1.msra.mxu0 %v567
        %578 = vmatprep.subr.mxu0 0.0
        %579 = vmatpush1.msra.mxu0 %v568
        %580 = vmatprep.subr.mxu0 0.0
        %581 = vmatpush1.msra.mxu0 0.0
        %582 = vmatprep.subr.mxu0 0.0
        %583 = vmatpush1.msra.mxu0 0.0
        %584 = vmatprep.subr.mxu0 0.0
        %585 = vmatpush1.msra.mxu0 0.0
        %586 = vmatprep.subr.mxu0 0.0
        %587 = vmatpush1.msra.mxu0 0.0
        %588 = vmatprep.subr.mxu0 0.0
        %589 = vmatpush1.msra.mxu0 0.0
        %590 = vmatprep.subr.mxu0 0.0
        %591 = vmatpush1.msra.mxu0 0.0
        %592 = vmatprep.subr.mxu0 0.0
        %593 = vmatpush1.msra.mxu0 0.0
        %594 = vmatprep.subr.mxu0 0.0
        %595 = vmatpush1.msra.mxu0 0.0
        %596 = vmatprep.subr.mxu0 0.0
        %597 = vmatpush1.msra.mxu0 0.0
        %598 = vmatprep.subr.mxu0 0.0
        %599 = vmatpush1.msra.mxu0 0.0
        %600 = vmatprep.subr.mxu0 0.0
        %601 = vmatpush1.msra.mxu0 0.0
        %602 = vmatprep.subr.mxu0 0.0
        %603 = vmatpush1.msra.mxu0 0.0
        %604 = vmatprep.subr.mxu0 0.0
        %605 = vmatpush1.msra.mxu0 0.0
        %606 = vmatprep.subr.mxu0 0.0
        %607 = vmatpush1.msra.mxu0 0.0
        %608 = vmatprep.subr.mxu0 0.0
        %609 = vmatpush1.msra.mxu0 0.0
        %610 = vmatprep.subr.mxu0 0.0
        %611 = vmatpush1.msra.mxu0 0.0
        %612 = vmatprep.subr.mxu0 0.0
        %613 = vmatpush1.msra.mxu0 0.0
        %614 = vmatprep.subr.mxu0 0.0
        %615 = vmatpush1.msra.mxu0 0.0
        %616 = vmatprep.subr.mxu0 0.0
        %617 = vmatpush1.msra.mxu0 0.0
        %618 = vmatprep.subr.mxu0 0.0
        %619 = vmatpush1.msra.mxu0 0.0
        %620 = vmatprep.subr.mxu0 0.0
        %621 = vmatpush1.msra.mxu0 0.0
        %622 = vmatprep.subr.mxu0 0.0
        %623 = vmatpush1.msra.mxu0 0.0
        %624 = vmatprep.subr.mxu0 0.0
        %625 = vmatpush1.msra.mxu0 0.0
        %626 = vmatprep.subr.mxu0 0.0
        %627 = vmatpush1.msra.mxu0 0.0
        %628 = vmatprep.subr.mxu0 0.0
        %629 = vmatpush1.msra.mxu0 0.0
        %630 = vmatprep.subr.mxu0 0.0
        %631 = vmatpush1.msra.mxu0 0.0
        %632 = vmatprep.subr.mxu0 0.0
        %633 = vmatpush1.msra.mxu0 0.0
        %634 = vmatprep.subr.mxu0 0.0
        %635 = vmatpush1.msra.mxu0 0.0
        %636 = vmatprep.mubr.f32.mxu0 0.0
        %637 = vmatmul.mubr.f32.gmra.mrb[0].mxu0 %v570
        %v638 = vpop.f32.mrb[0].mxu0
        %v639 = vadd.f32 0.0, %v638
        %v640 = vpop.f32.mrb[0].mxu0
        %641 = vdwg.mxu0
        %v642 = vld [vmem:[%s5] sm:$0xff]
        %v643 = vld [vmem:[%s5 + $0x8] sm:$0xff]
        %v644 = vld [vmem:[%s5 + $0x10] sm:$0xff]
        %v645 = vld [vmem:[%s5 + $0x18] sm:$0xff]
        %v647 = vsel %vm491, %v486, 0
        %649 = vmatprep.subr.mxu0 0.0
        %650 = vmatpush1.msra.mxu0 %v642
        %651 = vmatprep.subr.mxu0 0.0
        %652 = vmatpush1.msra.mxu0 %v643
        %653 = vmatprep.subr.mxu0 0.0
        %654 = vmatpush1.msra.mxu0 %v644
        %655 = vmatprep.subr.mxu0 0.0
        %656 = vmatpush1.msra.mxu0 %v645
        %657 = vmatprep.subr.mxu0 0.0
        %658 = vmatpush1.msra.mxu0 0.0
        %659 = vmatprep.subr.mxu0 0.0
        %660 = vmatpush1.msra.mxu0 0.0
        %661 = vmatprep.subr.mxu0 0.0
        %662 = vmatpush1.msra.mxu0 0.0
        %663 = vmatprep.subr.mxu0 0.0
        %664 = vmatpush1.msra.mxu0 0.0
        %665 = vmatprep.subr.mxu0 0.0
        %666 = vmatpush1.msra.mxu0 0.0
        %667 = vmatprep.subr.mxu0 0.0
        %668 = vmatpush1.msra.mxu0 0.0
        %669 = vmatprep.subr.mxu0 0.0
        %670 = vmatpush1.msra.mxu0 0.0
        %671 = vmatprep.subr.mxu0 0.0
        %672 = vmatpush1.msra.mxu0 0.0
        %673 = vmatprep.subr.mxu0 0.0
        %674 = vmatpush1.msra.mxu0 0.0
        %675 = vmatprep.subr.mxu0 0.0
        %676 = vmatpush1.msra.mxu0 0.0
        %677 = vmatprep.subr.mxu0 0.0
        %678 = vmatpush1.msra.mxu0 0.0
        %679 = vmatprep.subr.mxu0 0.0
        %680 = vmatpush1.msra.mxu0 0.0
        %681 = vmatprep.subr.mxu0 0.0
        %682 = vmatpush1.msra.mxu0 0.0
        %683 = vmatprep.subr.mxu0 0.0
        %684 = vmatpush1.msra.mxu0 0.0
        %685 = vmatprep.subr.mxu0 0.0
        %686 = vmatpush1.msra.mxu0 0.0
        %687 = vmatprep.subr.mxu0 0.0
        %688 = vmatpush1.msra.mxu0 0.0
        %689 = vmatprep.subr.mxu0 0.0
        %690 = vmatpush1.msra.mxu0 0.0
        %691 = vmatprep.subr.mxu0 0.0
        %692 = vmatpush1.msra.mxu0 0.0
        %693 = vmatprep.subr.mxu0 0.0
        %694 = vmatpush1.msra.mxu0 0.0
        %695 = vmatprep.subr.mxu0 0.0
        %696 = vmatpush1.msra.mxu0 0.0
        %697 = vmatprep.subr.mxu0 0.0
        %698 = vmatpush1.msra.mxu0 0.0
        %699 = vmatprep.subr.mxu0 0.0
        %700 = vmatpush1.msra.mxu0 0.0
        %701 = vmatprep.subr.mxu0 0.0
        %702 = vmatpush1.msra.mxu0 0.0
        %703 = vmatprep.subr.mxu0 0.0
        %704 = vmatpush1.msra.mxu0 0.0
        %705 = vmatprep.subr.mxu0 0.0
        %706 = vmatpush1.msra.mxu0 0.0
        %707 = vmatprep.subr.mxu0 0.0
        %708 = vmatpush1.msra.mxu0 0.0
        %709 = vmatprep.subr.mxu0 0.0
        %710 = vmatpush1.msra.mxu0 0.0
        %711 = vmatprep.subr.mxu0 0.0
        %712 = vmatpush1.msra.mxu0 0.0
        %713 = vmatprep.mubr.f32.mxu0 0.0
        %714 = vmatmul.mubr.f32.gmra.mrb[0].mxu0 %v647
        %v715 = vpop.f32.mrb[0].mxu0
        %v716 = vadd.f32 0.0, %v715
        %v717 = vpop.f32.mrb[0].mxu0
        %718 = vdwg.mxu0
        %v719 = vmul.f32 %v716, 0.35355338
        %721 = vrot.lane.b32.xlu0 %v719, 120
        %v722 = vpop.permute.xlu0 %721
        %723 = vrot.lane.b32.xlu0 %v719, 112
        %v724 = vpop.permute.xlu0 %723
        %725 = vrot.lane.b32.xlu0 %v719, 104
        %v726 = vpop.permute.xlu0 %725
        %728 = vrot.lane.b32.xlu0 %v562, 120
        %v729 = vpop.permute.xlu0 %728
        %730 = vrot.lane.b32.xlu0 %v562, 112
        %v731 = vpop.permute.xlu0 %730
        %732 = vrot.lane.b32.xlu0 %v562, 104
        %v733 = vpop.permute.xlu0 %732
        %735 = vrot.lane.b32.xlu0 %v639, 120
        %v736 = vpop.permute.xlu0 %735
        %738 = vrot.lane.b32.xlu0 %v639, 112
        %v739 = vpop.permute.xlu0 %738
        %741 = vrot.lane.b32.xlu0 %v639, 104
        %v742 = vpop.permute.xlu0 %741
        %vm744 = vcmask 64512
        %v745 = vsel %vm744, %v719, 0
        %v747 = vsel %vm744, %v562, 0
        %749 = vmatprep.subr.mxu0 0.0
        %750 = vmatpush1.xpose.msra.mxu0 %v747
        %751 = vmatprep.subr.mxu0 0.0
        %752 = vmatpush1.xpose.msra.mxu0 0.0
        %753 = vmatprep.subr.mxu0 0.0
        %754 = vmatpush1.xpose.msra.mxu0 0.0
        %755 = vmatprep.subr.mxu0 0.0
        %756 = vmatpush1.xpose.msra.mxu0 0.0
        %757 = vmatprep.subr.mxu0 0.0
        %758 = vmatpush1.xpose.msra.mxu0 0.0
        %759 = vmatprep.subr.mxu0 0.0
        %760 = vmatpush1.xpose.msra.mxu0 0.0
        %761 = vmatprep.subr.mxu0 0.0
        %762 = vmatpush1.xpose.msra.mxu0 0.0
        %763 = vmatprep.subr.mxu0 0.0
        %764 = vmatpush1.xpose.msra.mxu0 0.0
        %765 = vmatprep.subr.mxu0 0.0
        %766 = vmatpush1.xpose.msra.mxu0 0.0
        %767 = vmatprep.subr.mxu0 0.0
        %768 = vmatpush1.xpose.msra.mxu0 0.0
        %769 = vmatprep.subr.mxu0 0.0
        %770 = vmatpush1.xpose.msra.mxu0 0.0
        %771 = vmatprep.subr.mxu0 0.0
        %772 = vmatpush1.xpose.msra.mxu0 0.0
        %773 = vmatprep.subr.mxu0 0.0
        %774 = vmatpush1.xpose.msra.mxu0 0.0
        %775 = vmatprep.subr.mxu0 0.0
        %776 = vmatpush1.xpose.msra.mxu0 0.0
        %777 = vmatprep.subr.mxu0 0.0
        %778 = vmatpush1.xpose.msra.mxu0 0.0
        %779 = vmatprep.subr.mxu0 0.0
        %780 = vmatpush1.xpose.msra.mxu0 0.0
        %781 = vmatprep.subr.mxu0 0.0
        %782 = vmatpush1.xpose.msra.mxu0 0.0
        %783 = vmatprep.subr.mxu0 0.0
        %784 = vmatpush1.xpose.msra.mxu0 0.0
        %785 = vmatprep.subr.mxu0 0.0
        %786 = vmatpush1.xpose.msra.mxu0 0.0
        %787 = vmatprep.subr.mxu0 0.0
        %788 = vmatpush1.xpose.msra.mxu0 0.0
        %789 = vmatprep.subr.mxu0 0.0
        %790 = vmatpush1.xpose.msra.mxu0 0.0
        %791 = vmatprep.subr.mxu0 0.0
        %792 = vmatpush1.xpose.msra.mxu0 0.0
        %793 = vmatprep.subr.mxu0 0.0
        %794 = vmatpush1.xpose.msra.mxu0 0.0
        %795 = vmatprep.subr.mxu0 0.0
        %796 = vmatpush1.xpose.msra.mxu0 0.0
        %797 = vmatprep.subr.mxu0 0.0
        %798 = vmatpush1.xpose.msra.mxu0 0.0
        %799 = vmatprep.subr.mxu0 0.0
        %800 = vmatpush1.xpose.msra.mxu0 0.0
        %801 = vmatprep.subr.mxu0 0.0
        %802 = vmatpush1.xpose.msra.mxu0 0.0
        %803 = vmatprep.subr.mxu0 0.0
        %804 = vmatpush1.xpose.msra.mxu0 0.0
        %805 = vmatprep.subr.mxu0 0.0
        %806 = vmatpush1.xpose.msra.mxu0 0.0
        %807 = vmatprep.subr.mxu0 0.0
        %808 = vmatpush1.xpose.msra.mxu0 0.0
        %809 = vmatprep.subr.mxu0 0.0
        %810 = vmatpush1.xpose.msra.mxu0 0.0
        %811 = vmatprep.subr.mxu0 0.0
        %812 = vmatpush1.xpose.msra.mxu0 0.0
        %813 = vmatprep.mubr.f32.mxu0 0.0
        %814 = vmatmul.mubr.f32.gmra.mrb[0].mxu0 %v745
        %v815 = vpop.f32.mrb[0].mxu0
        %v816 = vadd.f32 0.0, %v815
        %v817 = vpop.f32.mrb[0].mxu0
        %818 = vdwg.mxu0
        %v819 = vsel %vm744, %v722, 0
        %v821 = vsel %vm744, %v729, 0
        %823 = vmatprep.subr.mxu0 0.0
        %824 = vmatpush1.xpose.msra.mxu0 %v821
        %825 = vmatprep.subr.mxu0 0.0
        %826 = vmatpush1.xpose.msra.mxu0 0.0
        %827 = vmatprep.subr.mxu0 0.0
        %828 = vmatpush1.xpose.msra.mxu0 0.0
        %829 = vmatprep.subr.mxu0 0.0
        %830 = vmatpush1.xpose.msra.mxu0 0.0
        %831 = vmatprep.subr.mxu0 0.0
        %832 = vmatpush1.xpose.msra.mxu0 0.0
        %833 = vmatprep.subr.mxu0 0.0
        %834 = vmatpush1.xpose.msra.mxu0 0.0
        %835 = vmatprep.subr.mxu0 0.0
        %836 = vmatpush1.xpose.msra.mxu0 0.0
        %837 = vmatprep.subr.mxu0 0.0
        %838 = vmatpush1.xpose.msra.mxu0 0.0
        %839 = vmatprep.subr.mxu0 0.0
        %840 = vmatpush1.xpose.msra.mxu0 0.0
        %841 = vmatprep.subr.mxu0 0.0
        %842 = vmatpush1.xpose.msra.mxu0 0.0
        %843 = vmatprep.subr.mxu0 0.0
        %844 = vmatpush1.xpose.msra.mxu0 0.0
        %845 = vmatprep.subr.mxu0 0.0
        %846 = vmatpush1.xpose.msra.mxu0 0.0
        %847 = vmatprep.subr.mxu0 0.0
        %848 = vmatpush1.xpose.msra.mxu0 0.0
        %849 = vmatprep.subr.mxu0 0.0
        %850 = vmatpush1.xpose.msra.mxu0 0.0
        %851 = vmatprep.subr.mxu0 0.0
        %852 = vmatpush1.xpose.msra.mxu0 0.0
        %853 = vmatprep.subr.mxu0 0.0
        %854 = vmatpush1.xpose.msra.mxu0 0.0
        %855 = vmatprep.subr.mxu0 0.0
        %856 = vmatpush1.xpose.msra.mxu0 0.0
        %857 = vmatprep.subr.mxu0 0.0
        %858 = vmatpush1.xpose.msra.mxu0 0.0
        %859 = vmatprep.subr.mxu0 0.0
        %860 = vmatpush1.xpose.msra.mxu0 0.0
        %861 = vmatprep.subr.mxu0 0.0
        %862 = vmatpush1.xpose.msra.mxu0 0.0
        %863 = vmatprep.subr.mxu0 0.0
        %864 = vmatpush1.xpose.msra.mxu0 0.0
        %865 = vmatprep.subr.mxu0 0.0
        %866 = vmatpush1.xpose.msra.mxu0 0.0
        %867 = vmatprep.subr.mxu0 0.0
        %868 = vmatpush1.xpose.msra.mxu0 0.0
        %869 = vmatprep.subr.mxu0 0.0
        %870 = vmatpush1.xpose.msra.mxu0 0.0
        %871 = vmatprep.subr.mxu0 0.0
        %872 = vmatpush1.xpose.msra.mxu0 0.0
        %873 = vmatprep.subr.mxu0 0.0
        %874 = vmatpush1.xpose.msra.mxu0 0.0
        %875 = vmatprep.subr.mxu0 0.0
        %876 = vmatpush1.xpose.msra.mxu0 0.0
        %877 = vmatprep.subr.mxu0 0.0
        %878 = vmatpush1.xpose.msra.mxu0 0.0
        %879 = vmatprep.subr.mxu0 0.0
        %880 = vmatpush1.xpose.msra.mxu0 0.0
        %881 = vmatprep.subr.mxu0 0.0
        %882 = vmatpush1.xpose.msra.mxu0 0.0
        %883 = vmatprep.subr.mxu0 0.0
        %884 = vmatpush1.xpose.msra.mxu0 0.0
        %885 = vmatprep.subr.mxu0 0.0
        %886 = vmatpush1.xpose.msra.mxu0 0.0
        %887 = vmatprep.mubr.f32.mxu0 0.0
        %888 = vmatmul.mubr.f32.gmra.mrb[0].mxu0 %v819
        %v889 = vpop.f32.mrb[0].mxu0
        %v890 = vadd.f32 0.0, %v889
        %v891 = vpop.f32.mrb[0].mxu0
        %892 = vdwg.mxu0
        %v893 = vsel %vm744, %v724, 0
        %v895 = vsel %vm744, %v731, 0
        %897 = vmatprep.subr.mxu0 0.0
        %898 = vmatpush1.xpose.msra.mxu0 %v895
        %899 = vmatprep.subr.mxu0 0.0
        %900 = vmatpush1.xpose.msra.mxu0 0.0
        %901 = vmatprep.subr.mxu0 0.0
        %902 = vmatpush1.xpose.msra.mxu0 0.0
        %903 = vmatprep.subr.mxu0 0.0
        %904 = vmatpush1.xpose.msra.mxu0 0.0
        %905 = vmatprep.subr.mxu0 0.0
        %906 = vmatpush1.xpose.msra.mxu0 0.0
        %907 = vmatprep.subr.mxu0 0.0
        %908 = vmatpush1.xpose.msra.mxu0 0.0
        %909 = vmatprep.subr.mxu0 0.0
        %910 = vmatpush1.xpose.msra.mxu0 0.0
        %911 = vmatprep.subr.mxu0 0.0
        %912 = vmatpush1.xpose.msra.mxu0 0.0
        %913 = vmatprep.subr.mxu0 0.0
        %914 = vmatpush1.xpose.msra.mxu0 0.0
        %915 = vmatprep.subr.mxu0 0.0
        %916 = vmatpush1.xpose.msra.mxu0 0.0
        %917 = vmatprep.subr.mxu0 0.0
        %918 = vmatpush1.xpose.msra.mxu0 0.0
        %919 = vmatprep.subr.mxu0 0.0
        %920 = vmatpush1.xpose.msra.mxu0 0.0
        %921 = vmatprep.subr.mxu0 0.0
        %922 = vmatpush1.xpose.msra.mxu0 0.0
        %923 = vmatprep.subr.mxu0 0.0
        %924 = vmatpush1.xpose.msra.mxu0 0.0
        %925 = vmatprep.subr.mxu0 0.0
        %926 = vmatpush1.xpose.msra.mxu0 0.0
        %927 = vmatprep.subr.mxu0 0.0
        %928 = vmatpush1.xpose.msra.mxu0 0.0
        %929 = vmatprep.subr.mxu0 0.0
        %930 = vmatpush1.xpose.msra.mxu0 0.0
        %931 = vmatprep.subr.mxu0 0.0
        %932 = vmatpush1.xpose.msra.mxu0 0.0
        %933 = vmatprep.subr.mxu0 0.0
        %934 = vmatpush1.xpose.msra.mxu0 0.0
        %935 = vmatprep.subr.mxu0 0.0
        %936 = vmatpush1.xpose.msra.mxu0 0.0
        %937 = vmatprep.subr.mxu0 0.0
        %938 = vmatpush1.xpose.msra.mxu0 0.0
        %939 = vmatprep.subr.mxu0 0.0
        %940 = vmatpush1.xpose.msra.mxu0 0.0
        %941 = vmatprep.subr.mxu0 0.0
        %942 = vmatpush1.xpose.msra.mxu0 0.0
        %943 = vmatprep.subr.mxu0 0.0
        %944 = vmatpush1.xpose.msra.mxu0 0.0
        %945 = vmatprep.subr.mxu0 0.0
        %946 = vmatpush1.xpose.msra.mxu0 0.0
        %947 = vmatprep.subr.mxu0 0.0
        %948 = vmatpush1.xpose.msra.mxu0 0.0
        %949 = vmatprep.subr.mxu0 0.0
        %950 = vmatpush1.xpose.msra.mxu0 0.0
        %951 = vmatprep.subr.mxu0 0.0
        %952 = vmatpush1.xpose.msra.mxu0 0.0
        %953 = vmatprep.subr.mxu0 0.0
        %954 = vmatpush1.xpose.msra.mxu0 0.0
        %955 = vmatprep.subr.mxu0 0.0
        %956 = vmatpush1.xpose.msra.mxu0 0.0
        %957 = vmatprep.subr.mxu0 0.0
        %958 = vmatpush1.xpose.msra.mxu0 0.0
        %959 = vmatprep.subr.mxu0 0.0
        %960 = vmatpush1.xpose.msra.mxu0 0.0
        %961 = vmatprep.mubr.f32.mxu0 0.0
        %962 = vmatmul.mubr.f32.gmra.mrb[0].mxu0 %v893
        %v963 = vpop.f32.mrb[0].mxu0
        %v964 = vadd.f32 0.0, %v963
        %v965 = vpop.f32.mrb[0].mxu0
        %966 = vdwg.mxu0
        %v967 = vsel %vm744, %v726, 0
        %v969 = vsel %vm744, %v733, 0
        %971 = vmatprep.subr.mxu0 0.0
        %972 = vmatpush1.xpose.msra.mxu0 %v969
        %973 = vmatprep.subr.mxu0 0.0
        %974 = vmatpush1.xpose.msra.mxu0 0.0
        %975 = vmatprep.subr.mxu0 0.0
        %976 = vmatpush1.xpose.msra.mxu0 0.0
        %977 = vmatprep.subr.mxu0 0.0
        %978 = vmatpush1.xpose.msra.mxu0 0.0
        %979 = vmatprep.subr.mxu0 0.0
        %980 = vmatpush1.xpose.msra.mxu0 0.0
        %981 = vmatprep.subr.mxu0 0.0
        %982 = vmatpush1.xpose.msra.mxu0 0.0
        %983 = vmatprep.subr.mxu0 0.0
        %984 = vmatpush1.xpose.msra.mxu0 0.0
        %985 = vmatprep.subr.mxu0 0.0
        %986 = vmatpush1.xpose.msra.mxu0 0.0
        %987 = vmatprep.subr.mxu0 0.0
        %988 = vmatpush1.xpose.msra.mxu0 0.0
        %989 = vmatprep.subr.mxu0 0.0
        %990 = vmatpush1.xpose.msra.mxu0 0.0
        %991 = vmatprep.subr.mxu0 0.0
        %992 = vmatpush1.xpose.msra.mxu0 0.0
        %993 = vmatprep.subr.mxu0 0.0
        %994 = vmatpush1.xpose.msra.mxu0 0.0
        %995 = vmatprep.subr.mxu0 0.0
        %996 = vmatpush1.xpose.msra.mxu0 0.0
        %997 = vmatprep.subr.mxu0 0.0
        %998 = vmatpush1.xpose.msra.mxu0 0.0
        %999 = vmatprep.subr.mxu0 0.0
        %1000 = vmatpush1.xpose.msra.mxu0 0.0
        %1001 = vmatprep.subr.mxu0 0.0
        %1002 = vmatpush1.xpose.msra.mxu0 0.0
        %1003 = vmatprep.subr.mxu0 0.0
        %1004 = vmatpush1.xpose.msra.mxu0 0.0
        %1005 = vmatprep.subr.mxu0 0.0
        %1006 = vmatpush1.xpose.msra.mxu0 0.0
        %1007 = vmatprep.subr.mxu0 0.0
        %1008 = vmatpush1.xpose.msra.mxu0 0.0
        %1009 = vmatprep.subr.mxu0 0.0
        %1010 = vmatpush1.xpose.msra.mxu0 0.0
        %1011 = vmatprep.subr.mxu0 0.0
        %1012 = vmatpush1.xpose.msra.mxu0 0.0
        %1013 = vmatprep.subr.mxu0 0.0
        %1014 = vmatpush1.xpose.msra.mxu0 0.0
        %1015 = vmatprep.subr.mxu0 0.0
        %1016 = vmatpush1.xpose.msra.mxu0 0.0
        %1017 = vmatprep.subr.mxu0 0.0
        %1018 = vmatpush1.xpose.msra.mxu0 0.0
        %1019 = vmatprep.subr.mxu0 0.0
        %1020 = vmatpush1.xpose.msra.mxu0 0.0
        %1021 = vmatprep.subr.mxu0 0.0
        %1022 = vmatpush1.xpose.msra.mxu0 0.0
        %1023 = vmatprep.subr.mxu0 0.0
        %1024 = vmatpush1.xpose.msra.mxu0 0.0
        %1025 = vmatprep.subr.mxu0 0.0
        %1026 = vmatpush1.xpose.msra.mxu0 0.0
        %1027 = vmatprep.subr.mxu0 0.0
        %1028 = vmatpush1.xpose.msra.mxu0 0.0
        %1029 = vmatprep.subr.mxu0 0.0
        %1030 = vmatpush1.xpose.msra.mxu0 0.0
        %1031 = vmatprep.subr.mxu0 0.0
        %1032 = vmatpush1.xpose.msra.mxu0 0.0
        %1033 = vmatprep.subr.mxu0 0.0
        %1034 = vmatpush1.xpose.msra.mxu0 0.0
        %1035 = vmatprep.mubr.f32.mxu0 0.0
        %1036 = vmatmul.mubr.f32.gmra.mrb[0].mxu0 %v967
        %v1037 = vpop.f32.mrb[0].mxu0
        %v1038 = vadd.f32 0.0, %v1037
        %v1039 = vpop.f32.mrb[0].mxu0
        %1040 = vdwg.mxu0
        %v1041 = vsel %vm744, %v816, -inf
        %1042 = vmax.xlane.f32.xlu0 %v1041
        %v1043 = vpop.xlane.xlu0 %1042
        %v1044 = vsel %vm744, %v890, -inf
        %1045 = vmax.xlane.f32.xlu0 %v1044
        %v1046 = vpop.xlane.xlu0 %1045
        %v1047 = vsel %vm744, %v964, -inf
        %1048 = vmax.xlane.f32.xlu0 %v1047
        %v1049 = vpop.xlane.xlu0 %1048
        %v1050 = vsel %vm744, %v1038, -inf
        %1051 = vmax.xlane.f32.xlu0 %v1050
        %v1052 = vpop.xlane.xlu0 %1051
        %v1053 = vsub.f32 %v816, %v1043
        %v1054 = vsub.f32 %v890, %v1046
        %v1055 = vsub.f32 %v964, %v1049
        %v1056 = vsub.f32 %v1038, %v1052
        %v1057 = vmul.f32 %v1053, 1.442695
        %v1058 = vpow.pop %v1057
        %v1059 = vmul.f32 %v1054, 1.442695
        %v1060 = vpow.pop %v1059
        %v1061 = vmul.f32 %v1055, 1.442695
        %v1062 = vpow.pop %v1061
        %v1063 = vmul.f32 %v1056, 1.442695
        %v1064 = vpow.pop %v1063
        %v1065 = vsel %vm744, %v1058, 0.0
        %1066 = vadd.xlane.f32.xlu0 %v1065
        %v1067 = vpop.xlane.xlu0 %1066
        %v1068 = vsel %vm744, %v1060, 0.0
        %1069 = vadd.xlane.f32.xlu0 %v1068
        %v1070 = vpop.xlane.xlu0 %1069
        %v1071 = vsel %vm744, %v1062, 0.0
        %1072 = vadd.xlane.f32.xlu0 %v1071
        %v1073 = vpop.xlane.xlu0 %1072
        %v1074 = vsel %vm744, %v1064, 0.0
        %1075 = vadd.xlane.f32.xlu0 %v1074
        %v1076 = vpop.xlane.xlu0 %1075
        %v1077 = vrcp.pop %v1067
        %v1078 = vmul.f32 %v1058, %v1077
        %v1079 = vrcp.pop %v1070
        %v1080 = vmul.f32 %v1060, %v1079
        %v1081 = vrcp.pop %v1073
        %v1082 = vmul.f32 %v1062, %v1081
        %v1083 = vrcp.pop %v1076
        %v1084 = vmul.f32 %v1064, %v1083
        %1085 = vst.msk [vmem:[%s483] sm:$0xff] %vm744, %v1078
        %1086 = vst.msk [vmem:[%s483 + $0x8] sm:$0xff] %vm744, %v1080
        %1087 = vst.msk [vmem:[%s483 + $0x10] sm:$0xff] %vm744, %v1082
        %1088 = vst.msk [vmem:[%s483 + $0x18] sm:$0xff] %vm744, %v1084
        %v1090 = vsel %vm744, %v1078, 0
        %1092 = vmatprep.subr.mxu0 0.0
        %1093 = vmatpush1.msra.mxu0 %v639
        %1094 = vmatprep.subr.mxu0 0.0
        %1095 = vmatpush1.msra.mxu0 0.0
        %1096 = vmatprep.subr.mxu0 0.0
        %1097 = vmatpush1.msra.mxu0 0.0
        %1098 = vmatprep.subr.mxu0 0.0
        %1099 = vmatpush1.msra.mxu0 0.0
        %1100 = vmatprep.subr.mxu0 0.0
        %1101 = vmatpush1.msra.mxu0 0.0
        %1102 = vmatprep.subr.mxu0 0.0
        %1103 = vmatpush1.msra.mxu0 0.0
        %1104 = vmatprep.subr.mxu0 0.0
        %1105 = vmatpush1.msra.mxu0 0.0
        %1106 = vmatprep.subr.mxu0 0.0
        %1107 = vmatpush1.msra.mxu0 0.0
        %1108 = vmatprep.subr.mxu0 0.0
        %1109 = vmatpush1.msra.mxu0 0.0
        %1110 = vmatprep.subr.mxu0 0.0
        %1111 = vmatpush1.msra.mxu0 0.0
        %1112 = vmatprep.subr.mxu0 0.0
        %1113 = vmatpush1.msra.mxu0 0.0
        %1114 = vmatprep.subr.mxu0 0.0
        %1115 = vmatpush1.msra.mxu0 0.0
        %1116 = vmatprep.subr.mxu0 0.0
        %1117 = vmatpush1.msra.mxu0 0.0
        %1118 = vmatprep.subr.mxu0 0.0
        %1119 = vmatpush1.msra.mxu0 0.0
        %1120 = vmatprep.subr.mxu0 0.0
        %1121 = vmatpush1.msra.mxu0 0.0
        %1122 = vmatprep.subr.mxu0 0.0
        %1123 = vmatpush1.msra.mxu0 0.0
        %1124 = vmatprep.subr.mxu0 0.0
        %1125 = vmatpush1.msra.mxu0 0.0
        %1126 = vmatprep.subr.mxu0 0.0
        %1127 = vmatpush1.msra.mxu0 0.0
        %1128 = vmatprep.subr.mxu0 0.0
        %1129 = vmatpush1.msra.mxu0 0.0
        %1130 = vmatprep.subr.mxu0 0.0
        %1131 = vmatpush1.msra.mxu0 0.0
        %1132 = vmatprep.subr.mxu0 0.0
        %1133 = vmatpush1.msra.mxu0 0.0
        %1134 = vmatprep.subr.mxu0 0.0
        %1135 = vmatpush1.msra.mxu0 0.0
        %1136 = vmatprep.subr.mxu0 0.0
        %1137 = vmatpush1.msra.mxu0 0.0
        %1138 = vmatprep.subr.mxu0 0.0
        %1139 = vmatpush1.msra.mxu0 0.0
        %1140 = vmatprep.subr.mxu0 0.0
        %1141 = vmatpush1.msra.mxu0 0.0
        %1142 = vmatprep.subr.mxu0 0.0
        %1143 = vmatpush1.msra.mxu0 0.0
        %1144 = vmatprep.subr.mxu0 0.0
        %1145 = vmatpush1.msra.mxu0 0.0
        %1146 = vmatprep.subr.mxu0 0.0
        %1147 = vmatpush1.msra.mxu0 0.0
        %1148 = vmatprep.subr.mxu0 0.0
        %1149 = vmatpush1.msra.mxu0 0.0
        %1150 = vmatprep.subr.mxu0 0.0
        %1151 = vmatpush1.msra.mxu0 0.0
        %1152 = vmatprep.subr.mxu0 0.0
        %1153 = vmatpush1.msra.mxu0 0.0
        %1154 = vmatprep.subr.mxu0 0.0
        %1155 = vmatpush1.msra.mxu0 0.0
        %1156 = vmatprep.mubr.f32.mxu0 0.0
        %1157 = vmatmul.mubr.f32.gmra.mrb[0].mxu0 %v1090
        %v1158 = vpop.f32.mrb[0].mxu0
        %v1159 = vadd.f32 0.0, %v1158
        %v1160 = vpop.f32.mrb[0].mxu0
        %1161 = vdwg.mxu0
        %v1163 = vsel %vm744, %v1080, 0
        %1165 = vmatprep.subr.mxu0 0.0
        %1166 = vmatpush1.msra.mxu0 %v736
        %1167 = vmatprep.subr.mxu0 0.0
        %1168 = vmatpush1.msra.mxu0 0.0
        %1169 = vmatprep.subr.mxu0 0.0
        %1170 = vmatpush1.msra.mxu0 0.0
        %1171 = vmatprep.subr.mxu0 0.0
        %1172 = vmatpush1.msra.mxu0 0.0
        %1173 = vmatprep.subr.mxu0 0.0
        %1174 = vmatpush1.msra.mxu0 0.0
        %1175 = vmatprep.subr.mxu0 0.0
        %1176 = vmatpush1.msra.mxu0 0.0
        %1177 = vmatprep.subr.mxu0 0.0
        %1178 = vmatpush1.msra.mxu0 0.0
        %1179 = vmatprep.subr.mxu0 0.0
        %1180 = vmatpush1.msra.mxu0 0.0
        %1181 = vmatprep.subr.mxu0 0.0
        %1182 = vmatpush1.msra.mxu0 0.0
        %1183 = vmatprep.subr.mxu0 0.0
        %1184 = vmatpush1.msra.mxu0 0.0
        %1185 = vmatprep.subr.mxu0 0.0
        %1186 = vmatpush1.msra.mxu0 0.0
        %1187 = vmatprep.subr.mxu0 0.0
        %1188 = vmatpush1.msra.mxu0 0.0
        %1189 = vmatprep.subr.mxu0 0.0
        %1190 = vmatpush1.msra.mxu0 0.0
        %1191 = vmatprep.subr.mxu0 0.0
        %1192 = vmatpush1.msra.mxu0 0.0
        %1193 = vmatprep.subr.mxu0 0.0
        %1194 = vmatpush1.msra.mxu0 0.0
        %1195 = vmatprep.subr.mxu0 0.0
        %1196 = vmatpush1.msra.mxu0 0.0
        %1197 = vmatprep.subr.mxu0 0.0
        %1198 = vmatpush1.msra.mxu0 0.0
        %1199 = vmatprep.subr.mxu0 0.0
        %1200 = vmatpush1.msra.mxu0 0.0
        %1201 = vmatprep.subr.mxu0 0.0
        %1202 = vmatpush1.msra.mxu0 0.0
        %1203 = vmatprep.subr.mxu0 0.0
        %1204 = vmatpush1.msra.mxu0 0.0
        %1205 = vmatprep.subr.mxu0 0.0
        %1206 = vmatpush1.msra.mxu0 0.0
        %1207 = vmatprep.subr.mxu0 0.0
        %1208 = vmatpush1.msra.mxu0 0.0
        %1209 = vmatprep.subr.mxu0 0.0
        %1210 = vmatpush1.msra.mxu0 0.0
        %1211 = vmatprep.subr.mxu0 0.0
        %1212 = vmatpush1.msra.mxu0 0.0
        %1213 = vmatprep.subr.mxu0 0.0
        %1214 = vmatpush1.msra.mxu0 0.0
        %1215 = vmatprep.subr.mxu0 0.0
        %1216 = vmatpush1.msra.mxu0 0.0
        %1217 = vmatprep.subr.mxu0 0.0
        %1218 = vmatpush1.msra.mxu0 0.0
        %1219 = vmatprep.subr.mxu0 0.0
        %1220 = vmatpush1.msra.mxu0 0.0
        %1221 = vmatprep.subr.mxu0 0.0
        %1222 = vmatpush1.msra.mxu0 0.0
        %1223 = vmatprep.subr.mxu0 0.0
        %1224 = vmatpush1.msra.mxu0 0.0
        %1225 = vmatprep.subr.mxu0 0.0
        %1226 = vmatpush1.msra.mxu0 0.0
        %1227 = vmatprep.subr.mxu0 0.0
        %1228 = vmatpush1.msra.mxu0 0.0
        %1229 = vmatprep.mubr.f32.mxu0 0.0
        %1230 = vmatmul.mubr.f32.gmra.mrb[0].mxu0 %v1163
        %v1231 = vpop.f32.mrb[0].mxu0
        %v1232 = vadd.f32 0.0, %v1231
        %v1233 = vpop.f32.mrb[0].mxu0
        %1234 = vdwg.mxu0
        %v1236 = vsel %vm744, %v1082, 0
        %1238 = vmatprep.subr.mxu0 0.0
        %1239 = vmatpush1.msra.mxu0 %v739
        %1240 = vmatprep.subr.mxu0 0.0
        %1241 = vmatpush1.msra.mxu0 0.0
        %1242 = vmatprep.subr.mxu0 0.0
        %1243 = vmatpush1.msra.mxu0 0.0
        %1244 = vmatprep.subr.mxu0 0.0
        %1245 = vmatpush1.msra.mxu0 0.0
        %1246 = vmatprep.subr.mxu0 0.0
        %1247 = vmatpush1.msra.mxu0 0.0
        %1248 = vmatprep.subr.mxu0 0.0
        %1249 = vmatpush1.msra.mxu0 0.0
        %1250 = vmatprep.subr.mxu0 0.0
        %1251 = vmatpush1.msra.mxu0 0.0
        %1252 = vmatprep.subr.mxu0 0.0
        %1253 = vmatpush1.msra.mxu0 0.0
        %1254 = vmatprep.subr.mxu0 0.0
        %1255 = vmatpush1.msra.mxu0 0.0
        %1256 = vmatprep.subr.mxu0 0.0
        %1257 = vmatpush1.msra.mxu0 0.0
        %1258 = vmatprep.subr.mxu0 0.0
        %1259 = vmatpush1.msra.mxu0 0.0
        %1260 = vmatprep.subr.mxu0 0.0
        %1261 = vmatpush1.msra.mxu0 0.0
        %1262 = vmatprep.subr.mxu0 0.0
        %1263 = vmatpush1.msra.mxu0 0.0
        %1264 = vmatprep.subr.mxu0 0.0
        %1265 = vmatpush1.msra.mxu0 0.0
        %1266 = vmatprep.subr.mxu0 0.0
        %1267 = vmatpush1.msra.mxu0 0.0
        %1268 = vmatprep.subr.mxu0 0.0
        %1269 = vmatpush1.msra.mxu0 0.0
        %1270 = vmatprep.subr.mxu0 0.0
        %1271 = vmatpush1.msra.mxu0 0.0
        %1272 = vmatprep.subr.mxu0 0.0
        %1273 = vmatpush1.msra.mxu0 0.0
        %1274 = vmatprep.subr.mxu0 0.0
        %1275 = vmatpush1.msra.mxu0 0.0
        %1276 = vmatprep.subr.mxu0 0.0
        %1277 = vmatpush1.msra.mxu0 0.0
        %1278 = vmatprep.subr.mxu0 0.0
        %1279 = vmatpush1.msra.mxu0 0.0
        %1280 = vmatprep.subr.mxu0 0.0
        %1281 = vmatpush1.msra.mxu0 0.0
        %1282 = vmatprep.subr.mxu0 0.0
        %1283 = vmatpush1.msra.mxu0 0.0
        %1284 = vmatprep.subr.mxu0 0.0
        %1285 = vmatpush1.msra.mxu0 0.0
        %1286 = vmatprep.subr.mxu0 0.0
        %1287 = vmatpush1.msra.mxu0 0.0
        %1288 = vmatprep.subr.mxu0 0.0
        %1289 = vmatpush1.msra.mxu0 0.0
        %1290 = vmatprep.subr.mxu0 0.0
        %1291 = vmatpush1.msra.mxu0 0.0
        %1292 = vmatprep.subr.mxu0 0.0
        %1293 = vmatpush1.msra.mxu0 0.0
        %1294 = vmatprep.subr.mxu0 0.0
        %1295 = vmatpush1.msra.mxu0 0.0
        %1296 = vmatprep.subr.mxu0 0.0
        %1297 = vmatpush1.msra.mxu0 0.0
        %1298 = vmatprep.subr.mxu0 0.0
        %1299 = vmatpush1.msra.mxu0 0.0
        %1300 = vmatprep.subr.mxu0 0.0
        %1301 = vmatpush1.msra.mxu0 0.0
        %1302 = vmatprep.mubr.f32.mxu0 0.0
        %1303 = vmatmul.mubr.f32.gmra.mrb[0].mxu0 %v1236
        %v1304 = vpop.f32.mrb[0].mxu0
        %v1305 = vadd.f32 0.0, %v1304
        %v1306 = vpop.f32.mrb[0].mxu0
        %1307 = vdwg.mxu0
        %v1309 = vsel %vm744, %v1084, 0
        %1311 = vmatprep.subr.mxu0 0.0
        %1312 = vmatpush1.msra.mxu0 %v742
        %1313 = vmatprep.subr.mxu0 0.0
        %1314 = vmatpush1.msra.mxu0 0.0
        %1315 = vmatprep.subr.mxu0 0.0
        %1316 = vmatpush1.msra.mxu0 0.0
        %1317 = vmatprep.subr.mxu0 0.0
        %1318 = vmatpush1.msra.mxu0 0.0
        %1319 = vmatprep.subr.mxu0 0.0
        %1320 = vmatpush1.msra.mxu0 0.0
        %1321 = vmatprep.subr.mxu0 0.0
        %1322 = vmatpush1.msra.mxu0 0.0
        %1323 = vmatprep.subr.mxu0 0.0
        %1324 = vmatpush1.msra.mxu0 0.0
        %1325 = vmatprep.subr.mxu0 0.0
        %1326 = vmatpush1.msra.mxu0 0.0
        %1327 = vmatprep.subr.mxu0 0.0
        %1328 = vmatpush1.msra.mxu0 0.0
        %1329 = vmatprep.subr.mxu0 0.0
        %1330 = vmatpush1.msra.mxu0 0.0
        %1331 = vmatprep.subr.mxu0 0.0
        %1332 = vmatpush1.msra.mxu0 0.0
        %1333 = vmatprep.subr.mxu0 0.0
        %1334 = vmatpush1.msra.mxu0 0.0
        %1335 = vmatprep.subr.mxu0 0.0
        %1336 = vmatpush1.msra.mxu0 0.0
        %1337 = vmatprep.subr.mxu0 0.0
        %1338 = vmatpush1.msra.mxu0 0.0
        %1339 = vmatprep.subr.mxu0 0.0
        %1340 = vmatpush1.msra.mxu0 0.0
        %1341 = vmatprep.subr.mxu0 0.0
        %1342 = vmatpush1.msra.mxu0 0.0
        %1343 = vmatprep.subr.mxu0 0.0
        %1344 = vmatpush1.msra.mxu0 0.0
        %1345 = vmatprep.subr.mxu0 0.0
        %1346 = vmatpush1.msra.mxu0 0.0
        %1347 = vmatprep.subr.mxu0 0.0
        %1348 = vmatpush1.msra.mxu0 0.0
        %1349 = vmatprep.subr.mxu0 0.0
        %1350 = vmatpush1.msra.mxu0 0.0
        %1351 = vmatprep.subr.mxu0 0.0
        %1352 = vmatpush1.msra.mxu0 0.0
        %1353 = vmatprep.subr.mxu0 0.0
        %1354 = vmatpush1.msra.mxu0 0.0
        %1355 = vmatprep.subr.mxu0 0.0
        %1356 = vmatpush1.msra.mxu0 0.0
        %1357 = vmatprep.subr.mxu0 0.0
        %1358 = vmatpush1.msra.mxu0 0.0
        %1359 = vmatprep.subr.mxu0 0.0
        %1360 = vmatpush1.msra.mxu0 0.0
        %1361 = vmatprep.subr.mxu0 0.0
        %1362 = vmatpush1.msra.mxu0 0.0
        %1363 = vmatprep.subr.mxu0 0.0
        %1364 = vmatpush1.msra.mxu0 0.0
        %1365 = vmatprep.subr.mxu0 0.0
        %1366 = vmatpush1.msra.mxu0 0.0
        %1367 = vmatprep.subr.mxu0 0.0
        %1368 = vmatpush1.msra.mxu0 0.0
        %1369 = vmatprep.subr.mxu0 0.0
        %1370 = vmatpush1.msra.mxu0 0.0
        %1371 = vmatprep.subr.mxu0 0.0
        %1372 = vmatpush1.msra.mxu0 0.0
        %1373 = vmatprep.subr.mxu0 0.0
        %1374 = vmatpush1.msra.mxu0 0.0
        %1375 = vmatprep.mubr.f32.mxu0 0.0
        %1376 = vmatmul.mubr.f32.gmra.mrb[0].mxu0 %v1309
        %v1377 = vpop.f32.mrb[0].mxu0
        %v1378 = vadd.f32 0.0, %v1377
        %v1379 = vpop.f32.mrb[0].mxu0
        %1380 = vdwg.mxu0
        %1382 = vrot.lane.b32.xlu0 %v1232, 8
        %v1383 = vpop.permute.xlu0 %1382
        %1386 = vrot.lane.b32.xlu0 %v1305, 16
        %v1387 = vpop.permute.xlu0 %1386
        %1390 = vrot.lane.b32.xlu0 %v1378, 24
        %v1391 = vpop.permute.xlu0 %1390
        %v1393 = vsel %vm744, %v1159, %v1383
        %vm1394 = vcmask 130048
        %v1395 = vsel %vm1394, %v1393, %v1387
        %vm1396 = vcmask 195584
        %v1397 = vsel %vm1396, %v1395, %v1391
        %v1398 = vld [vmem:[%s6] sm:$0xff]
        %v1399 = vld [vmem:[%s6 + $0x8] sm:$0xff]
        %v1400 = vld [vmem:[%s6 + $0x10] sm:$0xff]
        %v1401 = vld [vmem:[%s6 + $0x18] sm:$0xff]
        %v1402 = vld [vmem:[%s6 + $0x20] sm:$0xff]
        %v1403 = vld [vmem:[%s6 + $0x28] sm:$0xff]
        %v1404 = vld [vmem:[%s6 + $0x30] sm:$0xff]
        %v1405 = vld [vmem:[%s6 + $0x38] sm:$0xff]
        %v1407 = vsel %vm491, %v1397, 0
        %1409 = vmatprep.subr.mxu0 0.0
        %1410 = vmatpush1.msra.mxu0 %v1402
        %1411 = vmatprep.subr.mxu0 0.0
        %1412 = vmatpush1.msra.mxu0 %v1403
        %1413 = vmatprep.subr.mxu0 0.0
        %1414 = vmatpush1.msra.mxu0 %v1404
        %1415 = vmatprep.subr.mxu0 0.0
        %1416 = vmatpush1.msra.mxu0 %v1405
        %1417 = vmatprep.subr.mxu0 0.0
        %1418 = vmatpush1.msra.mxu0 0.0
        %1419 = vmatprep.subr.mxu0 0.0
        %1420 = vmatpush1.msra.mxu0 0.0
        %1421 = vmatprep.subr.mxu0 0.0
        %1422 = vmatpush1.msra.mxu0 0.0
        %1423 = vmatprep.subr.mxu0 0.0
        %1424 = vmatpush1.msra.mxu0 0.0
        %1425 = vmatprep.subr.mxu0 0.0
        %1426 = vmatpush1.msra.mxu0 0.0
        %1427 = vmatprep.subr.mxu0 0.0
        %1428 = vmatpush1.msra.mxu0 0.0
        %1429 = vmatprep.subr.mxu0 0.0
        %1430 = vmatpush1.msra.mxu0 0.0
        %1431 = vmatprep.subr.mxu0 0.0
        %1432 = vmatpush1.msra.mxu0 0.0
        %1433 = vmatprep.subr.mxu0 0.0
        %1434 = vmatpush1.msra.mxu0 0.0
        %1435 = vmatprep.subr.mxu0 0.0
        %1436 = vmatpush1.msra.mxu0 0.0
        %1437 = vmatprep.subr.mxu0 0.0
        %1438 = vmatpush1.msra.mxu0 0.0
        %1439 = vmatprep.subr.mxu0 0.0
        %1440 = vmatpush1.msra.mxu0 0.0
        %1441 = vmatprep.subr.mxu0 0.0
        %1442 = vmatpush1.msra.mxu0 0.0
        %1443 = vmatprep.subr.mxu0 0.0
        %1444 = vmatpush1.msra.mxu0 0.0
        %1445 = vmatprep.subr.mxu0 0.0
        %1446 = vmatpush1.msra.mxu0 0.0
        %1447 = vmatprep.subr.mxu0 0.0
        %1448 = vmatpush1.msra.mxu0 0.0
        %1449 = vmatprep.subr.mxu0 0.0
        %1450 = vmatpush1.msra.mxu0 0.0
        %1451 = vmatprep.subr.mxu0 0.0
        %1452 = vmatpush1.msra.mxu0 0.0
        %1453 = vmatprep.subr.mxu0 0.0
        %1454 = vmatpush1.msra.mxu0 0.0
        %1455 = vmatprep.subr.mxu0 0.0
        %1456 = vmatpush1.msra.mxu0 0.0
        %1457 = vmatprep.subr.mxu0 0.0
        %1458 = vmatpush1.msra.mxu0 0.0
        %1459 = vmatprep.subr.mxu0 0.0
        %1460 = vmatpush1.msra.mxu0 0.0
        %1461 = vmatprep.subr.mxu0 0.0
        %1462 = vmatpush1.msra.mxu0 0.0
        %1463 = vmatprep.subr.mxu0 0.0
        %1464 = vmatpush1.msra.mxu0 0.0
        %1465 = vmatprep.subr.mxu0 0.0
        %1466 = vmatpush1.msra.mxu0 0.0
        %1467 = vmatprep.subr.mxu0 0.0
        %1468 = vmatpush1.msra.mxu0 0.0
        %1469 = vmatprep.subr.mxu0 0.0
        %1470 = vmatpush1.msra.mxu0 0.0
        %1471 = vmatprep.subr.mxu0 0.0
        %1472 = vmatpush1.msra.mxu0 0.0
        %1473 = vmatprep.mubr.f32.mxu0 0.0
        %1474 = vmatmul.mubr.f32.gmra.mrb[0].mxu0 %v1407
        %v1475 = vpop.f32.mrb[0].mxu0
        %v1476 = vadd.f32 0.0, %v1475
        %v1477 = vpop.f32.mrb[0].mxu0
        %1478 = vdwg.mxu0
        %1479 = vmatprep.subr.mxu0 0.0
        %1480 = vmatpush1.msra.mxu0 %v1398
        %1481 = vmatprep.subr.mxu0 0.0
        %1482 = vmatpush1.msra.mxu0 %v1399
        %1483 = vmatprep.subr.mxu0 0.0
        %1484 = vmatpush1.msra.mxu0 %v1400
        %1485 = vmatprep.subr.mxu0 0.0
        %1486 = vmatpush1.msra.mxu0 %v1401
        %1487 = vmatprep.subr.mxu0 0.0
        %1488 = vmatpush1.msra.mxu0 0.0
        %1489 = vmatprep.subr.mxu0 0.0
        %1490 = vmatpush1.msra.mxu0 0.0
        %1491 = vmatprep.subr.mxu0 0.0
        %1492 = vmatpush1.msra.mxu0 0.0
        %1493 = vmatprep.subr.mxu0 0.0
        %1494 = vmatpush1.msra.mxu0 0.0
        %1495 = vmatprep.subr.mxu0 0.0
        %1496 = vmatpush1.msra.mxu0 0.0
        %1497 = vmatprep.subr.mxu0 0.0
        %1498 = vmatpush1.msra.mxu0 0.0
        %1499 = vmatprep.subr.mxu0 0.0
        %1500 = vmatpush1.msra.mxu0 0.0
        %1501 = vmatprep.subr.mxu0 0.0
        %1502 = vmatpush1.msra.mxu0 0.0
        %1503 = vmatprep.subr.mxu0 0.0
        %1504 = vmatpush1.msra.mxu0 0.0
        %1505 = vmatprep.subr.mxu0 0.0
        %1506 = vmatpush1.msra.mxu0 0.0
        %1507 = vmatprep.subr.mxu0 0.0
        %1508 = vmatpush1.msra.mxu0 0.0
        %1509 = vmatprep.subr.mxu0 0.0
        %1510 = vmatpush1.msra.mxu0 0.0
        %1511 = vmatprep.subr.mxu0 0.0
        %1512 = vmatpush1.msra.mxu0 0.0
        %1513 = vmatprep.subr.mxu0 0.0
        %1514 = vmatpush1.msra.mxu0 0.0
        %1515 = vmatprep.subr.mxu0 0.0
        %1516 = vmatpush1.msra.mxu0 0.0
        %1517 = vmatprep.subr.mxu0 0.0
        %1518 = vmatpush1.msra.mxu0 0.0
        %1519 = vmatprep.subr.mxu0 0.0
        %1520 = vmatpush1.msra.mxu0 0.0
        %1521 = vmatprep.subr.mxu0 0.0
        %1522 = vmatpush1.msra.mxu0 0.0
        %1523 = vmatprep.subr.mxu0 0.0
        %1524 = vmatpush1.msra.mxu0 0.0
        %1525 = vmatprep.subr.mxu0 0.0
        %1526 = vmatpush1.msra.mxu0 0.0
        %1527 = vmatprep.subr.mxu0 0.0
        %1528 = vmatpush1.msra.mxu0 0.0
        %1529 = vmatprep.subr.mxu0 0.0
        %1530 = vmatpush1.msra.mxu0 0.0
        %1531 = vmatprep.subr.mxu0 0.0
        %1532 = vmatpush1.msra.mxu0 0.0
        %1533 = vmatprep.subr.mxu0 0.0
        %1534 = vmatpush1.msra.mxu0 0.0
        %1535 = vmatprep.subr.mxu0 0.0
        %1536 = vmatpush1.msra.mxu0 0.0
        %1537 = vmatprep.subr.mxu0 0.0
        %1538 = vmatpush1.msra.mxu0 0.0
        %1539 = vmatprep.subr.mxu0 0.0
        %1540 = vmatpush1.msra.mxu0 0.0
        %1541 = vmatprep.subr.mxu0 0.0
        %1542 = vmatpush1.msra.mxu0 0.0
        %1543 = vmatprep.mubr.f32.mxu0 0.0
        %1544 = vmatmul.mubr.f32.gmra.mrb[0].mxu0 %v647
        %v1545 = vpop.f32.mrb[0].mxu0
        %v1546 = vadd.f32 %v1476, %v1545
        %v1547 = vpop.f32.mrb[0].mxu0
        %1548 = vdwg.mxu0
        %v1549 = vld [vmem:[%s7] sm:$0x1]
        %v1551 = vlaneseq
        %v1552 = vshrl.u32 %v1551, 7
        %v1553 = vsub.s32 0, %v1552
        %v1554 = vrot.slane %v1549, %v1553
        %v1556 = vadd.f32 %v1546, %v1554
        %v1557 = vadd.f32 %v1556, %v486
        %v1558 = vsel %vm491, %v1557, 0.0
        %1559 = vadd.xlane.f32.xlu0 %v1558
        %v1560 = vpop.xlane.xlu0 %1559
        %v1561 = vrcp.pop 32.0
        %v1562 = vmul.f32 %v1560, %v1561
        %v1563 = vsub.f32 %v1557, %v1562
        %v1564 = vmul.f32 %v1563, %v1563
        %v1565 = vsel %vm491, %v1564, 0.0
        %1566 = vadd.xlane.f32.xlu0 %v1565
        %v1567 = vpop.xlane.xlu0 %1566
        %v1568 = vmul.f32 %v1567, %v1561
        %v1569 = vadd.f32 %v1568, 1e-05
        %v1570 = vrsqrt.pop %v1569
        %v1571 = vmul.f32 %v1563, %v1570
        %v1572 = vld [vmem:[%s8] sm:$0x1]
        %v1574 = vlaneseq
        %v1575 = vshrl.u32 %v1574, 7
        %v1576 = vsub.s32 0, %v1575
        %v1577 = vrot.slane %v1572, %v1576
        %v1579 = vmul.f32 %v1571, %v1577
        %v1580 = vld [vmem:[%s9] sm:$0x1]
        %v1582 = vlaneseq
        %v1583 = vshrl.u32 %v1582, 7
        %v1584 = vsub.s32 0, %v1583
        %v1585 = vrot.slane %v1580, %v1584
        %v1587 = vadd.f32 %v1579, %v1585
        %1588 = vst.msk [vmem:[%s476] sm:$0xff] %vm491, %v1587
        %s1589 = sand.u32 %s268, 1
        %s1590 = scalar_lea.sflag [#allocation4], %s1589
        %s1591 = sand.u32 %s268, 1
        %s1592 = smul.addr %s1591, 8
        %s1593 = scalar_lea.vmem [#allocation8], %s1592
        %s1594 = sand.u32 %s294, 1
        %s1595 = scalar_lea.sflag [#allocation10], %s1594
        %s1596 = sand.u32 %s294, 1
        %s1597 = smul.addr %s1596, 32
        %s1598 = scalar_lea.vmem [#allocation9], %s1597
        // Predicated region
        $region73: #{tpu_custom_call.1} parent=59 // pred_check
          %p1599 = pneg %p278
        $region74: #{tpu_custom_call.1} parent=59 // pred_check_branch
          %1601 = sbr.rel (%p1599) target = $region76
        $region75: #{tpu_custom_call.1} parent=59 // pred_region
          %s1603 = ssub.s32 128, 128
          %1604 = vsyncadd %s1590, %s1603
          %s1605 = smul.addr %s35, 128
          %s1606 = scalar_lea.hbm %s10, %s1605
          %s1608 = sshll.u32 %s1593, 4
          %s1609 = int_to_ptr.vmem [resolvable:$true] %s1608
          %1611 = dma.vmem_to_hbm [thread:$0]  %s1609, 128, %s1606, %s1590
        $region76: #{tpu_custom_call.1} parent=59 // pred_fallthru
          _
        // Predicated region
        $region77: #{tpu_custom_call.1} parent=59 // pred_check
          %p1612 = pneg %p304
        $region78: #{tpu_custom_call.1} parent=59 // pred_check_branch
          %1614 = sbr.rel (%p1612) target = $region80
        $region79: #{tpu_custom_call.1} parent=59 // pred_region
          %s1616 = ssub.s32 512, 512
          %1617 = vsyncadd %s1595, %s1616
          %s1618 = smul.addr %s35, 128
          %s1619 = scalar_lea.hbm %s11, %s1618
          %s1620 = sshll.u32 %s1598, 4
          %s1621 = int_to_ptr.vmem [resolvable:$true] %s1620
          %1626 = dma.vmem_to_hbm [thread:$0]  %s1621, 512, %s1619, %s1595, 128, 256, 8
        $region80: #{tpu_custom_call.1} parent=59 // pred_fallthru
          _
      $region60: #{tpu_custom_call.1} parent=5 // pred_fallthru
        _
      %p1627 = scmp.le.s32.totalorder 2, %s30
      // Predicated region
      $region81: #{tpu_custom_call.1} parent=5 // pred_check
        %p1628 = pneg %p1627
      $region82: #{tpu_custom_call.1} parent=5 // pred_check_branch
        %1630 = sbr.rel (%p1628) target = $region84
      $region83: #{tpu_custom_call.1} parent=5 // pred_region
        %s1631 = ssub.s32 %s30, 2
        // Predicated region
        $region85: #{tpu_custom_call.1} parent=83 // pred_check
          %p1632 = pneg %p284
        $region86: #{tpu_custom_call.1} parent=83 // pred_check_branch
          %1634 = sbr.rel (%p1632) target = $region88
        $region87: #{tpu_custom_call.1} parent=83 // pred_region
          %s1635 = sand.u32 %s269, 1
          %s1636 = scalar_lea.sflag [#allocation4], %s1635
          %s1637 = sand.u32 %s269, 1
          %s1638 = smul.addr %s1637, 8
          %s1639 = scalar_lea.vmem [#allocation8], %s1638
          %1640 = dma.done %s1636, 128
        $region88: #{tpu_custom_call.1} parent=83 // pred_fallthru
          _
        // Predicated region
        $region89: #{tpu_custom_call.1} parent=83 // pred_check
          %p1641 = pneg %p310
        $region90: #{tpu_custom_call.1} parent=83 // pred_check_branch
          %1643 = sbr.rel (%p1641) target = $region92
        $region91: #{tpu_custom_call.1} parent=83 // pred_region
          %s1644 = sand.u32 %s295, 1
          %s1645 = scalar_lea.sflag [#allocation10], %s1644
          %s1646 = sand.u32 %s295, 1
          %s1647 = smul.addr %s1646, 32
          %s1648 = scalar_lea.vmem [#allocation9], %s1647
          %1649 = dma.done %s1645, 512
        $region92: #{tpu_custom_call.1} parent=83 // pred_fallthru
          _
      $region84: #{tpu_custom_call.1} parent=5 // pred_fallthru
        _
    $region6: #{tpu_custom_call.1} parent=1 // loop_footer
      %s34 = sadd.s32 1, %s30
    $region7: #{tpu_custom_call.1} parent=1 // loop_footer_branch
      %29 = sbr.rel target = $region3
    $region8: #{tpu_custom_call.1} parent=1 // loop_exit
      _
    %1650 = vsyncpa [#allocation3], 1
    %s1651 = scalar_lea.sflag [#allocation3], 1
    %1652 = vsyncpa %s1651, 1
    %1653 = vsyncpa [#allocation6], 1
    %s1654 = scalar_lea.sflag [#allocation6], 1
    %1655 = vsyncpa %s1654, 1
    %1656 = vsyncpa [#allocation4], 1
    %s1657 = scalar_lea.sflag [#allocation4], 1
    %1658 = vsyncpa %s1657, 1
    %1659 = vsyncpa [#allocation10], 1
    %s1660 = scalar_lea.sflag [#allocation10], 1
    %1661 = vsyncpa %s1660, 1

// kernel: tpu_custom_call.1
$region0: #{tpu_custom_call.1}
  #allocation0 [shape = 'u32[]', space=smem, size = 0x4, offset = 0x4, fixed_abs, tag = 'smem constant byte address 0x4 - core index']
  #allocation1 [shape = 'u32[144,128]{1,0:T(1,128)}', space=vmem, size = 0x12000, scoped, tag = 'internal scratch']
  %s0 = inlined_call_operand.hbm [shape: f32[2,8,32], index: 0, kind: input, shape index: {}]
  %s1 = inlined_call_operand.hbm [shape: f32[2,8,32], index: 1, kind: input, shape index: {}]
  %s2 = inlined_call_operand.hbm [shape: f32[2,8,32], index: 2, kind: input, shape index: {}]
  %s3 = inlined_call_operand.vmem [shape: f32[32,32], index: 3, kind: input, shape index: {}]
  %s4 = inlined_call_operand.vmem [shape: f32[32,32], index: 4, kind: input, shape index: {}]
  %s5 = inlined_call_operand.vmem [shape: f32[32,32], index: 5, kind: input, shape index: {}]
  %s6 = inlined_call_operand.vmem [shape: f32[64,32], index: 6, kind: input, shape index: {}]
  %s7 = inlined_call_operand.vmem [shape: f32[1,32], index: 7, kind: input, shape index: {}]
  %s8 = inlined_call_operand.vmem [shape: f32[1,32], index: 8, kind: input, shape index: {}]
  %s9 = inlined_call_operand.vmem [shape: f32[1,32], index: 9, kind: input, shape index: {}]
  %s10 = inlined_call_operand.hbm [shape: f32[2,8,32], index: 10, kind: output, shape index: {0}]
  %s11 = inlined_call_operand.hbm [shape: f32[4,2,8,8], index: 11, kind: output, shape index: {1}]
  %12 = xla_tuple %s10, %s11
  %s13 = sld [smem:[#allocation0]]
  $region93: #{tpu_custom_call.1} parent=0
    _
  %s15 = ssub.s32 1, %s13
  %s16 = scalar_select 0, %s15, %s13
  $region1: #{tpu_custom_call.1} parent=0
    #allocation2 [shape = 'u8[8192]{0}', space=vmem, size = 0x2000, scoped, tag = 'input window, operand 0']
    #allocation3 [shape = 's32[2]{0}', space=sflag, size = 0x8, scoped, tag = 'scoped memory for tpu_custom_call.1']
    #allocation4 [shape = 's32[2]{0}', space=sflag, size = 0x8, scoped, tag = 'scoped memory for tpu_custom_call.1']
    #allocation5 [shape = 'u8[8192]{0}', space=vmem, size = 0x2000, scoped, tag = 'input window, operand 1']
    #allocation6 [shape = 's32[2]{0}', space=sflag, size = 0x8, scoped, tag = 'scoped memory for tpu_custom_call.1']
    #allocation7 [shape = 'u8[8192]{0}', space=vmem, size = 0x2000, scoped, tag = 'input window, operand 2']
    #allocation8 [shape = 'u8[8192]{0}', space=vmem, size = 0x2000, scoped, tag = 'output window, operand 0']
    #allocation9 [shape = 'u8[32768]{0}', space=vmem, size = 0x8000, scoped, tag = 'output window, operand 1']
    #allocation10 [shape = 's32[2]{0}', space=sflag, size = 0x8, scoped, tag = 'scoped memory for tpu_custom_call.1']
    %17 = vsyncpa [#allocation3], 0
    %s18 = scalar_lea.sflag [#allocation3], 1
    %19 = vsyncpa %s18, 0
    %20 = vsyncpa [#allocation6], 0
    %s21 = scalar_lea.sflag [#allocation6], 1
    %22 = vsyncpa %s21, 0
    %23 = vsyncpa [#allocation4], 0
    %s24 = scalar_lea.sflag [#allocation4], 1
    %25 = vsyncpa %s24, 0
    %26 = vsyncpa [#allocation10], 0
    %s27 = scalar_lea.sflag [#allocation10], 1
    %28 = vsyncpa %s27, 0
    loop: start=0, step=1, limit=4
    $region2: #{tpu_custom_call.1} parent=1 // loop_pre_header
      _
    $region3: #{tpu_custom_call.1} parent=1 // loop_header
      %s30 = sphi 0, %s34
      %p31 = scmp.ge.s32.totalorder %s30, 4
      %s40 = sphi 0, %s42
      %s43 = sphi 0, %s40
      %s44 = sphi 0, %s43
      %s60 = sphi 0, %s44
      %s66 = sphi 0, %s68
      %s69 = sphi 0, %s66
      %s70 = sphi 0, %s69
      %s86 = sphi 0, %s70
      %s92 = sphi 0, %s94
      %s95 = sphi 0, %s92
      %s96 = sphi 0, %s95
      %s112 = sphi 0, %s96
      %s116 = sphi 0, %s116
      %s118 = sphi 0, %s116
      %s119 = sphi 0, %s118
      %s133 = sphi 0, %s119
      %s137 = sphi 0, %s137
      %s139 = sphi 0, %s137
      %s140 = sphi 0, %s139
      %s154 = sphi 0, %s140
      %s158 = sphi 0, %s158
      %s160 = sphi 0, %s158
      %s161 = sphi 0, %s160
      %s175 = sphi 0, %s161
      %s179 = sphi 0, %s179
      %s181 = sphi 0, %s179
      %s182 = sphi 0, %s181
      %s196 = sphi 0, %s182
      %s200 = sphi 0, %s200
      %s202 = sphi 0, %s200
      %s203 = sphi 0, %s202
      %s217 = sphi 0, %s203
      %s221 = sphi 0, %s221
      %s223 = sphi 0, %s221
      %s224 = sphi 0, %s223
      %s238 = sphi 0, %s224
      %s242 = sphi 0, %s242
      %s244 = sphi 0, %s242
      %s245 = sphi 0, %s244
      %s259 = sphi 0, %s245
      %s265 = sphi 0, %s267
      %s268 = sphi 0, %s265
      %s269 = sphi 0, %s268
      %s285 = sphi 0, %s269
      %s291 = sphi 0, %s293
      %s294 = sphi 0, %s291
      %s295 = sphi 0, %s294
      %s311 = sphi 0, %s295
    $region4: #{tpu_custom_call.1} parent=1 // loop_header_branch
      %33 = sbr.rel (%p31) target = $region8
    $region5: #{tpu_custom_call.1} parent=1 // loop_body
      %s35 = ssub.s32 %s30, 1
      %s36 = ssub.s32 %s30, 2
      %s37 = sadd.s32 %s30, 1
      %s38 = ssub.s32 %s30, %s37
      %p39 = scmp.eq.s32.totalorder %s38, 0
      %s41 = sadd.s32 %s40, 1
      %s42 = scalar_select %p39, %s40, %s41
      %p45 = pneg %p39
      %p46 = scmp.eq.s32.totalorder %s30, 1
      %p47 = por %p45, %p46
      %p48 = scmp.ne.s32.totalorder %s40, %s43
      %p49 = scmp.eq.s32.totalorder %s30, 0
      %p50 = por %p48, %p49
      %p51 = scmp.ne.s32.totalorder %s40, %s43
      %p52 = scmp.eq.s32.totalorder %s35, 1
      %p53 = por %p51, %p52
      %p54 = scmp.ne.s32.totalorder %s43, %s44
      %p55 = scmp.eq.s32.totalorder %s35, 0
      %p56 = por %p54, %p55
      %p57 = scmp.ne.s32.totalorder %s43, %s44
      %p58 = scmp.eq.s32.totalorder %s36, 1
      %p59 = por %p57, %p58
      %p61 = scmp.ne.s32.totalorder %s44, %s60
      %p62 = scmp.eq.s32.totalorder %s36, 0
      %p63 = por %p61, %p62
      %s64 = ssub.s32 %s30, %s37
      %p65 = scmp.eq.s32.totalorder %s64, 0
      %s67 = sadd.s32 %s66, 1
      %s68 = scalar_select %p65, %s66, %s67
      %p71 = pneg %p65
      %p72 = scmp.eq.s32.totalorder %s30, 1
      %p73 = por %p71, %p72
      %p74 = scmp.ne.s32.totalorder %s66, %s69
      %p75 = scmp.eq.s32.totalorder %s30, 0
      %p76 = por %p74, %p75
      %p77 = scmp.ne.s32.totalorder %s66, %s69
      %p78 = scmp.eq.s32.totalorder %s35, 1
      %p79 = por %p77, %p78
      %p80 = scmp.ne.s32.totalorder %s69, %s70
      %p81 = scmp.eq.s32.totalorder %s35, 0
      %p82 = por %p80, %p81
      %p83 = scmp.ne.s32.totalorder %s69, %s70
      %p84 = scmp.eq.s32.totalorder %s36, 1
      %p85 = por %p83, %p84
      %p87 = scmp.ne.s32.totalorder %s70, %s86
      %p88 = scmp.eq.s32.totalorder %s36, 0
      %p89 = por %p87, %p88
      %s90 = ssub.s32 %s30, %s37
      %p91 = scmp.eq.s32.totalorder %s90, 0
      %s93 = sadd.s32 %s92, 1
      %s94 = scalar_select %p91, %s92, %s93
      %p97 = pneg %p91
      %p98 = scmp.eq.s32.totalorder %s30, 1
      %p99 = por %p97, %p98
      %p100 = scmp.ne.s32.totalorder %s92, %s95
      %p101 = scmp.eq.s32.totalorder %s30, 0
      %p102 = por %p100, %p101
      %p103 = scmp.ne.s32.totalorder %s92, %s95
      %p104 = scmp.eq.s32.totalorder %s35, 1
      %p105 = por %p103, %p104
      %p106 = scmp.ne.s32.totalorder %s95, %s96
      %p107 = scmp.eq.s32.totalorder %s35, 0
      %p108 = por %p106, %p107
      %p109 = scmp.ne.s32.totalorder %s95, %s96
      %p110 = scmp.eq.s32.totalorder %s36, 1
      %p111 = por %p109, %p110
      %p113 = scmp.ne.s32.totalorder %s96, %s112
      %p114 = scmp.eq.s32.totalorder %s36, 0
      %p115 = por %p113, %p114
      %s117 = sadd.s32 %s116, 1
      %p120 = scmp.eq.s32.totalorder %s30, 1
      %p121 = scmp.ne.s32.totalorder %s116, %s118
      %p122 = scmp.eq.s32.totalorder %s30, 0
      %p123 = por %p121, %p122
      %p124 = scmp.ne.s32.totalorder %s116, %s118
      %p125 = scmp.eq.s32.totalorder %s35, 1
      %p126 = por %p124, %p125
      %p127 = scmp.ne.s32.totalorder %s118, %s119
      %p128 = scmp.eq.s32.totalorder %s35, 0
      %p129 = por %p127, %p128
      %p130 = scmp.ne.s32.totalorder %s118, %s119
      %p131 = scmp.eq.s32.totalorder %s36, 1
      %p132 = por %p130, %p131
      %p134 = scmp.ne.s32.totalorder %s119, %s133
      %p135 = scmp.eq.s32.totalorder %s36, 0
      %p136 = por %p134, %p135
      %s138 = sadd.s32 %s137, 1
      %p141 = scmp.eq.s32.totalorder %s30, 1
      %p142 = scmp.ne.s32.totalorder %s137, %s139
      %p143 = scmp.eq.s32.totalorder %s30, 0
      %p144 = por %p142, %p143
      %p145 = scmp.ne.s32.totalorder %s137, %s139
      %p146 = scmp.eq.s32.totalorder %s35, 1
      %p147 = por %p145, %p146
      %p148 = scmp.ne.s32.totalorder %s139, %s140
      %p149 = scmp.eq.s32.totalorder %s35, 0
      %p150 = por %p148, %p149
      %p151 = scmp.ne.s32.totalorder %s139, %s140
      %p152 = scmp.eq.s32.totalorder %s36, 1
      %p153 = por %p151, %p152
      %p155 = scmp.ne.s32.totalorder %s140, %s154
      %p156 = scmp.eq.s32.totalorder %s36, 0
      %p157 = por %p155, %p156
      %s159 = sadd.s32 %s158, 1
      %p162 = scmp.eq.s32.totalorder %s30, 1
      %p163 = scmp.ne.s32.totalorder %s158, %s160
      %p164 = scmp.eq.s32.totalorder %s30, 0
      %p165 = por %p163, %p164
      %p166 = scmp.ne.s32.totalorder %s158, %s160
      %p167 = scmp.eq.s32.totalorder %s35, 1
      %p168 = por %p166, %p167
      %p169 = scmp.ne.s32.totalorder %s160, %s161
      %p170 = scmp.eq.s32.totalorder %s35, 0
      %p171 = por %p169, %p170
      %p172 = scmp.ne.s32.totalorder %s160, %s161
      %p173 = scmp.eq.s32.totalorder %s36, 1
      %p174 = por %p172, %p173
      %p176 = scmp.ne.s32.totalorder %s161, %s175
      %p177 = scmp.eq.s32.totalorder %s36, 0
      %p178 = por %p176, %p177
      %s180 = sadd.s32 %s179, 1
      %p183 = scmp.eq.s32.totalorder %s30, 1
      %p184 = scmp.ne.s32.totalorder %s179, %s181
      %p185 = scmp.eq.s32.totalorder %s30, 0
      %p186 = por %p184, %p185
      %p187 = scmp.ne.s32.totalorder %s179, %s181
      %p188 = scmp.eq.s32.totalorder %s35, 1
      %p189 = por %p187, %p188
      %p190 = scmp.ne.s32.totalorder %s181, %s182
      %p191 = scmp.eq.s32.totalorder %s35, 0
      %p192 = por %p190, %p191
      %p193 = scmp.ne.s32.totalorder %s181, %s182
      %p194 = scmp.eq.s32.totalorder %s36, 1
      %p195 = por %p193, %p194
      %p197 = scmp.ne.s32.totalorder %s182, %s196
      %p198 = scmp.eq.s32.totalorder %s36, 0
      %p199 = por %p197, %p198
      %s201 = sadd.s32 %s200, 1
      %p204 = scmp.eq.s32.totalorder %s30, 1
      %p205 = scmp.ne.s32.totalorder %s200, %s202
      %p206 = scmp.eq.s32.totalorder %s30, 0
      %p207 = por %p205, %p206
      %p208 = scmp.ne.s32.totalorder %s200, %s202
      %p209 = scmp.eq.s32.totalorder %s35, 1
      %p210 = por %p208, %p209
      %p211 = scmp.ne.s32.totalorder %s202, %s203
      %p212 = scmp.eq.s32.totalorder %s35, 0
      %p213 = por %p211, %p212
      %p214 = scmp.ne.s32.totalorder %s202, %s203
      %p215 = scmp.eq.s32.totalorder %s36, 1
      %p216 = por %p214, %p215
      %p218 = scmp.ne.s32.totalorder %s203, %s217
      %p219 = scmp.eq.s32.totalorder %s36, 0
      %p220 = por %p218, %p219
      %s222 = sadd.s32 %s221, 1
      %p225 = scmp.eq.s32.totalorder %s30, 1
      %p226 = scmp.ne.s32.totalorder %s221, %s223
      %p227 = scmp.eq.s32.totalorder %s30, 0
      %p228 = por %p226, %p227
      %p229 = scmp.ne.s32.totalorder %s221, %s223
      %p230 = scmp.eq.s32.totalorder %s35, 1
      %p231 = por %p229, %p230
      %p232 = scmp.ne.s32.totalorder %s223, %s224
      %p233 = scmp.eq.s32.totalorder %s35, 0
      %p234 = por %p232, %p233
      %p235 = scmp.ne.s32.totalorder %s223, %s224
      %p236 = scmp.eq.s32.totalorder %s36, 1
      %p237 = por %p235, %p236
      %p239 = scmp.ne.s32.totalorder %s224, %s238
      %p240 = scmp.eq.s32.totalorder %s36, 0
      %p241 = por %p239, %p240
      %s243 = sadd.s32 %s242, 1
      %p246 = scmp.eq.s32.totalorder %s30, 1
      %p247 = scmp.ne.s32.totalorder %s242, %s244
      %p248 = scmp.eq.s32.totalorder %s30, 0
      %p249 = por %p247, %p248
      %p250 = scmp.ne.s32.totalorder %s242, %s244
      %p251 = scmp.eq.s32.totalorder %s35, 1
      %p252 = por %p250, %p251
      %p253 = scmp.ne.s32.totalorder %s244, %s245
      %p254 = scmp.eq.s32.totalorder %s35, 0
      %p255 = por %p253, %p254
      %p256 = scmp.ne.s32.totalorder %s244, %s245
      %p257 = scmp.eq.s32.totalorder %s36, 1
      %p258 = por %p256, %p257
      %p260 = scmp.ne.s32.totalorder %s245, %s259
      %p261 = scmp.eq.s32.totalorder %s36, 0
      %p262 = por %p260, %p261
      %s263 = ssub.s32 %s30, %s37
      %p264 = scmp.eq.s32.totalorder %s263, 0
      %s266 = sadd.s32 %s265, 1
      %s267 = scalar_select %p264, %s265, %s266
      %p270 = pneg %p264
      %p271 = scmp.eq.s32.totalorder %s30, 1
      %p272 = por %p270, %p271
      %p273 = scmp.ne.s32.totalorder %s265, %s268
      %p274 = scmp.eq.s32.totalorder %s30, 0
      %p275 = por %p273, %p274
      %p276 = scmp.ne.s32.totalorder %s265, %s268
      %p277 = scmp.eq.s32.totalorder %s35, 1
      %p278 = por %p276, %p277
      %p279 = scmp.ne.s32.totalorder %s268, %s269
      %p280 = scmp.eq.s32.totalorder %s35, 0
      %p281 = por %p279, %p280
      %p282 = scmp.ne.s32.totalorder %s268, %s269
      %p283 = scmp.eq.s32.totalorder %s36, 1
      %p284 = por %p282, %p283
      %p286 = scmp.ne.s32.totalorder %s269, %s285
      %p287 = scmp.eq.s32.totalorder %s36, 0
      %p288 = por %p286, %p287
      %s289 = ssub.s32 %s30, %s37
      %p290 = scmp.eq.s32.totalorder %s289, 0
      %s292 = sadd.s32 %s291, 1
      %s293 = scalar_select %p290, %s291, %s292
      %p296 = pneg %p290
      %p297 = scmp.eq.s32.totalorder %s30, 1
      %p298 = por %p296, %p297
      %p299 = scmp.ne.s32.totalorder %s291, %s294
      %p300 = scmp.eq.s32.totalorder %s30, 0
      %p301 = por %p299, %p300
      %p302 = scmp.ne.s32.totalorder %s291, %s294
      %p303 = scmp.eq.s32.totalorder %s35, 1
      %p304 = por %p302, %p303
      %p305 = scmp.ne.s32.totalorder %s294, %s295
      %p306 = scmp.eq.s32.totalorder %s35, 0
      %p307 = por %p305, %p306
      %p308 = scmp.ne.s32.totalorder %s294, %s295
      %p309 = scmp.eq.s32.totalorder %s36, 1
      %p310 = por %p308, %p309
      %p312 = scmp.ne.s32.totalorder %s295, %s311
      %p313 = scmp.eq.s32.totalorder %s36, 0
      %p314 = por %p312, %p313
      %p315 = scmp.le.s32.totalorder 1, %s30
      %p316 = scmp.lt.s32.totalorder %s30, 3
      %p317 = pnand %p315, %p316
      %p318 = pneg %p317
      // Predicated region
      $region9: #{tpu_custom_call.1} parent=5 // pred_check
        _
      $region10: #{tpu_custom_call.1} parent=5 // pred_check_branch
        %320 = sbr.rel (%p317) target = $region12
      $region11: #{tpu_custom_call.1} parent=5 // pred_region
        %s321 = ssub.s32 %s30, 1
        // Predicated region
        $region13: #{tpu_custom_call.1} parent=11 // pred_check
          %p322 = pneg %p129
        $region14: #{tpu_custom_call.1} parent=11 // pred_check_branch
          %324 = sbr.rel (%p322) target = $region16
        $region15: #{tpu_custom_call.1} parent=11 // pred_region
          _
        $region16: #{tpu_custom_call.1} parent=11 // pred_fallthru
          _
        // Predicated region
        $region17: #{tpu_custom_call.1} parent=11 // pred_check
          %p325 = pneg %p150
        $region18: #{tpu_custom_call.1} parent=11 // pred_check_branch
          %327 = sbr.rel (%p325) target = $region20
        $region19: #{tpu_custom_call.1} parent=11 // pred_region
          _
        $region20: #{tpu_custom_call.1} parent=11 // pred_fallthru
          _
        // Predicated region
        $region21: #{tpu_custom_call.1} parent=11 // pred_check
          %p328 = pneg %p171
        $region22: #{tpu_custom_call.1} parent=11 // pred_check_branch
          %330 = sbr.rel (%p328) target = $region24
        $region23: #{tpu_custom_call.1} parent=11 // pred_region
          _
        $region24: #{tpu_custom_call.1} parent=11 // pred_fallthru
          _
        // Predicated region
        $region25: #{tpu_custom_call.1} parent=11 // pred_check
          %p331 = pneg %p192
        $region26: #{tpu_custom_call.1} parent=11 // pred_check_branch
          %333 = sbr.rel (%p331) target = $region28
        $region27: #{tpu_custom_call.1} parent=11 // pred_region
          _
        $region28: #{tpu_custom_call.1} parent=11 // pred_fallthru
          _
        // Predicated region
        $region29: #{tpu_custom_call.1} parent=11 // pred_check
          %p334 = pneg %p213
        $region30: #{tpu_custom_call.1} parent=11 // pred_check_branch
          %336 = sbr.rel (%p334) target = $region32
        $region31: #{tpu_custom_call.1} parent=11 // pred_region
          _
        $region32: #{tpu_custom_call.1} parent=11 // pred_fallthru
          _
        // Predicated region
        $region33: #{tpu_custom_call.1} parent=11 // pred_check
          %p337 = pneg %p234
        $region34: #{tpu_custom_call.1} parent=11 // pred_check_branch
          %339 = sbr.rel (%p337) target = $region36
        $region35: #{tpu_custom_call.1} parent=11 // pred_region
          _
        $region36: #{tpu_custom_call.1} parent=11 // pred_fallthru
          _
        // Predicated region
        $region37: #{tpu_custom_call.1} parent=11 // pred_check
          %p340 = pneg %p255
        $region38: #{tpu_custom_call.1} parent=11 // pred_check_branch
          %342 = sbr.rel (%p340) target = $region40
        $region39: #{tpu_custom_call.1} parent=11 // pred_region
          _
        $region40: #{tpu_custom_call.1} parent=11 // pred_fallthru
          _
      $region12: #{tpu_custom_call.1} parent=5 // pred_fallthru
        _
      %p343 = scmp.lt.s32.totalorder %s30, 2
      // Predicated region
      $region41: #{tpu_custom_call.1} parent=5 // pred_check
        %p344 = pneg %p343
      $region42: #{tpu_custom_call.1} parent=5 // pred_check_branch
        %346 = sbr.rel (%p344) target = $region44
      $region43: #{tpu_custom_call.1} parent=5 // pred_region
        // Predicated region
        $region45: #{tpu_custom_call.1} parent=43 // pred_check
          %p347 = pneg %p50
        $region46: #{tpu_custom_call.1} parent=43 // pred_check_branch
          %349 = sbr.rel (%p347) target = $region48
        $region47: #{tpu_custom_call.1} parent=43 // pred_region
          %s350 = sand.u32 %s40, 1
          %s351 = scalar_lea.sflag [#allocation3], %s350
          %s352 = sand.u32 %s40, 1
          %s353 = smul.addr %s352, 8
          %s354 = scalar_lea.vmem [#allocation2], %s353
          %s356 = ssub.s32 128, 128
          %357 = vsyncadd %s351, %s356
          %s358 = smul.addr %s30, 128
          %s359 = scalar_lea.hbm %s0, %s358
          %s361 = sshll.u32 %s354, 4
          %s362 = int_to_ptr.vmem [resolvable:$true] %s361
          %364 = dma.hbm_to_vmem [thread:$0]  %s359, 128, %s362, %s351
        $region48: #{tpu_custom_call.1} parent=43 // pred_fallthru
          _
        // Predicated region
        $region49: #{tpu_custom_call.1} parent=43 // pred_check
          %p365 = pneg %p76
        $region50: #{tpu_custom_call.1} parent=43 // pred_check_branch
          %367 = sbr.rel (%p365) target = $region52
        $region51: #{tpu_custom_call.1} parent=43 // pred_region
          %s368 = sand.u32 %s30, 1
          %s369 = scalar_lea.sflag [#allocation6], %s368
          %s370 = sand.u32 %s66, 1
          %s371 = smul.addr %s370, 8
          %s372 = scalar_lea.vmem [#allocation5], %s371
          %s374 = ssub.s32 128, 128
          %375 = vsyncadd %s369, %s374
          %s376 = smul.addr %s30, 128
          %s377 = scalar_lea.hbm %s1, %s376
          %s379 = sshll.u32 %s372, 4
          %s380 = int_to_ptr.vmem [resolvable:$true] %s379
          %382 = dma.hbm_to_vmem [thread:$0]  %s377, 128, %s380, %s369
        $region52: #{tpu_custom_call.1} parent=43 // pred_fallthru
          _
        // Predicated region
        $region53: #{tpu_custom_call.1} parent=43 // pred_check
          %p383 = pneg %p102
        $region54: #{tpu_custom_call.1} parent=43 // pred_check_branch
          %385 = sbr.rel (%p383) target = $region56
        $region55: #{tpu_custom_call.1} parent=43 // pred_region
          %s386 = sand.u32 %s30, 1
          %s387 = scalar_lea.sflag [#allocation6], %s386
          %s388 = sand.u32 %s92, 1
          %s389 = smul.addr %s388, 8
          %s390 = scalar_lea.vmem [#allocation7], %s389
          %s392 = ssub.s32 128, 128
          %393 = vsyncadd %s387, %s392
          %s394 = smul.addr %s30, 128
          %s395 = scalar_lea.hbm %s2, %s394
          %s397 = sshll.u32 %s390, 4
          %s398 = int_to_ptr.vmem [resolvable:$true] %s397
          %400 = dma.hbm_to_vmem [thread:$0]  %s395, 128, %s398, %s387
        $region56: #{tpu_custom_call.1} parent=43 // pred_fallthru
          _
      $region44: #{tpu_custom_call.1} parent=5 // pred_fallthru
        _
      %p401 = scmp.le.s32.totalorder 1, %s30
      %p402 = scmp.lt.s32.totalorder %s30, 3
      %p403 = pnand %p401, %p402
      %p404 = pneg %p403
      // Predicated region
      $region57: #{tpu_custom_call.1} parent=5 // pred_check
        _
      $region58: #{tpu_custom_call.1} parent=5 // pred_check_branch
        %406 = sbr.rel (%p403) target = $region60
      $region59: #{tpu_custom_call.1} parent=5 // pred_region
        %s407 = ssub.s32 %s30, 1
        %s408 = sand.u32 %s43, 1
        %s409 = scalar_lea.sflag [#allocation3], %s408
        %s410 = sand.u32 %s43, 1
        %s411 = smul.addr %s410, 8
        %s412 = scalar_lea.vmem [#allocation2], %s411
        // Predicated region
        $region61: #{tpu_custom_call.1} parent=59 // pred_check
          %p413 = pneg %p56
        $region62: #{tpu_custom_call.1} parent=59 // pred_check_branch
          %415 = sbr.rel (%p413) target = $region64
        $region63: #{tpu_custom_call.1} parent=59 // pred_region
          %416 = dma.done %s409, 128
        $region64: #{tpu_custom_call.1} parent=59 // pred_fallthru
          _
        %s417 = sand.u32 %s35, 1
        %s418 = scalar_lea.sflag [#allocation6], %s417
        %s419 = sand.u32 %s69, 1
        %s420 = smul.addr %s419, 8
        %s421 = scalar_lea.vmem [#allocation5], %s420
        // Predicated region
        $region65: #{tpu_custom_call.1} parent=59 // pred_check
          %p422 = pneg %p82
        $region66: #{tpu_custom_call.1} parent=59 // pred_check_branch
          %424 = sbr.rel (%p422) target = $region68
        $region67: #{tpu_custom_call.1} parent=59 // pred_region
          %425 = dma.done %s418, 128
        $region68: #{tpu_custom_call.1} parent=59 // pred_fallthru
          _
        %s426 = sand.u32 %s35, 1
        %s427 = scalar_lea.sflag [#allocation6], %s426
        %s428 = sand.u32 %s95, 1
        %s429 = smul.addr %s428, 8
        %s430 = scalar_lea.vmem [#allocation7], %s429
        // Predicated region
        $region69: #{tpu_custom_call.1} parent=59 // pred_check
          %p431 = pneg %p108
        $region70: #{tpu_custom_call.1} parent=59 // pred_check_branch
          %433 = sbr.rel (%p431) target = $region72
        $region71: #{tpu_custom_call.1} parent=59 // pred_region
          %434 = dma.done %s427, 128
        $region72: #{tpu_custom_call.1} parent=59 // pred_fallthru
          _
        %s435 = sand.u32 %s43, 1
        %s436 = scalar_lea.sflag [#allocation3], %s435
        %s437 = sand.u32 %s43, 1
        %s438 = smul.addr %s437, 8
        %s439 = scalar_lea.vmem [#allocation2], %s438
        %p440 = pneg %p56
        %p441 = pneg %p53
        %s442 = sand.u32 %s35, 1
        %s443 = scalar_lea.sflag [#allocation6], %s442
        %s444 = sand.u32 %s69, 1
        %s445 = smul.addr %s444, 8
        %s446 = scalar_lea.vmem [#allocation5], %s445
        %p447 = pneg %p82
        %p448 = pneg %p79
        %s449 = sand.u32 %s35, 1
        %s450 = scalar_lea.sflag [#allocation6], %s449
        %s451 = sand.u32 %s95, 1
        %s452 = smul.addr %s451, 8
        %s453 = scalar_lea.vmem [#allocation7], %s452
        %p454 = pneg %p108
        %p455 = pneg %p105
        %p456 = pneg %p129
        %p457 = pneg %p126
        %p458 = pneg %p150
        %p459 = pneg %p147
        %p460 = pneg %p171
        %p461 = pneg %p168
        %p462 = pneg %p192
        %p463 = pneg %p189
        %p464 = pneg %p213
        %p465 = pneg %p210
        %p466 = pneg %p234
        %p467 = pneg %p231
        %p468 = pneg %p255
        %p469 = pneg %p252
        %p470 = pneg %p281
        %p471 = pneg %p278
        %s472 = sand.u32 %s268, 1
        %s473 = scalar_lea.sflag [#allocation4], %s472
        %s474 = sand.u32 %s268, 1
        %s475 = smul.addr %s474, 8
        %s476 = scalar_lea.vmem [#allocation8], %s475
        %p477 = pneg %p307
        %p478 = pneg %p304
        %s479 = sand.u32 %s294, 1
        %s480 = scalar_lea.sflag [#allocation10], %s479
        %s481 = sand.u32 %s294, 1
        %s482 = smul.addr %s481, 32
        %s483 = scalar_lea.vmem [#allocation9], %s482
        %v484 = vld [vmem:[%s412] sm:$0xff]
        %v485 = vld [vmem:[%s421] sm:$0xff]
        %v486 = vld [vmem:[%s430] sm:$0xff]
        %v487 = vld [vmem:[%s3] sm:$0xff]
        %v488 = vld [vmem:[%s3 + $0x8] sm:$0xff]
        %v489 = vld [vmem:[%s3 + $0x10] sm:$0xff]
        %v490 = vld [vmem:[%s3 + $0x18] sm:$0xff]
        %vm491 = vcmask 261120
        %v493 = vsel %vm491, %v484, 0
        %495 = vmatprep.subr.mxu0 0.0
        %496 = vmatpush1.msra.mxu0 %v487
        %497 = vmatprep.subr.mxu0 0.0
        %498 = vmatpush1.msra.mxu0 %v488
        %499 = vmatprep.subr.mxu0 0.0
        %500 = vmatpush1.msra.mxu0 %v489
        %501 = vmatprep.subr.mxu0 0.0
        %502 = vmatpush1.msra.mxu0 %v490
        %503 = vmatprep.subr.mxu0 0.0
        %504 = vmatpush1.msra.mxu0 0.0
        %505 = vmatprep.subr.mxu0 0.0
        %506 = vmatpush1.msra.mxu0 0.0
        %507 = vmatprep.subr.mxu0 0.0
        %508 = vmatpush1.msra.mxu0 0.0
        %509 = vmatprep.subr.mxu0 0.0
        %510 = vmatpush1.msra.mxu0 0.0
        %511 = vmatprep.subr.mxu0 0.0
        %512 = vmatpush1.msra.mxu0 0.0
        %513 = vmatprep.subr.mxu0 0.0
        %514 = vmatpush1.msra.mxu0 0.0
        %515 = vmatprep.subr.mxu0 0.0
        %516 = vmatpush1.msra.mxu0 0.0
        %517 = vmatprep.subr.mxu0 0.0
        %518 = vmatpush1.msra.mxu0 0.0
        %519 = vmatprep.subr.mxu0 0.0
        %520 = vmatpush1.msra.mxu0 0.0
        %521 = vmatprep.subr.mxu0 0.0
        %522 = vmatpush1.msra.mxu0 0.0
        %523 = vmatprep.subr.mxu0 0.0
        %524 = vmatpush1.msra.mxu0 0.0
        %525 = vmatprep.subr.mxu0 0.0
        %526 = vmatpush1.msra.mxu0 0.0
        %527 = vmatprep.subr.mxu0 0.0
        %528 = vmatpush1.msra.mxu0 0.0
        %529 = vmatprep.subr.mxu0 0.0
        %530 = vmatpush1.msra.mxu0 0.0
        %531 = vmatprep.subr.mxu0 0.0
        %532 = vmatpush1.msra.mxu0 0.0
        %533 = vmatprep.subr.mxu0 0.0
        %534 = vmatpush1.msra.mxu0 0.0
        %535 = vmatprep.subr.mxu0 0.0
        %536 = vmatpush1.msra.mxu0 0.0
        %537 = vmatprep.subr.mxu0 0.0
        %538 = vmatpush1.msra.mxu0 0.0
        %539 = vmatprep.subr.mxu0 0.0
        %540 = vmatpush1.msra.mxu0 0.0
        %541 = vmatprep.subr.mxu0 0.0
        %542 = vmatpush1.msra.mxu0 0.0
        %543 = vmatprep.subr.mxu0 0.0
        %544 = vmatpush1.msra.mxu0 0.0
        %545 = vmatprep.subr.mxu0 0.0
        %546 = vmatpush1.msra.mxu0 0.0
        %547 = vmatprep.subr.mxu0 0.0
        %548 = vmatpush1.msra.mxu0 0.0
        %549 = vmatprep.subr.mxu0 0.0
        %550 = vmatpush1.msra.mxu0 0.0
        %551 = vmatprep.subr.mxu0 0.0
        %552 = vmatpush1.msra.mxu0 0.0
        %553 = vmatprep.subr.mxu0 0.0
        %554 = vmatpush1.msra.mxu0 0.0
        %555 = vmatprep.subr.mxu0 0.0
        %556 = vmatpush1.msra.mxu0 0.0
        %557 = vmatprep.subr.mxu0 0.0
        %558 = vmatpush1.msra.mxu0 0.0
        %559 = vmatprep.mubr.f32.mxu0 0.0
        %560 = vmatmul.mubr.f32.gmra.mrb[0].mxu0 %v493
        %v561 = vpop.f32.mrb[0].mxu0
        %v562 = vadd.f32 0.0, %v561
        %v563 = vpop.f32.mrb[0].mxu0
        %564 = vdwg.mxu0
        %v565 = vld [vmem:[%s4] sm:$0xff]
        %v566 = vld [vmem:[%s4 + $0x8] sm:$0xff]
        %v567 = vld [vmem:[%s4 + $0x10] sm:$0xff]
        %v568 = vld [vmem:[%s4 + $0x18] sm:$0xff]
        %v570 = vsel %vm491, %v485, 0
        %572 = vmatprep.subr.mxu0 0.0
        %573 = vmatpush1.msra.mxu0 %v565
        %574 = vmatprep.subr.mxu0 0.0
        %575 = vmatpush1.msra.mxu0 %v566
        %576 = vmatprep.subr.mxu0 0.0
        %577 = vmatpush1.msra.mxu0 %v567
        %578 = vmatprep.subr.mxu0 0.0
        %579 = vmatpush1.msra.mxu0 %v568
        %580 = vmatprep.subr.mxu0 0.0
        %581 = vmatpush1.msra.mxu0 0.0
        %582 = vmatprep.subr.mxu0 0.0
        %583 = vmatpush1.msra.mxu0 0.0
        %584 = vmatprep.subr.mxu0 0.0
        %585 = vmatpush1.msra.mxu0 0.0
        %586 = vmatprep.subr.mxu0 0.0
        %587 = vmatpush1.msra.mxu0 0.0
        %588 = vmatprep.subr.mxu0 0.0
        %589 = vmatpush1.msra.mxu0 0.0
        %590 = vmatprep.subr.mxu0 0.0
        %591 = vmatpush1.msra.mxu0 0.0
        %592 = vmatprep.subr.mxu0 0.0
        %593 = vmatpush1.msra.mxu0 0.0
        %594 = vmatprep.subr.mxu0 0.0
        %595 = vmatpush1.msra.mxu0 0.0
        %596 = vmatprep.subr.mxu0 0.0
        %597 = vmatpush1.msra.mxu0 0.0
        %598 = vmatprep.subr.mxu0 0.0
        %599 = vmatpush1.msra.mxu0 0.0
        %600 = vmatprep.subr.mxu0 0.0
        %601 = vmatpush1.msra.mxu0 0.0
        %602 = vmatprep.subr.mxu0 0.0
        %603 = vmatpush1.msra.mxu0 0.0
        %604 = vmatprep.subr.mxu0 0.0
        %605 = vmatpush1.msra.mxu0 0.0
        %606 = vmatprep.subr.mxu0 0.0
        %607 = vmatpush1.msra.mxu0 0.0
        %608 = vmatprep.subr.mxu0 0.0
        %609 = vmatpush1.msra.mxu0 0.0
        %610 = vmatprep.subr.mxu0 0.0
        %611 = vmatpush1.msra.mxu0 0.0
        %612 = vmatprep.subr.mxu0 0.0
        %613 = vmatpush1.msra.mxu0 0.0
        %614 = vmatprep.subr.mxu0 0.0
        %615 = vmatpush1.msra.mxu0 0.0
        %616 = vmatprep.subr.mxu0 0.0
        %617 = vmatpush1.msra.mxu0 0.0
        %618 = vmatprep.subr.mxu0 0.0
        %619 = vmatpush1.msra.mxu0 0.0
        %620 = vmatprep.subr.mxu0 0.0
        %621 = vmatpush1.msra.mxu0 0.0
        %622 = vmatprep.subr.mxu0 0.0
        %623 = vmatpush1.msra.mxu0 0.0
        %624 = vmatprep.subr.mxu0 0.0
        %625 = vmatpush1.msra.mxu0 0.0
        %626 = vmatprep.subr.mxu0 0.0
        %627 = vmatpush1.msra.mxu0 0.0
        %628 = vmatprep.subr.mxu0 0.0
        %629 = vmatpush1.msra.mxu0 0.0
        %630 = vmatprep.subr.mxu0 0.0
        %631 = vmatpush1.msra.mxu0 0.0
        %632 = vmatprep.subr.mxu0 0.0
        %633 = vmatpush1.msra.mxu0 0.0
        %634 = vmatprep.subr.mxu0 0.0
        %635 = vmatpush1.msra.mxu0 0.0
        %636 = vmatprep.mubr.f32.mxu0 0.0
        %637 = vmatmul.mubr.f32.gmra.mrb[0].mxu0 %v570
        %v638 = vpop.f32.mrb[0].mxu0
        %v639 = vadd.f32 0.0, %v638
        %v640 = vpop.f32.mrb[0].mxu0
        %641 = vdwg.mxu0
        %v642 = vld [vmem:[%s5] sm:$0xff]
        %v643 = vld [vmem:[%s5 + $0x8] sm:$0xff]
        %v644 = vld [vmem:[%s5 + $0x10] sm:$0xff]
        %v645 = vld [vmem:[%s5 + $0x18] sm:$0xff]
        %v647 = vsel %vm491, %v486, 0
        %649 = vmatprep.subr.mxu0 0.0
        %650 = vmatpush1.msra.mxu0 %v642
        %651 = vmatprep.subr.mxu0 0.0
        %652 = vmatpush1.msra.mxu0 %v643
        %653 = vmatprep.subr.mxu0 0.0
        %654 = vmatpush1.msra.mxu0 %v644
        %655 = vmatprep.subr.mxu0 0.0
        %656 = vmatpush1.msra.mxu0 %v645
        %657 = vmatprep.subr.mxu0 0.0
        %658 = vmatpush1.msra.mxu0 0.0
        %659 = vmatprep.subr.mxu0 0.0
        %660 = vmatpush1.msra.mxu0 0.0
        %661 = vmatprep.subr.mxu0 0.0
        %662 = vmatpush1.msra.mxu0 0.0
        %663 = vmatprep.subr.mxu0 0.0
        %664 = vmatpush1.msra.mxu0 0.0
        %665 = vmatprep.subr.mxu0 0.0
        %666 = vmatpush1.msra.mxu0 0.0
        %667 = vmatprep.subr.mxu0 0.0
        %668 = vmatpush1.msra.mxu0 0.0
        %669 = vmatprep.subr.mxu0 0.0
        %670 = vmatpush1.msra.mxu0 0.0
        %671 = vmatprep.subr.mxu0 0.0
        %672 = vmatpush1.msra.mxu0 0.0
        %673 = vmatprep.subr.mxu0 0.0
        %674 = vmatpush1.msra.mxu0 0.0
        %675 = vmatprep.subr.mxu0 0.0
        %676 = vmatpush1.msra.mxu0 0.0
        %677 = vmatprep.subr.mxu0 0.0
        %678 = vmatpush1.msra.mxu0 0.0
        %679 = vmatprep.subr.mxu0 0.0
        %680 = vmatpush1.msra.mxu0 0.0
        %681 = vmatprep.subr.mxu0 0.0
        %682 = vmatpush1.msra.mxu0 0.0
        %683 = vmatprep.subr.mxu0 0.0
        %684 = vmatpush1.msra.mxu0 0.0
        %685 = vmatprep.subr.mxu0 0.0
        %686 = vmatpush1.msra.mxu0 0.0
        %687 = vmatprep.subr.mxu0 0.0
        %688 = vmatpush1.msra.mxu0 0.0
        %689 = vmatprep.subr.mxu0 0.0
        %690 = vmatpush1.msra.mxu0 0.0
        %691 = vmatprep.subr.mxu0 0.0
        %692 = vmatpush1.msra.mxu0 0.0
        %693 = vmatprep.subr.mxu0 0.0
        %694 = vmatpush1.msra.mxu0 0.0
        %695 = vmatprep.subr.mxu0 0.0
        %696 = vmatpush1.msra.mxu0 0.0
        %697 = vmatprep.subr.mxu0 0.0
        %698 = vmatpush1.msra.mxu0 0.0
        %699 = vmatprep.subr.mxu0 0.0
        %700 = vmatpush1.msra.mxu0 0.0
        %701 = vmatprep.subr.mxu0 0.0
        %702 = vmatpush1.msra.mxu0 0.0
        %703 = vmatprep.subr.mxu0 0.0
        %704 = vmatpush1.msra.mxu0 0.0
        %705 = vmatprep.subr.mxu0 0.0
        %706 = vmatpush1.msra.mxu0 0.0
        %707 = vmatprep.subr.mxu0 0.0
        %708 = vmatpush1.msra.mxu0 0.0
        %709 = vmatprep.subr.mxu0 0.0
        %710 = vmatpush1.msra.mxu0 0.0
        %711 = vmatprep.subr.mxu0 0.0
        %712 = vmatpush1.msra.mxu0 0.0
        %713 = vmatprep.mubr.f32.mxu0 0.0
        %714 = vmatmul.mubr.f32.gmra.mrb[0].mxu0 %v647
        %v715 = vpop.f32.mrb[0].mxu0
        %v716 = vadd.f32 0.0, %v715
        %v717 = vpop.f32.mrb[0].mxu0
        %718 = vdwg.mxu0
        %v719 = vmul.f32 %v716, 0.35355338
        %721 = vrot.lane.b32.xlu0 %v719, 120
        %v722 = vpop.permute.xlu0 %721
        %724 = vrot.lane.b32.xlu0 %v719, 112
        %v725 = vpop.permute.xlu0 %724
        %727 = vrot.lane.b32.xlu0 %v719, 104
        %v728 = vpop.permute.xlu0 %727
        %v730 = vcombine.low %v719, %v725
        %v731 = vcombine.high %v719, %v725
        %v733 = vunpack.c.l.s4 1983009808
        %v734 = vunpack.c.0.s8 %v733
        %v735 = vlaneseq
        %v736 = vshrl.u32 %v735, 7
        %v737 = vsub.s32 %v734, %v736
        %v738 = vrot.slane %v730, %v737
        %v740 = vunpack.c.l.s4 1983009808
        %v741 = vunpack.c.0.s8 %v740
        %v742 = vlaneseq
        %v743 = vshrl.u32 %v742, 7
        %v744 = vsub.s32 %v741, %v743
        %v745 = vrot.slane %v731, %v744
        %v746 = vcombine.low %v722, %v728
        %v747 = vcombine.high %v722, %v728
        %v749 = vunpack.c.l.s4 1983009808
        %v750 = vunpack.c.0.s8 %v749
        %v751 = vlaneseq
        %v752 = vshrl.u32 %v751, 7
        %v753 = vsub.s32 %v750, %v752
        %v754 = vrot.slane %v746, %v753
        %v756 = vunpack.c.l.s4 1983009808
        %v757 = vunpack.c.0.s8 %v756
        %v758 = vlaneseq
        %v759 = vshrl.u32 %v758, 7
        %v760 = vsub.s32 %v757, %v759
        %v761 = vrot.slane %v747, %v760
        %v762 = vcombine.low %v738, %v754
        %v763 = vcombine.high %v738, %v754
        %v765 = vunpack.c.l.s4 1934713408
        %v766 = vunpack.c.0.s8 %v765
        %v767 = vlaneseq
        %v768 = vshrl.u32 %v767, 7
        %v769 = vsub.s32 %v766, %v768
        %v770 = vrot.slane %v762, %v769
        %v772 = vunpack.c.l.s4 1934713408
        %v773 = vunpack.c.0.s8 %v772
        %v774 = vlaneseq
        %v775 = vshrl.u32 %v774, 7
        %v776 = vsub.s32 %v773, %v775
        %v777 = vrot.slane %v763, %v776
        %v778 = vcombine.low %v745, %v761
        %v779 = vcombine.high %v745, %v761
        %v781 = vunpack.c.l.s4 1934713408
        %v782 = vunpack.c.0.s8 %v781
        %v783 = vlaneseq
        %v784 = vshrl.u32 %v783, 7
        %v785 = vsub.s32 %v782, %v784
        %v786 = vrot.slane %v778, %v785
        %v788 = vunpack.c.l.s4 1934713408
        %v789 = vunpack.c.0.s8 %v788
        %v790 = vlaneseq
        %v791 = vshrl.u32 %v790, 7
        %v792 = vsub.s32 %v789, %v791
        %v793 = vrot.slane %v779, %v792
        %v794 = vcombine.high %v770, 0.0
        %v795 = vcombine.high %v777, 0.0
        %v796 = vcombine.high %v786, 0.0
        %v797 = vcombine.high %v793, 0.0
        %v798 = vcombine.low %v770, %v777
        %v800 = vunpack.c.l.s4 1983009808
        %v801 = vunpack.c.0.s8 %v800
        %v802 = vlaneseq
        %v803 = vshrl.u32 %v802, 7
        %v804 = vsub.s32 %v801, %v803
        %v805 = vrot.slane %v798, %v804
        %v806 = vcombine.low %v794, %v795
        %v808 = vunpack.c.l.s4 1983009808
        %v809 = vunpack.c.0.s8 %v808
        %v810 = vlaneseq
        %v811 = vshrl.u32 %v810, 7
        %v812 = vsub.s32 %v809, %v811
        %v813 = vrot.slane %v806, %v812
        %v814 = vcombine.low %v786, %v793
        %v816 = vunpack.c.l.s4 1983009808
        %v817 = vunpack.c.0.s8 %v816
        %v818 = vlaneseq
        %v819 = vshrl.u32 %v818, 7
        %v820 = vsub.s32 %v817, %v819
        %v821 = vrot.slane %v814, %v820
        %v822 = vcombine.low %v796, %v797
        %v824 = vunpack.c.l.s4 1983009808
        %v825 = vunpack.c.0.s8 %v824
        %v826 = vlaneseq
        %v827 = vshrl.u32 %v826, 7
        %v828 = vsub.s32 %v825, %v827
        %v829 = vrot.slane %v822, %v828
        %v830 = vcombine.low %v805, %v813
        %v831 = vcombine.high %v805, %v813
        %v833 = vunpack.c.l.s4 1934713408
        %v834 = vunpack.c.0.s8 %v833
        %v835 = vlaneseq
        %v836 = vshrl.u32 %v835, 7
        %v837 = vsub.s32 %v834, %v836
        %v838 = vrot.slane %v830, %v837
        %v840 = vunpack.c.l.s4 1934713408
        %v841 = vunpack.c.0.s8 %v840
        %v842 = vlaneseq
        %v843 = vshrl.u32 %v842, 7
        %v844 = vsub.s32 %v841, %v843
        %v845 = vrot.slane %v831, %v844
        %v846 = vcombine.low %v821, %v829
        %v847 = vcombine.high %v821, %v829
        %v849 = vunpack.c.l.s4 1934713408
        %v850 = vunpack.c.0.s8 %v849
        %v851 = vlaneseq
        %v852 = vshrl.u32 %v851, 7
        %v853 = vsub.s32 %v850, %v852
        %v854 = vrot.slane %v846, %v853
        %v856 = vunpack.c.l.s4 1934713408
        %v857 = vunpack.c.0.s8 %v856
        %v858 = vlaneseq
        %v859 = vshrl.u32 %v858, 7
        %v860 = vsub.s32 %v857, %v859
        %v861 = vrot.slane %v847, %v860
        %v862 = vcombine.low %v838, %v854
        %v863 = vcombine.high %v838, %v854
        %v864 = vcombine.low %v845, %v861
        %v865 = vcombine.high %v845, %v861
        %867 = vrot.lane.b32.xlu0 %v562, 120
        %v868 = vpop.permute.xlu0 %867
        %870 = vrot.lane.b32.xlu0 %v562, 112
        %v871 = vpop.permute.xlu0 %870
        %873 = vrot.lane.b32.xlu0 %v562, 104
        %v874 = vpop.permute.xlu0 %873
        %v876 = vcombine.low %v562, %v871
        %v877 = vcombine.high %v562, %v871
        %v879 = vunpack.c.l.s4 1983009808
        %v880 = vunpack.c.0.s8 %v879
        %v881 = vlaneseq
        %v882 = vshrl.u32 %v881, 7
        %v883 = vsub.s32 %v880, %v882
        %v884 = vrot.slane %v876, %v883
        %v886 = vunpack.c.l.s4 1983009808
        %v887 = vunpack.c.0.s8 %v886
        %v888 = vlaneseq
        %v889 = vshrl.u32 %v888, 7
        %v890 = vsub.s32 %v887, %v889
        %v891 = vrot.slane %v877, %v890
        %v892 = vcombine.low %v868, %v874
        %v893 = vcombine.high %v868, %v874
        %v895 = vunpack.c.l.s4 1983009808
        %v896 = vunpack.c.0.s8 %v895
        %v897 = vlaneseq
        %v898 = vshrl.u32 %v897, 7
        %v899 = vsub.s32 %v896, %v898
        %v900 = vrot.slane %v892, %v899
        %v902 = vunpack.c.l.s4 1983009808
        %v903 = vunpack.c.0.s8 %v902
        %v904 = vlaneseq
        %v905 = vshrl.u32 %v904, 7
        %v906 = vsub.s32 %v903, %v905
        %v907 = vrot.slane %v893, %v906
        %v908 = vcombine.low %v884, %v900
        %v909 = vcombine.high %v884, %v900
        %v911 = vunpack.c.l.s4 1934713408
        %v912 = vunpack.c.0.s8 %v911
        %v913 = vlaneseq
        %v914 = vshrl.u32 %v913, 7
        %v915 = vsub.s32 %v912, %v914
        %v916 = vrot.slane %v908, %v915
        %v918 = vunpack.c.l.s4 1934713408
        %v919 = vunpack.c.0.s8 %v918
        %v920 = vlaneseq
        %v921 = vshrl.u32 %v920, 7
        %v922 = vsub.s32 %v919, %v921
        %v923 = vrot.slane %v909, %v922
        %v924 = vcombine.low %v891, %v907
        %v925 = vcombine.high %v891, %v907
        %v927 = vunpack.c.l.s4 1934713408
        %v928 = vunpack.c.0.s8 %v927
        %v929 = vlaneseq
        %v930 = vshrl.u32 %v929, 7
        %v931 = vsub.s32 %v928, %v930
        %v932 = vrot.slane %v924, %v931
        %v934 = vunpack.c.l.s4 1934713408
        %v935 = vunpack.c.0.s8 %v934
        %v936 = vlaneseq
        %v937 = vshrl.u32 %v936, 7
        %v938 = vsub.s32 %v935, %v937
        %v939 = vrot.slane %v925, %v938
        %v940 = vcombine.high %v916, 0.0
        %v941 = vcombine.high %v923, 0.0
        %v942 = vcombine.high %v932, 0.0
        %v943 = vcombine.high %v939, 0.0
        %v944 = vcombine.low %v916, %v923
        %v946 = vunpack.c.l.s4 1983009808
        %v947 = vunpack.c.0.s8 %v946
        %v948 = vlaneseq
        %v949 = vshrl.u32 %v948, 7
        %v950 = vsub.s32 %v947, %v949
        %v951 = vrot.slane %v944, %v950
        %v952 = vcombine.low %v940, %v941
        %v954 = vunpack.c.l.s4 1983009808
        %v955 = vunpack.c.0.s8 %v954
        %v956 = vlaneseq
        %v957 = vshrl.u32 %v956, 7
        %v958 = vsub.s32 %v955, %v957
        %v959 = vrot.slane %v952, %v958
        %v960 = vcombine.low %v932, %v939
        %v962 = vunpack.c.l.s4 1983009808
        %v963 = vunpack.c.0.s8 %v962
        %v964 = vlaneseq
        %v965 = vshrl.u32 %v964, 7
        %v966 = vsub.s32 %v963, %v965
        %v967 = vrot.slane %v960, %v966
        %v968 = vcombine.low %v942, %v943
        %v970 = vunpack.c.l.s4 1983009808
        %v971 = vunpack.c.0.s8 %v970
        %v972 = vlaneseq
        %v973 = vshrl.u32 %v972, 7
        %v974 = vsub.s32 %v971, %v973
        %v975 = vrot.slane %v968, %v974
        %v976 = vcombine.low %v951, %v959
        %v977 = vcombine.high %v951, %v959
        %v979 = vunpack.c.l.s4 1934713408
        %v980 = vunpack.c.0.s8 %v979
        %v981 = vlaneseq
        %v982 = vshrl.u32 %v981, 7
        %v983 = vsub.s32 %v980, %v982
        %v984 = vrot.slane %v976, %v983
        %v986 = vunpack.c.l.s4 1934713408
        %v987 = vunpack.c.0.s8 %v986
        %v988 = vlaneseq
        %v989 = vshrl.u32 %v988, 7
        %v990 = vsub.s32 %v987, %v989
        %v991 = vrot.slane %v977, %v990
        %v992 = vcombine.low %v967, %v975
        %v993 = vcombine.high %v967, %v975
        %v995 = vunpack.c.l.s4 1934713408
        %v996 = vunpack.c.0.s8 %v995
        %v997 = vlaneseq
        %v998 = vshrl.u32 %v997, 7
        %v999 = vsub.s32 %v996, %v998
        %v1000 = vrot.slane %v992, %v999
        %v1002 = vunpack.c.l.s4 1934713408
        %v1003 = vunpack.c.0.s8 %v1002
        %v1004 = vlaneseq
        %v1005 = vshrl.u32 %v1004, 7
        %v1006 = vsub.s32 %v1003, %v1005
        %v1007 = vrot.slane %v993, %v1006
        %v1008 = vcombine.low %v984, %v1000
        %v1009 = vcombine.high %v984, %v1000
        %v1010 = vcombine.low %v991, %v1007
        %v1011 = vcombine.high %v991, %v1007
        %1013 = vrot.lane.b32.xlu0 %v639, 120
        %v1014 = vpop.permute.xlu0 %1013
        %1016 = vrot.lane.b32.xlu0 %v639, 112
        %v1017 = vpop.permute.xlu0 %1016
        %1019 = vrot.lane.b32.xlu0 %v639, 104
        %v1020 = vpop.permute.xlu0 %1019
        %v1022 = vcombine.low %v639, %v1017
        %v1023 = vcombine.high %v639, %v1017
        %v1025 = vunpack.c.l.s4 1983009808
        %v1026 = vunpack.c.0.s8 %v1025
        %v1027 = vlaneseq
        %v1028 = vshrl.u32 %v1027, 7
        %v1029 = vsub.s32 %v1026, %v1028
        %v1030 = vrot.slane %v1022, %v1029
        %v1032 = vunpack.c.l.s4 1983009808
        %v1033 = vunpack.c.0.s8 %v1032
        %v1034 = vlaneseq
        %v1035 = vshrl.u32 %v1034, 7
        %v1036 = vsub.s32 %v1033, %v1035
        %v1037 = vrot.slane %v1023, %v1036
        %v1038 = vcombine.low %v1014, %v1020
        %v1039 = vcombine.high %v1014, %v1020
        %v1041 = vunpack.c.l.s4 1983009808
        %v1042 = vunpack.c.0.s8 %v1041
        %v1043 = vlaneseq
        %v1044 = vshrl.u32 %v1043, 7
        %v1045 = vsub.s32 %v1042, %v1044
        %v1046 = vrot.slane %v1038, %v1045
        %v1048 = vunpack.c.l.s4 1983009808
        %v1049 = vunpack.c.0.s8 %v1048
        %v1050 = vlaneseq
        %v1051 = vshrl.u32 %v1050, 7
        %v1052 = vsub.s32 %v1049, %v1051
        %v1053 = vrot.slane %v1039, %v1052
        %v1054 = vcombine.low %v1030, %v1046
        %v1055 = vcombine.high %v1030, %v1046
        %v1057 = vunpack.c.l.s4 1934713408
        %v1058 = vunpack.c.0.s8 %v1057
        %v1059 = vlaneseq
        %v1060 = vshrl.u32 %v1059, 7
        %v1061 = vsub.s32 %v1058, %v1060
        %v1062 = vrot.slane %v1054, %v1061
        %v1064 = vunpack.c.l.s4 1934713408
        %v1065 = vunpack.c.0.s8 %v1064
        %v1066 = vlaneseq
        %v1067 = vshrl.u32 %v1066, 7
        %v1068 = vsub.s32 %v1065, %v1067
        %v1069 = vrot.slane %v1055, %v1068
        %v1070 = vcombine.low %v1037, %v1053
        %v1071 = vcombine.high %v1037, %v1053
        %v1073 = vunpack.c.l.s4 1934713408
        %v1074 = vunpack.c.0.s8 %v1073
        %v1075 = vlaneseq
        %v1076 = vshrl.u32 %v1075, 7
        %v1077 = vsub.s32 %v1074, %v1076
        %v1078 = vrot.slane %v1070, %v1077
        %v1080 = vunpack.c.l.s4 1934713408
        %v1081 = vunpack.c.0.s8 %v1080
        %v1082 = vlaneseq
        %v1083 = vshrl.u32 %v1082, 7
        %v1084 = vsub.s32 %v1081, %v1083
        %v1085 = vrot.slane %v1071, %v1084
        %v1086 = vcombine.high %v1062, 0.0
        %v1087 = vcombine.high %v1069, 0.0
        %v1088 = vcombine.high %v1078, 0.0
        %v1089 = vcombine.high %v1085, 0.0
        %v1090 = vcombine.low %v1062, %v1069
        %v1092 = vunpack.c.l.s4 1983009808
        %v1093 = vunpack.c.0.s8 %v1092
        %v1094 = vlaneseq
        %v1095 = vshrl.u32 %v1094, 7
        %v1096 = vsub.s32 %v1093, %v1095
        %v1097 = vrot.slane %v1090, %v1096
        %v1098 = vcombine.low %v1086, %v1087
        %v1100 = vunpack.c.l.s4 1983009808
        %v1101 = vunpack.c.0.s8 %v1100
        %v1102 = vlaneseq
        %v1103 = vshrl.u32 %v1102, 7
        %v1104 = vsub.s32 %v1101, %v1103
        %v1105 = vrot.slane %v1098, %v1104
        %v1106 = vcombine.low %v1078, %v1085
        %v1108 = vunpack.c.l.s4 1983009808
        %v1109 = vunpack.c.0.s8 %v1108
        %v1110 = vlaneseq
        %v1111 = vshrl.u32 %v1110, 7
        %v1112 = vsub.s32 %v1109, %v1111
        %v1113 = vrot.slane %v1106, %v1112
        %v1114 = vcombine.low %v1088, %v1089
        %v1116 = vunpack.c.l.s4 1983009808
        %v1117 = vunpack.c.0.s8 %v1116
        %v1118 = vlaneseq
        %v1119 = vshrl.u32 %v1118, 7
        %v1120 = vsub.s32 %v1117, %v1119
        %v1121 = vrot.slane %v1114, %v1120
        %v1122 = vcombine.low %v1097, %v1105
        %v1123 = vcombine.high %v1097, %v1105
        %v1125 = vunpack.c.l.s4 1934713408
        %v1126 = vunpack.c.0.s8 %v1125
        %v1127 = vlaneseq
        %v1128 = vshrl.u32 %v1127, 7
        %v1129 = vsub.s32 %v1126, %v1128
        %v1130 = vrot.slane %v1122, %v1129
        %v1132 = vunpack.c.l.s4 1934713408
        %v1133 = vunpack.c.0.s8 %v1132
        %v1134 = vlaneseq
        %v1135 = vshrl.u32 %v1134, 7
        %v1136 = vsub.s32 %v1133, %v1135
        %v1137 = vrot.slane %v1123, %v1136
        %v1138 = vcombine.low %v1113, %v1121
        %v1139 = vcombine.high %v1113, %v1121
        %v1141 = vunpack.c.l.s4 1934713408
        %v1142 = vunpack.c.0.s8 %v1141
        %v1143 = vlaneseq
        %v1144 = vshrl.u32 %v1143, 7
        %v1145 = vsub.s32 %v1142, %v1144
        %v1146 = vrot.slane %v1138, %v1145
        %v1148 = vunpack.c.l.s4 1934713408
        %v1149 = vunpack.c.0.s8 %v1148
        %v1150 = vlaneseq
        %v1151 = vshrl.u32 %v1150, 7
        %v1152 = vsub.s32 %v1149, %v1151
        %v1153 = vrot.slane %v1139, %v1152
        %v1154 = vcombine.low %v1130, %v1146
        %v1155 = vcombine.high %v1130, %v1146
        %v1156 = vcombine.low %v1137, %v1153
        %v1157 = vcombine.high %v1137, %v1153
        %vm1158 = vcmask 64512
        %v1160 = vsel %vm1158, %v862, 0
        %v1163 = vsel %vm1158, %v1008, 0
        %1165 = vmatprep.subr.mxu0 0.0
        %1166 = vmatpush1.xpose.msra.mxu0 %v1163
        %1167 = vmatprep.subr.mxu0 0.0
        %1168 = vmatpush1.xpose.msra.mxu0 0.0
        %1169 = vmatprep.subr.mxu0 0.0
        %1170 = vmatpush1.xpose.msra.mxu0 0.0
        %1171 = vmatprep.subr.mxu0 0.0
        %1172 = vmatpush1.xpose.msra.mxu0 0.0
        %1173 = vmatprep.subr.mxu0 0.0
        %1174 = vmatpush1.xpose.msra.mxu0 0.0
        %1175 = vmatprep.subr.mxu0 0.0
        %1176 = vmatpush1.xpose.msra.mxu0 0.0
        %1177 = vmatprep.subr.mxu0 0.0
        %1178 = vmatpush1.xpose.msra.mxu0 0.0
        %1179 = vmatprep.subr.mxu0 0.0
        %1180 = vmatpush1.xpose.msra.mxu0 0.0
        %1181 = vmatprep.subr.mxu0 0.0
        %1182 = vmatpush1.xpose.msra.mxu0 0.0
        %1183 = vmatprep.subr.mxu0 0.0
        %1184 = vmatpush1.xpose.msra.mxu0 0.0
        %1185 = vmatprep.subr.mxu0 0.0
        %1186 = vmatpush1.xpose.msra.mxu0 0.0
        %1187 = vmatprep.subr.mxu0 0.0
        %1188 = vmatpush1.xpose.msra.mxu0 0.0
        %1189 = vmatprep.subr.mxu0 0.0
        %1190 = vmatpush1.xpose.msra.mxu0 0.0
        %1191 = vmatprep.subr.mxu0 0.0
        %1192 = vmatpush1.xpose.msra.mxu0 0.0
        %1193 = vmatprep.subr.mxu0 0.0
        %1194 = vmatpush1.xpose.msra.mxu0 0.0
        %1195 = vmatprep.subr.mxu0 0.0
        %1196 = vmatpush1.xpose.msra.mxu0 0.0
        %1197 = vmatprep.subr.mxu0 0.0
        %1198 = vmatpush1.xpose.msra.mxu0 0.0
        %1199 = vmatprep.subr.mxu0 0.0
        %1200 = vmatpush1.xpose.msra.mxu0 0.0
        %1201 = vmatprep.subr.mxu0 0.0
        %1202 = vmatpush1.xpose.msra.mxu0 0.0
        %1203 = vmatprep.subr.mxu0 0.0
        %1204 = vmatpush1.xpose.msra.mxu0 0.0
        %1205 = vmatprep.subr.mxu0 0.0
        %1206 = vmatpush1.xpose.msra.mxu0 0.0
        %1207 = vmatprep.subr.mxu0 0.0
        %1208 = vmatpush1.xpose.msra.mxu0 0.0
        %1209 = vmatprep.subr.mxu0 0.0
        %1210 = vmatpush1.xpose.msra.mxu0 0.0
        %1211 = vmatprep.subr.mxu0 0.0
        %1212 = vmatpush1.xpose.msra.mxu0 0.0
        %1213 = vmatprep.subr.mxu0 0.0
        %1214 = vmatpush1.xpose.msra.mxu0 0.0
        %1215 = vmatprep.subr.mxu0 0.0
        %1216 = vmatpush1.xpose.msra.mxu0 0.0
        %1217 = vmatprep.subr.mxu0 0.0
        %1218 = vmatpush1.xpose.msra.mxu0 0.0
        %1219 = vmatprep.subr.mxu0 0.0
        %1220 = vmatpush1.xpose.msra.mxu0 0.0
        %1221 = vmatprep.subr.mxu0 0.0
        %1222 = vmatpush1.xpose.msra.mxu0 0.0
        %1223 = vmatprep.subr.mxu0 0.0
        %1224 = vmatpush1.xpose.msra.mxu0 0.0
        %1225 = vmatprep.subr.mxu0 0.0
        %1226 = vmatpush1.xpose.msra.mxu0 0.0
        %1227 = vmatprep.subr.mxu0 0.0
        %1228 = vmatpush1.xpose.msra.mxu0 0.0
        %1229 = vmatprep.mubr.f32.mxu0 0.0
        %1230 = vmatmul.mubr.f32.gmra.mrb[0].mxu0 %v1160
        %v1231 = vpop.f32.mrb[0].mxu0
        %v1232 = vadd.f32 0.0, %v1231
        %v1233 = vpop.f32.mrb[0].mxu0
        %1234 = vdwg.mxu0
        %v1236 = vsel %vm1158, %v863, 0
        %v1239 = vsel %vm1158, %v1009, 0
        %1241 = vmatprep.subr.mxu0 0.0
        %1242 = vmatpush1.xpose.msra.mxu0 %v1239
        %1243 = vmatprep.subr.mxu0 0.0
        %1244 = vmatpush1.xpose.msra.mxu0 0.0
        %1245 = vmatprep.subr.mxu0 0.0
        %1246 = vmatpush1.xpose.msra.mxu0 0.0
        %1247 = vmatprep.subr.mxu0 0.0
        %1248 = vmatpush1.xpose.msra.mxu0 0.0
        %1249 = vmatprep.subr.mxu0 0.0
        %1250 = vmatpush1.xpose.msra.mxu0 0.0
        %1251 = vmatprep.subr.mxu0 0.0
        %1252 = vmatpush1.xpose.msra.mxu0 0.0
        %1253 = vmatprep.subr.mxu0 0.0
        %1254 = vmatpush1.xpose.msra.mxu0 0.0
        %1255 = vmatprep.subr.mxu0 0.0
        %1256 = vmatpush1.xpose.msra.mxu0 0.0
        %1257 = vmatprep.subr.mxu0 0.0
        %1258 = vmatpush1.xpose.msra.mxu0 0.0
        %1259 = vmatprep.subr.mxu0 0.0
        %1260 = vmatpush1.xpose.msra.mxu0 0.0
        %1261 = vmatprep.subr.mxu0 0.0
        %1262 = vmatpush1.xpose.msra.mxu0 0.0
        %1263 = vmatprep.subr.mxu0 0.0
        %1264 = vmatpush1.xpose.msra.mxu0 0.0
        %1265 = vmatprep.subr.mxu0 0.0
        %1266 = vmatpush1.xpose.msra.mxu0 0.0
        %1267 = vmatprep.subr.mxu0 0.0
        %1268 = vmatpush1.xpose.msra.mxu0 0.0
        %1269 = vmatprep.subr.mxu0 0.0
        %1270 = vmatpush1.xpose.msra.mxu0 0.0
        %1271 = vmatprep.subr.mxu0 0.0
        %1272 = vmatpush1.xpose.msra.mxu0 0.0
        %1273 = vmatprep.subr.mxu0 0.0
        %1274 = vmatpush1.xpose.msra.mxu0 0.0
        %1275 = vmatprep.subr.mxu0 0.0
        %1276 = vmatpush1.xpose.msra.mxu0 0.0
        %1277 = vmatprep.subr.mxu0 0.0
        %1278 = vmatpush1.xpose.msra.mxu0 0.0
        %1279 = vmatprep.subr.mxu0 0.0
        %1280 = vmatpush1.xpose.msra.mxu0 0.0
        %1281 = vmatprep.subr.mxu0 0.0
        %1282 = vmatpush1.xpose.msra.mxu0 0.0
        %1283 = vmatprep.subr.mxu0 0.0
        %1284 = vmatpush1.xpose.msra.mxu0 0.0
        %1285 = vmatprep.subr.mxu0 0.0
        %1286 = vmatpush1.xpose.msra.mxu0 0.0
        %1287 = vmatprep.subr.mxu0 0.0
        %1288 = vmatpush1.xpose.msra.mxu0 0.0
        %1289 = vmatprep.subr.mxu0 0.0
        %1290 = vmatpush1.xpose.msra.mxu0 0.0
        %1291 = vmatprep.subr.mxu0 0.0
        %1292 = vmatpush1.xpose.msra.mxu0 0.0
        %1293 = vmatprep.subr.mxu0 0.0
        %1294 = vmatpush1.xpose.msra.mxu0 0.0
        %1295 = vmatprep.subr.mxu0 0.0
        %1296 = vmatpush1.xpose.msra.mxu0 0.0
        %1297 = vmatprep.subr.mxu0 0.0
        %1298 = vmatpush1.xpose.msra.mxu0 0.0
        %1299 = vmatprep.subr.mxu0 0.0
        %1300 = vmatpush1.xpose.msra.mxu0 0.0
        %1301 = vmatprep.subr.mxu0 0.0
        %1302 = vmatpush1.xpose.msra.mxu0 0.0
        %1303 = vmatprep.subr.mxu0 0.0
        %1304 = vmatpush1.xpose.msra.mxu0 0.0
        %1305 = vmatprep.mubr.f32.mxu0 0.0
        %1306 = vmatmul.mubr.f32.gmra.mrb[0].mxu0 %v1236
        %v1307 = vpop.f32.mrb[0].mxu0
        %v1308 = vadd.f32 0.0, %v1307
        %v1309 = vpop.f32.mrb[0].mxu0
        %1310 = vdwg.mxu0
        %v1312 = vsel %vm1158, %v864, 0
        %v1315 = vsel %vm1158, %v1010, 0
        %1317 = vmatprep.subr.mxu0 0.0
        %1318 = vmatpush1.xpose.msra.mxu0 %v1315
        %1319 = vmatprep.subr.mxu0 0.0
        %1320 = vmatpush1.xpose.msra.mxu0 0.0
        %1321 = vmatprep.subr.mxu0 0.0
        %1322 = vmatpush1.xpose.msra.mxu0 0.0
        %1323 = vmatprep.subr.mxu0 0.0
        %1324 = vmatpush1.xpose.msra.mxu0 0.0
        %1325 = vmatprep.subr.mxu0 0.0
        %1326 = vmatpush1.xpose.msra.mxu0 0.0
        %1327 = vmatprep.subr.mxu0 0.0
        %1328 = vmatpush1.xpose.msra.mxu0 0.0
        %1329 = vmatprep.subr.mxu0 0.0
        %1330 = vmatpush1.xpose.msra.mxu0 0.0
        %1331 = vmatprep.subr.mxu0 0.0
        %1332 = vmatpush1.xpose.msra.mxu0 0.0
        %1333 = vmatprep.subr.mxu0 0.0
        %1334 = vmatpush1.xpose.msra.mxu0 0.0
        %1335 = vmatprep.subr.mxu0 0.0
        %1336 = vmatpush1.xpose.msra.mxu0 0.0
        %1337 = vmatprep.subr.mxu0 0.0
        %1338 = vmatpush1.xpose.msra.mxu0 0.0
        %1339 = vmatprep.subr.mxu0 0.0
        %1340 = vmatpush1.xpose.msra.mxu0 0.0
        %1341 = vmatprep.subr.mxu0 0.0
        %1342 = vmatpush1.xpose.msra.mxu0 0.0
        %1343 = vmatprep.subr.mxu0 0.0
        %1344 = vmatpush1.xpose.msra.mxu0 0.0
        %1345 = vmatprep.subr.mxu0 0.0
        %1346 = vmatpush1.xpose.msra.mxu0 0.0
        %1347 = vmatprep.subr.mxu0 0.0
        %1348 = vmatpush1.xpose.msra.mxu0 0.0
        %1349 = vmatprep.subr.mxu0 0.0
        %1350 = vmatpush1.xpose.msra.mxu0 0.0
        %1351 = vmatprep.subr.mxu0 0.0
        %1352 = vmatpush1.xpose.msra.mxu0 0.0
        %1353 = vmatprep.subr.mxu0 0.0
        %1354 = vmatpush1.xpose.msra.mxu0 0.0
        %1355 = vmatprep.subr.mxu0 0.0
        %1356 = vmatpush1.xpose.msra.mxu0 0.0
        %1357 = vmatprep.subr.mxu0 0.0
        %1358 = vmatpush1.xpose.msra.mxu0 0.0
        %1359 = vmatprep.subr.mxu0 0.0
        %1360 = vmatpush1.xpose.msra.mxu0 0.0
        %1361 = vmatprep.subr.mxu0 0.0
        %1362 = vmatpush1.xpose.msra.mxu0 0.0
        %1363 = vmatprep.subr.mxu0 0.0
        %1364 = vmatpush1.xpose.msra.mxu0 0.0
        %1365 = vmatprep.subr.mxu0 0.0
        %1366 = vmatpush1.xpose.msra.mxu0 0.0
        %1367 = vmatprep.subr.mxu0 0.0
        %1368 = vmatpush1.xpose.msra.mxu0 0.0
        %1369 = vmatprep.subr.mxu0 0.0
        %1370 = vmatpush1.xpose.msra.mxu0 0.0
        %1371 = vmatprep.subr.mxu0 0.0
        %1372 = vmatpush1.xpose.msra.mxu0 0.0
        %1373 = vmatprep.subr.mxu0 0.0
        %1374 = vmatpush1.xpose.msra.mxu0 0.0
        %1375 = vmatprep.subr.mxu0 0.0
        %1376 = vmatpush1.xpose.msra.mxu0 0.0
        %1377 = vmatprep.subr.mxu0 0.0
        %1378 = vmatpush1.xpose.msra.mxu0 0.0
        %1379 = vmatprep.subr.mxu0 0.0
        %1380 = vmatpush1.xpose.msra.mxu0 0.0
        %1381 = vmatprep.mubr.f32.mxu0 0.0
        %1382 = vmatmul.mubr.f32.gmra.mrb[0].mxu0 %v1312
        %v1383 = vpop.f32.mrb[0].mxu0
        %v1384 = vadd.f32 0.0, %v1383
        %v1385 = vpop.f32.mrb[0].mxu0
        %1386 = vdwg.mxu0
        %v1388 = vsel %vm1158, %v865, 0
        %v1391 = vsel %vm1158, %v1011, 0
        %1393 = vmatprep.subr.mxu0 0.0
        %1394 = vmatpush1.xpose.msra.mxu0 %v1391
        %1395 = vmatprep.subr.mxu0 0.0
        %1396 = vmatpush1.xpose.msra.mxu0 0.0
        %1397 = vmatprep.subr.mxu0 0.0
        %1398 = vmatpush1.xpose.msra.mxu0 0.0
        %1399 = vmatprep.subr.mxu0 0.0
        %1400 = vmatpush1.xpose.msra.mxu0 0.0
        %1401 = vmatprep.subr.mxu0 0.0
        %1402 = vmatpush1.xpose.msra.mxu0 0.0
        %1403 = vmatprep.subr.mxu0 0.0
        %1404 = vmatpush1.xpose.msra.mxu0 0.0
        %1405 = vmatprep.subr.mxu0 0.0
        %1406 = vmatpush1.xpose.msra.mxu0 0.0
        %1407 = vmatprep.subr.mxu0 0.0
        %1408 = vmatpush1.xpose.msra.mxu0 0.0
        %1409 = vmatprep.subr.mxu0 0.0
        %1410 = vmatpush1.xpose.msra.mxu0 0.0
        %1411 = vmatprep.subr.mxu0 0.0
        %1412 = vmatpush1.xpose.msra.mxu0 0.0
        %1413 = vmatprep.subr.mxu0 0.0
        %1414 = vmatpush1.xpose.msra.mxu0 0.0
        %1415 = vmatprep.subr.mxu0 0.0
        %1416 = vmatpush1.xpose.msra.mxu0 0.0
        %1417 = vmatprep.subr.mxu0 0.0
        %1418 = vmatpush1.xpose.msra.mxu0 0.0
        %1419 = vmatprep.subr.mxu0 0.0
        %1420 = vmatpush1.xpose.msra.mxu0 0.0
        %1421 = vmatprep.subr.mxu0 0.0
        %1422 = vmatpush1.xpose.msra.mxu0 0.0
        %1423 = vmatprep.subr.mxu0 0.0
        %1424 = vmatpush1.xpose.msra.mxu0 0.0
        %1425 = vmatprep.subr.mxu0 0.0
        %1426 = vmatpush1.xpose.msra.mxu0 0.0
        %1427 = vmatprep.subr.mxu0 0.0
        %1428 = vmatpush1.xpose.msra.mxu0 0.0
        %1429 = vmatprep.subr.mxu0 0.0
        %1430 = vmatpush1.xpose.msra.mxu0 0.0
        %1431 = vmatprep.subr.mxu0 0.0
        %1432 = vmatpush1.xpose.msra.mxu0 0.0
        %1433 = vmatprep.subr.mxu0 0.0
        %1434 = vmatpush1.xpose.msra.mxu0 0.0
        %1435 = vmatprep.subr.mxu0 0.0
        %1436 = vmatpush1.xpose.msra.mxu0 0.0
        %1437 = vmatprep.subr.mxu0 0.0
        %1438 = vmatpush1.xpose.msra.mxu0 0.0
        %1439 = vmatprep.subr.mxu0 0.0
        %1440 = vmatpush1.xpose.msra.mxu0 0.0
        %1441 = vmatprep.subr.mxu0 0.0
        %1442 = vmatpush1.xpose.msra.mxu0 0.0
        %1443 = vmatprep.subr.mxu0 0.0
        %1444 = vmatpush1.xpose.msra.mxu0 0.0
        %1445 = vmatprep.subr.mxu0 0.0
        %1446 = vmatpush1.xpose.msra.mxu0 0.0
        %1447 = vmatprep.subr.mxu0 0.0
        %1448 = vmatpush1.xpose.msra.mxu0 0.0
        %1449 = vmatprep.subr.mxu0 0.0
        %1450 = vmatpush1.xpose.msra.mxu0 0.0
        %1451 = vmatprep.subr.mxu0 0.0
        %1452 = vmatpush1.xpose.msra.mxu0 0.0
        %1453 = vmatprep.subr.mxu0 0.0
        %1454 = vmatpush1.xpose.msra.mxu0 0.0
        %1455 = vmatprep.subr.mxu0 0.0
        %1456 = vmatpush1.xpose.msra.mxu0 0.0
        %1457 = vmatprep.mubr.f32.mxu0 0.0
        %1458 = vmatmul.mubr.f32.gmra.mrb[0].mxu0 %v1388
        %v1459 = vpop.f32.mrb[0].mxu0
        %v1460 = vadd.f32 0.0, %v1459
        %v1461 = vpop.f32.mrb[0].mxu0
        %1462 = vdwg.mxu0
        %v1463 = vsel %vm1158, %v1232, -inf
        %1464 = vmax.xlane.f32.xlu0 %v1463
        %v1465 = vpop.xlane.xlu0 %1464
        %v1466 = vsel %vm1158, %v1308, -inf
        %1467 = vmax.xlane.f32.xlu0 %v1466
        %v1468 = vpop.xlane.xlu0 %1467
        %v1469 = vsel %vm1158, %v1384, -inf
        %1470 = vmax.xlane.f32.xlu0 %v1469
        %v1471 = vpop.xlane.xlu0 %1470
        %v1472 = vsel %vm1158, %v1460, -inf
        %1473 = vmax.xlane.f32.xlu0 %v1472
        %v1474 = vpop.xlane.xlu0 %1473
        %v1475 = vsub.f32 %v1232, %v1465
        %v1476 = vsub.f32 %v1308, %v1468
        %v1477 = vsub.f32 %v1384, %v1471
        %v1478 = vsub.f32 %v1460, %v1474
        %v1479 = vmul.f32 %v1475, 1.442695
        %v1480 = vpow.pop %v1479
        %v1481 = vmul.f32 %v1476, 1.442695
        %v1482 = vpow.pop %v1481
        %v1483 = vmul.f32 %v1477, 1.442695
        %v1484 = vpow.pop %v1483
        %v1485 = vmul.f32 %v1478, 1.442695
        %v1486 = vpow.pop %v1485
        %v1487 = vsel %vm1158, %v1480, 0.0
        %1488 = vadd.xlane.f32.xlu0 %v1487
        %v1489 = vpop.xlane.xlu0 %1488
        %v1490 = vsel %vm1158, %v1482, 0.0
        %1491 = vadd.xlane.f32.xlu0 %v1490
        %v1492 = vpop.xlane.xlu0 %1491
        %v1493 = vsel %vm1158, %v1484, 0.0
        %1494 = vadd.xlane.f32.xlu0 %v1493
        %v1495 = vpop.xlane.xlu0 %1494
        %v1496 = vsel %vm1158, %v1486, 0.0
        %1497 = vadd.xlane.f32.xlu0 %v1496
        %v1498 = vpop.xlane.xlu0 %1497
        %v1499 = vrcp.pop %v1489
        %v1500 = vmul.f32 %v1480, %v1499
        %v1501 = vrcp.pop %v1492
        %v1502 = vmul.f32 %v1482, %v1501
        %v1503 = vrcp.pop %v1495
        %v1504 = vmul.f32 %v1484, %v1503
        %v1505 = vrcp.pop %v1498
        %v1506 = vmul.f32 %v1486, %v1505
        %1507 = vst.msk [vmem:[%s483] sm:$0xff] %vm1158, %v1500
        %1508 = vst.msk [vmem:[%s483 + $0x8] sm:$0xff] %vm1158, %v1502
        %1509 = vst.msk [vmem:[%s483 + $0x10] sm:$0xff] %vm1158, %v1504
        %1510 = vst.msk [vmem:[%s483 + $0x18] sm:$0xff] %vm1158, %v1506
        %v1512 = vsel %vm1158, %v1500, 0
        %1514 = vmatprep.subr.mxu0 0.0
        %1515 = vmatpush1.msra.mxu0 %v1154
        %1516 = vmatprep.subr.mxu0 0.0
        %1517 = vmatpush1.msra.mxu0 0.0
        %1518 = vmatprep.subr.mxu0 0.0
        %1519 = vmatpush1.msra.mxu0 0.0
        %1520 = vmatprep.subr.mxu0 0.0
        %1521 = vmatpush1.msra.mxu0 0.0
        %1522 = vmatprep.subr.mxu0 0.0
        %1523 = vmatpush1.msra.mxu0 0.0
        %1524 = vmatprep.subr.mxu0 0.0
        %1525 = vmatpush1.msra.mxu0 0.0
        %1526 = vmatprep.subr.mxu0 0.0
        %1527 = vmatpush1.msra.mxu0 0.0
        %1528 = vmatprep.subr.mxu0 0.0
        %1529 = vmatpush1.msra.mxu0 0.0
        %1530 = vmatprep.subr.mxu0 0.0
        %1531 = vmatpush1.msra.mxu0 0.0
        %1532 = vmatprep.subr.mxu0 0.0
        %1533 = vmatpush1.msra.mxu0 0.0
        %1534 = vmatprep.subr.mxu0 0.0
        %1535 = vmatpush1.msra.mxu0 0.0
        %1536 = vmatprep.subr.mxu0 0.0
        %1537 = vmatpush1.msra.mxu0 0.0
        %1538 = vmatprep.subr.mxu0 0.0
        %1539 = vmatpush1.msra.mxu0 0.0
        %1540 = vmatprep.subr.mxu0 0.0
        %1541 = vmatpush1.msra.mxu0 0.0
        %1542 = vmatprep.subr.mxu0 0.0
        %1543 = vmatpush1.msra.mxu0 0.0
        %1544 = vmatprep.subr.mxu0 0.0
        %1545 = vmatpush1.msra.mxu0 0.0
        %1546 = vmatprep.subr.mxu0 0.0
        %1547 = vmatpush1.msra.mxu0 0.0
        %1548 = vmatprep.subr.mxu0 0.0
        %1549 = vmatpush1.msra.mxu0 0.0
        %1550 = vmatprep.subr.mxu0 0.0
        %1551 = vmatpush1.msra.mxu0 0.0
        %1552 = vmatprep.subr.mxu0 0.0
        %1553 = vmatpush1.msra.mxu0 0.0
        %1554 = vmatprep.subr.mxu0 0.0
        %1555 = vmatpush1.msra.mxu0 0.0
        %1556 = vmatprep.subr.mxu0 0.0
        %1557 = vmatpush1.msra.mxu0 0.0
        %1558 = vmatprep.subr.mxu0 0.0
        %1559 = vmatpush1.msra.mxu0 0.0
        %1560 = vmatprep.subr.mxu0 0.0
        %1561 = vmatpush1.msra.mxu0 0.0
        %1562 = vmatprep.subr.mxu0 0.0
        %1563 = vmatpush1.msra.mxu0 0.0
        %1564 = vmatprep.subr.mxu0 0.0
        %1565 = vmatpush1.msra.mxu0 0.0
        %1566 = vmatprep.subr.mxu0 0.0
        %1567 = vmatpush1.msra.mxu0 0.0
        %1568 = vmatprep.subr.mxu0 0.0
        %1569 = vmatpush1.msra.mxu0 0.0
        %1570 = vmatprep.subr.mxu0 0.0
        %1571 = vmatpush1.msra.mxu0 0.0
        %1572 = vmatprep.subr.mxu0 0.0
        %1573 = vmatpush1.msra.mxu0 0.0
        %1574 = vmatprep.subr.mxu0 0.0
        %1575 = vmatpush1.msra.mxu0 0.0
        %1576 = vmatprep.subr.mxu0 0.0
        %1577 = vmatpush1.msra.mxu0 0.0
        %1578 = vmatprep.mubr.f32.mxu0 0.0
        %1579 = vmatmul.mubr.f32.gmra.mrb[0].mxu0 %v1512
        %v1580 = vpop.f32.mrb[0].mxu0
        %v1581 = vadd.f32 0.0, %v1580
        %v1582 = vpop.f32.mrb[0].mxu0
        %1583 = vdwg.mxu0
        %v1585 = vsel %vm1158, %v1502, 0
        %1587 = vmatprep.subr.mxu0 0.0
        %1588 = vmatpush1.msra.mxu0 %v1155
        %1589 = vmatprep.subr.mxu0 0.0
        %1590 = vmatpush1.msra.mxu0 0.0
        %1591 = vmatprep.subr.mxu0 0.0
        %1592 = vmatpush1.msra.mxu0 0.0
        %1593 = vmatprep.subr.mxu0 0.0
        %1594 = vmatpush1.msra.mxu0 0.0
        %1595 = vmatprep.subr.mxu0 0.0
        %1596 = vmatpush1.msra.mxu0 0.0
        %1597 = vmatprep.subr.mxu0 0.0
        %1598 = vmatpush1.msra.mxu0 0.0
        %1599 = vmatprep.subr.mxu0 0.0
        %1600 = vmatpush1.msra.mxu0 0.0
        %1601 = vmatprep.subr.mxu0 0.0
        %1602 = vmatpush1.msra.mxu0 0.0
        %1603 = vmatprep.subr.mxu0 0.0
        %1604 = vmatpush1.msra.mxu0 0.0
        %1605 = vmatprep.subr.mxu0 0.0
        %1606 = vmatpush1.msra.mxu0 0.0
        %1607 = vmatprep.subr.mxu0 0.0
        %1608 = vmatpush1.msra.mxu0 0.0
        %1609 = vmatprep.subr.mxu0 0.0
        %1610 = vmatpush1.msra.mxu0 0.0
        %1611 = vmatprep.subr.mxu0 0.0
        %1612 = vmatpush1.msra.mxu0 0.0
        %1613 = vmatprep.subr.mxu0 0.0
        %1614 = vmatpush1.msra.mxu0 0.0
        %1615 = vmatprep.subr.mxu0 0.0
        %1616 = vmatpush1.msra.mxu0 0.0
        %1617 = vmatprep.subr.mxu0 0.0
        %1618 = vmatpush1.msra.mxu0 0.0
        %1619 = vmatprep.subr.mxu0 0.0
        %1620 = vmatpush1.msra.mxu0 0.0
        %1621 = vmatprep.subr.mxu0 0.0
        %1622 = vmatpush1.msra.mxu0 0.0
        %1623 = vmatprep.subr.mxu0 0.0
        %1624 = vmatpush1.msra.mxu0 0.0
        %1625 = vmatprep.subr.mxu0 0.0
        %1626 = vmatpush1.msra.mxu0 0.0
        %1627 = vmatprep.subr.mxu0 0.0
        %1628 = vmatpush1.msra.mxu0 0.0
        %1629 = vmatprep.subr.mxu0 0.0
        %1630 = vmatpush1.msra.mxu0 0.0
        %1631 = vmatprep.subr.mxu0 0.0
        %1632 = vmatpush1.msra.mxu0 0.0
        %1633 = vmatprep.subr.mxu0 0.0
        %1634 = vmatpush1.msra.mxu0 0.0
        %1635 = vmatprep.subr.mxu0 0.0
        %1636 = vmatpush1.msra.mxu0 0.0
        %1637 = vmatprep.subr.mxu0 0.0
        %1638 = vmatpush1.msra.mxu0 0.0
        %1639 = vmatprep.subr.mxu0 0.0
        %1640 = vmatpush1.msra.mxu0 0.0
        %1641 = vmatprep.subr.mxu0 0.0
        %1642 = vmatpush1.msra.mxu0 0.0
        %1643 = vmatprep.subr.mxu0 0.0
        %1644 = vmatpush1.msra.mxu0 0.0
        %1645 = vmatprep.subr.mxu0 0.0
        %1646 = vmatpush1.msra.mxu0 0.0
        %1647 = vmatprep.subr.mxu0 0.0
        %1648 = vmatpush1.msra.mxu0 0.0
        %1649 = vmatprep.subr.mxu0 0.0
        %1650 = vmatpush1.msra.mxu0 0.0
        %1651 = vmatprep.mubr.f32.mxu0 0.0
        %1652 = vmatmul.mubr.f32.gmra.mrb[0].mxu0 %v1585
        %v1653 = vpop.f32.mrb[0].mxu0
        %v1654 = vadd.f32 0.0, %v1653
        %v1655 = vpop.f32.mrb[0].mxu0
        %1656 = vdwg.mxu0
        %v1658 = vsel %vm1158, %v1504, 0
        %1660 = vmatprep.subr.mxu0 0.0
        %1661 = vmatpush1.msra.mxu0 %v1156
        %1662 = vmatprep.subr.mxu0 0.0
        %1663 = vmatpush1.msra.mxu0 0.0
        %1664 = vmatprep.subr.mxu0 0.0
        %1665 = vmatpush1.msra.mxu0 0.0
        %1666 = vmatprep.subr.mxu0 0.0
        %1667 = vmatpush1.msra.mxu0 0.0
        %1668 = vmatprep.subr.mxu0 0.0
        %1669 = vmatpush1.msra.mxu0 0.0
        %1670 = vmatprep.subr.mxu0 0.0
        %1671 = vmatpush1.msra.mxu0 0.0
        %1672 = vmatprep.subr.mxu0 0.0
        %1673 = vmatpush1.msra.mxu0 0.0
        %1674 = vmatprep.subr.mxu0 0.0
        %1675 = vmatpush1.msra.mxu0 0.0
        %1676 = vmatprep.subr.mxu0 0.0
        %1677 = vmatpush1.msra.mxu0 0.0
        %1678 = vmatprep.subr.mxu0 0.0
        %1679 = vmatpush1.msra.mxu0 0.0
        %1680 = vmatprep.subr.mxu0 0.0
        %1681 = vmatpush1.msra.mxu0 0.0
        %1682 = vmatprep.subr.mxu0 0.0
        %1683 = vmatpush1.msra.mxu0 0.0
        %1684 = vmatprep.subr.mxu0 0.0
        %1685 = vmatpush1.msra.mxu0 0.0
        %1686 = vmatprep.subr.mxu0 0.0
        %1687 = vmatpush1.msra.mxu0 0.0
        %1688 = vmatprep.subr.mxu0 0.0
        %1689 = vmatpush1.msra.mxu0 0.0
        %1690 = vmatprep.subr.mxu0 0.0
        %1691 = vmatpush1.msra.mxu0 0.0
        %1692 = vmatprep.subr.mxu0 0.0
        %1693 = vmatpush1.msra.mxu0 0.0
        %1694 = vmatprep.subr.mxu0 0.0
        %1695 = vmatpush1.msra.mxu0 0.0
        %1696 = vmatprep.subr.mxu0 0.0
        %1697 = vmatpush1.msra.mxu0 0.0
        %1698 = vmatprep.subr.mxu0 0.0
        %1699 = vmatpush1.msra.mxu0 0.0
        %1700 = vmatprep.subr.mxu0 0.0
        %1701 = vmatpush1.msra.mxu0 0.0
        %1702 = vmatprep.subr.mxu0 0.0
        %1703 = vmatpush1.msra.mxu0 0.0
        %1704 = vmatprep.subr.mxu0 0.0
        %1705 = vmatpush1.msra.mxu0 0.0
        %1706 = vmatprep.subr.mxu0 0.0
        %1707 = vmatpush1.msra.mxu0 0.0
        %1708 = vmatprep.subr.mxu0 0.0
        %1709 = vmatpush1.msra.mxu0 0.0
        %1710 = vmatprep.subr.mxu0 0.0
        %1711 = vmatpush1.msra.mxu0 0.0
        %1712 = vmatprep.subr.mxu0 0.0
        %1713 = vmatpush1.msra.mxu0 0.0
        %1714 = vmatprep.subr.mxu0 0.0
        %1715 = vmatpush1.msra.mxu0 0.0
        %1716 = vmatprep.subr.mxu0 0.0
        %1717 = vmatpush1.msra.mxu0 0.0
        %1718 = vmatprep.subr.mxu0 0.0
        %1719 = vmatpush1.msra.mxu0 0.0
        %1720 = vmatprep.subr.mxu0 0.0
        %1721 = vmatpush1.msra.mxu0 0.0
        %1722 = vmatprep.subr.mxu0 0.0
        %1723 = vmatpush1.msra.mxu0 0.0
        %1724 = vmatprep.mubr.f32.mxu0 0.0
        %1725 = vmatmul.mubr.f32.gmra.mrb[0].mxu0 %v1658
        %v1726 = vpop.f32.mrb[0].mxu0
        %v1727 = vadd.f32 0.0, %v1726
        %v1728 = vpop.f32.mrb[0].mxu0
        %1729 = vdwg.mxu0
        %v1731 = vsel %vm1158, %v1506, 0
        %1733 = vmatprep.subr.mxu0 0.0
        %1734 = vmatpush1.msra.mxu0 %v1157
        %1735 = vmatprep.subr.mxu0 0.0
        %1736 = vmatpush1.msra.mxu0 0.0
        %1737 = vmatprep.subr.mxu0 0.0
        %1738 = vmatpush1.msra.mxu0 0.0
        %1739 = vmatprep.subr.mxu0 0.0
        %1740 = vmatpush1.msra.mxu0 0.0
        %1741 = vmatprep.subr.mxu0 0.0
        %1742 = vmatpush1.msra.mxu0 0.0
        %1743 = vmatprep.subr.mxu0 0.0
        %1744 = vmatpush1.msra.mxu0 0.0
        %1745 = vmatprep.subr.mxu0 0.0
        %1746 = vmatpush1.msra.mxu0 0.0
        %1747 = vmatprep.subr.mxu0 0.0
        %1748 = vmatpush1.msra.mxu0 0.0
        %1749 = vmatprep.subr.mxu0 0.0
        %1750 = vmatpush1.msra.mxu0 0.0
        %1751 = vmatprep.subr.mxu0 0.0
        %1752 = vmatpush1.msra.mxu0 0.0
        %1753 = vmatprep.subr.mxu0 0.0
        %1754 = vmatpush1.msra.mxu0 0.0
        %1755 = vmatprep.subr.mxu0 0.0
        %1756 = vmatpush1.msra.mxu0 0.0
        %1757 = vmatprep.subr.mxu0 0.0
        %1758 = vmatpush1.msra.mxu0 0.0
        %1759 = vmatprep.subr.mxu0 0.0
        %1760 = vmatpush1.msra.mxu0 0.0
        %1761 = vmatprep.subr.mxu0 0.0
        %1762 = vmatpush1.msra.mxu0 0.0
        %1763 = vmatprep.subr.mxu0 0.0
        %1764 = vmatpush1.msra.mxu0 0.0
        %1765 = vmatprep.subr.mxu0 0.0
        %1766 = vmatpush1.msra.mxu0 0.0
        %1767 = vmatprep.subr.mxu0 0.0
        %1768 = vmatpush1.msra.mxu0 0.0
        %1769 = vmatprep.subr.mxu0 0.0
        %1770 = vmatpush1.msra.mxu0 0.0
        %1771 = vmatprep.subr.mxu0 0.0
        %1772 = vmatpush1.msra.mxu0 0.0
        %1773 = vmatprep.subr.mxu0 0.0
        %1774 = vmatpush1.msra.mxu0 0.0
        %1775 = vmatprep.subr.mxu0 0.0
        %1776 = vmatpush1.msra.mxu0 0.0
        %1777 = vmatprep.subr.mxu0 0.0
        %1778 = vmatpush1.msra.mxu0 0.0
        %1779 = vmatprep.subr.mxu0 0.0
        %1780 = vmatpush1.msra.mxu0 0.0
        %1781 = vmatprep.subr.mxu0 0.0
        %1782 = vmatpush1.msra.mxu0 0.0
        %1783 = vmatprep.subr.mxu0 0.0
        %1784 = vmatpush1.msra.mxu0 0.0
        %1785 = vmatprep.subr.mxu0 0.0
        %1786 = vmatpush1.msra.mxu0 0.0
        %1787 = vmatprep.subr.mxu0 0.0
        %1788 = vmatpush1.msra.mxu0 0.0
        %1789 = vmatprep.subr.mxu0 0.0
        %1790 = vmatpush1.msra.mxu0 0.0
        %1791 = vmatprep.subr.mxu0 0.0
        %1792 = vmatpush1.msra.mxu0 0.0
        %1793 = vmatprep.subr.mxu0 0.0
        %1794 = vmatpush1.msra.mxu0 0.0
        %1795 = vmatprep.subr.mxu0 0.0
        %1796 = vmatpush1.msra.mxu0 0.0
        %1797 = vmatprep.mubr.f32.mxu0 0.0
        %1798 = vmatmul.mubr.f32.gmra.mrb[0].mxu0 %v1731
        %v1799 = vpop.f32.mrb[0].mxu0
        %v1800 = vadd.f32 0.0, %v1799
        %v1801 = vpop.f32.mrb[0].mxu0
        %1802 = vdwg.mxu0
        %v1803 = vcombine.low %v1581, %v1727
        %v1804 = vcombine.high %v1581, %v1727
        %v1806 = vunpack.c.l.s4 1983009808
        %v1807 = vunpack.c.0.s8 %v1806
        %v1808 = vlaneseq
        %v1809 = vshrl.u32 %v1808, 7
        %v1810 = vsub.s32 %v1807, %v1809
        %v1811 = vrot.slane %v1803, %v1810
        %v1813 = vunpack.c.l.s4 1983009808
        %v1814 = vunpack.c.0.s8 %v1813
        %v1815 = vlaneseq
        %v1816 = vshrl.u32 %v1815, 7
        %v1817 = vsub.s32 %v1814, %v1816
        %v1818 = vrot.slane %v1804, %v1817
        %v1819 = vcombine.low %v1654, %v1800
        %v1820 = vcombine.high %v1654, %v1800
        %v1822 = vunpack.c.l.s4 1983009808
        %v1823 = vunpack.c.0.s8 %v1822
        %v1824 = vlaneseq
        %v1825 = vshrl.u32 %v1824, 7
        %v1826 = vsub.s32 %v1823, %v1825
        %v1827 = vrot.slane %v1819, %v1826
        %v1829 = vunpack.c.l.s4 1983009808
        %v1830 = vunpack.c.0.s8 %v1829
        %v1831 = vlaneseq
        %v1832 = vshrl.u32 %v1831, 7
        %v1833 = vsub.s32 %v1830, %v1832
        %v1834 = vrot.slane %v1820, %v1833
        %v1835 = vcombine.low %v1811, %v1827
        %v1836 = vcombine.high %v1811, %v1827
        %v1838 = vunpack.c.l.s4 1934713408
        %v1839 = vunpack.c.0.s8 %v1838
        %v1840 = vlaneseq
        %v1841 = vshrl.u32 %v1840, 7
        %v1842 = vsub.s32 %v1839, %v1841
        %v1843 = vrot.slane %v1835, %v1842
        %v1845 = vunpack.c.l.s4 1934713408
        %v1846 = vunpack.c.0.s8 %v1845
        %v1847 = vlaneseq
        %v1848 = vshrl.u32 %v1847, 7
        %v1849 = vsub.s32 %v1846, %v1848
        %v1850 = vrot.slane %v1836, %v1849
        %v1851 = vcombine.low %v1818, %v1834
        %v1852 = vcombine.high %v1818, %v1834
        %v1854 = vunpack.c.l.s4 1934713408
        %v1855 = vunpack.c.0.s8 %v1854
        %v1856 = vlaneseq
        %v1857 = vshrl.u32 %v1856, 7
        %v1858 = vsub.s32 %v1855, %v1857
        %v1859 = vrot.slane %v1851, %v1858
        %v1861 = vunpack.c.l.s4 1934713408
        %v1862 = vunpack.c.0.s8 %v1861
        %v1863 = vlaneseq
        %v1864 = vshrl.u32 %v1863, 7
        %v1865 = vsub.s32 %v1862, %v1864
        %v1866 = vrot.slane %v1852, %v1865
        %v1867 = vcombine.high %v1843, 0.0
        %v1868 = vcombine.high %v1850, 0.0
        %v1869 = vcombine.high %v1859, 0.0
        %v1870 = vcombine.high %v1866, 0.0
        %v1871 = vcombine.low %v1843, %v1850
        %v1873 = vunpack.c.l.s4 1983009808
        %v1874 = vunpack.c.0.s8 %v1873
        %v1875 = vlaneseq
        %v1876 = vshrl.u32 %v1875, 7
        %v1877 = vsub.s32 %v1874, %v1876
        %v1878 = vrot.slane %v1871, %v1877
        %v1879 = vcombine.low %v1867, %v1868
        %v1881 = vunpack.c.l.s4 1983009808
        %v1882 = vunpack.c.0.s8 %v1881
        %v1883 = vlaneseq
        %v1884 = vshrl.u32 %v1883, 7
        %v1885 = vsub.s32 %v1882, %v1884
        %v1886 = vrot.slane %v1879, %v1885
        %v1887 = vcombine.low %v1859, %v1866
        %v1889 = vunpack.c.l.s4 1983009808
        %v1890 = vunpack.c.0.s8 %v1889
        %v1891 = vlaneseq
        %v1892 = vshrl.u32 %v1891, 7
        %v1893 = vsub.s32 %v1890, %v1892
        %v1894 = vrot.slane %v1887, %v1893
        %v1895 = vcombine.low %v1869, %v1870
        %v1897 = vunpack.c.l.s4 1983009808
        %v1898 = vunpack.c.0.s8 %v1897
        %v1899 = vlaneseq
        %v1900 = vshrl.u32 %v1899, 7
        %v1901 = vsub.s32 %v1898, %v1900
        %v1902 = vrot.slane %v1895, %v1901
        %v1903 = vcombine.low %v1878, %v1886
        %v1904 = vcombine.high %v1878, %v1886
        %v1906 = vunpack.c.l.s4 1934713408
        %v1907 = vunpack.c.0.s8 %v1906
        %v1908 = vlaneseq
        %v1909 = vshrl.u32 %v1908, 7
        %v1910 = vsub.s32 %v1907, %v1909
        %v1911 = vrot.slane %v1903, %v1910
        %v1913 = vunpack.c.l.s4 1934713408
        %v1914 = vunpack.c.0.s8 %v1913
        %v1915 = vlaneseq
        %v1916 = vshrl.u32 %v1915, 7
        %v1917 = vsub.s32 %v1914, %v1916
        %v1918 = vrot.slane %v1904, %v1917
        %v1919 = vcombine.low %v1894, %v1902
        %v1920 = vcombine.high %v1894, %v1902
        %v1922 = vunpack.c.l.s4 1934713408
        %v1923 = vunpack.c.0.s8 %v1922
        %v1924 = vlaneseq
        %v1925 = vshrl.u32 %v1924, 7
        %v1926 = vsub.s32 %v1923, %v1925
        %v1927 = vrot.slane %v1919, %v1926
        %v1929 = vunpack.c.l.s4 1934713408
        %v1930 = vunpack.c.0.s8 %v1929
        %v1931 = vlaneseq
        %v1932 = vshrl.u32 %v1931, 7
        %v1933 = vsub.s32 %v1930, %v1932
        %v1934 = vrot.slane %v1920, %v1933
        %v1935 = vcombine.low %v1911, %v1927
        %v1936 = vcombine.high %v1911, %v1927
        %v1937 = vcombine.low %v1918, %v1934
        %v1938 = vcombine.high %v1918, %v1934
        %1940 = vrot.lane.b32.xlu0 %v1936, 8
        %v1941 = vpop.permute.xlu0 %1940
        %1944 = vrot.lane.b32.xlu0 %v1937, 16
        %v1945 = vpop.permute.xlu0 %1944
        %1948 = vrot.lane.b32.xlu0 %v1938, 24
        %v1949 = vpop.permute.xlu0 %1948
        %v1951 = vsel %vm1158, %v1935, %v1941
        %vm1952 = vcmask 130048
        %v1953 = vsel %vm1952, %v1951, %v1945
        %vm1954 = vcmask 195584
        %v1955 = vsel %vm1954, %v1953, %v1949
        %v1956 = vld [vmem:[%s6] sm:$0xff]
        %v1957 = vld [vmem:[%s6 + $0x8] sm:$0xff]
        %v1958 = vld [vmem:[%s6 + $0x10] sm:$0xff]
        %v1959 = vld [vmem:[%s6 + $0x18] sm:$0xff]
        %v1960 = vld [vmem:[%s6 + $0x20] sm:$0xff]
        %v1961 = vld [vmem:[%s6 + $0x28] sm:$0xff]
        %v1962 = vld [vmem:[%s6 + $0x30] sm:$0xff]
        %v1963 = vld [vmem:[%s6 + $0x38] sm:$0xff]
        %v1965 = vsel %vm491, %v1955, 0
        %1967 = vmatprep.subr.mxu0 0.0
        %1968 = vmatpush1.msra.mxu0 %v1960
        %1969 = vmatprep.subr.mxu0 0.0
        %1970 = vmatpush1.msra.mxu0 %v1961
        %1971 = vmatprep.subr.mxu0 0.0
        %1972 = vmatpush1.msra.mxu0 %v1962
        %1973 = vmatprep.subr.mxu0 0.0
        %1974 = vmatpush1.msra.mxu0 %v1963
        %1975 = vmatprep.subr.mxu0 0.0
        %1976 = vmatpush1.msra.mxu0 0.0
        %1977 = vmatprep.subr.mxu0 0.0
        %1978 = vmatpush1.msra.mxu0 0.0
        %1979 = vmatprep.subr.mxu0 0.0
        %1980 = vmatpush1.msra.mxu0 0.0
        %1981 = vmatprep.subr.mxu0 0.0
        %1982 = vmatpush1.msra.mxu0 0.0
        %1983 = vmatprep.subr.mxu0 0.0
        %1984 = vmatpush1.msra.mxu0 0.0
        %1985 = vmatprep.subr.mxu0 0.0
        %1986 = vmatpush1.msra.mxu0 0.0
        %1987 = vmatprep.subr.mxu0 0.0
        %1988 = vmatpush1.msra.mxu0 0.0
        %1989 = vmatprep.subr.mxu0 0.0
        %1990 = vmatpush1.msra.mxu0 0.0
        %1991 = vmatprep.subr.mxu0 0.0
        %1992 = vmatpush1.msra.mxu0 0.0
        %1993 = vmatprep.subr.mxu0 0.0
        %1994 = vmatpush1.msra.mxu0 0.0
        %1995 = vmatprep.subr.mxu0 0.0
        %1996 = vmatpush1.msra.mxu0 0.0
        %1997 = vmatprep.subr.mxu0 0.0
        %1998 = vmatpush1.msra.mxu0 0.0
        %1999 = vmatprep.subr.mxu0 0.0
        %2000 = vmatpush1.msra.mxu0 0.0
        %2001 = vmatprep.subr.mxu0 0.0
        %2002 = vmatpush1.msra.mxu0 0.0
        %2003 = vmatprep.subr.mxu0 0.0
        %2004 = vmatpush1.msra.mxu0 0.0
        %2005 = vmatprep.subr.mxu0 0.0
        %2006 = vmatpush1.msra.mxu0 0.0
        %2007 = vmatprep.subr.mxu0 0.0
        %2008 = vmatpush1.msra.mxu0 0.0
        %2009 = vmatprep.subr.mxu0 0.0
        %2010 = vmatpush1.msra.mxu0 0.0
        %2011 = vmatprep.subr.mxu0 0.0
        %2012 = vmatpush1.msra.mxu0 0.0
        %2013 = vmatprep.subr.mxu0 0.0
        %2014 = vmatpush1.msra.mxu0 0.0
        %2015 = vmatprep.subr.mxu0 0.0
        %2016 = vmatpush1.msra.mxu0 0.0
        %2017 = vmatprep.subr.mxu0 0.0
        %2018 = vmatpush1.msra.mxu0 0.0
        %2019 = vmatprep.subr.mxu0 0.0
        %2020 = vmatpush1.msra.mxu0 0.0
        %2021 = vmatprep.subr.mxu0 0.0
        %2022 = vmatpush1.msra.mxu0 0.0
        %2023 = vmatprep.subr.mxu0 0.0
        %2024 = vmatpush1.msra.mxu0 0.0
        %2025 = vmatprep.subr.mxu0 0.0
        %2026 = vmatpush1.msra.mxu0 0.0
        %2027 = vmatprep.subr.mxu0 0.0
        %2028 = vmatpush1.msra.mxu0 0.0
        %2029 = vmatprep.subr.mxu0 0.0
        %2030 = vmatpush1.msra.mxu0 0.0
        %2031 = vmatprep.mubr.f32.mxu0 0.0
        %2032 = vmatmul.mubr.f32.gmra.mrb[0].mxu0 %v1965
        %v2033 = vpop.f32.mrb[0].mxu0
        %v2034 = vadd.f32 0.0, %v2033
        %v2035 = vpop.f32.mrb[0].mxu0
        %2036 = vdwg.mxu0
        %2037 = vmatprep.subr.mxu0 0.0
        %2038 = vmatpush1.msra.mxu0 %v1956
        %2039 = vmatprep.subr.mxu0 0.0
        %2040 = vmatpush1.msra.mxu0 %v1957
        %2041 = vmatprep.subr.mxu0 0.0
        %2042 = vmatpush1.msra.mxu0 %v1958
        %2043 = vmatprep.subr.mxu0 0.0
        %2044 = vmatpush1.msra.mxu0 %v1959
        %2045 = vmatprep.subr.mxu0 0.0
        %2046 = vmatpush1.msra.mxu0 0.0
        %2047 = vmatprep.subr.mxu0 0.0
        %2048 = vmatpush1.msra.mxu0 0.0
        %2049 = vmatprep.subr.mxu0 0.0
        %2050 = vmatpush1.msra.mxu0 0.0
        %2051 = vmatprep.subr.mxu0 0.0
        %2052 = vmatpush1.msra.mxu0 0.0
        %2053 = vmatprep.subr.mxu0 0.0
        %2054 = vmatpush1.msra.mxu0 0.0
        %2055 = vmatprep.subr.mxu0 0.0
        %2056 = vmatpush1.msra.mxu0 0.0
        %2057 = vmatprep.subr.mxu0 0.0
        %2058 = vmatpush1.msra.mxu0 0.0
        %2059 = vmatprep.subr.mxu0 0.0
        %2060 = vmatpush1.msra.mxu0 0.0
        %2061 = vmatprep.subr.mxu0 0.0
        %2062 = vmatpush1.msra.mxu0 0.0
        %2063 = vmatprep.subr.mxu0 0.0
        %2064 = vmatpush1.msra.mxu0 0.0
        %2065 = vmatprep.subr.mxu0 0.0
        %2066 = vmatpush1.msra.mxu0 0.0
        %2067 = vmatprep.subr.mxu0 0.0
        %2068 = vmatpush1.msra.mxu0 0.0
        %2069 = vmatprep.subr.mxu0 0.0
        %2070 = vmatpush1.msra.mxu0 0.0
        %2071 = vmatprep.subr.mxu0 0.0
        %2072 = vmatpush1.msra.mxu0 0.0
        %2073 = vmatprep.subr.mxu0 0.0
        %2074 = vmatpush1.msra.mxu0 0.0
        %2075 = vmatprep.subr.mxu0 0.0
        %2076 = vmatpush1.msra.mxu0 0.0
        %2077 = vmatprep.subr.mxu0 0.0
        %2078 = vmatpush1.msra.mxu0 0.0
        %2079 = vmatprep.subr.mxu0 0.0
        %2080 = vmatpush1.msra.mxu0 0.0
        %2081 = vmatprep.subr.mxu0 0.0
        %2082 = vmatpush1.msra.mxu0 0.0
        %2083 = vmatprep.subr.mxu0 0.0
        %2084 = vmatpush1.msra.mxu0 0.0
        %2085 = vmatprep.subr.mxu0 0.0
        %2086 = vmatpush1.msra.mxu0 0.0
        %2087 = vmatprep.subr.mxu0 0.0
        %2088 = vmatpush1.msra.mxu0 0.0
        %2089 = vmatprep.subr.mxu0 0.0
        %2090 = vmatpush1.msra.mxu0 0.0
        %2091 = vmatprep.subr.mxu0 0.0
        %2092 = vmatpush1.msra.mxu0 0.0
        %2093 = vmatprep.subr.mxu0 0.0
        %2094 = vmatpush1.msra.mxu0 0.0
        %2095 = vmatprep.subr.mxu0 0.0
        %2096 = vmatpush1.msra.mxu0 0.0
        %2097 = vmatprep.subr.mxu0 0.0
        %2098 = vmatpush1.msra.mxu0 0.0
        %2099 = vmatprep.subr.mxu0 0.0
        %2100 = vmatpush1.msra.mxu0 0.0
        %2101 = vmatprep.mubr.f32.mxu0 0.0
        %2102 = vmatmul.mubr.f32.gmra.mrb[0].mxu0 %v647
        %v2103 = vpop.f32.mrb[0].mxu0
        %v2104 = vadd.f32 %v2034, %v2103
        %v2105 = vpop.f32.mrb[0].mxu0
        %2106 = vdwg.mxu0
        %v2107 = vld [vmem:[%s7] sm:$0x1]
        %v2109 = vlaneseq
        %v2110 = vshrl.u32 %v2109, 7
        %v2111 = vsub.s32 0, %v2110
        %v2112 = vrot.slane %v2107, %v2111
        %v2114 = vadd.f32 %v2104, %v2112
        %v2115 = vadd.f32 %v2114, %v486
        %v2116 = vsel %vm491, %v2115, 0.0
        %2117 = vadd.xlane.f32.xlu0 %v2116
        %v2118 = vpop.xlane.xlu0 %2117
        %v2119 = vrcp.pop 32.0
        %v2120 = vmul.f32 %v2118, %v2119
        %v2121 = vsub.f32 %v2115, %v2120
        %v2122 = vmul.f32 %v2121, %v2121
        %v2123 = vsel %vm491, %v2122, 0.0
        %2124 = vadd.xlane.f32.xlu0 %v2123
        %v2125 = vpop.xlane.xlu0 %2124
        %v2126 = vmul.f32 %v2125, %v2119
        %v2127 = vadd.f32 %v2126, 1e-05
        %v2128 = vrsqrt.pop %v2127
        %v2129 = vmul.f32 %v2121, %v2128
        %v2130 = vld [vmem:[%s8] sm:$0x1]
        %v2132 = vlaneseq
        %v2133 = vshrl.u32 %v2132, 7
        %v2134 = vsub.s32 0, %v2133
        %v2135 = vrot.slane %v2130, %v2134
        %v2137 = vmul.f32 %v2129, %v2135
        %v2138 = vld [vmem:[%s9] sm:$0x1]
        %v2140 = vlaneseq
        %v2141 = vshrl.u32 %v2140, 7
        %v2142 = vsub.s32 0, %v2141
        %v2143 = vrot.slane %v2138, %v2142
        %v2145 = vadd.f32 %v2137, %v2143
        %2146 = vst.msk [vmem:[%s476] sm:$0xff] %vm491, %v2145
        %s2147 = sand.u32 %s268, 1
        %s2148 = scalar_lea.sflag [#allocation4], %s2147
        %s2149 = sand.u32 %s268, 1
        %s2150 = smul.addr %s2149, 8
        %s2151 = scalar_lea.vmem [#allocation8], %s2150
        %s2152 = sand.u32 %s294, 1
        %s2153 = scalar_lea.sflag [#allocation10], %s2152
        %s2154 = sand.u32 %s294, 1
        %s2155 = smul.addr %s2154, 32
        %s2156 = scalar_lea.vmem [#allocation9], %s2155
        // Predicated region
        $region73: #{tpu_custom_call.1} parent=59 // pred_check
          %p2157 = pneg %p278
        $region74: #{tpu_custom_call.1} parent=59 // pred_check_branch
          %2159 = sbr.rel (%p2157) target = $region76
        $region75: #{tpu_custom_call.1} parent=59 // pred_region
          %s2161 = ssub.s32 128, 128
          %2162 = vsyncadd %s2148, %s2161
          %s2163 = smul.addr %s35, 128
          %s2164 = scalar_lea.hbm %s10, %s2163
          %s2166 = sshll.u32 %s2151, 4
          %s2167 = int_to_ptr.vmem [resolvable:$true] %s2166
          %2169 = dma.vmem_to_hbm [thread:$0]  %s2167, 128, %s2164, %s2148
        $region76: #{tpu_custom_call.1} parent=59 // pred_fallthru
          _
        // Predicated region
        $region77: #{tpu_custom_call.1} parent=59 // pred_check
          %p2170 = pneg %p304
        $region78: #{tpu_custom_call.1} parent=59 // pred_check_branch
          %2172 = sbr.rel (%p2170) target = $region80
        $region79: #{tpu_custom_call.1} parent=59 // pred_region
          %s2174 = ssub.s32 512, 512
          %2175 = vsyncadd %s2153, %s2174
          %s2176 = smul.addr %s35, 128
          %s2177 = scalar_lea.hbm %s11, %s2176
          %s2178 = sshll.u32 %s2156, 4
          %s2179 = int_to_ptr.vmem [resolvable:$true] %s2178
          %2184 = dma.vmem_to_hbm [thread:$0]  %s2179, 512, %s2177, %s2153, 128, 256, 8
        $region80: #{tpu_custom_call.1} parent=59 // pred_fallthru
          _
      $region60: #{tpu_custom_call.1} parent=5 // pred_fallthru
        _
      %p2185 = scmp.le.s32.totalorder 2, %s30
      // Predicated region
      $region81: #{tpu_custom_call.1} parent=5 // pred_check
        %p2186 = pneg %p2185
      $region82: #{tpu_custom_call.1} parent=5 // pred_check_branch
        %2188 = sbr.rel (%p2186) target = $region84
      $region83: #{tpu_custom_call.1} parent=5 // pred_region
        %s2189 = ssub.s32 %s30, 2
        // Predicated region
        $region85: #{tpu_custom_call.1} parent=83 // pred_check
          %p2190 = pneg %p284
        $region86: #{tpu_custom_call.1} parent=83 // pred_check_branch
          %2192 = sbr.rel (%p2190) target = $region88
        $region87: #{tpu_custom_call.1} parent=83 // pred_region
          %s2193 = sand.u32 %s269, 1
          %s2194 = scalar_lea.sflag [#allocation4], %s2193
          %s2195 = sand.u32 %s269, 1
          %s2196 = smul.addr %s2195, 8
          %s2197 = scalar_lea.vmem [#allocation8], %s2196
          %2198 = dma.done %s2194, 128
        $region88: #{tpu_custom_call.1} parent=83 // pred_fallthru
          _
        // Predicated region
        $region89: #{tpu_custom_call.1} parent=83 // pred_check
          %p2199 = pneg %p310
        $region90: #{tpu_custom_call.1} parent=83 // pred_check_branch
          %2201 = sbr.rel (%p2199) target = $region92
        $region91: #{tpu_custom_call.1} parent=83 // pred_region
          %s2202 = sand.u32 %s295, 1
          %s2203 = scalar_lea.sflag [#allocation10], %s2202
          %s2204 = sand.u32 %s295, 1
          %s2205 = smul.addr %s2204, 32
          %s2206 = scalar_lea.vmem [#allocation9], %s2205
          %2207 = dma.done %s2203, 512
        $region92: #{tpu_custom_call.1} parent=83 // pred_fallthru
          _
      $region84: #{tpu_custom_call.1} parent=5 // pred_fallthru
        _
    $region6: #{tpu_custom_call.1} parent=1 // loop_footer
      %s34 = sadd.s32 1, %s30
    $region7: #{tpu_custom_call.1} parent=1 // loop_footer_branch
      %29 = sbr.rel target = $region3
    $region8: #{tpu_custom_call.1} parent=1 // loop_exit
      _
    %2208 = vsyncpa [#allocation3], 1
    %s2209 = scalar_lea.sflag [#allocation3], 1
    %2210 = vsyncpa %s2209, 1
    %2211 = vsyncpa [#allocation6], 1
    %s2212 = scalar_lea.sflag [#allocation6], 1
    %2213 = vsyncpa %s2212, 1
    %2214 = vsyncpa [#allocation4], 1
    %s2215 = scalar_lea.sflag [#allocation4], 1
    %2216 = vsyncpa %s2215, 1
    %2217 = vsyncpa [#allocation10], 1
    %s2218 = scalar_lea.sflag [#allocation10], 1
    %2219 = vsyncpa %s2218, 1

// kernel: tpu_custom_call.1
$region0: #{tpu_custom_call.1}
  #allocation0 [shape = 'u32[]', space=smem, size = 0x4, offset = 0x4, fixed_abs, tag = 'smem constant byte address 0x4 - core index']
  #allocation1 [shape = 'u32[144,128]{1,0:T(1,128)}', space=vmem, size = 0x12000, scoped, tag = 'internal scratch']
  %s0 = inlined_call_operand.hbm [shape: f32[2,8,32], index: 0, kind: input, shape index: {}]
  %s1 = inlined_call_operand.hbm [shape: f32[2,8,32], index: 1, kind: input, shape index: {}]
  %s2 = inlined_call_operand.hbm [shape: f32[2,8,32], index: 2, kind: input, shape index: {}]
  %s3 = inlined_call_operand.vmem [shape: f32[32,32], index: 3, kind: input, shape index: {}]
  %s4 = inlined_call_operand.vmem [shape: f32[32,32], index: 4, kind: input, shape index: {}]
  %s5 = inlined_call_operand.vmem [shape: f32[32,32], index: 5, kind: input, shape index: {}]
  %s6 = inlined_call_operand.vmem [shape: f32[64,32], index: 6, kind: input, shape index: {}]
  %s7 = inlined_call_operand.vmem [shape: f32[1,32], index: 7, kind: input, shape index: {}]
  %s8 = inlined_call_operand.vmem [shape: f32[1,32], index: 8, kind: input, shape index: {}]
  %s9 = inlined_call_operand.vmem [shape: f32[1,32], index: 9, kind: input, shape index: {}]
  %s10 = inlined_call_operand.hbm [shape: f32[2,8,32], index: 10, kind: output, shape index: {0}]
  %s11 = inlined_call_operand.hbm [shape: f32[4,2,8,8], index: 11, kind: output, shape index: {1}]
  %12 = xla_tuple %s10, %s11
  %s13 = sld [smem:[#allocation0]]
  $region93: #{tpu_custom_call.1} parent=0
    _
  %s15 = ssub.s32 1, %s13
  %s16 = scalar_select 0, %s15, %s13
  $region1: #{tpu_custom_call.1} parent=0
    #allocation2 [shape = 'u8[8192]{0}', space=vmem, size = 0x2000, scoped, tag = 'input window, operand 0']
    #allocation3 [shape = 's32[2]{0}', space=sflag, size = 0x8, scoped, tag = 'scoped memory for tpu_custom_call.1']
    #allocation4 [shape = 's32[2]{0}', space=sflag, size = 0x8, scoped, tag = 'scoped memory for tpu_custom_call.1']
    #allocation5 [shape = 'u8[8192]{0}', space=vmem, size = 0x2000, scoped, tag = 'input window, operand 1']
    #allocation6 [shape = 's32[2]{0}', space=sflag, size = 0x8, scoped, tag = 'scoped memory for tpu_custom_call.1']
    #allocation7 [shape = 'u8[8192]{0}', space=vmem, size = 0x2000, scoped, tag = 'input window, operand 2']
    #allocation8 [shape = 'u8[8192]{0}', space=vmem, size = 0x2000, scoped, tag = 'output window, operand 0']
    #allocation9 [shape = 'u8[32768]{0}', space=vmem, size = 0x8000, scoped, tag = 'output window, operand 1']
    #allocation10 [shape = 's32[2]{0}', space=sflag, size = 0x8, scoped, tag = 'scoped memory for tpu_custom_call.1']
    %17 = vsyncpa [#allocation3], 0
    %s18 = scalar_lea.sflag [#allocation3], 1
    %19 = vsyncpa %s18, 0
    %20 = vsyncpa [#allocation6], 0
    %s21 = scalar_lea.sflag [#allocation6], 1
    %22 = vsyncpa %s21, 0
    %23 = vsyncpa [#allocation4], 0
    %s24 = scalar_lea.sflag [#allocation4], 1
    %25 = vsyncpa %s24, 0
    %26 = vsyncpa [#allocation10], 0
    %s27 = scalar_lea.sflag [#allocation10], 1
    %28 = vsyncpa %s27, 0
    loop: start=0, step=1, limit=4
    $region2: #{tpu_custom_call.1} parent=1 // loop_pre_header
      _
    $region3: #{tpu_custom_call.1} parent=1 // loop_header
      %s30 = sphi 0, %s34
      %p31 = scmp.ge.s32.totalorder %s30, 4
      %s40 = sphi 0, %s42
      %s43 = sphi 0, %s40
      %s44 = sphi 0, %s43
      %s60 = sphi 0, %s44
      %s66 = sphi 0, %s68
      %s69 = sphi 0, %s66
      %s70 = sphi 0, %s69
      %s86 = sphi 0, %s70
      %s92 = sphi 0, %s94
      %s95 = sphi 0, %s92
      %s96 = sphi 0, %s95
      %s112 = sphi 0, %s96
      %s116 = sphi 0, %s116
      %s118 = sphi 0, %s116
      %s119 = sphi 0, %s118
      %s133 = sphi 0, %s119
      %s137 = sphi 0, %s137
      %s139 = sphi 0, %s137
      %s140 = sphi 0, %s139
      %s154 = sphi 0, %s140
      %s158 = sphi 0, %s158
      %s160 = sphi 0, %s158
      %s161 = sphi 0, %s160
      %s175 = sphi 0, %s161
      %s179 = sphi 0, %s179
      %s181 = sphi 0, %s179
      %s182 = sphi 0, %s181
      %s196 = sphi 0, %s182
      %s200 = sphi 0, %s200
      %s202 = sphi 0, %s200
      %s203 = sphi 0, %s202
      %s217 = sphi 0, %s203
      %s221 = sphi 0, %s221
      %s223 = sphi 0, %s221
      %s224 = sphi 0, %s223
      %s238 = sphi 0, %s224
      %s242 = sphi 0, %s242
      %s244 = sphi 0, %s242
      %s245 = sphi 0, %s244
      %s259 = sphi 0, %s245
      %s265 = sphi 0, %s267
      %s268 = sphi 0, %s265
      %s269 = sphi 0, %s268
      %s285 = sphi 0, %s269
      %s291 = sphi 0, %s293
      %s294 = sphi 0, %s291
      %s295 = sphi 0, %s294
      %s311 = sphi 0, %s295
    $region4: #{tpu_custom_call.1} parent=1 // loop_header_branch
      %33 = sbr.rel (%p31) target = $region8
    $region5: #{tpu_custom_call.1} parent=1 // loop_body
      %s35 = ssub.s32 %s30, 1
      %s36 = ssub.s32 %s30, 2
      %s37 = sadd.s32 %s30, 1
      %s38 = ssub.s32 %s30, %s37
      %p39 = scmp.eq.s32.totalorder %s38, 0
      %s41 = sadd.s32 %s40, 1
      %s42 = scalar_select %p39, %s40, %s41
      %p45 = pneg %p39
      %p46 = scmp.eq.s32.totalorder %s30, 1
      %p47 = por %p45, %p46
      %p48 = scmp.ne.s32.totalorder %s40, %s43
      %p49 = scmp.eq.s32.totalorder %s30, 0
      %p50 = por %p48, %p49
      %p51 = scmp.ne.s32.totalorder %s40, %s43
      %p52 = scmp.eq.s32.totalorder %s35, 1
      %p53 = por %p51, %p52
      %p54 = scmp.ne.s32.totalorder %s43, %s44
      %p55 = scmp.eq.s32.totalorder %s35, 0
      %p56 = por %p54, %p55
      %p57 = scmp.ne.s32.totalorder %s43, %s44
      %p58 = scmp.eq.s32.totalorder %s36, 1
      %p59 = por %p57, %p58
      %p61 = scmp.ne.s32.totalorder %s44, %s60
      %p62 = scmp.eq.s32.totalorder %s36, 0
      %p63 = por %p61, %p62
      %s64 = ssub.s32 %s30, %s37
      %p65 = scmp.eq.s32.totalorder %s64, 0
      %s67 = sadd.s32 %s66, 1
      %s68 = scalar_select %p65, %s66, %s67
      %p71 = pneg %p65
      %p72 = scmp.eq.s32.totalorder %s30, 1
      %p73 = por %p71, %p72
      %p74 = scmp.ne.s32.totalorder %s66, %s69
      %p75 = scmp.eq.s32.totalorder %s30, 0
      %p76 = por %p74, %p75
      %p77 = scmp.ne.s32.totalorder %s66, %s69
      %p78 = scmp.eq.s32.totalorder %s35, 1
      %p79 = por %p77, %p78
      %p80 = scmp.ne.s32.totalorder %s69, %s70
      %p81 = scmp.eq.s32.totalorder %s35, 0
      %p82 = por %p80, %p81
      %p83 = scmp.ne.s32.totalorder %s69, %s70
      %p84 = scmp.eq.s32.totalorder %s36, 1
      %p85 = por %p83, %p84
      %p87 = scmp.ne.s32.totalorder %s70, %s86
      %p88 = scmp.eq.s32.totalorder %s36, 0
      %p89 = por %p87, %p88
      %s90 = ssub.s32 %s30, %s37
      %p91 = scmp.eq.s32.totalorder %s90, 0
      %s93 = sadd.s32 %s92, 1
      %s94 = scalar_select %p91, %s92, %s93
      %p97 = pneg %p91
      %p98 = scmp.eq.s32.totalorder %s30, 1
      %p99 = por %p97, %p98
      %p100 = scmp.ne.s32.totalorder %s92, %s95
      %p101 = scmp.eq.s32.totalorder %s30, 0
      %p102 = por %p100, %p101
      %p103 = scmp.ne.s32.totalorder %s92, %s95
      %p104 = scmp.eq.s32.totalorder %s35, 1
      %p105 = por %p103, %p104
      %p106 = scmp.ne.s32.totalorder %s95, %s96
      %p107 = scmp.eq.s32.totalorder %s35, 0
      %p108 = por %p106, %p107
      %p109 = scmp.ne.s32.totalorder %s95, %s96
      %p110 = scmp.eq.s32.totalorder %s36, 1
      %p111 = por %p109, %p110
      %p113 = scmp.ne.s32.totalorder %s96, %s112
      %p114 = scmp.eq.s32.totalorder %s36, 0
      %p115 = por %p113, %p114
      %s117 = sadd.s32 %s116, 1
      %p120 = scmp.eq.s32.totalorder %s30, 1
      %p121 = scmp.ne.s32.totalorder %s116, %s118
      %p122 = scmp.eq.s32.totalorder %s30, 0
      %p123 = por %p121, %p122
      %p124 = scmp.ne.s32.totalorder %s116, %s118
      %p125 = scmp.eq.s32.totalorder %s35, 1
      %p126 = por %p124, %p125
      %p127 = scmp.ne.s32.totalorder %s118, %s119
      %p128 = scmp.eq.s32.totalorder %s35, 0
      %p129 = por %p127, %p128
      %p130 = scmp.ne.s32.totalorder %s118, %s119
      %p131 = scmp.eq.s32.totalorder %s36, 1
      %p132 = por %p130, %p131
      %p134 = scmp.ne.s32.totalorder %s119, %s133
      %p135 = scmp.eq.s32.totalorder %s36, 0
      %p136 = por %p134, %p135
      %s138 = sadd.s32 %s137, 1
      %p141 = scmp.eq.s32.totalorder %s30, 1
      %p142 = scmp.ne.s32.totalorder %s137, %s139
      %p143 = scmp.eq.s32.totalorder %s30, 0
      %p144 = por %p142, %p143
      %p145 = scmp.ne.s32.totalorder %s137, %s139
      %p146 = scmp.eq.s32.totalorder %s35, 1
      %p147 = por %p145, %p146
      %p148 = scmp.ne.s32.totalorder %s139, %s140
      %p149 = scmp.eq.s32.totalorder %s35, 0
      %p150 = por %p148, %p149
      %p151 = scmp.ne.s32.totalorder %s139, %s140
      %p152 = scmp.eq.s32.totalorder %s36, 1
      %p153 = por %p151, %p152
      %p155 = scmp.ne.s32.totalorder %s140, %s154
      %p156 = scmp.eq.s32.totalorder %s36, 0
      %p157 = por %p155, %p156
      %s159 = sadd.s32 %s158, 1
      %p162 = scmp.eq.s32.totalorder %s30, 1
      %p163 = scmp.ne.s32.totalorder %s158, %s160
      %p164 = scmp.eq.s32.totalorder %s30, 0
      %p165 = por %p163, %p164
      %p166 = scmp.ne.s32.totalorder %s158, %s160
      %p167 = scmp.eq.s32.totalorder %s35, 1
      %p168 = por %p166, %p167
      %p169 = scmp.ne.s32.totalorder %s160, %s161
      %p170 = scmp.eq.s32.totalorder %s35, 0
      %p171 = por %p169, %p170
      %p172 = scmp.ne.s32.totalorder %s160, %s161
      %p173 = scmp.eq.s32.totalorder %s36, 1
      %p174 = por %p172, %p173
      %p176 = scmp.ne.s32.totalorder %s161, %s175
      %p177 = scmp.eq.s32.totalorder %s36, 0
      %p178 = por %p176, %p177
      %s180 = sadd.s32 %s179, 1
      %p183 = scmp.eq.s32.totalorder %s30, 1
      %p184 = scmp.ne.s32.totalorder %s179, %s181
      %p185 = scmp.eq.s32.totalorder %s30, 0
      %p186 = por %p184, %p185
      %p187 = scmp.ne.s32.totalorder %s179, %s181
      %p188 = scmp.eq.s32.totalorder %s35, 1
      %p189 = por %p187, %p188
      %p190 = scmp.ne.s32.totalorder %s181, %s182
      %p191 = scmp.eq.s32.totalorder %s35, 0
      %p192 = por %p190, %p191
      %p193 = scmp.ne.s32.totalorder %s181, %s182
      %p194 = scmp.eq.s32.totalorder %s36, 1
      %p195 = por %p193, %p194
      %p197 = scmp.ne.s32.totalorder %s182, %s196
      %p198 = scmp.eq.s32.totalorder %s36, 0
      %p199 = por %p197, %p198
      %s201 = sadd.s32 %s200, 1
      %p204 = scmp.eq.s32.totalorder %s30, 1
      %p205 = scmp.ne.s32.totalorder %s200, %s202
      %p206 = scmp.eq.s32.totalorder %s30, 0
      %p207 = por %p205, %p206
      %p208 = scmp.ne.s32.totalorder %s200, %s202
      %p209 = scmp.eq.s32.totalorder %s35, 1
      %p210 = por %p208, %p209
      %p211 = scmp.ne.s32.totalorder %s202, %s203
      %p212 = scmp.eq.s32.totalorder %s35, 0
      %p213 = por %p211, %p212
      %p214 = scmp.ne.s32.totalorder %s202, %s203
      %p215 = scmp.eq.s32.totalorder %s36, 1
      %p216 = por %p214, %p215
      %p218 = scmp.ne.s32.totalorder %s203, %s217
      %p219 = scmp.eq.s32.totalorder %s36, 0
      %p220 = por %p218, %p219
      %s222 = sadd.s32 %s221, 1
      %p225 = scmp.eq.s32.totalorder %s30, 1
      %p226 = scmp.ne.s32.totalorder %s221, %s223
      %p227 = scmp.eq.s32.totalorder %s30, 0
      %p228 = por %p226, %p227
      %p229 = scmp.ne.s32.totalorder %s221, %s223
      %p230 = scmp.eq.s32.totalorder %s35, 1
      %p231 = por %p229, %p230
      %p232 = scmp.ne.s32.totalorder %s223, %s224
      %p233 = scmp.eq.s32.totalorder %s35, 0
      %p234 = por %p232, %p233
      %p235 = scmp.ne.s32.totalorder %s223, %s224
      %p236 = scmp.eq.s32.totalorder %s36, 1
      %p237 = por %p235, %p236
      %p239 = scmp.ne.s32.totalorder %s224, %s238
      %p240 = scmp.eq.s32.totalorder %s36, 0
      %p241 = por %p239, %p240
      %s243 = sadd.s32 %s242, 1
      %p246 = scmp.eq.s32.totalorder %s30, 1
      %p247 = scmp.ne.s32.totalorder %s242, %s244
      %p248 = scmp.eq.s32.totalorder %s30, 0
      %p249 = por %p247, %p248
      %p250 = scmp.ne.s32.totalorder %s242, %s244
      %p251 = scmp.eq.s32.totalorder %s35, 1
      %p252 = por %p250, %p251
      %p253 = scmp.ne.s32.totalorder %s244, %s245
      %p254 = scmp.eq.s32.totalorder %s35, 0
      %p255 = por %p253, %p254
      %p256 = scmp.ne.s32.totalorder %s244, %s245
      %p257 = scmp.eq.s32.totalorder %s36, 1
      %p258 = por %p256, %p257
      %p260 = scmp.ne.s32.totalorder %s245, %s259
      %p261 = scmp.eq.s32.totalorder %s36, 0
      %p262 = por %p260, %p261
      %s263 = ssub.s32 %s30, %s37
      %p264 = scmp.eq.s32.totalorder %s263, 0
      %s266 = sadd.s32 %s265, 1
      %s267 = scalar_select %p264, %s265, %s266
      %p270 = pneg %p264
      %p271 = scmp.eq.s32.totalorder %s30, 1
      %p272 = por %p270, %p271
      %p273 = scmp.ne.s32.totalorder %s265, %s268
      %p274 = scmp.eq.s32.totalorder %s30, 0
      %p275 = por %p273, %p274
      %p276 = scmp.ne.s32.totalorder %s265, %s268
      %p277 = scmp.eq.s32.totalorder %s35, 1
      %p278 = por %p276, %p277
      %p279 = scmp.ne.s32.totalorder %s268, %s269
      %p280 = scmp.eq.s32.totalorder %s35, 0
      %p281 = por %p279, %p280
      %p282 = scmp.ne.s32.totalorder %s268, %s269
      %p283 = scmp.eq.s32.totalorder %s36, 1
      %p284 = por %p282, %p283
      %p286 = scmp.ne.s32.totalorder %s269, %s285
      %p287 = scmp.eq.s32.totalorder %s36, 0
      %p288 = por %p286, %p287
      %s289 = ssub.s32 %s30, %s37
      %p290 = scmp.eq.s32.totalorder %s289, 0
      %s292 = sadd.s32 %s291, 1
      %s293 = scalar_select %p290, %s291, %s292
      %p296 = pneg %p290
      %p297 = scmp.eq.s32.totalorder %s30, 1
      %p298 = por %p296, %p297
      %p299 = scmp.ne.s32.totalorder %s291, %s294
      %p300 = scmp.eq.s32.totalorder %s30, 0
      %p301 = por %p299, %p300
      %p302 = scmp.ne.s32.totalorder %s291, %s294
      %p303 = scmp.eq.s32.totalorder %s35, 1
      %p304 = por %p302, %p303
      %p305 = scmp.ne.s32.totalorder %s294, %s295
      %p306 = scmp.eq.s32.totalorder %s35, 0
      %p307 = por %p305, %p306
      %p308 = scmp.ne.s32.totalorder %s294, %s295
      %p309 = scmp.eq.s32.totalorder %s36, 1
      %p310 = por %p308, %p309
      %p312 = scmp.ne.s32.totalorder %s295, %s311
      %p313 = scmp.eq.s32.totalorder %s36, 0
      %p314 = por %p312, %p313
      %p315 = scmp.le.s32.totalorder 1, %s30
      %p316 = scmp.lt.s32.totalorder %s30, 3
      %p317 = pnand %p315, %p316
      %p318 = pneg %p317
      // Predicated region
      $region9: #{tpu_custom_call.1} parent=5 // pred_check
        _
      $region10: #{tpu_custom_call.1} parent=5 // pred_check_branch
        %320 = sbr.rel (%p317) target = $region12
      $region11: #{tpu_custom_call.1} parent=5 // pred_region
        %s321 = ssub.s32 %s30, 1
        // Predicated region
        $region13: #{tpu_custom_call.1} parent=11 // pred_check
          %p322 = pneg %p129
        $region14: #{tpu_custom_call.1} parent=11 // pred_check_branch
          %324 = sbr.rel (%p322) target = $region16
        $region15: #{tpu_custom_call.1} parent=11 // pred_region
          _
        $region16: #{tpu_custom_call.1} parent=11 // pred_fallthru
          _
        // Predicated region
        $region17: #{tpu_custom_call.1} parent=11 // pred_check
          %p325 = pneg %p150
        $region18: #{tpu_custom_call.1} parent=11 // pred_check_branch
          %327 = sbr.rel (%p325) target = $region20
        $region19: #{tpu_custom_call.1} parent=11 // pred_region
          _
        $region20: #{tpu_custom_call.1} parent=11 // pred_fallthru
          _
        // Predicated region
        $region21: #{tpu_custom_call.1} parent=11 // pred_check
          %p328 = pneg %p171
        $region22: #{tpu_custom_call.1} parent=11 // pred_check_branch
          %330 = sbr.rel (%p328) target = $region24
        $region23: #{tpu_custom_call.1} parent=11 // pred_region
          _
        $region24: #{tpu_custom_call.1} parent=11 // pred_fallthru
          _
        // Predicated region
        $region25: #{tpu_custom_call.1} parent=11 // pred_check
          %p331 = pneg %p192
        $region26: #{tpu_custom_call.1} parent=11 // pred_check_branch
          %333 = sbr.rel (%p331) target = $region28
        $region27: #{tpu_custom_call.1} parent=11 // pred_region
          _
        $region28: #{tpu_custom_call.1} parent=11 // pred_fallthru
          _
        // Predicated region
        $region29: #{tpu_custom_call.1} parent=11 // pred_check
          %p334 = pneg %p213
        $region30: #{tpu_custom_call.1} parent=11 // pred_check_branch
          %336 = sbr.rel (%p334) target = $region32
        $region31: #{tpu_custom_call.1} parent=11 // pred_region
          _
        $region32: #{tpu_custom_call.1} parent=11 // pred_fallthru
          _
        // Predicated region
        $region33: #{tpu_custom_call.1} parent=11 // pred_check
          %p337 = pneg %p234
        $region34: #{tpu_custom_call.1} parent=11 // pred_check_branch
          %339 = sbr.rel (%p337) target = $region36
        $region35: #{tpu_custom_call.1} parent=11 // pred_region
          _
        $region36: #{tpu_custom_call.1} parent=11 // pred_fallthru
          _
        // Predicated region
        $region37: #{tpu_custom_call.1} parent=11 // pred_check
          %p340 = pneg %p255
        $region38: #{tpu_custom_call.1} parent=11 // pred_check_branch
          %342 = sbr.rel (%p340) target = $region40
        $region39: #{tpu_custom_call.1} parent=11 // pred_region
          _
        $region40: #{tpu_custom_call.1} parent=11 // pred_fallthru
          _
      $region12: #{tpu_custom_call.1} parent=5 // pred_fallthru
        _
      %p343 = scmp.lt.s32.totalorder %s30, 2
      // Predicated region
      $region41: #{tpu_custom_call.1} parent=5 // pred_check
        %p344 = pneg %p343
      $region42: #{tpu_custom_call.1} parent=5 // pred_check_branch
        %346 = sbr.rel (%p344) target = $region44
      $region43: #{tpu_custom_call.1} parent=5 // pred_region
        // Predicated region
        $region45: #{tpu_custom_call.1} parent=43 // pred_check
          %p347 = pneg %p50
        $region46: #{tpu_custom_call.1} parent=43 // pred_check_branch
          %349 = sbr.rel (%p347) target = $region48
        $region47: #{tpu_custom_call.1} parent=43 // pred_region
          %s350 = sand.u32 %s40, 1
          %s351 = scalar_lea.sflag [#allocation3], %s350
          %s352 = sand.u32 %s40, 1
          %s353 = smul.addr %s352, 8
          %s354 = scalar_lea.vmem [#allocation2], %s353
          %s356 = ssub.s32 128, 128
          %357 = vsyncadd %s351, %s356
          %s358 = smul.addr %s30, 128
          %s359 = scalar_lea.hbm %s0, %s358
          %s361 = sshll.u32 %s354, 4
          %s362 = int_to_ptr.vmem [resolvable:$true] %s361
          %364 = dma.hbm_to_vmem [thread:$0]  %s359, 128, %s362, %s351
        $region48: #{tpu_custom_call.1} parent=43 // pred_fallthru
          _
        // Predicated region
        $region49: #{tpu_custom_call.1} parent=43 // pred_check
          %p365 = pneg %p76
        $region50: #{tpu_custom_call.1} parent=43 // pred_check_branch
          %367 = sbr.rel (%p365) target = $region52
        $region51: #{tpu_custom_call.1} parent=43 // pred_region
          %s368 = sand.u32 %s30, 1
          %s369 = scalar_lea.sflag [#allocation6], %s368
          %s370 = sand.u32 %s66, 1
          %s371 = smul.addr %s370, 8
          %s372 = scalar_lea.vmem [#allocation5], %s371
          %s374 = ssub.s32 128, 128
          %375 = vsyncadd %s369, %s374
          %s376 = smul.addr %s30, 128
          %s377 = scalar_lea.hbm %s1, %s376
          %s379 = sshll.u32 %s372, 4
          %s380 = int_to_ptr.vmem [resolvable:$true] %s379
          %382 = dma.hbm_to_vmem [thread:$0]  %s377, 128, %s380, %s369
        $region52: #{tpu_custom_call.1} parent=43 // pred_fallthru
          _
        // Predicated region
        $region53: #{tpu_custom_call.1} parent=43 // pred_check
          %p383 = pneg %p102
        $region54: #{tpu_custom_call.1} parent=43 // pred_check_branch
          %385 = sbr.rel (%p383) target = $region56
        $region55: #{tpu_custom_call.1} parent=43 // pred_region
          %s386 = sand.u32 %s30, 1
          %s387 = scalar_lea.sflag [#allocation6], %s386
          %s388 = sand.u32 %s92, 1
          %s389 = smul.addr %s388, 8
          %s390 = scalar_lea.vmem [#allocation7], %s389
          %s392 = ssub.s32 128, 128
          %393 = vsyncadd %s387, %s392
          %s394 = smul.addr %s30, 128
          %s395 = scalar_lea.hbm %s2, %s394
          %s397 = sshll.u32 %s390, 4
          %s398 = int_to_ptr.vmem [resolvable:$true] %s397
          %400 = dma.hbm_to_vmem [thread:$0]  %s395, 128, %s398, %s387
        $region56: #{tpu_custom_call.1} parent=43 // pred_fallthru
          _
      $region44: #{tpu_custom_call.1} parent=5 // pred_fallthru
        _
      %p401 = scmp.le.s32.totalorder 1, %s30
      %p402 = scmp.lt.s32.totalorder %s30, 3
      %p403 = pnand %p401, %p402
      %p404 = pneg %p403
      // Predicated region
      $region57: #{tpu_custom_call.1} parent=5 // pred_check
        _
      $region58: #{tpu_custom_call.1} parent=5 // pred_check_branch
        %406 = sbr.rel (%p403) target = $region60
      $region59: #{tpu_custom_call.1} parent=5 // pred_region
        %s407 = ssub.s32 %s30, 1
        %s408 = sand.u32 %s43, 1
        %s409 = scalar_lea.sflag [#allocation3], %s408
        %s410 = sand.u32 %s43, 1
        %s411 = smul.addr %s410, 8
        %s412 = scalar_lea.vmem [#allocation2], %s411
        // Predicated region
        $region61: #{tpu_custom_call.1} parent=59 // pred_check
          %p413 = pneg %p56
        $region62: #{tpu_custom_call.1} parent=59 // pred_check_branch
          %415 = sbr.rel (%p413) target = $region64
        $region63: #{tpu_custom_call.1} parent=59 // pred_region
          %416 = dma.done %s409, 128
        $region64: #{tpu_custom_call.1} parent=59 // pred_fallthru
          _
        %s417 = sand.u32 %s35, 1
        %s418 = scalar_lea.sflag [#allocation6], %s417
        %s419 = sand.u32 %s69, 1
        %s420 = smul.addr %s419, 8
        %s421 = scalar_lea.vmem [#allocation5], %s420
        // Predicated region
        $region65: #{tpu_custom_call.1} parent=59 // pred_check
          %p422 = pneg %p82
        $region66: #{tpu_custom_call.1} parent=59 // pred_check_branch
          %424 = sbr.rel (%p422) target = $region68
        $region67: #{tpu_custom_call.1} parent=59 // pred_region
          %425 = dma.done %s418, 128
        $region68: #{tpu_custom_call.1} parent=59 // pred_fallthru
          _
        %s426 = sand.u32 %s35, 1
        %s427 = scalar_lea.sflag [#allocation6], %s426
        %s428 = sand.u32 %s95, 1
        %s429 = smul.addr %s428, 8
        %s430 = scalar_lea.vmem [#allocation7], %s429
        // Predicated region
        $region69: #{tpu_custom_call.1} parent=59 // pred_check
          %p431 = pneg %p108
        $region70: #{tpu_custom_call.1} parent=59 // pred_check_branch
          %433 = sbr.rel (%p431) target = $region72
        $region71: #{tpu_custom_call.1} parent=59 // pred_region
          %434 = dma.done %s427, 128
        $region72: #{tpu_custom_call.1} parent=59 // pred_fallthru
          _
        %s435 = sand.u32 %s43, 1
        %s436 = scalar_lea.sflag [#allocation3], %s435
        %s437 = sand.u32 %s43, 1
        %s438 = smul.addr %s437, 8
        %s439 = scalar_lea.vmem [#allocation2], %s438
        %p440 = pneg %p56
        %p441 = pneg %p53
        %s442 = sand.u32 %s35, 1
        %s443 = scalar_lea.sflag [#allocation6], %s442
        %s444 = sand.u32 %s69, 1
        %s445 = smul.addr %s444, 8
        %s446 = scalar_lea.vmem [#allocation5], %s445
        %p447 = pneg %p82
        %p448 = pneg %p79
        %s449 = sand.u32 %s35, 1
        %s450 = scalar_lea.sflag [#allocation6], %s449
        %s451 = sand.u32 %s95, 1
        %s452 = smul.addr %s451, 8
        %s453 = scalar_lea.vmem [#allocation7], %s452
        %p454 = pneg %p108
        %p455 = pneg %p105
        %p456 = pneg %p129
        %p457 = pneg %p126
        %p458 = pneg %p150
        %p459 = pneg %p147
        %p460 = pneg %p171
        %p461 = pneg %p168
        %p462 = pneg %p192
        %p463 = pneg %p189
        %p464 = pneg %p213
        %p465 = pneg %p210
        %p466 = pneg %p234
        %p467 = pneg %p231
        %p468 = pneg %p255
        %p469 = pneg %p252
        %p470 = pneg %p281
        %p471 = pneg %p278
        %s472 = sand.u32 %s268, 1
        %s473 = scalar_lea.sflag [#allocation4], %s472
        %s474 = sand.u32 %s268, 1
        %s475 = smul.addr %s474, 8
        %s476 = scalar_lea.vmem [#allocation8], %s475
        %p477 = pneg %p307
        %p478 = pneg %p304
        %s479 = sand.u32 %s294, 1
        %s480 = scalar_lea.sflag [#allocation10], %s479
        %s481 = sand.u32 %s294, 1
        %s482 = smul.addr %s481, 32
        %s483 = scalar_lea.vmem [#allocation9], %s482
        %v484 = vld [vmem:[%s412] sm:$0xff]
        %v485 = vld [vmem:[%s421] sm:$0xff]
        %v486 = vld [vmem:[%s430] sm:$0xff]
        %v487 = vld [vmem:[%s3] sm:$0xff]
        %v488 = vld [vmem:[%s3 + $0x8] sm:$0xff]
        %v489 = vld [vmem:[%s3 + $0x10] sm:$0xff]
        %v490 = vld [vmem:[%s3 + $0x18] sm:$0xff]
        %vm491 = vcmask 261120
        %v493 = vsel %vm491, %v484, 0
        %495 = vmatprep.subr.mxu0 0.0
        %496 = vmatpush1.msra.mxu0 %v487
        %497 = vmatprep.subr.mxu0 0.0
        %498 = vmatpush1.msra.mxu0 %v488
        %499 = vmatprep.subr.mxu0 0.0
        %500 = vmatpush1.msra.mxu0 %v489
        %501 = vmatprep.subr.mxu0 0.0
        %502 = vmatpush1.msra.mxu0 %v490
        %503 = vmatprep.subr.mxu0 0.0
        %504 = vmatpush1.msra.mxu0 0.0
        %505 = vmatprep.subr.mxu0 0.0
        %506 = vmatpush1.msra.mxu0 0.0
        %507 = vmatprep.subr.mxu0 0.0
        %508 = vmatpush1.msra.mxu0 0.0
        %509 = vmatprep.subr.mxu0 0.0
        %510 = vmatpush1.msra.mxu0 0.0
        %511 = vmatprep.subr.mxu0 0.0
        %512 = vmatpush1.msra.mxu0 0.0
        %513 = vmatprep.subr.mxu0 0.0
        %514 = vmatpush1.msra.mxu0 0.0
        %515 = vmatprep.subr.mxu0 0.0
        %516 = vmatpush1.msra.mxu0 0.0
        %517 = vmatprep.subr.mxu0 0.0
        %518 = vmatpush1.msra.mxu0 0.0
        %519 = vmatprep.subr.mxu0 0.0
        %520 = vmatpush1.msra.mxu0 0.0
        %521 = vmatprep.subr.mxu0 0.0
        %522 = vmatpush1.msra.mxu0 0.0
        %523 = vmatprep.subr.mxu0 0.0
        %524 = vmatpush1.msra.mxu0 0.0
        %525 = vmatprep.subr.mxu0 0.0
        %526 = vmatpush1.msra.mxu0 0.0
        %527 = vmatprep.subr.mxu0 0.0
        %528 = vmatpush1.msra.mxu0 0.0
        %529 = vmatprep.subr.mxu0 0.0
        %530 = vmatpush1.msra.mxu0 0.0
        %531 = vmatprep.subr.mxu0 0.0
        %532 = vmatpush1.msra.mxu0 0.0
        %533 = vmatprep.subr.mxu0 0.0
        %534 = vmatpush1.msra.mxu0 0.0
        %535 = vmatprep.subr.mxu0 0.0
        %536 = vmatpush1.msra.mxu0 0.0
        %537 = vmatprep.subr.mxu0 0.0
        %538 = vmatpush1.msra.mxu0 0.0
        %539 = vmatprep.subr.mxu0 0.0
        %540 = vmatpush1.msra.mxu0 0.0
        %541 = vmatprep.subr.mxu0 0.0
        %542 = vmatpush1.msra.mxu0 0.0
        %543 = vmatprep.subr.mxu0 0.0
        %544 = vmatpush1.msra.mxu0 0.0
        %545 = vmatprep.subr.mxu0 0.0
        %546 = vmatpush1.msra.mxu0 0.0
        %547 = vmatprep.subr.mxu0 0.0
        %548 = vmatpush1.msra.mxu0 0.0
        %549 = vmatprep.subr.mxu0 0.0
        %550 = vmatpush1.msra.mxu0 0.0
        %551 = vmatprep.subr.mxu0 0.0
        %552 = vmatpush1.msra.mxu0 0.0
        %553 = vmatprep.subr.mxu0 0.0
        %554 = vmatpush1.msra.mxu0 0.0
        %555 = vmatprep.subr.mxu0 0.0
        %556 = vmatpush1.msra.mxu0 0.0
        %557 = vmatprep.subr.mxu0 0.0
        %558 = vmatpush1.msra.mxu0 0.0
        %559 = vmatprep.mubr.f32.mxu0 0.0
        %560 = vmatmul.mubr.f32.gmra.mrb[0].mxu0 %v493
        %v561 = vpop.f32.mrb[0].mxu0
        %v562 = vadd.f32 0.0, %v561
        %v563 = vpop.f32.mrb[0].mxu0
        %564 = vdwg.mxu0
        %v565 = vld [vmem:[%s4] sm:$0xff]
        %v566 = vld [vmem:[%s4 + $0x8] sm:$0xff]
        %v567 = vld [vmem:[%s4 + $0x10] sm:$0xff]
        %v568 = vld [vmem:[%s4 + $0x18] sm:$0xff]
        %v570 = vsel %vm491, %v485, 0
        %572 = vmatprep.subr.mxu0 0.0
        %573 = vmatpush1.msra.mxu0 %v565
        %574 = vmatprep.subr.mxu0 0.0
        %575 = vmatpush1.msra.mxu0 %v566
        %576 = vmatprep.subr.mxu0 0.0
        %577 = vmatpush1.msra.mxu0 %v567
        %578 = vmatprep.subr.mxu0 0.0
        %579 = vmatpush1.msra.mxu0 %v568
        %580 = vmatprep.subr.mxu0 0.0
        %581 = vmatpush1.msra.mxu0 0.0
        %582 = vmatprep.subr.mxu0 0.0
        %583 = vmatpush1.msra.mxu0 0.0
        %584 = vmatprep.subr.mxu0 0.0
        %585 = vmatpush1.msra.mxu0 0.0
        %586 = vmatprep.subr.mxu0 0.0
        %587 = vmatpush1.msra.mxu0 0.0
        %588 = vmatprep.subr.mxu0 0.0
        %589 = vmatpush1.msra.mxu0 0.0
        %590 = vmatprep.subr.mxu0 0.0
        %591 = vmatpush1.msra.mxu0 0.0
        %592 = vmatprep.subr.mxu0 0.0
        %593 = vmatpush1.msra.mxu0 0.0
        %594 = vmatprep.subr.mxu0 0.0
        %595 = vmatpush1.msra.mxu0 0.0
        %596 = vmatprep.subr.mxu0 0.0
        %597 = vmatpush1.msra.mxu0 0.0
        %598 = vmatprep.subr.mxu0 0.0
        %599 = vmatpush1.msra.mxu0 0.0
        %600 = vmatprep.subr.mxu0 0.0
        %601 = vmatpush1.msra.mxu0 0.0
        %602 = vmatprep.subr.mxu0 0.0
        %603 = vmatpush1.msra.mxu0 0.0
        %604 = vmatprep.subr.mxu0 0.0
        %605 = vmatpush1.msra.mxu0 0.0
        %606 = vmatprep.subr.mxu0 0.0
        %607 = vmatpush1.msra.mxu0 0.0
        %608 = vmatprep.subr.mxu0 0.0
        %609 = vmatpush1.msra.mxu0 0.0
        %610 = vmatprep.subr.mxu0 0.0
        %611 = vmatpush1.msra.mxu0 0.0
        %612 = vmatprep.subr.mxu0 0.0
        %613 = vmatpush1.msra.mxu0 0.0
        %614 = vmatprep.subr.mxu0 0.0
        %615 = vmatpush1.msra.mxu0 0.0
        %616 = vmatprep.subr.mxu0 0.0
        %617 = vmatpush1.msra.mxu0 0.0
        %618 = vmatprep.subr.mxu0 0.0
        %619 = vmatpush1.msra.mxu0 0.0
        %620 = vmatprep.subr.mxu0 0.0
        %621 = vmatpush1.msra.mxu0 0.0
        %622 = vmatprep.subr.mxu0 0.0
        %623 = vmatpush1.msra.mxu0 0.0
        %624 = vmatprep.subr.mxu0 0.0
        %625 = vmatpush1.msra.mxu0 0.0
        %626 = vmatprep.subr.mxu0 0.0
        %627 = vmatpush1.msra.mxu0 0.0
        %628 = vmatprep.subr.mxu0 0.0
        %629 = vmatpush1.msra.mxu0 0.0
        %630 = vmatprep.subr.mxu0 0.0
        %631 = vmatpush1.msra.mxu0 0.0
        %632 = vmatprep.subr.mxu0 0.0
        %633 = vmatpush1.msra.mxu0 0.0
        %634 = vmatprep.subr.mxu0 0.0
        %635 = vmatpush1.msra.mxu0 0.0
        %636 = vmatprep.mubr.f32.mxu0 0.0
        %637 = vmatmul.mubr.f32.gmra.mrb[0].mxu0 %v570
        %v638 = vpop.f32.mrb[0].mxu0
        %v639 = vadd.f32 0.0, %v638
        %v640 = vpop.f32.mrb[0].mxu0
        %641 = vdwg.mxu0
        %v642 = vld [vmem:[%s5] sm:$0xff]
        %v643 = vld [vmem:[%s5 + $0x8] sm:$0xff]
        %v644 = vld [vmem:[%s5 + $0x10] sm:$0xff]
        %v645 = vld [vmem:[%s5 + $0x18] sm:$0xff]
        %v647 = vsel %vm491, %v486, 0
        %649 = vmatprep.subr.mxu0 0.0
        %650 = vmatpush1.msra.mxu0 %v642
        %651 = vmatprep.subr.mxu0 0.0
        %652 = vmatpush1.msra.mxu0 %v643
        %653 = vmatprep.subr.mxu0 0.0
        %654 = vmatpush1.msra.mxu0 %v644
        %655 = vmatprep.subr.mxu0 0.0
        %656 = vmatpush1.msra.mxu0 %v645
        %657 = vmatprep.subr.mxu0 0.0
        %658 = vmatpush1.msra.mxu0 0.0
        %659 = vmatprep.subr.mxu0 0.0
        %660 = vmatpush1.msra.mxu0 0.0
        %661 = vmatprep.subr.mxu0 0.0
        %662 = vmatpush1.msra.mxu0 0.0
        %663 = vmatprep.subr.mxu0 0.0
        %664 = vmatpush1.msra.mxu0 0.0
        %665 = vmatprep.subr.mxu0 0.0
        %666 = vmatpush1.msra.mxu0 0.0
        %667 = vmatprep.subr.mxu0 0.0
        %668 = vmatpush1.msra.mxu0 0.0
        %669 = vmatprep.subr.mxu0 0.0
        %670 = vmatpush1.msra.mxu0 0.0
        %671 = vmatprep.subr.mxu0 0.0
        %672 = vmatpush1.msra.mxu0 0.0
        %673 = vmatprep.subr.mxu0 0.0
        %674 = vmatpush1.msra.mxu0 0.0
        %675 = vmatprep.subr.mxu0 0.0
        %676 = vmatpush1.msra.mxu0 0.0
        %677 = vmatprep.subr.mxu0 0.0
        %678 = vmatpush1.msra.mxu0 0.0
        %679 = vmatprep.subr.mxu0 0.0
        %680 = vmatpush1.msra.mxu0 0.0
        %681 = vmatprep.subr.mxu0 0.0
        %682 = vmatpush1.msra.mxu0 0.0
        %683 = vmatprep.subr.mxu0 0.0
        %684 = vmatpush1.msra.mxu0 0.0
        %685 = vmatprep.subr.mxu0 0.0
        %686 = vmatpush1.msra.mxu0 0.0
        %687 = vmatprep.subr.mxu0 0.0
        %688 = vmatpush1.msra.mxu0 0.0
        %689 = vmatprep.subr.mxu0 0.0
        %690 = vmatpush1.msra.mxu0 0.0
        %691 = vmatprep.subr.mxu0 0.0
        %692 = vmatpush1.msra.mxu0 0.0
        %693 = vmatprep.subr.mxu0 0.0
        %694 = vmatpush1.msra.mxu0 0.0
        %695 = vmatprep.subr.mxu0 0.0
        %696 = vmatpush1.msra.mxu0 0.0
        %697 = vmatprep.subr.mxu0 0.0
        %698 = vmatpush1.msra.mxu0 0.0
        %699 = vmatprep.subr.mxu0 0.0
        %700 = vmatpush1.msra.mxu0 0.0
        %701 = vmatprep.subr.mxu0 0.0
        %702 = vmatpush1.msra.mxu0 0.0
        %703 = vmatprep.subr.mxu0 0.0
        %704 = vmatpush1.msra.mxu0 0.0
        %705 = vmatprep.subr.mxu0 0.0
        %706 = vmatpush1.msra.mxu0 0.0
        %707 = vmatprep.subr.mxu0 0.0
        %708 = vmatpush1.msra.mxu0 0.0
        %709 = vmatprep.subr.mxu0 0.0
        %710 = vmatpush1.msra.mxu0 0.0
        %711 = vmatprep.subr.mxu0 0.0
        %712 = vmatpush1.msra.mxu0 0.0
        %713 = vmatprep.mubr.f32.mxu0 0.0
        %714 = vmatmul.mubr.f32.gmra.mrb[0].mxu0 %v647
        %v715 = vpop.f32.mrb[0].mxu0
        %v716 = vadd.f32 0.0, %v715
        %v717 = vpop.f32.mrb[0].mxu0
        %718 = vdwg.mxu0
        %v719 = vmul.f32 %v716, 0.35355338
        %721 = vrot.lane.b32.xlu0 %v719, 120
        %v722 = vpop.permute.xlu0 %721
        %723 = vrot.lane.b32.xlu0 %v719, 112
        %v724 = vpop.permute.xlu0 %723
        %725 = vrot.lane.b32.xlu0 %v719, 104
        %v726 = vpop.permute.xlu0 %725
        %728 = vrot.lane.b32.xlu0 %v562, 120
        %v729 = vpop.permute.xlu0 %728
        %730 = vrot.lane.b32.xlu0 %v562, 112
        %v731 = vpop.permute.xlu0 %730
        %732 = vrot.lane.b32.xlu0 %v562, 104
        %v733 = vpop.permute.xlu0 %732
        %735 = vrot.lane.b32.xlu0 %v639, 120
        %v736 = vpop.permute.xlu0 %735
        %738 = vrot.lane.b32.xlu0 %v639, 112
        %v739 = vpop.permute.xlu0 %738
        %741 = vrot.lane.b32.xlu0 %v639, 104
        %v742 = vpop.permute.xlu0 %741
        %vm744 = vcmask 64512
        %v745 = vsel %vm744, %v719, 0
        %v747 = vsel %vm744, %v562, 0
        %749 = vmatprep.subr.mxu0 0.0
        %750 = vmatpush1.xpose.msra.mxu0 %v747
        %751 = vmatprep.subr.mxu0 0.0
        %752 = vmatpush1.xpose.msra.mxu0 0.0
        %753 = vmatprep.subr.mxu0 0.0
        %754 = vmatpush1.xpose.msra.mxu0 0.0
        %755 = vmatprep.subr.mxu0 0.0
        %756 = vmatpush1.xpose.msra.mxu0 0.0
        %757 = vmatprep.subr.mxu0 0.0
        %758 = vmatpush1.xpose.msra.mxu0 0.0
        %759 = vmatprep.subr.mxu0 0.0
        %760 = vmatpush1.xpose.msra.mxu0 0.0
        %761 = vmatprep.subr.mxu0 0.0
        %762 = vmatpush1.xpose.msra.mxu0 0.0
        %763 = vmatprep.subr.mxu0 0.0
        %764 = vmatpush1.xpose.msra.mxu0 0.0
        %765 = vmatprep.subr.mxu0 0.0
        %766 = vmatpush1.xpose.msra.mxu0 0.0
        %767 = vmatprep.subr.mxu0 0.0
        %768 = vmatpush1.xpose.msra.mxu0 0.0
        %769 = vmatprep.subr.mxu0 0.0
        %770 = vmatpush1.xpose.msra.mxu0 0.0
        %771 = vmatprep.subr.mxu0 0.0
        %772 = vmatpush1.xpose.msra.mxu0 0.0
        %773 = vmatprep.subr.mxu0 0.0
        %774 = vmatpush1.xpose.msra.mxu0 0.0
        %775 = vmatprep.subr.mxu0 0.0
        %776 = vmatpush1.xpose.msra.mxu0 0.0
        %777 = vmatprep.subr.mxu0 0.0
        %778 = vmatpush1.xpose.msra.mxu0 0.0
        %779 = vmatprep.subr.mxu0 0.0
        %780 = vmatpush1.xpose.msra.mxu0 0.0
        %781 = vmatprep.subr.mxu0 0.0
        %782 = vmatpush1.xpose.msra.mxu0 0.0
        %783 = vmatprep.subr.mxu0 0.0
        %784 = vmatpush1.xpose.msra.mxu0 0.0
        %785 = vmatprep.subr.mxu0 0.0
        %786 = vmatpush1.xpose.msra.mxu0 0.0
        %787 = vmatprep.subr.mxu0 0.0
        %788 = vmatpush1.xpose.msra.mxu0 0.0
        %789 = vmatprep.subr.mxu0 0.0
        %790 = vmatpush1.xpose.msra.mxu0 0.0
        %791 = vmatprep.subr.mxu0 0.0
        %792 = vmatpush1.xpose.msra.mxu0 0.0
        %793 = vmatprep.subr.mxu0 0.0
        %794 = vmatpush1.xpose.msra.mxu0 0.0
        %795 = vmatprep.subr.mxu0 0.0
        %796 = vmatpush1.xpose.msra.mxu0 0.0
        %797 = vmatprep.subr.mxu0 0.0
        %798 = vmatpush1.xpose.msra.mxu0 0.0
        %799 = vmatprep.subr.mxu0 0.0
        %800 = vmatpush1.xpose.msra.mxu0 0.0
        %801 = vmatprep.subr.mxu0 0.0
        %802 = vmatpush1.xpose.msra.mxu0 0.0
        %803 = vmatprep.subr.mxu0 0.0
        %804 = vmatpush1.xpose.msra.mxu0 0.0
        %805 = vmatprep.subr.mxu0 0.0
        %806 = vmatpush1.xpose.msra.mxu0 0.0
        %807 = vmatprep.subr.mxu0 0.0
        %808 = vmatpush1.xpose.msra.mxu0 0.0
        %809 = vmatprep.subr.mxu0 0.0
        %810 = vmatpush1.xpose.msra.mxu0 0.0
        %811 = vmatprep.subr.mxu0 0.0
        %812 = vmatpush1.xpose.msra.mxu0 0.0
        %813 = vmatprep.mubr.f32.mxu0 0.0
        %814 = vmatmul.mubr.f32.gmra.mrb[0].mxu0 %v745
        %v815 = vpop.f32.mrb[0].mxu0
        %v816 = vadd.f32 0.0, %v815
        %v817 = vpop.f32.mrb[0].mxu0
        %818 = vdwg.mxu0
        %v819 = vsel %vm744, %v722, 0
        %v821 = vsel %vm744, %v729, 0
        %823 = vmatprep.subr.mxu0 0.0
        %824 = vmatpush1.xpose.msra.mxu0 %v821
        %825 = vmatprep.subr.mxu0 0.0
        %826 = vmatpush1.xpose.msra.mxu0 0.0
        %827 = vmatprep.subr.mxu0 0.0
        %828 = vmatpush1.xpose.msra.mxu0 0.0
        %829 = vmatprep.subr.mxu0 0.0
        %830 = vmatpush1.xpose.msra.mxu0 0.0
        %831 = vmatprep.subr.mxu0 0.0
        %832 = vmatpush1.xpose.msra.mxu0 0.0
        %833 = vmatprep.subr.mxu0 0.0
        %834 = vmatpush1.xpose.msra.mxu0 0.0
        %835 = vmatprep.subr.mxu0 0.0
        %836 = vmatpush1.xpose.msra.mxu0 0.0
        %837 = vmatprep.subr.mxu0 0.0
        %838 = vmatpush1.xpose.msra.mxu0 0.0
        %839 = vmatprep.subr.mxu0 0.0
        %840 = vmatpush1.xpose.msra.mxu0 0.0
        %841 = vmatprep.subr.mxu0 0.0
        %842 = vmatpush1.xpose.msra.mxu0 0.0
        %843 = vmatprep.subr.mxu0 0.0
        %844 = vmatpush1.xpose.msra.mxu0 0.0
        %845 = vmatprep.subr.mxu0 0.0
        %846 = vmatpush1.xpose.msra.mxu0 0.0
        %847 = vmatprep.subr.mxu0 0.0
        %848 = vmatpush1.xpose.msra.mxu0 0.0
        %849 = vmatprep.subr.mxu0 0.0
        %850 = vmatpush1.xpose.msra.mxu0 0.0
        %851 = vmatprep.subr.mxu0 0.0
        %852 = vmatpush1.xpose.msra.mxu0 0.0
        %853 = vmatprep.subr.mxu0 0.0
        %854 = vmatpush1.xpose.msra.mxu0 0.0
        %855 = vmatprep.subr.mxu0 0.0
        %856 = vmatpush1.xpose.msra.mxu0 0.0
        %857 = vmatprep.subr.mxu0 0.0
        %858 = vmatpush1.xpose.msra.mxu0 0.0
        %859 = vmatprep.subr.mxu0 0.0
        %860 = vmatpush1.xpose.msra.mxu0 0.0
        %861 = vmatprep.subr.mxu0 0.0
        %862 = vmatpush1.xpose.msra.mxu0 0.0
        %863 = vmatprep.subr.mxu0 0.0
        %864 = vmatpush1.xpose.msra.mxu0 0.0
        %865 = vmatprep.subr.mxu0 0.0
        %866 = vmatpush1.xpose.msra.mxu0 0.0
        %867 = vmatprep.subr.mxu0 0.0
        %868 = vmatpush1.xpose.msra.mxu0 0.0
        %869 = vmatprep.subr.mxu0 0.0
        %870 = vmatpush1.xpose.msra.mxu0 0.0
        %871 = vmatprep.subr.mxu0 0.0
        %872 = vmatpush1.xpose.msra.mxu0 0.0
        %873 = vmatprep.subr.mxu0 0.0
        %874 = vmatpush1.xpose.msra.mxu0 0.0
        %875 = vmatprep.subr.mxu0 0.0
        %876 = vmatpush1.xpose.msra.mxu0 0.0
        %877 = vmatprep.subr.mxu0 0.0
        %878 = vmatpush1.xpose.msra.mxu0 0.0
        %879 = vmatprep.subr.mxu0 0.0
        %880 = vmatpush1.xpose.msra.mxu0 0.0
        %881 = vmatprep.subr.mxu0 0.0
        %882 = vmatpush1.xpose.msra.mxu0 0.0
        %883 = vmatprep.subr.mxu0 0.0
        %884 = vmatpush1.xpose.msra.mxu0 0.0
        %885 = vmatprep.subr.mxu0 0.0
        %886 = vmatpush1.xpose.msra.mxu0 0.0
        %887 = vmatprep.mubr.f32.mxu0 0.0
        %888 = vmatmul.mubr.f32.gmra.mrb[0].mxu0 %v819
        %v889 = vpop.f32.mrb[0].mxu0
        %v890 = vadd.f32 0.0, %v889
        %v891 = vpop.f32.mrb[0].mxu0
        %892 = vdwg.mxu0
        %v893 = vsel %vm744, %v724, 0
        %v895 = vsel %vm744, %v731, 0
        %897 = vmatprep.subr.mxu0 0.0
        %898 = vmatpush1.xpose.msra.mxu0 %v895
        %899 = vmatprep.subr.mxu0 0.0
        %900 = vmatpush1.xpose.msra.mxu0 0.0
        %901 = vmatprep.subr.mxu0 0.0
        %902 = vmatpush1.xpose.msra.mxu0 0.0
        %903 = vmatprep.subr.mxu0 0.0
        %904 = vmatpush1.xpose.msra.mxu0 0.0
        %905 = vmatprep.subr.mxu0 0.0
        %906 = vmatpush1.xpose.msra.mxu0 0.0
        %907 = vmatprep.subr.mxu0 0.0
        %908 = vmatpush1.xpose.msra.mxu0 0.0
        %909 = vmatprep.subr.mxu0 0.0
        %910 = vmatpush1.xpose.msra.mxu0 0.0
        %911 = vmatprep.subr.mxu0 0.0
        %912 = vmatpush1.xpose.msra.mxu0 0.0
        %913 = vmatprep.subr.mxu0 0.0
        %914 = vmatpush1.xpose.msra.mxu0 0.0
        %915 = vmatprep.subr.mxu0 0.0
        %916 = vmatpush1.xpose.msra.mxu0 0.0
        %917 = vmatprep.subr.mxu0 0.0
        %918 = vmatpush1.xpose.msra.mxu0 0.0
        %919 = vmatprep.subr.mxu0 0.0
        %920 = vmatpush1.xpose.msra.mxu0 0.0
        %921 = vmatprep.subr.mxu0 0.0
        %922 = vmatpush1.xpose.msra.mxu0 0.0
        %923 = vmatprep.subr.mxu0 0.0
        %924 = vmatpush1.xpose.msra.mxu0 0.0
        %925 = vmatprep.subr.mxu0 0.0
        %926 = vmatpush1.xpose.msra.mxu0 0.0
        %927 = vmatprep.subr.mxu0 0.0
        %928 = vmatpush1.xpose.msra.mxu0 0.0
        %929 = vmatprep.subr.mxu0 0.0
        %930 = vmatpush1.xpose.msra.mxu0 0.0
        %931 = vmatprep.subr.mxu0 0.0
        %932 = vmatpush1.xpose.msra.mxu0 0.0
        %933 = vmatprep.subr.mxu0 0.0
        %934 = vmatpush1.xpose.msra.mxu0 0.0
        %935 = vmatprep.subr.mxu0 0.0
        %936 = vmatpush1.xpose.msra.mxu0 0.0
        %937 = vmatprep.subr.mxu0 0.0
        %938 = vmatpush1.xpose.msra.mxu0 0.0
        %939 = vmatprep.subr.mxu0 0.0
        %940 = vmatpush1.xpose.msra.mxu0 0.0
        %941 = vmatprep.subr.mxu0 0.0
        %942 = vmatpush1.xpose.msra.mxu0 0.0
        %943 = vmatprep.subr.mxu0 0.0
        %944 = vmatpush1.xpose.msra.mxu0 0.0
        %945 = vmatprep.subr.mxu0 0.0
        %946 = vmatpush1.xpose.msra.mxu0 0.0
        %947 = vmatprep.subr.mxu0 0.0
        %948 = vmatpush1.xpose.msra.mxu0 0.0
        %949 = vmatprep.subr.mxu0 0.0
        %950 = vmatpush1.xpose.msra.mxu0 0.0
        %951 = vmatprep.subr.mxu0 0.0
        %952 = vmatpush1.xpose.msra.mxu0 0.0
        %953 = vmatprep.subr.mxu0 0.0
        %954 = vmatpush1.xpose.msra.mxu0 0.0
        %955 = vmatprep.subr.mxu0 0.0
        %956 = vmatpush1.xpose.msra.mxu0 0.0
        %957 = vmatprep.subr.mxu0 0.0
        %958 = vmatpush1.xpose.msra.mxu0 0.0
        %959 = vmatprep.subr.mxu0 0.0
        %960 = vmatpush1.xpose.msra.mxu0 0.0
        %961 = vmatprep.mubr.f32.mxu0 0.0
        %962 = vmatmul.mubr.f32.gmra.mrb[0].mxu0 %v893
        %v963 = vpop.f32.mrb[0].mxu0
        %v964 = vadd.f32 0.0, %v963
        %v965 = vpop.f32.mrb[0].mxu0
        %966 = vdwg.mxu0
        %v967 = vsel %vm744, %v726, 0
        %v969 = vsel %vm744, %v733, 0
        %971 = vmatprep.subr.mxu0 0.0
        %972 = vmatpush1.xpose.msra.mxu0 %v969
        %973 = vmatprep.subr.mxu0 0.0
        %974 = vmatpush1.xpose.msra.mxu0 0.0
        %975 = vmatprep.subr.mxu0 0.0
        %976 = vmatpush1.xpose.msra.mxu0 0.0
        %977 = vmatprep.subr.mxu0 0.0
        %978 = vmatpush1.xpose.msra.mxu0 0.0
        %979 = vmatprep.subr.mxu0 0.0
        %980 = vmatpush1.xpose.msra.mxu0 0.0
        %981 = vmatprep.subr.mxu0 0.0
        %982 = vmatpush1.xpose.msra.mxu0 0.0
        %983 = vmatprep.subr.mxu0 0.0
        %984 = vmatpush1.xpose.msra.mxu0 0.0
        %985 = vmatprep.subr.mxu0 0.0
        %986 = vmatpush1.xpose.msra.mxu0 0.0
        %987 = vmatprep.subr.mxu0 0.0
        %988 = vmatpush1.xpose.msra.mxu0 0.0
        %989 = vmatprep.subr.mxu0 0.0
        %990 = vmatpush1.xpose.msra.mxu0 0.0
        %991 = vmatprep.subr.mxu0 0.0
        %992 = vmatpush1.xpose.msra.mxu0 0.0
        %993 = vmatprep.subr.mxu0 0.0
        %994 = vmatpush1.xpose.msra.mxu0 0.0
        %995 = vmatprep.subr.mxu0 0.0
        %996 = vmatpush1.xpose.msra.mxu0 0.0
        %997 = vmatprep.subr.mxu0 0.0
        %998 = vmatpush1.xpose.msra.mxu0 0.0
        %999 = vmatprep.subr.mxu0 0.0
        %1000 = vmatpush1.xpose.msra.mxu0 0.0
        %1001 = vmatprep.subr.mxu0 0.0
        %1002 = vmatpush1.xpose.msra.mxu0 0.0
        %1003 = vmatprep.subr.mxu0 0.0
        %1004 = vmatpush1.xpose.msra.mxu0 0.0
        %1005 = vmatprep.subr.mxu0 0.0
        %1006 = vmatpush1.xpose.msra.mxu0 0.0
        %1007 = vmatprep.subr.mxu0 0.0
        %1008 = vmatpush1.xpose.msra.mxu0 0.0
        %1009 = vmatprep.subr.mxu0 0.0
        %1010 = vmatpush1.xpose.msra.mxu0 0.0
        %1011 = vmatprep.subr.mxu0 0.0
        %1012 = vmatpush1.xpose.msra.mxu0 0.0
        %1013 = vmatprep.subr.mxu0 0.0
        %1014 = vmatpush1.xpose.msra.mxu0 0.0
        %1015 = vmatprep.subr.mxu0 0.0
        %1016 = vmatpush1.xpose.msra.mxu0 0.0
        %1017 = vmatprep.subr.mxu0 0.0
        %1018 = vmatpush1.xpose.msra.mxu0 0.0
        %1019 = vmatprep.subr.mxu0 0.0
        %1020 = vmatpush1.xpose.msra.mxu0 0.0
        %1021 = vmatprep.subr.mxu0 0.0
        %1022 = vmatpush1.xpose.msra.mxu0 0.0
        %1023 = vmatprep.subr.mxu0 0.0
        %1024 = vmatpush1.xpose.msra.mxu0 0.0
        %1025 = vmatprep.subr.mxu0 0.0
        %1026 = vmatpush1.xpose.msra.mxu0 0.0
        %1027 = vmatprep.subr.mxu0 0.0
        %1028 = vmatpush1.xpose.msra.mxu0 0.0
        %1029 = vmatprep.subr.mxu0 0.0
        %1030 = vmatpush1.xpose.msra.mxu0 0.0
        %1031 = vmatprep.subr.mxu0 0.0
        %1032 = vmatpush1.xpose.msra.mxu0 0.0
        %1033 = vmatprep.subr.mxu0 0.0
        %1034 = vmatpush1.xpose.msra.mxu0 0.0
        %1035 = vmatprep.mubr.f32.mxu0 0.0
        %1036 = vmatmul.mubr.f32.gmra.mrb[0].mxu0 %v967
        %v1037 = vpop.f32.mrb[0].mxu0
        %v1038 = vadd.f32 0.0, %v1037
        %v1039 = vpop.f32.mrb[0].mxu0
        %1040 = vdwg.mxu0
        %v1041 = vsel %vm744, %v816, -inf
        %1042 = vmax.xlane.f32.xlu0 %v1041
        %v1043 = vpop.xlane.xlu0 %1042
        %v1044 = vsel %vm744, %v890, -inf
        %1045 = vmax.xlane.f32.xlu0 %v1044
        %v1046 = vpop.xlane.xlu0 %1045
        %v1047 = vsel %vm744, %v964, -inf
        %1048 = vmax.xlane.f32.xlu0 %v1047
        %v1049 = vpop.xlane.xlu0 %1048
        %v1050 = vsel %vm744, %v1038, -inf
        %1051 = vmax.xlane.f32.xlu0 %v1050
        %v1052 = vpop.xlane.xlu0 %1051
        %v1053 = vsub.f32 %v816, %v1043
        %v1054 = vsub.f32 %v890, %v1046
        %v1055 = vsub.f32 %v964, %v1049
        %v1056 = vsub.f32 %v1038, %v1052
        %v1057 = vmul.f32 %v1053, 1.442695
        %v1058 = vpow.pop %v1057
        %v1059 = vmul.f32 %v1054, 1.442695
        %v1060 = vpow.pop %v1059
        %v1061 = vmul.f32 %v1055, 1.442695
        %v1062 = vpow.pop %v1061
        %v1063 = vmul.f32 %v1056, 1.442695
        %v1064 = vpow.pop %v1063
        %v1065 = vsel %vm744, %v1058, 0.0
        %1066 = vadd.xlane.f32.xlu0 %v1065
        %v1067 = vpop.xlane.xlu0 %1066
        %v1068 = vsel %vm744, %v1060, 0.0
        %1069 = vadd.xlane.f32.xlu0 %v1068
        %v1070 = vpop.xlane.xlu0 %1069
        %v1071 = vsel %vm744, %v1062, 0.0
        %1072 = vadd.xlane.f32.xlu0 %v1071
        %v1073 = vpop.xlane.xlu0 %1072
        %v1074 = vsel %vm744, %v1064, 0.0
        %1075 = vadd.xlane.f32.xlu0 %v1074
        %v1076 = vpop.xlane.xlu0 %1075
        %v1077 = vrcp.pop %v1067
        %v1078 = vmul.f32 %v1058, %v1077
        %v1079 = vrcp.pop %v1070
        %v1080 = vmul.f32 %v1060, %v1079
        %v1081 = vrcp.pop %v1073
        %v1082 = vmul.f32 %v1062, %v1081
        %v1083 = vrcp.pop %v1076
        %v1084 = vmul.f32 %v1064, %v1083
        %1085 = vst.msk [vmem:[%s483] sm:$0xff] %vm744, %v1078
        %1086 = vst.msk [vmem:[%s483 + $0x8] sm:$0xff] %vm744, %v1080
        %1087 = vst.msk [vmem:[%s483 + $0x10] sm:$0xff] %vm744, %v1082
        %1088 = vst.msk [vmem:[%s483 + $0x18] sm:$0xff] %vm744, %v1084
        %v1090 = vsel %vm744, %v1078, 0
        %1092 = vmatprep.subr.mxu0 0.0
        %1093 = vmatpush1.msra.mxu0 %v639
        %1094 = vmatprep.subr.mxu0 0.0
        %1095 = vmatpush1.msra.mxu0 0.0
        %1096 = vmatprep.subr.mxu0 0.0
        %1097 = vmatpush1.msra.mxu0 0.0
        %1098 = vmatprep.subr.mxu0 0.0
        %1099 = vmatpush1.msra.mxu0 0.0
        %1100 = vmatprep.subr.mxu0 0.0
        %1101 = vmatpush1.msra.mxu0 0.0
        %1102 = vmatprep.subr.mxu0 0.0
        %1103 = vmatpush1.msra.mxu0 0.0
        %1104 = vmatprep.subr.mxu0 0.0
        %1105 = vmatpush1.msra.mxu0 0.0
        %1106 = vmatprep.subr.mxu0 0.0
        %1107 = vmatpush1.msra.mxu0 0.0
        %1108 = vmatprep.subr.mxu0 0.0
        %1109 = vmatpush1.msra.mxu0 0.0
        %1110 = vmatprep.subr.mxu0 0.0
        %1111 = vmatpush1.msra.mxu0 0.0
        %1112 = vmatprep.subr.mxu0 0.0
        %1113 = vmatpush1.msra.mxu0 0.0
        %1114 = vmatprep.subr.mxu0 0.0
        %1115 = vmatpush1.msra.mxu0 0.0
        %1116 = vmatprep.subr.mxu0 0.0
        %1117 = vmatpush1.msra.mxu0 0.0
        %1118 = vmatprep.subr.mxu0 0.0
        %1119 = vmatpush1.msra.mxu0 0.0
        %1120 = vmatprep.subr.mxu0 0.0
        %1121 = vmatpush1.msra.mxu0 0.0
        %1122 = vmatprep.subr.mxu0 0.0
        %1123 = vmatpush1.msra.mxu0 0.0
        %1124 = vmatprep.subr.mxu0 0.0
        %1125 = vmatpush1.msra.mxu0 0.0
        %1126 = vmatprep.subr.mxu0 0.0
        %1127 = vmatpush1.msra.mxu0 0.0
        %1128 = vmatprep.subr.mxu0 0.0
        %1129 = vmatpush1.msra.mxu0 0.0
        %1130 = vmatprep.subr.mxu0 0.0
        %1131 = vmatpush1.msra.mxu0 0.0
        %1132 = vmatprep.subr.mxu0 0.0
        %1133 = vmatpush1.msra.mxu0 0.0
        %1134 = vmatprep.subr.mxu0 0.0
        %1135 = vmatpush1.msra.mxu0 0.0
        %1136 = vmatprep.subr.mxu0 0.0
        %1137 = vmatpush1.msra.mxu0 0.0
        %1138 = vmatprep.subr.mxu0 0.0
        %1139 = vmatpush1.msra.mxu0 0.0
        %1140 = vmatprep.subr.mxu0 0.0
        %1141 = vmatpush1.msra.mxu0 0.0
        %1142 = vmatprep.subr.mxu0 0.0
        %1143 = vmatpush1.msra.mxu0 0.0
        %1144 = vmatprep.subr.mxu0 0.0
        %1145 = vmatpush1.msra.mxu0 0.0
        %1146 = vmatprep.subr.mxu0 0.0
        %1147 = vmatpush1.msra.mxu0 0.0
        %1148 = vmatprep.subr.mxu0 0.0
        %1149 = vmatpush1.msra.mxu0 0.0
        %1150 = vmatprep.subr.mxu0 0.0
        %1151 = vmatpush1.msra.mxu0 0.0
        %1152 = vmatprep.subr.mxu0 0.0
        %1153 = vmatpush1.msra.mxu0 0.0
        %1154 = vmatprep.subr.mxu0 0.0
        %1155 = vmatpush1.msra.mxu0 0.0
        %1156 = vmatprep.mubr.f32.mxu0 0.0
        %1157 = vmatmul.mubr.f32.gmra.mrb[0].mxu0 %v1090
        %v1158 = vpop.f32.mrb[0].mxu0
        %v1159 = vadd.f32 0.0, %v1158
        %v1160 = vpop.f32.mrb[0].mxu0
        %1161 = vdwg.mxu0
        %v1163 = vsel %vm744, %v1080, 0
        %1165 = vmatprep.subr.mxu0 0.0
        %1166 = vmatpush1.msra.mxu0 %v736
        %1167 = vmatprep.subr.mxu0 0.0
        %1168 = vmatpush1.msra.mxu0 0.0
        %1169 = vmatprep.subr.mxu0 0.0
        %1170 = vmatpush1.msra.mxu0 0.0
        %1171 = vmatprep.subr.mxu0 0.0
        %1172 = vmatpush1.msra.mxu0 0.0
        %1173 = vmatprep.subr.mxu0 0.0
        %1174 = vmatpush1.msra.mxu0 0.0
        %1175 = vmatprep.subr.mxu0 0.0
        %1176 = vmatpush1.msra.mxu0 0.0
        %1177 = vmatprep.subr.mxu0 0.0
        %1178 = vmatpush1.msra.mxu0 0.0
        %1179 = vmatprep.subr.mxu0 0.0
        %1180 = vmatpush1.msra.mxu0 0.0
        %1181 = vmatprep.subr.mxu0 0.0
        %1182 = vmatpush1.msra.mxu0 0.0
        %1183 = vmatprep.subr.mxu0 0.0
        %1184 = vmatpush1.msra.mxu0 0.0
        %1185 = vmatprep.subr.mxu0 0.0
        %1186 = vmatpush1.msra.mxu0 0.0
        %1187 = vmatprep.subr.mxu0 0.0
        %1188 = vmatpush1.msra.mxu0 0.0
        %1189 = vmatprep.subr.mxu0 0.0
        %1190 = vmatpush1.msra.mxu0 0.0
        %1191 = vmatprep.subr.mxu0 0.0
        %1192 = vmatpush1.msra.mxu0 0.0
        %1193 = vmatprep.subr.mxu0 0.0
        %1194 = vmatpush1.msra.mxu0 0.0
        %1195 = vmatprep.subr.mxu0 0.0
        %1196 = vmatpush1.msra.mxu0 0.0
        %1197 = vmatprep.subr.mxu0 0.0
        %1198 = vmatpush1.msra.mxu0 0.0
        %1199 = vmatprep.subr.mxu0 0.0
        %1200 = vmatpush1.msra.mxu0 0.0
        %1201 = vmatprep.subr.mxu0 0.0
        %1202 = vmatpush1.msra.mxu0 0.0
        %1203 = vmatprep.subr.mxu0 0.0
        %1204 = vmatpush1.msra.mxu0 0.0
        %1205 = vmatprep.subr.mxu0 0.0
        %1206 = vmatpush1.msra.mxu0 0.0
        %1207 = vmatprep.subr.mxu0 0.0
        %1208 = vmatpush1.msra.mxu0 0.0
        %1209 = vmatprep.subr.mxu0 0.0
        %1210 = vmatpush1.msra.mxu0 0.0
        %1211 = vmatprep.subr.mxu0 0.0
        %1212 = vmatpush1.msra.mxu0 0.0
        %1213 = vmatprep.subr.mxu0 0.0
        %1214 = vmatpush1.msra.mxu0 0.0
        %1215 = vmatprep.subr.mxu0 0.0
        %1216 = vmatpush1.msra.mxu0 0.0
        %1217 = vmatprep.subr.mxu0 0.0
        %1218 = vmatpush1.msra.mxu0 0.0
        %1219 = vmatprep.subr.mxu0 0.0
        %1220 = vmatpush1.msra.mxu0 0.0
        %1221 = vmatprep.subr.mxu0 0.0
        %1222 = vmatpush1.msra.mxu0 0.0
        %1223 = vmatprep.subr.mxu0 0.0
        %1224 = vmatpush1.msra.mxu0 0.0
        %1225 = vmatprep.subr.mxu0 0.0
        %1226 = vmatpush1.msra.mxu0 0.0
        %1227 = vmatprep.subr.mxu0 0.0
        %1228 = vmatpush1.msra.mxu0 0.0
        %1229 = vmatprep.mubr.f32.mxu0 0.0
        %1230 = vmatmul.mubr.f32.gmra.mrb[0].mxu0 %v1163
        %v1231 = vpop.f32.mrb[0].mxu0
        %v1232 = vadd.f32 0.0, %v1231
        %v1233 = vpop.f32.mrb[0].mxu0
        %1234 = vdwg.mxu0
        %v1236 = vsel %vm744, %v1082, 0
        %1238 = vmatprep.subr.mxu0 0.0
        %1239 = vmatpush1.msra.mxu0 %v739
        %1240 = vmatprep.subr.mxu0 0.0
        %1241 = vmatpush1.msra.mxu0 0.0
        %1242 = vmatprep.subr.mxu0 0.0
        %1243 = vmatpush1.msra.mxu0 0.0
        %1244 = vmatprep.subr.mxu0 0.0
        %1245 = vmatpush1.msra.mxu0 0.0
        %1246 = vmatprep.subr.mxu0 0.0
        %1247 = vmatpush1.msra.mxu0 0.0
        %1248 = vmatprep.subr.mxu0 0.0
        %1249 = vmatpush1.msra.mxu0 0.0
        %1250 = vmatprep.subr.mxu0 0.0
        %1251 = vmatpush1.msra.mxu0 0.0
        %1252 = vmatprep.subr.mxu0 0.0
        %1253 = vmatpush1.msra.mxu0 0.0
        %1254 = vmatprep.subr.mxu0 0.0
        %1255 = vmatpush1.msra.mxu0 0.0
        %1256 = vmatprep.subr.mxu0 0.0
        %1257 = vmatpush1.msra.mxu0 0.0
        %1258 = vmatprep.subr.mxu0 0.0
        %1259 = vmatpush1.msra.mxu0 0.0
        %1260 = vmatprep.subr.mxu0 0.0
        %1261 = vmatpush1.msra.mxu0 0.0
        %1262 = vmatprep.subr.mxu0 0.0
        %1263 = vmatpush1.msra.mxu0 0.0
        %1264 = vmatprep.subr.mxu0 0.0
        %1265 = vmatpush1.msra.mxu0 0.0
        %1266 = vmatprep.subr.mxu0 0.0
        %1267 = vmatpush1.msra.mxu0 0.0
        %1268 = vmatprep.subr.mxu0 0.0
        %1269 = vmatpush1.msra.mxu0 0.0
        %1270 = vmatprep.subr.mxu0 0.0
        %1271 = vmatpush1.msra.mxu0 0.0
        %1272 = vmatprep.subr.mxu0 0.0
        %1273 = vmatpush1.msra.mxu0 0.0
        %1274 = vmatprep.subr.mxu0 0.0
        %1275 = vmatpush1.msra.mxu0 0.0
        %1276 = vmatprep.subr.mxu0 0.0
        %1277 = vmatpush1.msra.mxu0 0.0
        %1278 = vmatprep.subr.mxu0 0.0
        %1279 = vmatpush1.msra.mxu0 0.0
        %1280 = vmatprep.subr.mxu0 0.0
        %1281 = vmatpush1.msra.mxu0 0.0
        %1282 = vmatprep.subr.mxu0 0.0
        %1283 = vmatpush1.msra.mxu0 0.0
        %1284 = vmatprep.subr.mxu0 0.0
        %1285 = vmatpush1.msra.mxu0 0.0
        %1286 = vmatprep.subr.mxu0 0.0
        %1287 = vmatpush1.msra.mxu0 0.0
        %1288 = vmatprep.subr.mxu0 0.0
        %1289 = vmatpush1.msra.mxu0 0.0
        %1290 = vmatprep.subr.mxu0 0.0
        %1291 = vmatpush1.msra.mxu0 0.0
        %1292 = vmatprep.subr.mxu0 0.0
        %1293 = vmatpush1.msra.mxu0 0.0
        %1294 = vmatprep.subr.mxu0 0.0
        %1295 = vmatpush1.msra.mxu0 0.0
        %1296 = vmatprep.subr.mxu0 0.0
        %1297 = vmatpush1.msra.mxu0 0.0
        %1298 = vmatprep.subr.mxu0 0.0
        %1299 = vmatpush1.msra.mxu0 0.0
        %1300 = vmatprep.subr.mxu0 0.0
        %1301 = vmatpush1.msra.mxu0 0.0
        %1302 = vmatprep.mubr.f32.mxu0 0.0
        %1303 = vmatmul.mubr.f32.gmra.mrb[0].mxu0 %v1236
        %v1304 = vpop.f32.mrb[0].mxu0
        %v1305 = vadd.f32 0.0, %v1304
        %v1306 = vpop.f32.mrb[0].mxu0
        %1307 = vdwg.mxu0
        %v1309 = vsel %vm744, %v1084, 0
        %1311 = vmatprep.subr.mxu0 0.0
        %1312 = vmatpush1.msra.mxu0 %v742
        %1313 = vmatprep.subr.mxu0 0.0
        %1314 = vmatpush1.msra.mxu0 0.0
        %1315 = vmatprep.subr.mxu0 0.0
        %1316 = vmatpush1.msra.mxu0 0.0
        %1317 = vmatprep.subr.mxu0 0.0
        %1318 = vmatpush1.msra.mxu0 0.0
        %1319 = vmatprep.subr.mxu0 0.0
        %1320 = vmatpush1.msra.mxu0 0.0
        %1321 = vmatprep.subr.mxu0 0.0
        %1322 = vmatpush1.msra.mxu0 0.0
        %1323 = vmatprep.subr.mxu0 0.0
        %1324 = vmatpush1.msra.mxu0 0.0
        %1325 = vmatprep.subr.mxu0 0.0
        %1326 = vmatpush1.msra.mxu0 0.0
        %1327 = vmatprep.subr.mxu0 0.0
        %1328 = vmatpush1.msra.mxu0 0.0
        %1329 = vmatprep.subr.mxu0 0.0
        %1330 = vmatpush1.msra.mxu0 0.0
        %1331 = vmatprep.subr.mxu0 0.0
        %1332 = vmatpush1.msra.mxu0 0.0
        %1333 = vmatprep.subr.mxu0 0.0
        %1334 = vmatpush1.msra.mxu0 0.0
        %1335 = vmatprep.subr.mxu0 0.0
        %1336 = vmatpush1.msra.mxu0 0.0
        %1337 = vmatprep.subr.mxu0 0.0
        %1338 = vmatpush1.msra.mxu0 0.0
        %1339 = vmatprep.subr.mxu0 0.0
        %1340 = vmatpush1.msra.mxu0 0.0
        %1341 = vmatprep.subr.mxu0 0.0
        %1342 = vmatpush1.msra.mxu0 0.0
        %1343 = vmatprep.subr.mxu0 0.0
        %1344 = vmatpush1.msra.mxu0 0.0
        %1345 = vmatprep.subr.mxu0 0.0
        %1346 = vmatpush1.msra.mxu0 0.0
        %1347 = vmatprep.subr.mxu0 0.0
        %1348 = vmatpush1.msra.mxu0 0.0
        %1349 = vmatprep.subr.mxu0 0.0
        %1350 = vmatpush1.msra.mxu0 0.0
        %1351 = vmatprep.subr.mxu0 0.0
        %1352 = vmatpush1.msra.mxu0 0.0
        %1353 = vmatprep.subr.mxu0 0.0
        %1354 = vmatpush1.msra.mxu0 0.0
        %1355 = vmatprep.subr.mxu0 0.0
        %1356 = vmatpush1.msra.mxu0 0.0
        %1357 = vmatprep.subr.mxu0 0.0
        %1358 = vmatpush1.msra.mxu0 0.0
        %1359 = vmatprep.subr.mxu0 0.0
        %1360 = vmatpush1.msra.mxu0 0.0
        %1361 = vmatprep.subr.mxu0 0.0
        %1362 = vmatpush1.msra.mxu0 0.0
        %1363 = vmatprep.subr.mxu0 0.0
        %1364 = vmatpush1.msra.mxu0 0.0
        %1365 = vmatprep.subr.mxu0 0.0
        %1366 = vmatpush1.msra.mxu0 0.0
        %1367 = vmatprep.subr.mxu0 0.0
        %1368 = vmatpush1.msra.mxu0 0.0
        %1369 = vmatprep.subr.mxu0 0.0
        %1370 = vmatpush1.msra.mxu0 0.0
        %1371 = vmatprep.subr.mxu0 0.0
        %1372 = vmatpush1.msra.mxu0 0.0
        %1373 = vmatprep.subr.mxu0 0.0
        %1374 = vmatpush1.msra.mxu0 0.0
        %1375 = vmatprep.mubr.f32.mxu0 0.0
        %1376 = vmatmul.mubr.f32.gmra.mrb[0].mxu0 %v1309
        %v1377 = vpop.f32.mrb[0].mxu0
        %v1378 = vadd.f32 0.0, %v1377
        %v1379 = vpop.f32.mrb[0].mxu0
        %1380 = vdwg.mxu0
        %1382 = vrot.lane.b32.xlu0 %v1232, 8
        %v1383 = vpop.permute.xlu0 %1382
        %1386 = vrot.lane.b32.xlu0 %v1305, 16
        %v1387 = vpop.permute.xlu0 %1386
        %1390 = vrot.lane.b32.xlu0 %v1378, 24
        %v1391 = vpop.permute.xlu0 %1390
        %v1393 = vsel %vm744, %v1159, %v1383
        %vm1394 = vcmask 130048
        %v1395 = vsel %vm1394, %v1393, %v1387
        %vm1396 = vcmask 195584
        %v1397 = vsel %vm1396, %v1395, %v1391
        %v1398 = vld [vmem:[%s6] sm:$0xff]
        %v1399 = vld [vmem:[%s6 + $0x8] sm:$0xff]
        %v1400 = vld [vmem:[%s6 + $0x10] sm:$0xff]
        %v1401 = vld [vmem:[%s6 + $0x18] sm:$0xff]
        %v1402 = vld [vmem:[%s6 + $0x20] sm:$0xff]
        %v1403 = vld [vmem:[%s6 + $0x28] sm:$0xff]
        %v1404 = vld [vmem:[%s6 + $0x30] sm:$0xff]
        %v1405 = vld [vmem:[%s6 + $0x38] sm:$0xff]
        %v1407 = vsel %vm491, %v1397, 0
        %1409 = vmatprep.subr.mxu0 0.0
        %1410 = vmatpush1.msra.mxu0 %v1402
        %1411 = vmatprep.subr.mxu0 0.0
        %1412 = vmatpush1.msra.mxu0 %v1403
        %1413 = vmatprep.subr.mxu0 0.0
        %1414 = vmatpush1.msra.mxu0 %v1404
        %1415 = vmatprep.subr.mxu0 0.0
        %1416 = vmatpush1.msra.mxu0 %v1405
        %1417 = vmatprep.subr.mxu0 0.0
        %1418 = vmatpush1.msra.mxu0 0.0
        %1419 = vmatprep.subr.mxu0 0.0
        %1420 = vmatpush1.msra.mxu0 0.0
        %1421 = vmatprep.subr.mxu0 0.0
        %1422 = vmatpush1.msra.mxu0 0.0
        %1423 = vmatprep.subr.mxu0 0.0
        %1424 = vmatpush1.msra.mxu0 0.0
        %1425 = vmatprep.subr.mxu0 0.0
        %1426 = vmatpush1.msra.mxu0 0.0
        %1427 = vmatprep.subr.mxu0 0.0
        %1428 = vmatpush1.msra.mxu0 0.0
        %1429 = vmatprep.subr.mxu0 0.0
        %1430 = vmatpush1.msra.mxu0 0.0
        %1431 = vmatprep.subr.mxu0 0.0
        %1432 = vmatpush1.msra.mxu0 0.0
        %1433 = vmatprep.subr.mxu0 0.0
        %1434 = vmatpush1.msra.mxu0 0.0
        %1435 = vmatprep.subr.mxu0 0.0
        %1436 = vmatpush1.msra.mxu0 0.0
        %1437 = vmatprep.subr.mxu0 0.0
        %1438 = vmatpush1.msra.mxu0 0.0
        %1439 = vmatprep.subr.mxu0 0.0
        %1440 = vmatpush1.msra.mxu0 0.0
        %1441 = vmatprep.subr.mxu0 0.0
        %1442 = vmatpush1.msra.mxu0 0.0
        %1443 = vmatprep.subr.mxu0 0.0
        %1444 = vmatpush1.msra.mxu0 0.0
        %1445 = vmatprep.subr.mxu0 0.0
        %1446 = vmatpush1.msra.mxu0 0.0
        %1447 = vmatprep.subr.mxu0 0.0
        %1448 = vmatpush1.msra.mxu0 0.0
        %1449 = vmatprep.subr.mxu0 0.0
        %1450 = vmatpush1.msra.mxu0 0.0
        %1451 = vmatprep.subr.mxu0 0.0
        %1452 = vmatpush1.msra.mxu0 0.0
        %1453 = vmatprep.subr.mxu0 0.0
        %1454 = vmatpush1.msra.mxu0 0.0
        %1455 = vmatprep.subr.mxu0 0.0
        %1456 = vmatpush1.msra.mxu0 0.0
        %1457 = vmatprep.subr.mxu0 0.0
        %1458 = vmatpush1.msra.mxu0 0.0
        %1459 = vmatprep.subr.mxu0 0.0
        %1460 = vmatpush1.msra.mxu0 0.0
        %1461 = vmatprep.subr.mxu0 0.0
        %1462 = vmatpush1.msra.mxu0 0.0
        %1463 = vmatprep.subr.mxu0 0.0
        %1464 = vmatpush1.msra.mxu0 0.0
        %1465 = vmatprep.subr.mxu0 0.0
        %1466 = vmatpush1.msra.mxu0 0.0
        %1467 = vmatprep.subr.mxu0 0.0
        %1468 = vmatpush1.msra.mxu0 0.0
        %1469 = vmatprep.subr.mxu0 0.0
        %1470 = vmatpush1.msra.mxu0 0.0
        %1471 = vmatprep.subr.mxu0 0.0
        %1472 = vmatpush1.msra.mxu0 0.0
        %1473 = vmatprep.mubr.f32.mxu0 0.0
        %1474 = vmatmul.mubr.f32.gmra.mrb[0].mxu0 %v1407
        %v1475 = vpop.f32.mrb[0].mxu0
        %v1476 = vadd.f32 0.0, %v1475
        %v1477 = vpop.f32.mrb[0].mxu0
        %1478 = vdwg.mxu0
        %1479 = vmatprep.subr.mxu0 0.0
        %1480 = vmatpush1.msra.mxu0 %v1398
        %1481 = vmatprep.subr.mxu0 0.0
        %1482 = vmatpush1.msra.mxu0 %v1399
        %1483 = vmatprep.subr.mxu0 0.0
        %1484 = vmatpush1.msra.mxu0 %v1400
        %1485 = vmatprep.subr.mxu0 0.0
        %1486 = vmatpush1.msra.mxu0 %v1401
        %1487 = vmatprep.subr.mxu0 0.0
        %1488 = vmatpush1.msra.mxu0 0.0
        %1489 = vmatprep.subr.mxu0 0.0
        %1490 = vmatpush1.msra.mxu0 0.0
        %1491 = vmatprep.subr.mxu0 0.0
        %1492 = vmatpush1.msra.mxu0 0.0
        %1493 = vmatprep.subr.mxu0 0.0
        %1494 = vmatpush1.msra.mxu0 0.0
        %1495 = vmatprep.subr.mxu0 0.0
        %1496 = vmatpush1.msra.mxu0 0.0
        %1497 = vmatprep.subr.mxu0 0.0
        %1498 = vmatpush1.msra.mxu0 0.0
        %1499 = vmatprep.subr.mxu0 0.0
        %1500 = vmatpush1.msra.mxu0 0.0
        %1501 = vmatprep.subr.mxu0 0.0
        %1502 = vmatpush1.msra.mxu0 0.0
        %1503 = vmatprep.subr.mxu0 0.0
        %1504 = vmatpush1.msra.mxu0 0.0
        %1505 = vmatprep.subr.mxu0 0.0
        %1506 = vmatpush1.msra.mxu0 0.0
        %1507 = vmatprep.subr.mxu0 0.0
        %1508 = vmatpush1.msra.mxu0 0.0
        %1509 = vmatprep.subr.mxu0 0.0
        %1510 = vmatpush1.msra.mxu0 0.0
        %1511 = vmatprep.subr.mxu0 0.0
        %1512 = vmatpush1.msra.mxu0 0.0
        %1513 = vmatprep.subr.mxu0 0.0
        %1514 = vmatpush1.msra.mxu0 0.0
        %1515 = vmatprep.subr.mxu0 0.0
        %1516 = vmatpush1.msra.mxu0 0.0
        %1517 = vmatprep.subr.mxu0 0.0
        %1518 = vmatpush1.msra.mxu0 0.0
        %1519 = vmatprep.subr.mxu0 0.0
        %1520 = vmatpush1.msra.mxu0 0.0
        %1521 = vmatprep.subr.mxu0 0.0
        %1522 = vmatpush1.msra.mxu0 0.0
        %1523 = vmatprep.subr.mxu0 0.0
        %1524 = vmatpush1.msra.mxu0 0.0
        %1525 = vmatprep.subr.mxu0 0.0
        %1526 = vmatpush1.msra.mxu0 0.0
        %1527 = vmatprep.subr.mxu0 0.0
        %1528 = vmatpush1.msra.mxu0 0.0
        %1529 = vmatprep.subr.mxu0 0.0
        %1530 = vmatpush1.msra.mxu0 0.0
        %1531 = vmatprep.subr.mxu0 0.0
        %1532 = vmatpush1.msra.mxu0 0.0
        %1533 = vmatprep.subr.mxu0 0.0
        %1534 = vmatpush1.msra.mxu0 0.0
        %1535 = vmatprep.subr.mxu0 0.0
        %1536 = vmatpush1.msra.mxu0 0.0
        %1537 = vmatprep.subr.mxu0 0.0
        %1538 = vmatpush1.msra.mxu0 0.0
        %1539 = vmatprep.subr.mxu0 0.0
        %1540 = vmatpush1.msra.mxu0 0.0
        %1541 = vmatprep.subr.mxu0 0.0
        %1542 = vmatpush1.msra.mxu0 0.0
        %1543 = vmatprep.mubr.f32.mxu0 0.0
        %1544 = vmatmul.mubr.f32.gmra.mrb[0].mxu0 %v647
        %v1545 = vpop.f32.mrb[0].mxu0
        %v1546 = vadd.f32 %v1476, %v1545
        %v1547 = vpop.f32.mrb[0].mxu0
        %1548 = vdwg.mxu0
        %v1549 = vld [vmem:[%s7] sm:$0x1]
        %v1551 = vlaneseq
        %v1552 = vshrl.u32 %v1551, 7
        %v1553 = vsub.s32 0, %v1552
        %v1554 = vrot.slane %v1549, %v1553
        %v1556 = vadd.f32 %v1546, %v1554
        %v1557 = vadd.f32 %v1556, %v486
        %v1558 = vsel %vm491, %v1557, 0.0
        %1559 = vadd.xlane.f32.xlu0 %v1558
        %v1560 = vpop.xlane.xlu0 %1559
        %v1561 = vrcp.pop 32.0
        %v1562 = vmul.f32 %v1560, %v1561
        %v1563 = vsub.f32 %v1557, %v1562
        %v1564 = vmul.f32 %v1563, %v1563
        %v1565 = vsel %vm491, %v1564, 0.0
        %1566 = vadd.xlane.f32.xlu0 %v1565
        %v1567 = vpop.xlane.xlu0 %1566
        %v1568 = vmul.f32 %v1567, %v1561
        %v1569 = vadd.f32 %v1568, 1e-05
        %v1570 = vrsqrt.pop %v1569
        %v1571 = vmul.f32 %v1563, %v1570
        %v1572 = vld [vmem:[%s8] sm:$0x1]
        %v1574 = vlaneseq
        %v1575 = vshrl.u32 %v1574, 7
        %v1576 = vsub.s32 0, %v1575
        %v1577 = vrot.slane %v1572, %v1576
        %v1579 = vmul.f32 %v1571, %v1577
        %v1580 = vld [vmem:[%s9] sm:$0x1]
        %v1582 = vlaneseq
        %v1583 = vshrl.u32 %v1582, 7
        %v1584 = vsub.s32 0, %v1583
        %v1585 = vrot.slane %v1580, %v1584
        %v1587 = vadd.f32 %v1579, %v1585
        %1588 = vst.msk [vmem:[%s476] sm:$0xff] %vm491, %v1587
        %s1589 = sand.u32 %s268, 1
        %s1590 = scalar_lea.sflag [#allocation4], %s1589
        %s1591 = sand.u32 %s268, 1
        %s1592 = smul.addr %s1591, 8
        %s1593 = scalar_lea.vmem [#allocation8], %s1592
        %s1594 = sand.u32 %s294, 1
        %s1595 = scalar_lea.sflag [#allocation10], %s1594
        %s1596 = sand.u32 %s294, 1
        %s1597 = smul.addr %s1596, 32
        %s1598 = scalar_lea.vmem [#allocation9], %s1597
        // Predicated region
        $region73: #{tpu_custom_call.1} parent=59 // pred_check
          %p1599 = pneg %p278
        $region74: #{tpu_custom_call.1} parent=59 // pred_check_branch
          %1601 = sbr.rel (%p1599) target = $region76
        $region75: #{tpu_custom_call.1} parent=59 // pred_region
          %s1603 = ssub.s32 128, 128
          %1604 = vsyncadd %s1590, %s1603
          %s1605 = smul.addr %s35, 128
          %s1606 = scalar_lea.hbm %s10, %s1605
          %s1608 = sshll.u32 %s1593, 4
          %s1609 = int_to_ptr.vmem [resolvable:$true] %s1608
          %1611 = dma.vmem_to_hbm [thread:$0]  %s1609, 128, %s1606, %s1590
        $region76: #{tpu_custom_call.1} parent=59 // pred_fallthru
          _
        // Predicated region
        $region77: #{tpu_custom_call.1} parent=59 // pred_check
          %p1612 = pneg %p304
        $region78: #{tpu_custom_call.1} parent=59 // pred_check_branch
          %1614 = sbr.rel (%p1612) target = $region80
        $region79: #{tpu_custom_call.1} parent=59 // pred_region
          %s1616 = ssub.s32 512, 512
          %1617 = vsyncadd %s1595, %s1616
          %s1618 = smul.addr %s35, 128
          %s1619 = scalar_lea.hbm %s11, %s1618
          %s1620 = sshll.u32 %s1598, 4
          %s1621 = int_to_ptr.vmem [resolvable:$true] %s1620
          %1626 = dma.vmem_to_hbm [thread:$0]  %s1621, 512, %s1619, %s1595, 128, 256, 8
        $region80: #{tpu_custom_call.1} parent=59 // pred_fallthru
          _
      $region60: #{tpu_custom_call.1} parent=5 // pred_fallthru
        _
      %p1627 = scmp.le.s32.totalorder 2, %s30
      // Predicated region
      $region81: #{tpu_custom_call.1} parent=5 // pred_check
        %p1628 = pneg %p1627
      $region82: #{tpu_custom_call.1} parent=5 // pred_check_branch
        %1630 = sbr.rel (%p1628) target = $region84
      $region83: #{tpu_custom_call.1} parent=5 // pred_region
        %s1631 = ssub.s32 %s30, 2
        // Predicated region
        $region85: #{tpu_custom_call.1} parent=83 // pred_check
          %p1632 = pneg %p284
        $region86: #{tpu_custom_call.1} parent=83 // pred_check_branch
          %1634 = sbr.rel (%p1632) target = $region88
        $region87: #{tpu_custom_call.1} parent=83 // pred_region
          %s1635 = sand.u32 %s269, 1
          %s1636 = scalar_lea.sflag [#allocation4], %s1635
          %s1637 = sand.u32 %s269, 1
          %s1638 = smul.addr %s1637, 8
          %s1639 = scalar_lea.vmem [#allocation8], %s1638
          %1640 = dma.done %s1636, 128
        $region88: #{tpu_custom_call.1} parent=83 // pred_fallthru
          _
        // Predicated region
        $region89: #{tpu_custom_call.1} parent=83 // pred_check
          %p1641 = pneg %p310
        $region90: #{tpu_custom_call.1} parent=83 // pred_check_branch
          %1643 = sbr.rel (%p1641) target = $region92
        $region91: #{tpu_custom_call.1} parent=83 // pred_region
          %s1644 = sand.u32 %s295, 1
          %s1645 = scalar_lea.sflag [#allocation10], %s1644
          %s1646 = sand.u32 %s295, 1
          %s1647 = smul.addr %s1646, 32
          %s1648 = scalar_lea.vmem [#allocation9], %s1647
          %1649 = dma.done %s1645, 512
        $region92: #{tpu_custom_call.1} parent=83 // pred_fallthru
          _
      $region84: #{tpu_custom_call.1} parent=5 // pred_fallthru
        _
    $region6: #{tpu_custom_call.1} parent=1 // loop_footer
      %s34 = sadd.s32 1, %s30
    $region7: #{tpu_custom_call.1} parent=1 // loop_footer_branch
      %29 = sbr.rel target = $region3
    $region8: #{tpu_custom_call.1} parent=1 // loop_exit
      _
    %1650 = vsyncpa [#allocation3], 1
    %s1651 = scalar_lea.sflag [#allocation3], 1
    %1652 = vsyncpa %s1651, 1
    %1653 = vsyncpa [#allocation6], 1
    %s1654 = scalar_lea.sflag [#allocation6], 1
    %1655 = vsyncpa %s1654, 1
    %1656 = vsyncpa [#allocation4], 1
    %s1657 = scalar_lea.sflag [#allocation4], 1
    %1658 = vsyncpa %s1657, 1
    %1659 = vsyncpa [#allocation10], 1
    %s1660 = scalar_lea.sflag [#allocation10], 1
    %1661 = vsyncpa %s1660, 1

</llo_original>
